<compile_context>
chip_gen: v6e
topology: v6e:2x2x1
jax: 0.10.0
libtpu: 0.0.40
codegen_flags: <defaults>
</compile_context>

<pallas_src>
import functools

import jax
import jax.numpy as jnp
from jax import lax
from jax.experimental import pallas as pl
from jax.experimental.pallas import tpu as pltpu
import numpy as np


def basic_block_kernel(x_ref, w1_ref, b1_ref, w2_ref, b2_ref, o_ref, mid_ref,
                       *, row_block):
    # x_ref  : (1, H+2, W+2, Cp)  spatially pre-padded input block (compute dtype)
    # w1_ref : (9, Cp, Cp)        conv1 weights, BN1 scale folded in, tap-major
    # b1_ref : (1, Cp)            folded BN1 shift (f32)
    # w2_ref : (9, Cp, Cp)        conv2 weights, BN2 scale folded in
    # b2_ref : (1, Cp)            folded BN2 shift (f32)
    # o_ref  : (1, H, W, Cp)      output block
    # mid_ref: (H+2, W+2, Cp)     VMEM scratch: padded conv1 output (compute dtype)
    H = o_ref.shape[1]
    W = o_ref.shape[2]
    Cp = o_ref.shape[3]
    tr = row_block
    n_blocks = H // tr
    cdt = mid_ref.dtype

    # Zero only the 1-px border of the conv1-output scratch; the interior is
    # fully overwritten below.  Done every grid step so it stays correct when
    # the batch axis is sharded across TensorCores.
    mid_ref[0:1, :, :] = jnp.zeros((1, W + 2, Cp), cdt)
    mid_ref[H + 1:H + 2, :, :] = jnp.zeros((1, W + 2, Cp), cdt)
    mid_ref[:, 0:1, :] = jnp.zeros((H + 2, 1, Cp), cdt)
    mid_ref[:, W + 1:W + 2, :] = jnp.zeros((H + 2, 1, Cp), cdt)

    # Bias vectors hoisted out of the row loops (scale already folded into w).
    b1 = b1_ref[...]          # (1, Cp) f32
    b2 = b2_ref[...]

    def conv_rows(read_tap, w_ref):
        # 3x3 conv for one row block as 9 accumulating MXU dots: no im2col
        # patch materialization, LHS fed straight from the padded source.
        acc = None
        for t in range(9):
            dh, dw = divmod(t, 3)
            lhs = read_tap(dh, dw).reshape(tr * W, Cp)           # compute dtype
            d = jnp.dot(lhs, w_ref[t], preferred_element_type=jnp.float32)
            acc = d if acc is None else acc + d
        return acc                                               # (tr*W, Cp) f32

    # ---- conv1 (+ folded BN1) + ReLU -> mid scratch -------------------------
    def conv1_body(r, carry):
        r0 = pl.multiple_of(r * tr, tr)
        acc = conv_rows(
            lambda dh, dw: x_ref[:, pl.ds(r0 + dh, tr), pl.ds(dw, W), :],
            w1_ref)
        out1 = jnp.maximum(acc + b1, 0.0)
        mid_ref[pl.ds(1 + r0, tr), pl.ds(1, W), :] = (
            out1.reshape(tr, W, Cp).astype(cdt))
        return carry

    # ---- conv2 (+ folded BN2) + identity residual + ReLU -> output ----------
    def conv2_body(r, carry):
        r0 = pl.multiple_of(r * tr, tr)
        acc = conv_rows(
            lambda dh, dw: mid_ref[pl.ds(r0 + dh, tr), pl.ds(dw, W), :],
            w2_ref)
        res = x_ref[:, pl.ds(1 + r0, tr), pl.ds(1, W), :]        # identity path
        res = res.reshape(tr * W, Cp).astype(jnp.float32)
        out = jnp.maximum(acc + b2 + res, 0.0)
        o_ref[:, pl.ds(r0, tr), :, :] = (
            out.reshape(1, tr, W, Cp).astype(o_ref.dtype))
        return carry

    # Fully unroll only short loops (real ResNet H can make n_blocks large).
    unroll = n_blocks <= 8
    lax.fori_loop(0, n_blocks, conv1_body, 0, unroll=unroll)
    lax.fori_loop(0, n_blocks, conv2_body, 0, unroll=unroll)


def basic_block(x_nhwc, w1, s1, b1, w2, s2, b2, *,
                compute_dtype=jnp.float32, row_block=8, lane=128,
                vmem_limit_bytes=None):
    """x_nhwc: (N,H,W,C); w1/w2: (3,3,C,C) HWIO; s*,b*: (C,) folded BN."""
    N, H, W, C = x_nhwc.shape
    assert w1.shape == (3, 3, C, C) and w2.shape == (3, 3, C, C), (
        "identity shortcut requires inplanes == planes and stride == 1")

    # Pad channels to the 128-lane width: lane-dense compute, unmasked stores.
    # TODO(synk): for C<128 layers an unpadded Cout (masked output stores)
    #             would halve the wasted MXU work; kept padded for simplicity.
    Cp = ((C + lane - 1) // lane) * lane
    pad_c = Cp - C

    # Row-block size that divides H.  M = tr*W per MXU dot; bump row_block
    # (e.g. 16) on v6e/v7x where the MXU is 256-wide/tall and W is small.
    tr = min(row_block, H)
    while H % tr:
        tr -= 1

    # Spatial pre-pad (+1 px) and channel pad in HBM, single cast to the MXU
    # compute dtype (removes the in-kernel pad copy and the per-tap casts).
    xp = jnp.pad(x_nhwc, ((0, 0), (1, 1), (1, 1), (0, pad_c))).astype(
        compute_dtype)

    def prep_w(w, s):
        # Fold the BN scale into the conv output channels; pad; lay out
        # tap-major: (3,3,Cp,Cp) -> (9,Cp,Cp), tap index t = dh*3 + dw.
        wf = (w * s[None, None, None, :]).astype(jnp.float32)
        wp = jnp.pad(wf, ((0, 0), (0, 0), (0, pad_c), (0, pad_c)))
        return wp.reshape(9, Cp, Cp).astype(compute_dtype)

    def prep_b(v):
        return jnp.pad(v, ((0, pad_c),)).reshape(1, Cp).astype(jnp.float32)

    w1p, w2p = prep_w(w1, s1), prep_w(w2, s2)
    b1p, b2p = prep_b(b1), prep_b(b2)

    kernel = functools.partial(basic_block_kernel, row_block=tr)

    # Scoped-VMEM budget: only raise it when the per-step working set exceeds
    # the smallest default (16 MiB on v5e); cap well below v5e/v6e physical.
    # On v7x (64 MiB physical) prefer bf16 compute_dtype over raising this.
    cb = jnp.dtype(compute_dtype).itemsize
    xb = jnp.dtype(x_nhwc.dtype).itemsize
    est = (2 * (H + 2) * (W + 2) * Cp * cb      # double-buffered input block
           + 2 * H * W * Cp * xb                # double-buffered output block
           + (H + 2) * (W + 2) * Cp * cb        # mid scratch
           + 2 * 2 * 9 * Cp * Cp * cb           # weights (x2 if double-buffered)
           + 4 * Cp * 4)                        # biases
    if vmem_limit_bytes is None and est > 16 * 2**20:
        vmem_limit_bytes = int(min(1.25 * est + (4 << 20), 96 * 2**20))

    grid_spec = pltpu.PrefetchScalarGridSpec(
        num_scalar_prefetch=0,
        grid=(N,),
        in_specs=[
            pl.BlockSpec((1, H + 2, W + 2, Cp), lambda n: (n, 0, 0, 0)),
            # Weight/bias index maps are constant across the grid; on v7x add
            # pipeline_mode=pl.Buffered(1) here to avoid double-buffering them.
            pl.BlockSpec((9, Cp, Cp), lambda n: (0, 0, 0)),
            pl.BlockSpec((1, Cp), lambda n: (0, 0)),
            pl.BlockSpec((9, Cp, Cp), lambda n: (0, 0, 0)),
            pl.BlockSpec((1, Cp), lambda n: (0, 0)),
        ],
        out_specs=pl.BlockSpec((1, H, W, Cp), lambda n: (n, 0, 0, 0)),
        scratch_shapes=[
            pltpu.VMEM((H + 2, W + 2, Cp), compute_dtype),   # padded conv1 out
        ],
    )

    out_p = pl.pallas_call(
        kernel,
        out_shape=jax.ShapeDtypeStruct((N, H, W, Cp), x_nhwc.dtype),
        grid_spec=grid_spec,
        compiler_params=pltpu.CompilerParams(
            dimension_semantics=("parallel",),
            vmem_limit_bytes=vmem_limit_bytes),
    )(xp, w1p, b1p, w2p, b2p)

    return out_p[..., :C] if pad_c else out_p


def ref_basic_block(x, w1, s1, b1, w2, s2, b2):
    """Pure-JAX reference (NHWC), eval-mode BN folded into scale/shift."""
    dn = ("NHWC", "HWIO", "NHWC")
    o = lax.conv_general_dilated(x, w1, (1, 1), "SAME", dimension_numbers=dn)
    o = jnp.maximum(o * s1 + b1, 0.0)
    o = lax.conv_general_dilated(o, w2, (1, 1), "SAME", dimension_numbers=dn)
    o = o * s2 + b2
    return jnp.maximum(o + x, 0.0)


def fold_bn(gamma, beta, mean, var, eps=1e-5):
    scale = gamma / jnp.sqrt(var + eps)
    shift = beta - mean * scale
    return scale, shift


if __name__ == "__main__":
    # BasicBlock(inplanes=4, planes=4, stride=1, downsample=None)
    N, H, W, C = 2, 16, 16, 4

    key = jax.random.PRNGKey(0)
    keys = jax.random.split(key, 11)
    x = jax.random.normal(keys[0], (N, H, W, C), jnp.float32)

    # conv weights (HWIO); deterministic synthetic init.
    w1 = jax.random.normal(keys[1], (3, 3, C, C), jnp.float32) * 0.2
    w2 = jax.random.normal(keys[2], (3, 3, C, C), jnp.float32) * 0.2

    # BN1 params / running stats
    g1 = 1.0 + 0.1 * jax.random.normal(keys[3], (C,), jnp.float32)
    be1 = 0.1 * jax.random.normal(keys[4], (C,), jnp.float32)
    m1 = 0.1 * jax.random.normal(keys[5], (C,), jnp.float32)
    v1 = jax.random.uniform(keys[6], (C,), jnp.float32, 0.5, 1.5)
    # BN2 (custom BatchNorm2d without .scale() call == standard BN)
    g2 = 1.0 + 0.1 * jax.random.normal(keys[7], (C,), jnp.float32)
    be2 = 0.1 * jax.random.normal(keys[8], (C,), jnp.float32)
    m2 = 0.1 * jax.random.normal(keys[9], (C,), jnp.float32)
    v2 = jax.random.uniform(keys[10], (C,), jnp.float32, 0.5, 1.5)

    s1, b1 = fold_bn(g1, be1, m1, v1)
    s2, b2 = fold_bn(g2, be2, m2, v2)

    ref = ref_basic_block(x, w1, s1, b1, w2, s2, b2)

    # f32 MXU path: must match the f32 reference tightly.
    out_f32 = jax.block_until_ready(
        basic_block(x, w1, s1, b1, w2, s2, b2, compute_dtype=jnp.float32))
    np.testing.assert_allclose(np.asarray(out_f32), np.asarray(ref),
                               rtol=1e-4, atol=1e-4)

    # bf16 MXU path (f32 accumulation): looser numerics, sanity-checked.
    out_bf16 = jax.block_until_ready(
        basic_block(x, w1, s1, b1, w2, s2, b2, compute_dtype=jnp.bfloat16))
    np.testing.assert_allclose(np.asarray(out_bf16), np.asarray(ref),
                               rtol=1e-1, atol=1e-1)

    print("KERNEL_OK")
</pallas_src>

<mosaic_0001>
module attributes {stable_mosaic.version = 11 : i64} {
  func.func @basic_block_kernel(%arg0: i32, %arg1: memref<1x18x18x128xf32, #tpu.memory_space<vmem>>, %arg2: memref<9x128x128xf32, #tpu.memory_space<vmem>>, %arg3: memref<1x128xf32, #tpu.memory_space<vmem>>, %arg4: memref<9x128x128xf32, #tpu.memory_space<vmem>>, %arg5: memref<1x128xf32, #tpu.memory_space<vmem>>, %arg6: memref<1x16x16x128xf32, #tpu.memory_space<vmem>>, %arg7: memref<18x18x128xf32, #tpu.memory_space<vmem>>) attributes {dimension_semantics = [#tpu.dimension_semantics<parallel>], iteration_bounds = array<i64: 2>, scalar_prefetch = 0 : i64, scratch_operands = 1 : i64, tpu.core_type = #tpu.core_type<tc>, window_params = [{transform_indices = @transform_0, window_bounds = array<i64: 1, 18, 18, 128>}, {pipeline_mode = #tpu.pipeline_mode<synchronous>, transform_indices = @transform_1, window_bounds = array<i64: 9, 128, 128>}, {pipeline_mode = #tpu.pipeline_mode<synchronous>, transform_indices = @transform_2, window_bounds = array<i64: 1, 128>}, {pipeline_mode = #tpu.pipeline_mode<synchronous>, transform_indices = @transform_3, window_bounds = array<i64: 9, 128, 128>}, {pipeline_mode = #tpu.pipeline_mode<synchronous>, transform_indices = @transform_4, window_bounds = array<i64: 1, 128>}, {transform_indices = @transform_5, window_bounds = array<i64: 1, 16, 16, 128>}]} {
    %cst = arith.constant 0.000000e+00 : f32
    %0 = vector.broadcast %cst : f32 to vector<1x18x128xf32>
    %c0 = arith.constant 0 : index
    %c0_0 = arith.constant 0 : index
    %c0_1 = arith.constant 0 : index
    %1 = vector.load %arg7[%c0, %c0_0, %c0_1] : memref<18x18x128xf32, #tpu.memory_space<vmem>>, vector<1x18x128xf32>
    tpu.vector_store %arg7[%c0, %c0_0, %c0_1], %0 {strides = array<i32>} : memref<18x18x128xf32, #tpu.memory_space<vmem>>, vector<1x18x128xf32>,
    %cst_2 = arith.constant 0.000000e+00 : f32
    %2 = vector.broadcast %cst_2 : f32 to vector<1x18x128xf32>
    %c17 = arith.constant 17 : index
    %c0_3 = arith.constant 0 : index
    %c0_4 = arith.constant 0 : index
    %3 = vector.load %arg7[%c17, %c0_3, %c0_4] : memref<18x18x128xf32, #tpu.memory_space<vmem>>, vector<1x18x128xf32>
    tpu.vector_store %arg7[%c17, %c0_3, %c0_4], %2 {strides = array<i32>} : memref<18x18x128xf32, #tpu.memory_space<vmem>>, vector<1x18x128xf32>,
    %cst_5 = arith.constant 0.000000e+00 : f32
    %4 = vector.broadcast %cst_5 : f32 to vector<18x1x128xf32>
    %c0_6 = arith.constant 0 : index
    %c0_7 = arith.constant 0 : index
    %c0_8 = arith.constant 0 : index
    %5 = vector.load %arg7[%c0_6, %c0_7, %c0_8] : memref<18x18x128xf32, #tpu.memory_space<vmem>>, vector<18x1x128xf32>
    tpu.vector_store %arg7[%c0_6, %c0_7, %c0_8], %4 {strides = array<i32>} : memref<18x18x128xf32, #tpu.memory_space<vmem>>, vector<18x1x128xf32>,
    %cst_9 = arith.constant 0.000000e+00 : f32
    %6 = vector.broadcast %cst_9 : f32 to vector<18x1x128xf32>
    %c0_10 = arith.constant 0 : index
    %c17_11 = arith.constant 17 : index
    %c0_12 = arith.constant 0 : index
    %7 = vector.load %arg7[%c0_10, %c17_11, %c0_12] : memref<18x18x128xf32, #tpu.memory_space<vmem>>, vector<18x1x128xf32>
    tpu.vector_store %arg7[%c0_10, %c17_11, %c0_12], %6 {strides = array<i32>} : memref<18x18x128xf32, #tpu.memory_space<vmem>>, vector<18x1x128xf32>,
    %c0_13 = arith.constant 0 : index
    %c0_14 = arith.constant 0 : index
    %8 = vector.load %arg3[%c0_13, %c0_14] : memref<1x128xf32, #tpu.memory_space<vmem>>, vector<1x128xf32>
    %c0_15 = arith.constant 0 : index
    %c0_16 = arith.constant 0 : index
    %9 = vector.load %arg5[%c0_15, %c0_16] : memref<1x128xf32, #tpu.memory_space<vmem>>, vector<1x128xf32>
    %c0_i32 = arith.constant 0 : i32
    %c8_i32 = arith.constant 8 : i32
    %10 = arith.muli %c0_i32, %c8_i32 : i32
    %11 = tpu.assume_multiple %10, 8 : i32
    %c0_i32_17 = arith.constant 0 : i32
    %12 = arith.addi %11, %c0_i32_17 : i32
    %c0_18 = arith.constant 0 : index
    %13 = arith.index_cast %12 : i32 to index
    %c0_19 = arith.constant 0 : index
    %c0_20 = arith.constant 0 : index
    %14 = vector.load %arg1[%c0_18, %13, %c0_19, %c0_20] : memref<1x18x18x128xf32, #tpu.memory_space<vmem>>, vector<1x8x16x128xf32>
    %15 = vector.shape_cast %14 : vector<1x8x16x128xf32> to vector<128x128xf32>
    %c0_21 = arith.constant 0 : index
    %c0_22 = arith.constant 0 : index
    %c0_23 = arith.constant 0 : index
    %16 = vector.load %arg2[%c0_21, %c0_22, %c0_23] : memref<9x128x128xf32, #tpu.memory_space<vmem>>, vector<1x128x128xf32>
    %17 = vector.shape_cast %16 : vector<1x128x128xf32> to vector<128x128xf32>
    %cst_24 = arith.constant dense<0.000000e+00> : vector<128x128xf32>
    %18 = tpu.matmul %15, %17, %cst_24 {dimension_numbers = #tpu.dot_dimension_numbers<[1], [0], [0], [1], [0, 0, 1, 1], [], []>} : vector<128x128xf32>, vector<128x128xf32>, vector<128x128xf32> -> vector<128x128xf32>
    %c0_i32_25 = arith.constant 0 : i32
    %19 = arith.addi %11, %c0_i32_25 : i32
    %c0_26 = arith.constant 0 : index
    %20 = arith.index_cast %19 : i32 to index
    %c1 = arith.constant 1 : index
    %c0_27 = arith.constant 0 : index
    %21 = vector.load %arg1[%c0_26, %20, %c1, %c0_27] : memref<1x18x18x128xf32, #tpu.memory_space<vmem>>, vector<1x8x16x128xf32>
    %22 = vector.shape_cast %21 : vector<1x8x16x128xf32> to vector<128x128xf32>
    %c1_28 = arith.constant 1 : index
    %c0_29 = arith.constant 0 : index
    %c0_30 = arith.constant 0 : index
    %23 = vector.load %arg2[%c1_28, %c0_29, %c0_30] : memref<9x128x128xf32, #tpu.memory_space<vmem>>, vector<1x128x128xf32>
    %24 = vector.shape_cast %23 : vector<1x128x128xf32> to vector<128x128xf32>
    %cst_31 = arith.constant dense<0.000000e+00> : vector<128x128xf32>
    %25 = tpu.matmul %22, %24, %cst_31 {dimension_numbers = #tpu.dot_dimension_numbers<[1], [0], [0], [1], [0, 0, 1, 1], [], []>} : vector<128x128xf32>, vector<128x128xf32>, vector<128x128xf32> -> vector<128x128xf32>
    %26 = arith.addf %18, %25 : vector<128x128xf32>
    %c0_i32_32 = arith.constant 0 : i32
    %27 = arith.addi %11, %c0_i32_32 : i32
    %c0_33 = arith.constant 0 : index
    %28 = arith.index_cast %27 : i32 to index
    %c2 = arith.constant 2 : index
    %c0_34 = arith.constant 0 : index
    %29 = vector.load %arg1[%c0_33, %28, %c2, %c0_34] : memref<1x18x18x128xf32, #tpu.memory_space<vmem>>, vector<1x8x16x128xf32>
    %30 = vector.shape_cast %29 : vector<1x8x16x128xf32> to vector<128x128xf32>
    %c2_35 = arith.constant 2 : index
    %c0_36 = arith.constant 0 : index
    %c0_37 = arith.constant 0 : index
    %31 = vector.load %arg2[%c2_35, %c0_36, %c0_37] : memref<9x128x128xf32, #tpu.memory_space<vmem>>, vector<1x128x128xf32>
    %32 = vector.shape_cast %31 : vector<1x128x128xf32> to vector<128x128xf32>
    %cst_38 = arith.constant dense<0.000000e+00> : vector<128x128xf32>
    %33 = tpu.matmul %30, %32, %cst_38 {dimension_numbers = #tpu.dot_dimension_numbers<[1], [0], [0], [1], [0, 0, 1, 1], [], []>} : vector<128x128xf32>, vector<128x128xf32>, vector<128x128xf32> -> vector<128x128xf32>
    %34 = arith.addf %26, %33 : vector<128x128xf32>
    %c1_i32 = arith.constant 1 : i32
    %35 = arith.addi %11, %c1_i32 : i32
    %c0_39 = arith.constant 0 : index
    %36 = arith.index_cast %35 : i32 to index
    %c0_40 = arith.constant 0 : index
    %c0_41 = arith.constant 0 : index
    %37 = vector.load %arg1[%c0_39, %36, %c0_40, %c0_41] : memref<1x18x18x128xf32, #tpu.memory_space<vmem>>, vector<1x8x16x128xf32>
    %38 = vector.shape_cast %37 : vector<1x8x16x128xf32> to vector<128x128xf32>
    %c3 = arith.constant 3 : index
    %c0_42 = arith.constant 0 : index
    %c0_43 = arith.constant 0 : index
    %39 = vector.load %arg2[%c3, %c0_42, %c0_43] : memref<9x128x128xf32, #tpu.memory_space<vmem>>, vector<1x128x128xf32>
    %40 = vector.shape_cast %39 : vector<1x128x128xf32> to vector<128x128xf32>
    %cst_44 = arith.constant dense<0.000000e+00> : vector<128x128xf32>
    %41 = tpu.matmul %38, %40, %cst_44 {dimension_numbers = #tpu.dot_dimension_numbers<[1], [0], [0], [1], [0, 0, 1, 1], [], []>} : vector<128x128xf32>, vector<128x128xf32>, vector<128x128xf32> -> vector<128x128xf32>
    %42 = arith.addf %34, %41 : vector<128x128xf32>
    %c1_i32_45 = arith.constant 1 : i32
    %43 = arith.addi %11, %c1_i32_45 : i32
    %c0_46 = arith.constant 0 : index
    %44 = arith.index_cast %43 : i32 to index
    %c1_47 = arith.constant 1 : index
    %c0_48 = arith.constant 0 : index
    %45 = vector.load %arg1[%c0_46, %44, %c1_47, %c0_48] : memref<1x18x18x128xf32, #tpu.memory_space<vmem>>, vector<1x8x16x128xf32>
    %46 = vector.shape_cast %45 : vector<1x8x16x128xf32> to vector<128x128xf32>
    %c4 = arith.constant 4 : index
    %c0_49 = arith.constant 0 : index
    %c0_50 = arith.constant 0 : index
    %47 = vector.load %arg2[%c4, %c0_49, %c0_50] : memref<9x128x128xf32, #tpu.memory_space<vmem>>, vector<1x128x128xf32>
    %48 = vector.shape_cast %47 : vector<1x128x128xf32> to vector<128x128xf32>
    %cst_51 = arith.constant dense<0.000000e+00> : vector<128x128xf32>
    %49 = tpu.matmul %46, %48, %cst_51 {dimension_numbers = #tpu.dot_dimension_numbers<[1], [0], [0], [1], [0, 0, 1, 1], [], []>} : vector<128x128xf32>, vector<128x128xf32>, vector<128x128xf32> -> vector<128x128xf32>
    %50 = arith.addf %42, %49 : vector<128x128xf32>
    %c1_i32_52 = arith.constant 1 : i32
    %51 = arith.addi %11, %c1_i32_52 : i32
    %c0_53 = arith.constant 0 : index
    %52 = arith.index_cast %51 : i32 to index
    %c2_54 = arith.constant 2 : index
    %c0_55 = arith.constant 0 : index
    %53 = vector.load %arg1[%c0_53, %52, %c2_54, %c0_55] : memref<1x18x18x128xf32, #tpu.memory_space<vmem>>, vector<1x8x16x128xf32>
    %54 = vector.shape_cast %53 : vector<1x8x16x128xf32> to vector<128x128xf32>
    %c5 = arith.constant 5 : index
    %c0_56 = arith.constant 0 : index
    %c0_57 = arith.constant 0 : index
    %55 = vector.load %arg2[%c5, %c0_56, %c0_57] : memref<9x128x128xf32, #tpu.memory_space<vmem>>, vector<1x128x128xf32>
    %56 = vector.shape_cast %55 : vector<1x128x128xf32> to vector<128x128xf32>
    %cst_58 = arith.constant dense<0.000000e+00> : vector<128x128xf32>
    %57 = tpu.matmul %54, %56, %cst_58 {dimension_numbers = #tpu.dot_dimension_numbers<[1], [0], [0], [1], [0, 0, 1, 1], [], []>} : vector<128x128xf32>, vector<128x128xf32>, vector<128x128xf32> -> vector<128x128xf32>
    %58 = arith.addf %50, %57 : vector<128x128xf32>
    %c2_i32 = arith.constant 2 : i32
    %59 = arith.addi %11, %c2_i32 : i32
    %c0_59 = arith.constant 0 : index
    %60 = arith.index_cast %59 : i32 to index
    %c0_60 = arith.constant 0 : index
    %c0_61 = arith.constant 0 : index
    %61 = vector.load %arg1[%c0_59, %60, %c0_60, %c0_61] : memref<1x18x18x128xf32, #tpu.memory_space<vmem>>, vector<1x8x16x128xf32>
    %62 = vector.shape_cast %61 : vector<1x8x16x128xf32> to vector<128x128xf32>
    %c6 = arith.constant 6 : index
    %c0_62 = arith.constant 0 : index
    %c0_63 = arith.constant 0 : index
    %63 = vector.load %arg2[%c6, %c0_62, %c0_63] : memref<9x128x128xf32, #tpu.memory_space<vmem>>, vector<1x128x128xf32>
    %64 = vector.shape_cast %63 : vector<1x128x128xf32> to vector<128x128xf32>
    %cst_64 = arith.constant dense<0.000000e+00> : vector<128x128xf32>
    %65 = tpu.matmul %62, %64, %cst_64 {dimension_numbers = #tpu.dot_dimension_numbers<[1], [0], [0], [1], [0, 0, 1, 1], [], []>} : vector<128x128xf32>, vector<128x128xf32>, vector<128x128xf32> -> vector<128x128xf32>
    %66 = arith.addf %58, %65 : vector<128x128xf32>
    %c2_i32_65 = arith.constant 2 : i32
    %67 = arith.addi %11, %c2_i32_65 : i32
    %c0_66 = arith.constant 0 : index
    %68 = arith.index_cast %67 : i32 to index
    %c1_67 = arith.constant 1 : index
    %c0_68 = arith.constant 0 : index
    %69 = vector.load %arg1[%c0_66, %68, %c1_67, %c0_68] : memref<1x18x18x128xf32, #tpu.memory_space<vmem>>, vector<1x8x16x128xf32>
    %70 = vector.shape_cast %69 : vector<1x8x16x128xf32> to vector<128x128xf32>
    %c7 = arith.constant 7 : index
    %c0_69 = arith.constant 0 : index
    %c0_70 = arith.constant 0 : index
    %71 = vector.load %arg2[%c7, %c0_69, %c0_70] : memref<9x128x128xf32, #tpu.memory_space<vmem>>, vector<1x128x128xf32>
    %72 = vector.shape_cast %71 : vector<1x128x128xf32> to vector<128x128xf32>
    %cst_71 = arith.constant dense<0.000000e+00> : vector<128x128xf32>
    %73 = tpu.matmul %70, %72, %cst_71 {dimension_numbers = #tpu.dot_dimension_numbers<[1], [0], [0], [1], [0, 0, 1, 1], [], []>} : vector<128x128xf32>, vector<128x128xf32>, vector<128x128xf32> -> vector<128x128xf32>
    %74 = arith.addf %66, %73 : vector<128x128xf32>
    %c2_i32_72 = arith.constant 2 : i32
    %75 = arith.addi %11, %c2_i32_72 : i32
    %c0_73 = arith.constant 0 : index
    %76 = arith.index_cast %75 : i32 to index
    %c2_74 = arith.constant 2 : index
    %c0_75 = arith.constant 0 : index
    %77 = vector.load %arg1[%c0_73, %76, %c2_74, %c0_75] : memref<1x18x18x128xf32, #tpu.memory_space<vmem>>, vector<1x8x16x128xf32>
    %78 = vector.shape_cast %77 : vector<1x8x16x128xf32> to vector<128x128xf32>
    %c8 = arith.constant 8 : index
    %c0_76 = arith.constant 0 : index
    %c0_77 = arith.constant 0 : index
    %79 = vector.load %arg2[%c8, %c0_76, %c0_77] : memref<9x128x128xf32, #tpu.memory_space<vmem>>, vector<1x128x128xf32>
    %80 = vector.shape_cast %79 : vector<1x128x128xf32> to vector<128x128xf32>
    %cst_78 = arith.constant dense<0.000000e+00> : vector<128x128xf32>
    %81 = tpu.matmul %78, %80, %cst_78 {dimension_numbers = #tpu.dot_dimension_numbers<[1], [0], [0], [1], [0, 0, 1, 1], [], []>} : vector<128x128xf32>, vector<128x128xf32>, vector<128x128xf32> -> vector<128x128xf32>
    %82 = arith.addf %74, %81 : vector<128x128xf32>
    %83 = vector.broadcast %8 : vector<1x128xf32> to vector<128x128xf32>
    %84 = arith.addf %82, %83 : vector<128x128xf32>
    %cst_79 = arith.constant 0.000000e+00 : f32
    %85 = vector.broadcast %cst_79 : f32 to vector<128x128xf32>
    %86 = arith.maximumf %84, %85 : vector<128x128xf32>
    %87 = vector.shape_cast %86 : vector<128x128xf32> to vector<8x16x128xf32>
    %c1_i32_80 = arith.constant 1 : i32
    %88 = arith.addi %c1_i32_80, %11 : i32
    %89 = arith.index_cast %88 : i32 to index
    %c1_81 = arith.constant 1 : index
    %c0_82 = arith.constant 0 : index
    %90 = vector.load %arg7[%89, %c1_81, %c0_82] : memref<18x18x128xf32, #tpu.memory_space<vmem>>, vector<8x16x128xf32>
    tpu.vector_store %arg7[%89, %c1_81, %c0_82], %87 {strides = array<i32>} : memref<18x18x128xf32, #tpu.memory_space<vmem>>, vector<8x16x128xf32>,
    %c1_i32_83 = arith.constant 1 : i32
    %c8_i32_84 = arith.constant 8 : i32
    %91 = arith.muli %c1_i32_83, %c8_i32_84 : i32
    %92 = tpu.assume_multiple %91, 8 : i32
    %c0_i32_85 = arith.constant 0 : i32
    %93 = arith.addi %92, %c0_i32_85 : i32
    %c0_86 = arith.constant 0 : index
    %94 = arith.index_cast %93 : i32 to index
    %c0_87 = arith.constant 0 : index
    %c0_88 = arith.constant 0 : index
    %95 = vector.load %arg1[%c0_86, %94, %c0_87, %c0_88] : memref<1x18x18x128xf32, #tpu.memory_space<vmem>>, vector<1x8x16x128xf32>
    %96 = vector.shape_cast %95 : vector<1x8x16x128xf32> to vector<128x128xf32>
    %c0_89 = arith.constant 0 : index
    %c0_90 = arith.constant 0 : index
    %c0_91 = arith.constant 0 : index
    %97 = vector.load %arg2[%c0_89, %c0_90, %c0_91] : memref<9x128x128xf32, #tpu.memory_space<vmem>>, vector<1x128x128xf32>
    %98 = vector.shape_cast %97 : vector<1x128x128xf32> to vector<128x128xf32>
    %cst_92 = arith.constant dense<0.000000e+00> : vector<128x128xf32>
    %99 = tpu.matmul %96, %98, %cst_92 {dimension_numbers = #tpu.dot_dimension_numbers<[1], [0], [0], [1], [0, 0, 1, 1], [], []>} : vector<128x128xf32>, vector<128x128xf32>, vector<128x128xf32> -> vector<128x128xf32>
    %c0_i32_93 = arith.constant 0 : i32
    %100 = arith.addi %92, %c0_i32_93 : i32
    %c0_94 = arith.constant 0 : index
    %101 = arith.index_cast %100 : i32 to index
    %c1_95 = arith.constant 1 : index
    %c0_96 = arith.constant 0 : index
    %102 = vector.load %arg1[%c0_94, %101, %c1_95, %c0_96] : memref<1x18x18x128xf32, #tpu.memory_space<vmem>>, vector<1x8x16x128xf32>
    %103 = vector.shape_cast %102 : vector<1x8x16x128xf32> to vector<128x128xf32>
    %c1_97 = arith.constant 1 : index
    %c0_98 = arith.constant 0 : index
    %c0_99 = arith.constant 0 : index
    %104 = vector.load %arg2[%c1_97, %c0_98, %c0_99] : memref<9x128x128xf32, #tpu.memory_space<vmem>>, vector<1x128x128xf32>
    %105 = vector.shape_cast %104 : vector<1x128x128xf32> to vector<128x128xf32>
    %cst_100 = arith.constant dense<0.000000e+00> : vector<128x128xf32>
    %106 = tpu.matmul %103, %105, %cst_100 {dimension_numbers = #tpu.dot_dimension_numbers<[1], [0], [0], [1], [0, 0, 1, 1], [], []>} : vector<128x128xf32>, vector<128x128xf32>, vector<128x128xf32> -> vector<128x128xf32>
    %107 = arith.addf %99, %106 : vector<128x128xf32>
    %c0_i32_101 = arith.constant 0 : i32
    %108 = arith.addi %92, %c0_i32_101 : i32
    %c0_102 = arith.constant 0 : index
    %109 = arith.index_cast %108 : i32 to index
    %c2_103 = arith.constant 2 : index
    %c0_104 = arith.constant 0 : index
    %110 = vector.load %arg1[%c0_102, %109, %c2_103, %c0_104] : memref<1x18x18x128xf32, #tpu.memory_space<vmem>>, vector<1x8x16x128xf32>
    %111 = vector.shape_cast %110 : vector<1x8x16x128xf32> to vector<128x128xf32>
    %c2_105 = arith.constant 2 : index
    %c0_106 = arith.constant 0 : index
    %c0_107 = arith.constant 0 : index
    %112 = vector.load %arg2[%c2_105, %c0_106, %c0_107] : memref<9x128x128xf32, #tpu.memory_space<vmem>>, vector<1x128x128xf32>
    %113 = vector.shape_cast %112 : vector<1x128x128xf32> to vector<128x128xf32>
    %cst_108 = arith.constant dense<0.000000e+00> : vector<128x128xf32>
    %114 = tpu.matmul %111, %113, %cst_108 {dimension_numbers = #tpu.dot_dimension_numbers<[1], [0], [0], [1], [0, 0, 1, 1], [], []>} : vector<128x128xf32>, vector<128x128xf32>, vector<128x128xf32> -> vector<128x128xf32>
    %115 = arith.addf %107, %114 : vector<128x128xf32>
    %c1_i32_109 = arith.constant 1 : i32
    %116 = arith.addi %92, %c1_i32_109 : i32
    %c0_110 = arith.constant 0 : index
    %117 = arith.index_cast %116 : i32 to index
    %c0_111 = arith.constant 0 : index
    %c0_112 = arith.constant 0 : index
    %118 = vector.load %arg1[%c0_110, %117, %c0_111, %c0_112] : memref<1x18x18x128xf32, #tpu.memory_space<vmem>>, vector<1x8x16x128xf32>
    %119 = vector.shape_cast %118 : vector<1x8x16x128xf32> to vector<128x128xf32>
    %c3_113 = arith.constant 3 : index
    %c0_114 = arith.constant 0 : index
    %c0_115 = arith.constant 0 : index
    %120 = vector.load %arg2[%c3_113, %c0_114, %c0_115] : memref<9x128x128xf32, #tpu.memory_space<vmem>>, vector<1x128x128xf32>
    %121 = vector.shape_cast %120 : vector<1x128x128xf32> to vector<128x128xf32>
    %cst_116 = arith.constant dense<0.000000e+00> : vector<128x128xf32>
    %122 = tpu.matmul %119, %121, %cst_116 {dimension_numbers = #tpu.dot_dimension_numbers<[1], [0], [0], [1], [0, 0, 1, 1], [], []>} : vector<128x128xf32>, vector<128x128xf32>, vector<128x128xf32> -> vector<128x128xf32>
    %123 = arith.addf %115, %122 : vector<128x128xf32>
    %c1_i32_117 = arith.constant 1 : i32
    %124 = arith.addi %92, %c1_i32_117 : i32
    %c0_118 = arith.constant 0 : index
    %125 = arith.index_cast %124 : i32 to index
    %c1_119 = arith.constant 1 : index
    %c0_120 = arith.constant 0 : index
    %126 = vector.load %arg1[%c0_118, %125, %c1_119, %c0_120] : memref<1x18x18x128xf32, #tpu.memory_space<vmem>>, vector<1x8x16x128xf32>
    %127 = vector.shape_cast %126 : vector<1x8x16x128xf32> to vector<128x128xf32>
    %c4_121 = arith.constant 4 : index
    %c0_122 = arith.constant 0 : index
    %c0_123 = arith.constant 0 : index
    %128 = vector.load %arg2[%c4_121, %c0_122, %c0_123] : memref<9x128x128xf32, #tpu.memory_space<vmem>>, vector<1x128x128xf32>
    %129 = vector.shape_cast %128 : vector<1x128x128xf32> to vector<128x128xf32>
    %cst_124 = arith.constant dense<0.000000e+00> : vector<128x128xf32>
    %130 = tpu.matmul %127, %129, %cst_124 {dimension_numbers = #tpu.dot_dimension_numbers<[1], [0], [0], [1], [0, 0, 1, 1], [], []>} : vector<128x128xf32>, vector<128x128xf32>, vector<128x128xf32> -> vector<128x128xf32>
    %131 = arith.addf %123, %130 : vector<128x128xf32>
    %c1_i32_125 = arith.constant 1 : i32
    %132 = arith.addi %92, %c1_i32_125 : i32
    %c0_126 = arith.constant 0 : index
    %133 = arith.index_cast %132 : i32 to index
    %c2_127 = arith.constant 2 : index
    %c0_128 = arith.constant 0 : index
    %134 = vector.load %arg1[%c0_126, %133, %c2_127, %c0_128] : memref<1x18x18x128xf32, #tpu.memory_space<vmem>>, vector<1x8x16x128xf32>
    %135 = vector.shape_cast %134 : vector<1x8x16x128xf32> to vector<128x128xf32>
    %c5_129 = arith.constant 5 : index
    %c0_130 = arith.constant 0 : index
    %c0_131 = arith.constant 0 : index
    %136 = vector.load %arg2[%c5_129, %c0_130, %c0_131] : memref<9x128x128xf32, #tpu.memory_space<vmem>>, vector<1x128x128xf32>
    %137 = vector.shape_cast %136 : vector<1x128x128xf32> to vector<128x128xf32>
    %cst_132 = arith.constant dense<0.000000e+00> : vector<128x128xf32>
    %138 = tpu.matmul %135, %137, %cst_132 {dimension_numbers = #tpu.dot_dimension_numbers<[1], [0], [0], [1], [0, 0, 1, 1], [], []>} : vector<128x128xf32>, vector<128x128xf32>, vector<128x128xf32> -> vector<128x128xf32>
    %139 = arith.addf %131, %138 : vector<128x128xf32>
    %c2_i32_133 = arith.constant 2 : i32
    %140 = arith.addi %92, %c2_i32_133 : i32
    %c0_134 = arith.constant 0 : index
    %141 = arith.index_cast %140 : i32 to index
    %c0_135 = arith.constant 0 : index
    %c0_136 = arith.constant 0 : index
    %142 = vector.load %arg1[%c0_134, %141, %c0_135, %c0_136] : memref<1x18x18x128xf32, #tpu.memory_space<vmem>>, vector<1x8x16x128xf32>
    %143 = vector.shape_cast %142 : vector<1x8x16x128xf32> to vector<128x128xf32>
    %c6_137 = arith.constant 6 : index
    %c0_138 = arith.constant 0 : index
    %c0_139 = arith.constant 0 : index
    %144 = vector.load %arg2[%c6_137, %c0_138, %c0_139] : memref<9x128x128xf32, #tpu.memory_space<vmem>>, vector<1x128x128xf32>
    %145 = vector.shape_cast %144 : vector<1x128x128xf32> to vector<128x128xf32>
    %cst_140 = arith.constant dense<0.000000e+00> : vector<128x128xf32>
    %146 = tpu.matmul %143, %145, %cst_140 {dimension_numbers = #tpu.dot_dimension_numbers<[1], [0], [0], [1], [0, 0, 1, 1], [], []>} : vector<128x128xf32>, vector<128x128xf32>, vector<128x128xf32> -> vector<128x128xf32>
    %147 = arith.addf %139, %146 : vector<128x128xf32>
    %c2_i32_141 = arith.constant 2 : i32
    %148 = arith.addi %92, %c2_i32_141 : i32
    %c0_142 = arith.constant 0 : index
    %149 = arith.index_cast %148 : i32 to index
    %c1_143 = arith.constant 1 : index
    %c0_144 = arith.constant 0 : index
    %150 = vector.load %arg1[%c0_142, %149, %c1_143, %c0_144] : memref<1x18x18x128xf32, #tpu.memory_space<vmem>>, vector<1x8x16x128xf32>
    %151 = vector.shape_cast %150 : vector<1x8x16x128xf32> to vector<128x128xf32>
    %c7_145 = arith.constant 7 : index
    %c0_146 = arith.constant 0 : index
    %c0_147 = arith.constant 0 : index
    %152 = vector.load %arg2[%c7_145, %c0_146, %c0_147] : memref<9x128x128xf32, #tpu.memory_space<vmem>>, vector<1x128x128xf32>
    %153 = vector.shape_cast %152 : vector<1x128x128xf32> to vector<128x128xf32>
    %cst_148 = arith.constant dense<0.000000e+00> : vector<128x128xf32>
    %154 = tpu.matmul %151, %153, %cst_148 {dimension_numbers = #tpu.dot_dimension_numbers<[1], [0], [0], [1], [0, 0, 1, 1], [], []>} : vector<128x128xf32>, vector<128x128xf32>, vector<128x128xf32> -> vector<128x128xf32>
    %155 = arith.addf %147, %154 : vector<128x128xf32>
    %c2_i32_149 = arith.constant 2 : i32
    %156 = arith.addi %92, %c2_i32_149 : i32
    %c0_150 = arith.constant 0 : index
    %157 = arith.index_cast %156 : i32 to index
    %c2_151 = arith.constant 2 : index
    %c0_152 = arith.constant 0 : index
    %158 = vector.load %arg1[%c0_150, %157, %c2_151, %c0_152] : memref<1x18x18x128xf32, #tpu.memory_space<vmem>>, vector<1x8x16x128xf32>
    %159 = vector.shape_cast %158 : vector<1x8x16x128xf32> to vector<128x128xf32>
    %c8_153 = arith.constant 8 : index
    %c0_154 = arith.constant 0 : index
    %c0_155 = arith.constant 0 : index
    %160 = vector.load %arg2[%c8_153, %c0_154, %c0_155] : memref<9x128x128xf32, #tpu.memory_space<vmem>>, vector<1x128x128xf32>
    %161 = vector.shape_cast %160 : vector<1x128x128xf32> to vector<128x128xf32>
    %cst_156 = arith.constant dense<0.000000e+00> : vector<128x128xf32>
    %162 = tpu.matmul %159, %161, %cst_156 {dimension_numbers = #tpu.dot_dimension_numbers<[1], [0], [0], [1], [0, 0, 1, 1], [], []>} : vector<128x128xf32>, vector<128x128xf32>, vector<128x128xf32> -> vector<128x128xf32>
    %163 = arith.addf %155, %162 : vector<128x128xf32>
    %164 = vector.broadcast %8 : vector<1x128xf32> to vector<128x128xf32>
    %165 = arith.addf %163, %164 : vector<128x128xf32>
    %cst_157 = arith.constant 0.000000e+00 : f32
    %166 = vector.broadcast %cst_157 : f32 to vector<128x128xf32>
    %167 = arith.maximumf %165, %166 : vector<128x128xf32>
    %168 = vector.shape_cast %167 : vector<128x128xf32> to vector<8x16x128xf32>
    %c1_i32_158 = arith.constant 1 : i32
    %169 = arith.addi %c1_i32_158, %92 : i32
    %170 = arith.index_cast %169 : i32 to index
    %c1_159 = arith.constant 1 : index
    %c0_160 = arith.constant 0 : index
    %171 = vector.load %arg7[%170, %c1_159, %c0_160] : memref<18x18x128xf32, #tpu.memory_space<vmem>>, vector<8x16x128xf32>
    tpu.vector_store %arg7[%170, %c1_159, %c0_160], %168 {strides = array<i32>} : memref<18x18x128xf32, #tpu.memory_space<vmem>>, vector<8x16x128xf32>,
    %c2_i32_161 = arith.constant 2 : i32
    %c0_i32_162 = arith.constant 0 : i32
    %c8_i32_163 = arith.constant 8 : i32
    %172 = arith.muli %c0_i32_162, %c8_i32_163 : i32
    %173 = tpu.assume_multiple %172, 8 : i32
    %c0_i32_164 = arith.constant 0 : i32
    %174 = arith.addi %173, %c0_i32_164 : i32
    %175 = arith.index_cast %174 : i32 to index
    %c0_165 = arith.constant 0 : index
    %c0_166 = arith.constant 0 : index
    %176 = vector.load %arg7[%175, %c0_165, %c0_166] : memref<18x18x128xf32, #tpu.memory_space<vmem>>, vector<8x16x128xf32>
    %177 = vector.shape_cast %176 : vector<8x16x128xf32> to vector<128x128xf32>
    %c0_167 = arith.constant 0 : index
    %c0_168 = arith.constant 0 : index
    %c0_169 = arith.constant 0 : index
    %178 = vector.load %arg4[%c0_167, %c0_168, %c0_169] : memref<9x128x128xf32, #tpu.memory_space<vmem>>, vector<1x128x128xf32>
    %179 = vector.shape_cast %178 : vector<1x128x128xf32> to vector<128x128xf32>
    %cst_170 = arith.constant dense<0.000000e+00> : vector<128x128xf32>
    %180 = tpu.matmul %177, %179, %cst_170 {dimension_numbers = #tpu.dot_dimension_numbers<[1], [0], [0], [1], [0, 0, 1, 1], [], []>} : vector<128x128xf32>, vector<128x128xf32>, vector<128x128xf32> -> vector<128x128xf32>
    %c0_i32_171 = arith.constant 0 : i32
    %181 = arith.addi %173, %c0_i32_171 : i32
    %182 = arith.index_cast %181 : i32 to index
    %c1_172 = arith.constant 1 : index
    %c0_173 = arith.constant 0 : index
    %183 = vector.load %arg7[%182, %c1_172, %c0_173] : memref<18x18x128xf32, #tpu.memory_space<vmem>>, vector<8x16x128xf32>
    %184 = vector.shape_cast %183 : vector<8x16x128xf32> to vector<128x128xf32>
    %c1_174 = arith.constant 1 : index
    %c0_175 = arith.constant 0 : index
    %c0_176 = arith.constant 0 : index
    %185 = vector.load %arg4[%c1_174, %c0_175, %c0_176] : memref<9x128x128xf32, #tpu.memory_space<vmem>>, vector<1x128x128xf32>
    %186 = vector.shape_cast %185 : vector<1x128x128xf32> to vector<128x128xf32>
    %cst_177 = arith.constant dense<0.000000e+00> : vector<128x128xf32>
    %187 = tpu.matmul %184, %186, %cst_177 {dimension_numbers = #tpu.dot_dimension_numbers<[1], [0], [0], [1], [0, 0, 1, 1], [], []>} : vector<128x128xf32>, vector<128x128xf32>, vector<128x128xf32> -> vector<128x128xf32>
    %188 = arith.addf %180, %187 : vector<128x128xf32>
    %c0_i32_178 = arith.constant 0 : i32
    %189 = arith.addi %173, %c0_i32_178 : i32
    %190 = arith.index_cast %189 : i32 to index
    %c2_179 = arith.constant 2 : index
    %c0_180 = arith.constant 0 : index
    %191 = vector.load %arg7[%190, %c2_179, %c0_180] : memref<18x18x128xf32, #tpu.memory_space<vmem>>, vector<8x16x128xf32>
    %192 = vector.shape_cast %191 : vector<8x16x128xf32> to vector<128x128xf32>
    %c2_181 = arith.constant 2 : index
    %c0_182 = arith.constant 0 : index
    %c0_183 = arith.constant 0 : index
    %193 = vector.load %arg4[%c2_181, %c0_182, %c0_183] : memref<9x128x128xf32, #tpu.memory_space<vmem>>, vector<1x128x128xf32>
    %194 = vector.shape_cast %193 : vector<1x128x128xf32> to vector<128x128xf32>
    %cst_184 = arith.constant dense<0.000000e+00> : vector<128x128xf32>
    %195 = tpu.matmul %192, %194, %cst_184 {dimension_numbers = #tpu.dot_dimension_numbers<[1], [0], [0], [1], [0, 0, 1, 1], [], []>} : vector<128x128xf32>, vector<128x128xf32>, vector<128x128xf32> -> vector<128x128xf32>
    %196 = arith.addf %188, %195 : vector<128x128xf32>
    %c1_i32_185 = arith.constant 1 : i32
    %197 = arith.addi %173, %c1_i32_185 : i32
    %198 = arith.index_cast %197 : i32 to index
    %c0_186 = arith.constant 0 : index
    %c0_187 = arith.constant 0 : index
    %199 = vector.load %arg7[%198, %c0_186, %c0_187] : memref<18x18x128xf32, #tpu.memory_space<vmem>>, vector<8x16x128xf32>
    %200 = vector.shape_cast %199 : vector<8x16x128xf32> to vector<128x128xf32>
    %c3_188 = arith.constant 3 : index
    %c0_189 = arith.constant 0 : index
    %c0_190 = arith.constant 0 : index
    %201 = vector.load %arg4[%c3_188, %c0_189, %c0_190] : memref<9x128x128xf32, #tpu.memory_space<vmem>>, vector<1x128x128xf32>
    %202 = vector.shape_cast %201 : vector<1x128x128xf32> to vector<128x128xf32>
    %cst_191 = arith.constant dense<0.000000e+00> : vector<128x128xf32>
    %203 = tpu.matmul %200, %202, %cst_191 {dimension_numbers = #tpu.dot_dimension_numbers<[1], [0], [0], [1], [0, 0, 1, 1], [], []>} : vector<128x128xf32>, vector<128x128xf32>, vector<128x128xf32> -> vector<128x128xf32>
    %204 = arith.addf %196, %203 : vector<128x128xf32>
    %c1_i32_192 = arith.constant 1 : i32
    %205 = arith.addi %173, %c1_i32_192 : i32
    %206 = arith.index_cast %205 : i32 to index
    %c1_193 = arith.constant 1 : index
    %c0_194 = arith.constant 0 : index
    %207 = vector.load %arg7[%206, %c1_193, %c0_194] : memref<18x18x128xf32, #tpu.memory_space<vmem>>, vector<8x16x128xf32>
    %208 = vector.shape_cast %207 : vector<8x16x128xf32> to vector<128x128xf32>
    %c4_195 = arith.constant 4 : index
    %c0_196 = arith.constant 0 : index
    %c0_197 = arith.constant 0 : index
    %209 = vector.load %arg4[%c4_195, %c0_196, %c0_197] : memref<9x128x128xf32, #tpu.memory_space<vmem>>, vector<1x128x128xf32>
    %210 = vector.shape_cast %209 : vector<1x128x128xf32> to vector<128x128xf32>
    %cst_198 = arith.constant dense<0.000000e+00> : vector<128x128xf32>
    %211 = tpu.matmul %208, %210, %cst_198 {dimension_numbers = #tpu.dot_dimension_numbers<[1], [0], [0], [1], [0, 0, 1, 1], [], []>} : vector<128x128xf32>, vector<128x128xf32>, vector<128x128xf32> -> vector<128x128xf32>
    %212 = arith.addf %204, %211 : vector<128x128xf32>
    %c1_i32_199 = arith.constant 1 : i32
    %213 = arith.addi %173, %c1_i32_199 : i32
    %214 = arith.index_cast %213 : i32 to index
    %c2_200 = arith.constant 2 : index
    %c0_201 = arith.constant 0 : index
    %215 = vector.load %arg7[%214, %c2_200, %c0_201] : memref<18x18x128xf32, #tpu.memory_space<vmem>>, vector<8x16x128xf32>
    %216 = vector.shape_cast %215 : vector<8x16x128xf32> to vector<128x128xf32>
    %c5_202 = arith.constant 5 : index
    %c0_203 = arith.constant 0 : index
    %c0_204 = arith.constant 0 : index
    %217 = vector.load %arg4[%c5_202, %c0_203, %c0_204] : memref<9x128x128xf32, #tpu.memory_space<vmem>>, vector<1x128x128xf32>
    %218 = vector.shape_cast %217 : vector<1x128x128xf32> to vector<128x128xf32>
    %cst_205 = arith.constant dense<0.000000e+00> : vector<128x128xf32>
    %219 = tpu.matmul %216, %218, %cst_205 {dimension_numbers = #tpu.dot_dimension_numbers<[1], [0], [0], [1], [0, 0, 1, 1], [], []>} : vector<128x128xf32>, vector<128x128xf32>, vector<128x128xf32> -> vector<128x128xf32>
    %220 = arith.addf %212, %219 : vector<128x128xf32>
    %c2_i32_206 = arith.constant 2 : i32
    %221 = arith.addi %173, %c2_i32_206 : i32
    %222 = arith.index_cast %221 : i32 to index
    %c0_207 = arith.constant 0 : index
    %c0_208 = arith.constant 0 : index
    %223 = vector.load %arg7[%222, %c0_207, %c0_208] : memref<18x18x128xf32, #tpu.memory_space<vmem>>, vector<8x16x128xf32>
    %224 = vector.shape_cast %223 : vector<8x16x128xf32> to vector<128x128xf32>
    %c6_209 = arith.constant 6 : index
    %c0_210 = arith.constant 0 : index
    %c0_211 = arith.constant 0 : index
    %225 = vector.load %arg4[%c6_209, %c0_210, %c0_211] : memref<9x128x128xf32, #tpu.memory_space<vmem>>, vector<1x128x128xf32>
    %226 = vector.shape_cast %225 : vector<1x128x128xf32> to vector<128x128xf32>
    %cst_212 = arith.constant dense<0.000000e+00> : vector<128x128xf32>
    %227 = tpu.matmul %224, %226, %cst_212 {dimension_numbers = #tpu.dot_dimension_numbers<[1], [0], [0], [1], [0, 0, 1, 1], [], []>} : vector<128x128xf32>, vector<128x128xf32>, vector<128x128xf32> -> vector<128x128xf32>
    %228 = arith.addf %220, %227 : vector<128x128xf32>
    %c2_i32_213 = arith.constant 2 : i32
    %229 = arith.addi %173, %c2_i32_213 : i32
    %230 = arith.index_cast %229 : i32 to index
    %c1_214 = arith.constant 1 : index
    %c0_215 = arith.constant 0 : index
    %231 = vector.load %arg7[%230, %c1_214, %c0_215] : memref<18x18x128xf32, #tpu.memory_space<vmem>>, vector<8x16x128xf32>
    %232 = vector.shape_cast %231 : vector<8x16x128xf32> to vector<128x128xf32>
    %c7_216 = arith.constant 7 : index
    %c0_217 = arith.constant 0 : index
    %c0_218 = arith.constant 0 : index
    %233 = vector.load %arg4[%c7_216, %c0_217, %c0_218] : memref<9x128x128xf32, #tpu.memory_space<vmem>>, vector<1x128x128xf32>
    %234 = vector.shape_cast %233 : vector<1x128x128xf32> to vector<128x128xf32>
    %cst_219 = arith.constant dense<0.000000e+00> : vector<128x128xf32>
    %235 = tpu.matmul %232, %234, %cst_219 {dimension_numbers = #tpu.dot_dimension_numbers<[1], [0], [0], [1], [0, 0, 1, 1], [], []>} : vector<128x128xf32>, vector<128x128xf32>, vector<128x128xf32> -> vector<128x128xf32>
    %236 = arith.addf %228, %235 : vector<128x128xf32>
    %c2_i32_220 = arith.constant 2 : i32
    %237 = arith.addi %173, %c2_i32_220 : i32
    %238 = arith.index_cast %237 : i32 to index
    %c2_221 = arith.constant 2 : index
    %c0_222 = arith.constant 0 : index
    %239 = vector.load %arg7[%238, %c2_221, %c0_222] : memref<18x18x128xf32, #tpu.memory_space<vmem>>, vector<8x16x128xf32>
    %240 = vector.shape_cast %239 : vector<8x16x128xf32> to vector<128x128xf32>
    %c8_223 = arith.constant 8 : index
    %c0_224 = arith.constant 0 : index
    %c0_225 = arith.constant 0 : index
    %241 = vector.load %arg4[%c8_223, %c0_224, %c0_225] : memref<9x128x128xf32, #tpu.memory_space<vmem>>, vector<1x128x128xf32>
    %242 = vector.shape_cast %241 : vector<1x128x128xf32> to vector<128x128xf32>
    %cst_226 = arith.constant dense<0.000000e+00> : vector<128x128xf32>
    %243 = tpu.matmul %240, %242, %cst_226 {dimension_numbers = #tpu.dot_dimension_numbers<[1], [0], [0], [1], [0, 0, 1, 1], [], []>} : vector<128x128xf32>, vector<128x128xf32>, vector<128x128xf32> -> vector<128x128xf32>
    %244 = arith.addf %236, %243 : vector<128x128xf32>
    %c1_i32_227 = arith.constant 1 : i32
    %245 = arith.addi %c1_i32_227, %173 : i32
    %c0_228 = arith.constant 0 : index
    %246 = arith.index_cast %245 : i32 to index
    %c1_229 = arith.constant 1 : index
    %c0_230 = arith.constant 0 : index
    %247 = vector.load %arg1[%c0_228, %246, %c1_229, %c0_230] : memref<1x18x18x128xf32, #tpu.memory_space<vmem>>, vector<1x8x16x128xf32>
    %248 = vector.shape_cast %247 : vector<1x8x16x128xf32> to vector<128x128xf32>
    %249 = vector.broadcast %9 : vector<1x128xf32> to vector<128x128xf32>
    %250 = arith.addf %244, %249 : vector<128x128xf32>
    %251 = arith.addf %250, %248 : vector<128x128xf32>
    %cst_231 = arith.constant 0.000000e+00 : f32
    %252 = vector.broadcast %cst_231 : f32 to vector<128x128xf32>
    %253 = arith.maximumf %251, %252 : vector<128x128xf32>
    %254 = vector.shape_cast %253 : vector<128x128xf32> to vector<1x8x16x128xf32>
    %c0_232 = arith.constant 0 : index
    %255 = arith.index_cast %173 : i32 to index
    %c0_233 = arith.constant 0 : index
    %c0_234 = arith.constant 0 : index
    %256 = vector.load %arg6[%c0_232, %255, %c0_233, %c0_234] : memref<1x16x16x128xf32, #tpu.memory_space<vmem>>, vector<1x8x16x128xf32>
    tpu.vector_store %arg6[%c0_232, %255, %c0_233, %c0_234], %254 {strides = array<i32>} : memref<1x16x16x128xf32, #tpu.memory_space<vmem>>, vector<1x8x16x128xf32>,
    %c1_i32_235 = arith.constant 1 : i32
    %c8_i32_236 = arith.constant 8 : i32
    %257 = arith.muli %c1_i32_235, %c8_i32_236 : i32
    %258 = tpu.assume_multiple %257, 8 : i32
    %c0_i32_237 = arith.constant 0 : i32
    %259 = arith.addi %258, %c0_i32_237 : i32
    %260 = arith.index_cast %259 : i32 to index
    %c0_238 = arith.constant 0 : index
    %c0_239 = arith.constant 0 : index
    %261 = vector.load %arg7[%260, %c0_238, %c0_239] : memref<18x18x128xf32, #tpu.memory_space<vmem>>, vector<8x16x128xf32>
    %262 = vector.shape_cast %261 : vector<8x16x128xf32> to vector<128x128xf32>
    %c0_240 = arith.constant 0 : index
    %c0_241 = arith.constant 0 : index
    %c0_242 = arith.constant 0 : index
    %263 = vector.load %arg4[%c0_240, %c0_241, %c0_242] : memref<9x128x128xf32, #tpu.memory_space<vmem>>, vector<1x128x128xf32>
    %264 = vector.shape_cast %263 : vector<1x128x128xf32> to vector<128x128xf32>
    %cst_243 = arith.constant dense<0.000000e+00> : vector<128x128xf32>
    %265 = tpu.matmul %262, %264, %cst_243 {dimension_numbers = #tpu.dot_dimension_numbers<[1], [0], [0], [1], [0, 0, 1, 1], [], []>} : vector<128x128xf32>, vector<128x128xf32>, vector<128x128xf32> -> vector<128x128xf32>
    %c0_i32_244 = arith.constant 0 : i32
    %266 = arith.addi %258, %c0_i32_244 : i32
    %267 = arith.index_cast %266 : i32 to index
    %c1_245 = arith.constant 1 : index
    %c0_246 = arith.constant 0 : index
    %268 = vector.load %arg7[%267, %c1_245, %c0_246] : memref<18x18x128xf32, #tpu.memory_space<vmem>>, vector<8x16x128xf32>
    %269 = vector.shape_cast %268 : vector<8x16x128xf32> to vector<128x128xf32>
    %c1_247 = arith.constant 1 : index
    %c0_248 = arith.constant 0 : index
    %c0_249 = arith.constant 0 : index
    %270 = vector.load %arg4[%c1_247, %c0_248, %c0_249] : memref<9x128x128xf32, #tpu.memory_space<vmem>>, vector<1x128x128xf32>
    %271 = vector.shape_cast %270 : vector<1x128x128xf32> to vector<128x128xf32>
    %cst_250 = arith.constant dense<0.000000e+00> : vector<128x128xf32>
    %272 = tpu.matmul %269, %271, %cst_250 {dimension_numbers = #tpu.dot_dimension_numbers<[1], [0], [0], [1], [0, 0, 1, 1], [], []>} : vector<128x128xf32>, vector<128x128xf32>, vector<128x128xf32> -> vector<128x128xf32>
    %273 = arith.addf %265, %272 : vector<128x128xf32>
    %c0_i32_251 = arith.constant 0 : i32
    %274 = arith.addi %258, %c0_i32_251 : i32
    %275 = arith.index_cast %274 : i32 to index
    %c2_252 = arith.constant 2 : index
    %c0_253 = arith.constant 0 : index
    %276 = vector.load %arg7[%275, %c2_252, %c0_253] : memref<18x18x128xf32, #tpu.memory_space<vmem>>, vector<8x16x128xf32>
    %277 = vector.shape_cast %276 : vector<8x16x128xf32> to vector<128x128xf32>
    %c2_254 = arith.constant 2 : index
    %c0_255 = arith.constant 0 : index
    %c0_256 = arith.constant 0 : index
    %278 = vector.load %arg4[%c2_254, %c0_255, %c0_256] : memref<9x128x128xf32, #tpu.memory_space<vmem>>, vector<1x128x128xf32>
    %279 = vector.shape_cast %278 : vector<1x128x128xf32> to vector<128x128xf32>
    %cst_257 = arith.constant dense<0.000000e+00> : vector<128x128xf32>
    %280 = tpu.matmul %277, %279, %cst_257 {dimension_numbers = #tpu.dot_dimension_numbers<[1], [0], [0], [1], [0, 0, 1, 1], [], []>} : vector<128x128xf32>, vector<128x128xf32>, vector<128x128xf32> -> vector<128x128xf32>
    %281 = arith.addf %273, %280 : vector<128x128xf32>
    %c1_i32_258 = arith.constant 1 : i32
    %282 = arith.addi %258, %c1_i32_258 : i32
    %283 = arith.index_cast %282 : i32 to index
    %c0_259 = arith.constant 0 : index
    %c0_260 = arith.constant 0 : index
    %284 = vector.load %arg7[%283, %c0_259, %c0_260] : memref<18x18x128xf32, #tpu.memory_space<vmem>>, vector<8x16x128xf32>
    %285 = vector.shape_cast %284 : vector<8x16x128xf32> to vector<128x128xf32>
    %c3_261 = arith.constant 3 : index
    %c0_262 = arith.constant 0 : index
    %c0_263 = arith.constant 0 : index
    %286 = vector.load %arg4[%c3_261, %c0_262, %c0_263] : memref<9x128x128xf32, #tpu.memory_space<vmem>>, vector<1x128x128xf32>
    %287 = vector.shape_cast %286 : vector<1x128x128xf32> to vector<128x128xf32>
    %cst_264 = arith.constant dense<0.000000e+00> : vector<128x128xf32>
    %288 = tpu.matmul %285, %287, %cst_264 {dimension_numbers = #tpu.dot_dimension_numbers<[1], [0], [0], [1], [0, 0, 1, 1], [], []>} : vector<128x128xf32>, vector<128x128xf32>, vector<128x128xf32> -> vector<128x128xf32>
    %289 = arith.addf %281, %288 : vector<128x128xf32>
    %c1_i32_265 = arith.constant 1 : i32
    %290 = arith.addi %258, %c1_i32_265 : i32
    %291 = arith.index_cast %290 : i32 to index
    %c1_266 = arith.constant 1 : index
    %c0_267 = arith.constant 0 : index
    %292 = vector.load %arg7[%291, %c1_266, %c0_267] : memref<18x18x128xf32, #tpu.memory_space<vmem>>, vector<8x16x128xf32>
    %293 = vector.shape_cast %292 : vector<8x16x128xf32> to vector<128x128xf32>
    %c4_268 = arith.constant 4 : index
    %c0_269 = arith.constant 0 : index
    %c0_270 = arith.constant 0 : index
    %294 = vector.load %arg4[%c4_268, %c0_269, %c0_270] : memref<9x128x128xf32, #tpu.memory_space<vmem>>, vector<1x128x128xf32>
    %295 = vector.shape_cast %294 : vector<1x128x128xf32> to vector<128x128xf32>
    %cst_271 = arith.constant dense<0.000000e+00> : vector<128x128xf32>
    %296 = tpu.matmul %293, %295, %cst_271 {dimension_numbers = #tpu.dot_dimension_numbers<[1], [0], [0], [1], [0, 0, 1, 1], [], []>} : vector<128x128xf32>, vector<128x128xf32>, vector<128x128xf32> -> vector<128x128xf32>
    %297 = arith.addf %289, %296 : vector<128x128xf32>
    %c1_i32_272 = arith.constant 1 : i32
    %298 = arith.addi %258, %c1_i32_272 : i32
    %299 = arith.index_cast %298 : i32 to index
    %c2_273 = arith.constant 2 : index
    %c0_274 = arith.constant 0 : index
    %300 = vector.load %arg7[%299, %c2_273, %c0_274] : memref<18x18x128xf32, #tpu.memory_space<vmem>>, vector<8x16x128xf32>
    %301 = vector.shape_cast %300 : vector<8x16x128xf32> to vector<128x128xf32>
    %c5_275 = arith.constant 5 : index
    %c0_276 = arith.constant 0 : index
    %c0_277 = arith.constant 0 : index
    %302 = vector.load %arg4[%c5_275, %c0_276, %c0_277] : memref<9x128x128xf32, #tpu.memory_space<vmem>>, vector<1x128x128xf32>
    %303 = vector.shape_cast %302 : vector<1x128x128xf32> to vector<128x128xf32>
    %cst_278 = arith.constant dense<0.000000e+00> : vector<128x128xf32>
    %304 = tpu.matmul %301, %303, %cst_278 {dimension_numbers = #tpu.dot_dimension_numbers<[1], [0], [0], [1], [0, 0, 1, 1], [], []>} : vector<128x128xf32>, vector<128x128xf32>, vector<128x128xf32> -> vector<128x128xf32>
    %305 = arith.addf %297, %304 : vector<128x128xf32>
    %c2_i32_279 = arith.constant 2 : i32
    %306 = arith.addi %258, %c2_i32_279 : i32
    %307 = arith.index_cast %306 : i32 to index
    %c0_280 = arith.constant 0 : index
    %c0_281 = arith.constant 0 : index
    %308 = vector.load %arg7[%307, %c0_280, %c0_281] : memref<18x18x128xf32, #tpu.memory_space<vmem>>, vector<8x16x128xf32>
    %309 = vector.shape_cast %308 : vector<8x16x128xf32> to vector<128x128xf32>
    %c6_282 = arith.constant 6 : index
    %c0_283 = arith.constant 0 : index
    %c0_284 = arith.constant 0 : index
    %310 = vector.load %arg4[%c6_282, %c0_283, %c0_284] : memref<9x128x128xf32, #tpu.memory_space<vmem>>, vector<1x128x128xf32>
    %311 = vector.shape_cast %310 : vector<1x128x128xf32> to vector<128x128xf32>
    %cst_285 = arith.constant dense<0.000000e+00> : vector<128x128xf32>
    %312 = tpu.matmul %309, %311, %cst_285 {dimension_numbers = #tpu.dot_dimension_numbers<[1], [0], [0], [1], [0, 0, 1, 1], [], []>} : vector<128x128xf32>, vector<128x128xf32>, vector<128x128xf32> -> vector<128x128xf32>
    %313 = arith.addf %305, %312 : vector<128x128xf32>
    %c2_i32_286 = arith.constant 2 : i32
    %314 = arith.addi %258, %c2_i32_286 : i32
    %315 = arith.index_cast %314 : i32 to index
    %c1_287 = arith.constant 1 : index
    %c0_288 = arith.constant 0 : index
    %316 = vector.load %arg7[%315, %c1_287, %c0_288] : memref<18x18x128xf32, #tpu.memory_space<vmem>>, vector<8x16x128xf32>
    %317 = vector.shape_cast %316 : vector<8x16x128xf32> to vector<128x128xf32>
    %c7_289 = arith.constant 7 : index
    %c0_290 = arith.constant 0 : index
    %c0_291 = arith.constant 0 : index
    %318 = vector.load %arg4[%c7_289, %c0_290, %c0_291] : memref<9x128x128xf32, #tpu.memory_space<vmem>>, vector<1x128x128xf32>
    %319 = vector.shape_cast %318 : vector<1x128x128xf32> to vector<128x128xf32>
    %cst_292 = arith.constant dense<0.000000e+00> : vector<128x128xf32>
    %320 = tpu.matmul %317, %319, %cst_292 {dimension_numbers = #tpu.dot_dimension_numbers<[1], [0], [0], [1], [0, 0, 1, 1], [], []>} : vector<128x128xf32>, vector<128x128xf32>, vector<128x128xf32> -> vector<128x128xf32>
    %321 = arith.addf %313, %320 : vector<128x128xf32>
    %c2_i32_293 = arith.constant 2 : i32
    %322 = arith.addi %258, %c2_i32_293 : i32
    %323 = arith.index_cast %322 : i32 to index
    %c2_294 = arith.constant 2 : index
    %c0_295 = arith.constant 0 : index
    %324 = vector.load %arg7[%323, %c2_294, %c0_295] : memref<18x18x128xf32, #tpu.memory_space<vmem>>, vector<8x16x128xf32>
    %325 = vector.shape_cast %324 : vector<8x16x128xf32> to vector<128x128xf32>
    %c8_296 = arith.constant 8 : index
    %c0_297 = arith.constant 0 : index
    %c0_298 = arith.constant 0 : index
    %326 = vector.load %arg4[%c8_296, %c0_297, %c0_298] : memref<9x128x128xf32, #tpu.memory_space<vmem>>, vector<1x128x128xf32>
    %327 = vector.shape_cast %326 : vector<1x128x128xf32> to vector<128x128xf32>
    %cst_299 = arith.constant dense<0.000000e+00> : vector<128x128xf32>
    %328 = tpu.matmul %325, %327, %cst_299 {dimension_numbers = #tpu.dot_dimension_numbers<[1], [0], [0], [1], [0, 0, 1, 1], [], []>} : vector<128x128xf32>, vector<128x128xf32>, vector<128x128xf32> -> vector<128x128xf32>
    %329 = arith.addf %321, %328 : vector<128x128xf32>
    %c1_i32_300 = arith.constant 1 : i32
    %330 = arith.addi %c1_i32_300, %258 : i32
    %c0_301 = arith.constant 0 : index
    %331 = arith.index_cast %330 : i32 to index
    %c1_302 = arith.constant 1 : index
    %c0_303 = arith.constant 0 : index
    %332 = vector.load %arg1[%c0_301, %331, %c1_302, %c0_303] : memref<1x18x18x128xf32, #tpu.memory_space<vmem>>, vector<1x8x16x128xf32>
    %333 = vector.shape_cast %332 : vector<1x8x16x128xf32> to vector<128x128xf32>
    %334 = vector.broadcast %9 : vector<1x128xf32> to vector<128x128xf32>
    %335 = arith.addf %329, %334 : vector<128x128xf32>
    %336 = arith.addf %335, %333 : vector<128x128xf32>
    %cst_304 = arith.constant 0.000000e+00 : f32
    %337 = vector.broadcast %cst_304 : f32 to vector<128x128xf32>
    %338 = arith.maximumf %336, %337 : vector<128x128xf32>
    %339 = vector.shape_cast %338 : vector<128x128xf32> to vector<1x8x16x128xf32>
    %c0_305 = arith.constant 0 : index
    %340 = arith.index_cast %258 : i32 to index
    %c0_306 = arith.constant 0 : index
    %c0_307 = arith.constant 0 : index
    %341 = vector.load %arg6[%c0_305, %340, %c0_306, %c0_307] : memref<1x16x16x128xf32, #tpu.memory_space<vmem>>, vector<1x8x16x128xf32>
    tpu.vector_store %arg6[%c0_305, %340, %c0_306, %c0_307], %339 {strides = array<i32>} : memref<1x16x16x128xf32, #tpu.memory_space<vmem>>, vector<1x8x16x128xf32>,
    %c2_i32_308 = arith.constant 2 : i32
    return
  }
  func.func @transform_0(%arg0: i32) -> (i32, i32, i32, i32) {
    %c0_i32 = arith.constant 0 : i32
    %c0_i32_0 = arith.constant 0 : i32
    %c0_i32_1 = arith.constant 0 : i32
    %c0_i32_2 = arith.constant 0 : i32
    return %arg0, %c0_i32, %c0_i32_0, %c0_i32_1 : i32, i32, i32, i32
  }
  func.func @transform_1(%arg0: i32) -> (i32, i32, i32) {
    %c0_i32 = arith.constant 0 : i32
    %c0_i32_0 = arith.constant 0 : i32
    %c0_i32_1 = arith.constant 0 : i32
    %c0_i32_2 = arith.constant 0 : i32
    return %c0_i32, %c0_i32_0, %c0_i32_1 : i32, i32, i32
  }
  func.func @transform_2(%arg0: i32) -> (i32, i32) {
    %c0_i32 = arith.constant 0 : i32
    %c0_i32_0 = arith.constant 0 : i32
    %c0_i32_1 = arith.constant 0 : i32
    return %c0_i32, %c0_i32_0 : i32, i32
  }
  func.func @transform_3(%arg0: i32) -> (i32, i32, i32) {
    %c0_i32 = arith.constant 0 : i32
    %c0_i32_0 = arith.constant 0 : i32
    %c0_i32_1 = arith.constant 0 : i32
    %c0_i32_2 = arith.constant 0 : i32
    return %c0_i32, %c0_i32_0, %c0_i32_1 : i32, i32, i32
  }
  func.func @transform_4(%arg0: i32) -> (i32, i32) {
    %c0_i32 = arith.constant 0 : i32
    %c0_i32_0 = arith.constant 0 : i32
    %c0_i32_1 = arith.constant 0 : i32
    return %c0_i32, %c0_i32_0 : i32, i32
  }
  func.func @transform_5(%arg0: i32) -> (i32, i32, i32, i32) {
    %c0_i32 = arith.constant 0 : i32
    %c0_i32_0 = arith.constant 0 : i32
    %c0_i32_1 = arith.constant 0 : i32
    %c0_i32_2 = arith.constant 0 : i32
    return %arg0, %c0_i32, %c0_i32_0, %c0_i32_1 : i32, i32, i32, i32
  }
}

</mosaic_0001>

<llo_original>
// kernel: tpu_custom_call.1
$region0: #{tpu_custom_call.1}
  #allocation0 [shape = 'u32[]', space=smem, size = 0x4, offset = 0x4, fixed_abs, tag = 'smem constant byte address 0x4 - core index']
  #allocation1 [shape = 'u32[144,128]{1,0:T(1,128)}', space=vmem, size = 0x12000, scoped, tag = 'internal scratch']
  #allocation2 [shape = 'f32[18,18,128]{2,1,0:T(8,128)}', space=vmem, size = 0x36000, scoped, tag = 'scratch operand']
  %s0 = inlined_call_operand.vmem [shape: f32[2,18,18,128], index: 0, kind: input, shape index: {}]
  %s1 = inlined_call_operand.vmem [shape: f32[9,128,128], index: 1, kind: input, shape index: {}]
  %s2 = inlined_call_operand.vmem [shape: f32[1,128], index: 2, kind: input, shape index: {}]
  %s3 = inlined_call_operand.hbm [shape: f32[9,128,128], index: 3, kind: input, shape index: {}]
  %s4 = inlined_call_operand.vmem [shape: f32[1,128], index: 4, kind: input, shape index: {}]
  %s5 = inlined_call_operand.hbm [shape: f32[2,16,16,128], index: 5, kind: output, shape index: {}]
  %s6 = sld [smem:[#allocation0]]
  $region57: #{tpu_custom_call.1} parent=0
    _
  %s8 = ssub.s32 1, %s6
  %s9 = scalar_select 0, %s8, %s6
  $region1: #{tpu_custom_call.1} parent=0
    #allocation3 [shape = 'u8[589824]{0}', space=vmem, size = 0x90000, scoped, tag = 'input window, operand 3, single buffered']
    #allocation4 [shape = 's32[2]{0}', space=sflag, size = 0x8, scoped, tag = 'scoped memory for tpu_custom_call.1']
    #allocation5 [shape = 's32[2]{0}', space=sflag, size = 0x8, scoped, tag = 'scoped memory for tpu_custom_call.1']
    #allocation6 [shape = 'u8[262144]{0}', space=vmem, size = 0x40000, scoped, tag = 'output window, operand 0']
    %10 = vsyncpa [#allocation4], 0
    %11 = vsyncpa [#allocation5], 0
    %s12 = scalar_lea.sflag [#allocation5], 1
    %13 = vsyncpa %s12, 0
    loop: start=0, step=1, limit=4
    $region2: #{tpu_custom_call.1} parent=1 // loop_pre_header
      _
    $region3: #{tpu_custom_call.1} parent=1 // loop_header
      %s15 = sphi 0, %s19
      %p16 = scmp.ge.s32.totalorder %s15, 4
      %s25 = sphi 0, %s27
      %s28 = sphi 0, %s25
      %s29 = sphi 0, %s28
      %s45 = sphi 0, %s29
      %s49 = sphi 0, %s49
      %s51 = sphi 0, %s49
      %s52 = sphi 0, %s51
      %s66 = sphi 0, %s52
      %s70 = sphi 0, %s70
      %s72 = sphi 0, %s70
      %s73 = sphi 0, %s72
      %s87 = sphi 0, %s73
      %s91 = sphi 0, %s91
      %s93 = sphi 0, %s91
      %s94 = sphi 0, %s93
      %s108 = sphi 0, %s94
      %s112 = sphi 0, %s112
      %s114 = sphi 0, %s112
      %s115 = sphi 0, %s114
      %s129 = sphi 0, %s115
      %s135 = sphi 0, %s137
      %s138 = sphi 0, %s135
      %s139 = sphi 0, %s138
      %s155 = sphi 0, %s139
    $region4: #{tpu_custom_call.1} parent=1 // loop_header_branch
      %18 = sbr.rel (%p16) target = $region8
    $region5: #{tpu_custom_call.1} parent=1 // loop_body
      %s20 = ssub.s32 %s15, 1
      %s21 = ssub.s32 %s15, 2
      %s22 = sadd.s32 %s15, 1
      %s23 = ssub.s32 %s15, %s22
      %p24 = scmp.eq.s32.totalorder %s23, 0
      %s26 = sadd.s32 %s25, 1
      %s27 = scalar_select %p24, %s25, %s26
      %p30 = pneg %p24
      %p31 = scmp.eq.s32.totalorder %s15, 1
      %p32 = por %p30, %p31
      %p33 = scmp.ne.s32.totalorder %s25, %s28
      %p34 = scmp.eq.s32.totalorder %s15, 0
      %p35 = por %p33, %p34
      %p36 = scmp.ne.s32.totalorder %s25, %s28
      %p37 = scmp.eq.s32.totalorder %s20, 1
      %p38 = por %p36, %p37
      %p39 = scmp.ne.s32.totalorder %s28, %s29
      %p40 = scmp.eq.s32.totalorder %s20, 0
      %p41 = por %p39, %p40
      %p42 = scmp.ne.s32.totalorder %s28, %s29
      %p43 = scmp.eq.s32.totalorder %s21, 1
      %p44 = por %p42, %p43
      %p46 = scmp.ne.s32.totalorder %s29, %s45
      %p47 = scmp.eq.s32.totalorder %s21, 0
      %p48 = por %p46, %p47
      %s50 = sadd.s32 %s49, 1
      %p53 = scmp.eq.s32.totalorder %s15, 1
      %p54 = scmp.ne.s32.totalorder %s49, %s51
      %p55 = scmp.eq.s32.totalorder %s15, 0
      %p56 = por %p54, %p55
      %p57 = scmp.ne.s32.totalorder %s49, %s51
      %p58 = scmp.eq.s32.totalorder %s20, 1
      %p59 = por %p57, %p58
      %p60 = scmp.ne.s32.totalorder %s51, %s52
      %p61 = scmp.eq.s32.totalorder %s20, 0
      %p62 = por %p60, %p61
      %p63 = scmp.ne.s32.totalorder %s51, %s52
      %p64 = scmp.eq.s32.totalorder %s21, 1
      %p65 = por %p63, %p64
      %p67 = scmp.ne.s32.totalorder %s52, %s66
      %p68 = scmp.eq.s32.totalorder %s21, 0
      %p69 = por %p67, %p68
      %s71 = sadd.s32 %s70, 1
      %p74 = scmp.eq.s32.totalorder %s15, 1
      %p75 = scmp.ne.s32.totalorder %s70, %s72
      %p76 = scmp.eq.s32.totalorder %s15, 0
      %p77 = por %p75, %p76
      %p78 = scmp.ne.s32.totalorder %s70, %s72
      %p79 = scmp.eq.s32.totalorder %s20, 1
      %p80 = por %p78, %p79
      %p81 = scmp.ne.s32.totalorder %s72, %s73
      %p82 = scmp.eq.s32.totalorder %s20, 0
      %p83 = por %p81, %p82
      %p84 = scmp.ne.s32.totalorder %s72, %s73
      %p85 = scmp.eq.s32.totalorder %s21, 1
      %p86 = por %p84, %p85
      %p88 = scmp.ne.s32.totalorder %s73, %s87
      %p89 = scmp.eq.s32.totalorder %s21, 0
      %p90 = por %p88, %p89
      %s92 = sadd.s32 %s91, 1
      %p95 = scmp.eq.s32.totalorder %s15, 1
      %p96 = scmp.ne.s32.totalorder %s91, %s93
      %p97 = scmp.eq.s32.totalorder %s15, 0
      %p98 = por %p96, %p97
      %p99 = scmp.ne.s32.totalorder %s91, %s93
      %p100 = scmp.eq.s32.totalorder %s20, 1
      %p101 = por %p99, %p100
      %p102 = scmp.ne.s32.totalorder %s93, %s94
      %p103 = scmp.eq.s32.totalorder %s20, 0
      %p104 = por %p102, %p103
      %p105 = scmp.ne.s32.totalorder %s93, %s94
      %p106 = scmp.eq.s32.totalorder %s21, 1
      %p107 = por %p105, %p106
      %p109 = scmp.ne.s32.totalorder %s94, %s108
      %p110 = scmp.eq.s32.totalorder %s21, 0
      %p111 = por %p109, %p110
      %s113 = sadd.s32 %s112, 1
      %p116 = scmp.eq.s32.totalorder %s15, 1
      %p117 = scmp.ne.s32.totalorder %s112, %s114
      %p118 = scmp.eq.s32.totalorder %s15, 0
      %p119 = por %p117, %p118
      %p120 = scmp.ne.s32.totalorder %s112, %s114
      %p121 = scmp.eq.s32.totalorder %s20, 1
      %p122 = por %p120, %p121
      %p123 = scmp.ne.s32.totalorder %s114, %s115
      %p124 = scmp.eq.s32.totalorder %s20, 0
      %p125 = por %p123, %p124
      %p126 = scmp.ne.s32.totalorder %s114, %s115
      %p127 = scmp.eq.s32.totalorder %s21, 1
      %p128 = por %p126, %p127
      %p130 = scmp.ne.s32.totalorder %s115, %s129
      %p131 = scmp.eq.s32.totalorder %s21, 0
      %p132 = por %p130, %p131
      %s133 = ssub.s32 %s15, %s22
      %p134 = scmp.eq.s32.totalorder %s133, 0
      %s136 = sadd.s32 %s135, 1
      %s137 = scalar_select %p134, %s135, %s136
      %p140 = pneg %p134
      %p141 = scmp.eq.s32.totalorder %s15, 1
      %p142 = por %p140, %p141
      %p143 = scmp.ne.s32.totalorder %s135, %s138
      %p144 = scmp.eq.s32.totalorder %s15, 0
      %p145 = por %p143, %p144
      %p146 = scmp.ne.s32.totalorder %s135, %s138
      %p147 = scmp.eq.s32.totalorder %s20, 1
      %p148 = por %p146, %p147
      %p149 = scmp.ne.s32.totalorder %s138, %s139
      %p150 = scmp.eq.s32.totalorder %s20, 0
      %p151 = por %p149, %p150
      %p152 = scmp.ne.s32.totalorder %s138, %s139
      %p153 = scmp.eq.s32.totalorder %s21, 1
      %p154 = por %p152, %p153
      %p156 = scmp.ne.s32.totalorder %s139, %s155
      %p157 = scmp.eq.s32.totalorder %s21, 0
      %p158 = por %p156, %p157
      %p159 = scmp.le.s32.totalorder 1, %s15
      %p160 = scmp.lt.s32.totalorder %s15, 3
      %p161 = pnand %p159, %p160
      %p162 = pneg %p161
      // Predicated region
      $region9: #{tpu_custom_call.1} parent=5 // pred_check
        _
      $region10: #{tpu_custom_call.1} parent=5 // pred_check_branch
        %164 = sbr.rel (%p161) target = $region12
      $region11: #{tpu_custom_call.1} parent=5 // pred_region
        %s165 = ssub.s32 %s15, 1
        // Predicated region
        $region13: #{tpu_custom_call.1} parent=11 // pred_check
          %p166 = pneg %p62
        $region14: #{tpu_custom_call.1} parent=11 // pred_check_branch
          %168 = sbr.rel (%p166) target = $region16
        $region15: #{tpu_custom_call.1} parent=11 // pred_region
          _
        $region16: #{tpu_custom_call.1} parent=11 // pred_fallthru
          _
        // Predicated region
        $region17: #{tpu_custom_call.1} parent=11 // pred_check
          %p169 = pneg %p83
        $region18: #{tpu_custom_call.1} parent=11 // pred_check_branch
          %171 = sbr.rel (%p169) target = $region20
        $region19: #{tpu_custom_call.1} parent=11 // pred_region
          _
        $region20: #{tpu_custom_call.1} parent=11 // pred_fallthru
          _
        // Predicated region
        $region21: #{tpu_custom_call.1} parent=11 // pred_check
          %p172 = pneg %p104
        $region22: #{tpu_custom_call.1} parent=11 // pred_check_branch
          %174 = sbr.rel (%p172) target = $region24
        $region23: #{tpu_custom_call.1} parent=11 // pred_region
          %s176 = ssub.s32 18432, 18432
          %177 = vsyncadd [#allocation4], %s176
          %s178 = sshll.u32 [#allocation3], 4
          %s179 = int_to_ptr.vmem [resolvable:$true] %s178
          %184 = dma.hbm_to_vmem [thread:$0]  %s3, 18432, %s179, [#allocation4], 128, 128, 8
        $region24: #{tpu_custom_call.1} parent=11 // pred_fallthru
          _
        // Predicated region
        $region25: #{tpu_custom_call.1} parent=11 // pred_check
          %p185 = pneg %p125
        $region26: #{tpu_custom_call.1} parent=11 // pred_check_branch
          %187 = sbr.rel (%p185) target = $region28
        $region27: #{tpu_custom_call.1} parent=11 // pred_region
          _
        $region28: #{tpu_custom_call.1} parent=11 // pred_fallthru
          _
      $region12: #{tpu_custom_call.1} parent=5 // pred_fallthru
        _
      %p188 = scmp.lt.s32.totalorder %s15, 2
      // Predicated region
      $region29: #{tpu_custom_call.1} parent=5 // pred_check
        %p189 = pneg %p188
      $region30: #{tpu_custom_call.1} parent=5 // pred_check_branch
        %191 = sbr.rel (%p189) target = $region32
      $region31: #{tpu_custom_call.1} parent=5 // pred_region
        // Predicated region
        $region33: #{tpu_custom_call.1} parent=31 // pred_check
          %p192 = pneg %p35
        $region34: #{tpu_custom_call.1} parent=31 // pred_check_branch
          %194 = sbr.rel (%p192) target = $region36
        $region35: #{tpu_custom_call.1} parent=31 // pred_region
          %p195 = scmp.lt.s32.totalorder %s15, 1
          %s196 = scalar_select %p195, %s15, 1
          %s197 = smul.addr %s196, 54
          %s198 = smul.addr %s197, 8
          %s199 = scalar_lea.vmem %s0, %s198
        $region36: #{tpu_custom_call.1} parent=31 // pred_fallthru
          _
      $region32: #{tpu_custom_call.1} parent=5 // pred_fallthru
        _
      %p200 = scmp.le.s32.totalorder 1, %s15
      %p201 = scmp.lt.s32.totalorder %s15, 3
      %p202 = pnand %p200, %p201
      %p203 = pneg %p202
      // Predicated region
      $region37: #{tpu_custom_call.1} parent=5 // pred_check
        _
      $region38: #{tpu_custom_call.1} parent=5 // pred_check_branch
        %205 = sbr.rel (%p202) target = $region40
      $region39: #{tpu_custom_call.1} parent=5 // pred_region
        %s206 = ssub.s32 %s15, 1
        // Predicated region
        $region41: #{tpu_custom_call.1} parent=39 // pred_check
          %p207 = pneg %p104
        $region42: #{tpu_custom_call.1} parent=39 // pred_check_branch
          %209 = sbr.rel (%p207) target = $region44
        $region43: #{tpu_custom_call.1} parent=39 // pred_region
          %210 = dma.done [#allocation4], 18432
        $region44: #{tpu_custom_call.1} parent=39 // pred_fallthru
          _
        %p211 = scmp.lt.s32.totalorder %s20, 1
        %s212 = scalar_select %p211, %s20, 1
        %s213 = smul.addr %s212, 54
        %s214 = smul.addr %s213, 8
        %s215 = scalar_lea.vmem %s0, %s214
        %p216 = pneg %p41
        %p217 = pneg %p38
        %p218 = pneg %p62
        %p219 = pneg %p59
        %p220 = pneg %p83
        %p221 = pneg %p80
        %p222 = pneg %p104
        %p223 = pneg %p101
        %p224 = pneg %p125
        %p225 = pneg %p122
        %p226 = pneg %p151
        %p227 = pneg %p148
        %s228 = sand.u32 %s138, 1
        %s229 = scalar_lea.sflag [#allocation5], %s228
        %s230 = sand.u32 %s138, 1
        %s231 = smul.addr %s230, 256
        %s232 = scalar_lea.vmem [#allocation6], %s231
        %p233 = scmp.lt.s32.totalorder %s20, 1
        %s234 = scalar_select %p233, %s20, 1
        %s235 = smul.addr %s234, 54
        %s236 = smul.addr %s235, 8
        %s237 = scalar_lea.vmem %s0, %s236
        %238 = vst [vmem:[#allocation2] sm:$0xff] 0.0
        %239 = vst [vmem:[#allocation2 + $0x8] sm:$0xff] 0.0
        %240 = vst [vmem:[#allocation2 + $0x10] sm:$0x3] 0.0
        %s241 = scalar_lea.vmem [#allocation2], 408
        %242 = vst [vmem:[%s241] sm:$0xff] 0.0
        %243 = vst [vmem:[%s241 + $0x8] sm:$0xff] 0.0
        %244 = vst [vmem:[%s241 + $0x10] sm:$0x3] 0.0
        %245 = vst [vmem:[#allocation2] sm:$0x1] 0.0
        %246 = vst [vmem:[#allocation2 + $0x18] sm:$0x1] 0.0
        %247 = vst [vmem:[#allocation2 + $0x30] sm:$0x1] 0.0
        %248 = vst [vmem:[#allocation2 + $0x48] sm:$0x1] 0.0
        %249 = vst [vmem:[#allocation2 + $0x60] sm:$0x1] 0.0
        %250 = vst [vmem:[#allocation2 + $0x78] sm:$0x1] 0.0
        %251 = vst [vmem:[#allocation2 + $0x90] sm:$0x1] 0.0
        %252 = vst [vmem:[#allocation2 + $0xa8] sm:$0x1] 0.0
        %253 = vst [vmem:[#allocation2 + $0xc0] sm:$0x1] 0.0
        %254 = vst [vmem:[#allocation2 + $0xd8] sm:$0x1] 0.0
        %255 = vst [vmem:[#allocation2 + $0xf0] sm:$0x1] 0.0
        %256 = vst [vmem:[#allocation2 + $0x108] sm:$0x1] 0.0
        %257 = vst [vmem:[#allocation2 + $0x120] sm:$0x1] 0.0
        %258 = vst [vmem:[#allocation2 + $0x138] sm:$0x1] 0.0
        %259 = vst [vmem:[#allocation2 + $0x150] sm:$0x1] 0.0
        %260 = vst [vmem:[#allocation2 + $0x168] sm:$0x1] 0.0
        %261 = vst [vmem:[#allocation2 + $0x180] sm:$0x1] 0.0
        %262 = vst [vmem:[#allocation2 + $0x198] sm:$0x1] 0.0
        %263 = vst [vmem:[#allocation2 + $0x11] sm:$0x1] 0.0
        %264 = vst [vmem:[#allocation2 + $0x29] sm:$0x1] 0.0
        %265 = vst [vmem:[#allocation2 + $0x41] sm:$0x1] 0.0
        %266 = vst [vmem:[#allocation2 + $0x59] sm:$0x1] 0.0
        %267 = vst [vmem:[#allocation2 + $0x71] sm:$0x1] 0.0
        %268 = vst [vmem:[#allocation2 + $0x89] sm:$0x1] 0.0
        %269 = vst [vmem:[#allocation2 + $0xa1] sm:$0x1] 0.0
        %270 = vst [vmem:[#allocation2 + $0xb9] sm:$0x1] 0.0
        %271 = vst [vmem:[#allocation2 + $0xd1] sm:$0x1] 0.0
        %272 = vst [vmem:[#allocation2 + $0xe9] sm:$0x1] 0.0
        %273 = vst [vmem:[#allocation2 + $0x101] sm:$0x1] 0.0
        %274 = vst [vmem:[#allocation2 + $0x119] sm:$0x1] 0.0
        %275 = vst [vmem:[#allocation2 + $0x131] sm:$0x1] 0.0
        %276 = vst [vmem:[#allocation2 + $0x149] sm:$0x1] 0.0
        %277 = vst [vmem:[#allocation2 + $0x161] sm:$0x1] 0.0
        %278 = vst [vmem:[#allocation2 + $0x179] sm:$0x1] 0.0
        %279 = vst [vmem:[#allocation2 + $0x191] sm:$0x1] 0.0
        %280 = vst [vmem:[#allocation2 + $0x1a9] sm:$0x1] 0.0
        %v281 = vld [vmem:[%s2] sm:$0x1]
        %v282 = vld [vmem:[%s4] sm:$0x1]
        %s283 = smul.u32 0, 24
        %s284 = scalar_lea.vmem %s237, %s283
        %v285 = vld [vmem:[%s284] sm:$0xff]
        %v286 = vld [vmem:[%s284 + $0x8] sm:$0xff]
        %v287 = vld [vmem:[%s284 + $0x18] sm:$0xff]
        %v288 = vld [vmem:[%s284 + $0x20] sm:$0xff]
        %v289 = vld [vmem:[%s284 + $0x30] sm:$0xff]
        %v290 = vld [vmem:[%s284 + $0x38] sm:$0xff]
        %v291 = vld [vmem:[%s284 + $0x48] sm:$0xff]
        %v292 = vld [vmem:[%s284 + $0x50] sm:$0xff]
        %v293 = vld [vmem:[%s284 + $0x60] sm:$0xff]
        %v294 = vld [vmem:[%s284 + $0x68] sm:$0xff]
        %v295 = vld [vmem:[%s284 + $0x78] sm:$0xff]
        %v296 = vld [vmem:[%s284 + $0x80] sm:$0xff]
        %v297 = vld [vmem:[%s284 + $0x90] sm:$0xff]
        %v298 = vld [vmem:[%s284 + $0x98] sm:$0xff]
        %v299 = vld [vmem:[%s284 + $0xa8] sm:$0xff]
        %v300 = vld [vmem:[%s284 + $0xb0] sm:$0xff]
        %v301 = vld [vmem:[%s1] sm:$0xff]
        %v302 = vld [vmem:[%s1 + $0x8] sm:$0xff]
        %v303 = vld [vmem:[%s1 + $0x10] sm:$0xff]
        %v304 = vld [vmem:[%s1 + $0x18] sm:$0xff]
        %v305 = vld [vmem:[%s1 + $0x20] sm:$0xff]
        %v306 = vld [vmem:[%s1 + $0x28] sm:$0xff]
        %v307 = vld [vmem:[%s1 + $0x30] sm:$0xff]
        %v308 = vld [vmem:[%s1 + $0x38] sm:$0xff]
        %v309 = vld [vmem:[%s1 + $0x40] sm:$0xff]
        %v310 = vld [vmem:[%s1 + $0x48] sm:$0xff]
        %v311 = vld [vmem:[%s1 + $0x50] sm:$0xff]
        %v312 = vld [vmem:[%s1 + $0x58] sm:$0xff]
        %v313 = vld [vmem:[%s1 + $0x60] sm:$0xff]
        %v314 = vld [vmem:[%s1 + $0x68] sm:$0xff]
        %v315 = vld [vmem:[%s1 + $0x70] sm:$0xff]
        %v316 = vld [vmem:[%s1 + $0x78] sm:$0xff]
        %v317 = vld [vmem:[%s284 + $0x1] sm:$0xff]
        %v318 = vld [vmem:[%s284 + $0x9] sm:$0xff]
        %v319 = vld [vmem:[%s284 + $0x19] sm:$0xff]
        %v320 = vld [vmem:[%s284 + $0x21] sm:$0xff]
        %v321 = vld [vmem:[%s284 + $0x31] sm:$0xff]
        %v322 = vld [vmem:[%s284 + $0x39] sm:$0xff]
        %v323 = vld [vmem:[%s284 + $0x49] sm:$0xff]
        %v324 = vld [vmem:[%s284 + $0x51] sm:$0xff]
        %v325 = vld [vmem:[%s284 + $0x61] sm:$0xff]
        %v326 = vld [vmem:[%s284 + $0x69] sm:$0xff]
        %v327 = vld [vmem:[%s284 + $0x79] sm:$0xff]
        %v328 = vld [vmem:[%s284 + $0x81] sm:$0xff]
        %v329 = vld [vmem:[%s284 + $0x91] sm:$0xff]
        %v330 = vld [vmem:[%s284 + $0x99] sm:$0xff]
        %v331 = vld [vmem:[%s284 + $0xa9] sm:$0xff]
        %v332 = vld [vmem:[%s284 + $0xb1] sm:$0xff]
        %s333 = scalar_lea.vmem %s1, 128
        %v334 = vld [vmem:[%s333] sm:$0xff]
        %v335 = vld [vmem:[%s333 + $0x8] sm:$0xff]
        %v336 = vld [vmem:[%s333 + $0x10] sm:$0xff]
        %v337 = vld [vmem:[%s333 + $0x18] sm:$0xff]
        %v338 = vld [vmem:[%s333 + $0x20] sm:$0xff]
        %v339 = vld [vmem:[%s333 + $0x28] sm:$0xff]
        %v340 = vld [vmem:[%s333 + $0x30] sm:$0xff]
        %v341 = vld [vmem:[%s333 + $0x38] sm:$0xff]
        %v342 = vld [vmem:[%s333 + $0x40] sm:$0xff]
        %v343 = vld [vmem:[%s333 + $0x48] sm:$0xff]
        %v344 = vld [vmem:[%s333 + $0x50] sm:$0xff]
        %v345 = vld [vmem:[%s333 + $0x58] sm:$0xff]
        %v346 = vld [vmem:[%s333 + $0x60] sm:$0xff]
        %v347 = vld [vmem:[%s333 + $0x68] sm:$0xff]
        %v348 = vld [vmem:[%s333 + $0x70] sm:$0xff]
        %v349 = vld [vmem:[%s333 + $0x78] sm:$0xff]
        %350 = vmatprep.subr.mxu0 0.0
        %351 = vmatpush1.msra.mxu0 %v349
        %352 = vmatprep.subr.mxu0 0.0
        %353 = vmatpush1.msra.mxu0 %v348
        %354 = vmatprep.subr.mxu0 0.0
        %355 = vmatpush1.msra.mxu0 %v347
        %356 = vmatprep.subr.mxu0 0.0
        %357 = vmatpush1.msra.mxu0 %v346
        %358 = vmatprep.subr.mxu0 0.0
        %359 = vmatpush1.msra.mxu0 %v345
        %360 = vmatprep.subr.mxu0 0.0
        %361 = vmatpush1.msra.mxu0 %v344
        %362 = vmatprep.subr.mxu0 0.0
        %363 = vmatpush1.msra.mxu0 %v343
        %364 = vmatprep.subr.mxu0 0.0
        %365 = vmatpush1.msra.mxu0 %v342
        %366 = vmatprep.subr.mxu0 0.0
        %367 = vmatpush1.msra.mxu0 %v341
        %368 = vmatprep.subr.mxu0 0.0
        %369 = vmatpush1.msra.mxu0 %v340
        %370 = vmatprep.subr.mxu0 0.0
        %371 = vmatpush1.msra.mxu0 %v339
        %372 = vmatprep.subr.mxu0 0.0
        %373 = vmatpush1.msra.mxu0 %v338
        %374 = vmatprep.subr.mxu0 0.0
        %375 = vmatpush1.msra.mxu0 %v337
        %376 = vmatprep.subr.mxu0 0.0
        %377 = vmatpush1.msra.mxu0 %v336
        %378 = vmatprep.subr.mxu0 0.0
        %379 = vmatpush1.msra.mxu0 %v335
        %380 = vmatprep.subr.mxu0 0.0
        %381 = vmatpush1.msra.mxu0 %v334
        %382 = vmatprep.subr.mxu0 0.0
        %383 = vmatpush2.msra.mxu0 0.0
        %384 = vmatprep.subr.mxu0 0.0
        %385 = vmatpush2.msra.mxu0 0.0
        %386 = vmatprep.subr.mxu0 0.0
        %387 = vmatpush2.msra.mxu0 0.0
        %388 = vmatprep.subr.mxu0 0.0
        %389 = vmatpush2.msra.mxu0 0.0
        %390 = vmatprep.subr.mxu0 0.0
        %391 = vmatpush2.msra.mxu0 0.0
        %392 = vmatprep.subr.mxu0 0.0
        %393 = vmatpush2.msra.mxu0 0.0
        %394 = vmatprep.subr.mxu0 0.0
        %395 = vmatpush2.msra.mxu0 0.0
        %396 = vmatprep.subr.mxu0 0.0
        %397 = vmatpush2.msra.mxu0 0.0
        %398 = vmatprep.subr.mxu0 0.0
        %399 = vmatpush2.msra.mxu0 0.0
        %400 = vmatprep.subr.mxu0 0.0
        %401 = vmatpush2.msra.mxu0 0.0
        %402 = vmatprep.subr.mxu0 0.0
        %403 = vmatpush2.msra.mxu0 0.0
        %404 = vmatprep.subr.mxu0 0.0
        %405 = vmatpush2.msra.mxu0 0.0
        %406 = vmatprep.subr.mxu0 0.0
        %407 = vmatpush2.msra.mxu0 0.0
        %408 = vmatprep.subr.mxu0 0.0
        %409 = vmatpush2.msra.mxu0 0.0
        %410 = vmatprep.subr.mxu0 0.0
        %411 = vmatpush2.msra.mxu0 0.0
        %412 = vmatprep.subr.mxu0 0.0
        %413 = vmatpush2.msra.mxu0 0.0
        %414 = vmatprep.mubr.f32.mxu0 0.0
        %415 = vmatmul.mubr.f32.gmra.mxu0 %v317
        %v416 = vpop.f32.mrf.mxu0
        %v417 = vadd.f32 0.0, %v416
        %v418 = vpop.f32.mrf.mxu0
        %419 = vmatprep.mubr.f32.mxu0 0.0
        %420 = vmatmul.mubr.f32.gmra.mxu0 %v318
        %v421 = vpop.f32.mrf.mxu0
        %v422 = vadd.f32 0.0, %v421
        %v423 = vpop.f32.mrf.mxu0
        %424 = vmatprep.mubr.f32.mxu0 0.0
        %425 = vmatmul.mubr.f32.gmra.mxu0 %v319
        %v426 = vpop.f32.mrf.mxu0
        %v427 = vadd.f32 0.0, %v426
        %v428 = vpop.f32.mrf.mxu0
        %429 = vmatprep.mubr.f32.mxu0 0.0
        %430 = vmatmul.mubr.f32.gmra.mxu0 %v320
        %v431 = vpop.f32.mrf.mxu0
        %v432 = vadd.f32 0.0, %v431
        %v433 = vpop.f32.mrf.mxu0
        %434 = vmatprep.mubr.f32.mxu0 0.0
        %435 = vmatmul.mubr.f32.gmra.mxu0 %v321
        %v436 = vpop.f32.mrf.mxu0
        %v437 = vadd.f32 0.0, %v436
        %v438 = vpop.f32.mrf.mxu0
        %439 = vmatprep.mubr.f32.mxu0 0.0
        %440 = vmatmul.mubr.f32.gmra.mxu0 %v322
        %v441 = vpop.f32.mrf.mxu0
        %v442 = vadd.f32 0.0, %v441
        %v443 = vpop.f32.mrf.mxu0
        %444 = vmatprep.mubr.f32.mxu0 0.0
        %445 = vmatmul.mubr.f32.gmra.mxu0 %v323
        %v446 = vpop.f32.mrf.mxu0
        %v447 = vadd.f32 0.0, %v446
        %v448 = vpop.f32.mrf.mxu0
        %449 = vmatprep.mubr.f32.mxu0 0.0
        %450 = vmatmul.mubr.f32.gmra.mxu0 %v324
        %v451 = vpop.f32.mrf.mxu0
        %v452 = vadd.f32 0.0, %v451
        %v453 = vpop.f32.mrf.mxu0
        %454 = vmatprep.mubr.f32.mxu0 0.0
        %455 = vmatmul.mubr.f32.gmra.mxu0 %v325
        %v456 = vpop.f32.mrf.mxu0
        %v457 = vadd.f32 0.0, %v456
        %v458 = vpop.f32.mrf.mxu0
        %459 = vmatprep.mubr.f32.mxu0 0.0
        %460 = vmatmul.mubr.f32.gmra.mxu0 %v326
        %v461 = vpop.f32.mrf.mxu0
        %v462 = vadd.f32 0.0, %v461
        %v463 = vpop.f32.mrf.mxu0
        %464 = vmatprep.mubr.f32.mxu0 0.0
        %465 = vmatmul.mubr.f32.gmra.mxu0 %v327
        %v466 = vpop.f32.mrf.mxu0
        %v467 = vadd.f32 0.0, %v466
        %v468 = vpop.f32.mrf.mxu0
        %469 = vmatprep.mubr.f32.mxu0 0.0
        %470 = vmatmul.mubr.f32.gmra.mxu0 %v328
        %v471 = vpop.f32.mrf.mxu0
        %v472 = vadd.f32 0.0, %v471
        %v473 = vpop.f32.mrf.mxu0
        %474 = vmatprep.mubr.f32.mxu0 0.0
        %475 = vmatmul.mubr.f32.gmra.mxu0 %v329
        %v476 = vpop.f32.mrf.mxu0
        %v477 = vadd.f32 0.0, %v476
        %v478 = vpop.f32.mrf.mxu0
        %479 = vmatprep.mubr.f32.mxu0 0.0
        %480 = vmatmul.mubr.f32.gmra.mxu0 %v330
        %v481 = vpop.f32.mrf.mxu0
        %v482 = vadd.f32 0.0, %v481
        %v483 = vpop.f32.mrf.mxu0
        %484 = vmatprep.mubr.f32.mxu0 0.0
        %485 = vmatmul.mubr.f32.gmra.mxu0 %v331
        %v486 = vpop.f32.mrf.mxu0
        %v487 = vadd.f32 0.0, %v486
        %v488 = vpop.f32.mrf.mxu0
        %489 = vmatprep.mubr.f32.mxu0 0.0
        %490 = vmatmul.mubr.f32.gmra.mxu0 %v332
        %v491 = vpop.f32.mrf.mxu0
        %v492 = vadd.f32 0.0, %v491
        %v493 = vpop.f32.mrf.mxu0
        %494 = vdwg.mxu0
        %495 = vmatprep.subr.mxu0 0.0
        %496 = vmatpush1.msra.mxu0 %v316
        %497 = vmatprep.subr.mxu0 0.0
        %498 = vmatpush1.msra.mxu0 %v315
        %499 = vmatprep.subr.mxu0 0.0
        %500 = vmatpush1.msra.mxu0 %v314
        %501 = vmatprep.subr.mxu0 0.0
        %502 = vmatpush1.msra.mxu0 %v313
        %503 = vmatprep.subr.mxu0 0.0
        %504 = vmatpush1.msra.mxu0 %v312
        %505 = vmatprep.subr.mxu0 0.0
        %506 = vmatpush1.msra.mxu0 %v311
        %507 = vmatprep.subr.mxu0 0.0
        %508 = vmatpush1.msra.mxu0 %v310
        %509 = vmatprep.subr.mxu0 0.0
        %510 = vmatpush1.msra.mxu0 %v309
        %511 = vmatprep.subr.mxu0 0.0
        %512 = vmatpush1.msra.mxu0 %v308
        %513 = vmatprep.subr.mxu0 0.0
        %514 = vmatpush1.msra.mxu0 %v307
        %515 = vmatprep.subr.mxu0 0.0
        %516 = vmatpush1.msra.mxu0 %v306
        %517 = vmatprep.subr.mxu0 0.0
        %518 = vmatpush1.msra.mxu0 %v305
        %519 = vmatprep.subr.mxu0 0.0
        %520 = vmatpush1.msra.mxu0 %v304
        %521 = vmatprep.subr.mxu0 0.0
        %522 = vmatpush1.msra.mxu0 %v303
        %523 = vmatprep.subr.mxu0 0.0
        %524 = vmatpush1.msra.mxu0 %v302
        %525 = vmatprep.subr.mxu0 0.0
        %526 = vmatpush1.msra.mxu0 %v301
        %527 = vmatprep.subr.mxu0 0.0
        %528 = vmatpush2.msra.mxu0 0.0
        %529 = vmatprep.subr.mxu0 0.0
        %530 = vmatpush2.msra.mxu0 0.0
        %531 = vmatprep.subr.mxu0 0.0
        %532 = vmatpush2.msra.mxu0 0.0
        %533 = vmatprep.subr.mxu0 0.0
        %534 = vmatpush2.msra.mxu0 0.0
        %535 = vmatprep.subr.mxu0 0.0
        %536 = vmatpush2.msra.mxu0 0.0
        %537 = vmatprep.subr.mxu0 0.0
        %538 = vmatpush2.msra.mxu0 0.0
        %539 = vmatprep.subr.mxu0 0.0
        %540 = vmatpush2.msra.mxu0 0.0
        %541 = vmatprep.subr.mxu0 0.0
        %542 = vmatpush2.msra.mxu0 0.0
        %543 = vmatprep.subr.mxu0 0.0
        %544 = vmatpush2.msra.mxu0 0.0
        %545 = vmatprep.subr.mxu0 0.0
        %546 = vmatpush2.msra.mxu0 0.0
        %547 = vmatprep.subr.mxu0 0.0
        %548 = vmatpush2.msra.mxu0 0.0
        %549 = vmatprep.subr.mxu0 0.0
        %550 = vmatpush2.msra.mxu0 0.0
        %551 = vmatprep.subr.mxu0 0.0
        %552 = vmatpush2.msra.mxu0 0.0
        %553 = vmatprep.subr.mxu0 0.0
        %554 = vmatpush2.msra.mxu0 0.0
        %555 = vmatprep.subr.mxu0 0.0
        %556 = vmatpush2.msra.mxu0 0.0
        %557 = vmatprep.subr.mxu0 0.0
        %558 = vmatpush2.msra.mxu0 0.0
        %559 = vmatprep.mubr.f32.mxu0 0.0
        %560 = vmatmul.mubr.f32.gmra.mxu0 %v285
        %v561 = vpop.f32.mrf.mxu0
        %v562 = vadd.f32 %v417, %v561
        %v563 = vpop.f32.mrf.mxu0
        %564 = vmatprep.mubr.f32.mxu0 0.0
        %565 = vmatmul.mubr.f32.gmra.mxu0 %v286
        %v566 = vpop.f32.mrf.mxu0
        %v567 = vadd.f32 %v422, %v566
        %v568 = vpop.f32.mrf.mxu0
        %569 = vmatprep.mubr.f32.mxu0 0.0
        %570 = vmatmul.mubr.f32.gmra.mxu0 %v287
        %v571 = vpop.f32.mrf.mxu0
        %v572 = vadd.f32 %v427, %v571
        %v573 = vpop.f32.mrf.mxu0
        %574 = vmatprep.mubr.f32.mxu0 0.0
        %575 = vmatmul.mubr.f32.gmra.mxu0 %v288
        %v576 = vpop.f32.mrf.mxu0
        %v577 = vadd.f32 %v432, %v576
        %v578 = vpop.f32.mrf.mxu0
        %579 = vmatprep.mubr.f32.mxu0 0.0
        %580 = vmatmul.mubr.f32.gmra.mxu0 %v289
        %v581 = vpop.f32.mrf.mxu0
        %v582 = vadd.f32 %v437, %v581
        %v583 = vpop.f32.mrf.mxu0
        %584 = vmatprep.mubr.f32.mxu0 0.0
        %585 = vmatmul.mubr.f32.gmra.mxu0 %v290
        %v586 = vpop.f32.mrf.mxu0
        %v587 = vadd.f32 %v442, %v586
        %v588 = vpop.f32.mrf.mxu0
        %589 = vmatprep.mubr.f32.mxu0 0.0
        %590 = vmatmul.mubr.f32.gmra.mxu0 %v291
        %v591 = vpop.f32.mrf.mxu0
        %v592 = vadd.f32 %v447, %v591
        %v593 = vpop.f32.mrf.mxu0
        %594 = vmatprep.mubr.f32.mxu0 0.0
        %595 = vmatmul.mubr.f32.gmra.mxu0 %v292
        %v596 = vpop.f32.mrf.mxu0
        %v597 = vadd.f32 %v452, %v596
        %v598 = vpop.f32.mrf.mxu0
        %599 = vmatprep.mubr.f32.mxu0 0.0
        %600 = vmatmul.mubr.f32.gmra.mxu0 %v293
        %v601 = vpop.f32.mrf.mxu0
        %v602 = vadd.f32 %v457, %v601
        %v603 = vpop.f32.mrf.mxu0
        %604 = vmatprep.mubr.f32.mxu0 0.0
        %605 = vmatmul.mubr.f32.gmra.mxu0 %v294
        %v606 = vpop.f32.mrf.mxu0
        %v607 = vadd.f32 %v462, %v606
        %v608 = vpop.f32.mrf.mxu0
        %609 = vmatprep.mubr.f32.mxu0 0.0
        %610 = vmatmul.mubr.f32.gmra.mxu0 %v295
        %v611 = vpop.f32.mrf.mxu0
        %v612 = vadd.f32 %v467, %v611
        %v613 = vpop.f32.mrf.mxu0
        %614 = vmatprep.mubr.f32.mxu0 0.0
        %615 = vmatmul.mubr.f32.gmra.mxu0 %v296
        %v616 = vpop.f32.mrf.mxu0
        %v617 = vadd.f32 %v472, %v616
        %v618 = vpop.f32.mrf.mxu0
        %619 = vmatprep.mubr.f32.mxu0 0.0
        %620 = vmatmul.mubr.f32.gmra.mxu0 %v297
        %v621 = vpop.f32.mrf.mxu0
        %v622 = vadd.f32 %v477, %v621
        %v623 = vpop.f32.mrf.mxu0
        %624 = vmatprep.mubr.f32.mxu0 0.0
        %625 = vmatmul.mubr.f32.gmra.mxu0 %v298
        %v626 = vpop.f32.mrf.mxu0
        %v627 = vadd.f32 %v482, %v626
        %v628 = vpop.f32.mrf.mxu0
        %629 = vmatprep.mubr.f32.mxu0 0.0
        %630 = vmatmul.mubr.f32.gmra.mxu0 %v299
        %v631 = vpop.f32.mrf.mxu0
        %v632 = vadd.f32 %v487, %v631
        %v633 = vpop.f32.mrf.mxu0
        %634 = vmatprep.mubr.f32.mxu0 0.0
        %635 = vmatmul.mubr.f32.gmra.mxu0 %v300
        %v636 = vpop.f32.mrf.mxu0
        %v637 = vadd.f32 %v492, %v636
        %v638 = vpop.f32.mrf.mxu0
        %639 = vdwg.mxu0
        %v640 = vld [vmem:[%s284 + $0x2] sm:$0xff]
        %v641 = vld [vmem:[%s284 + $0xa] sm:$0xff]
        %v642 = vld [vmem:[%s284 + $0x1a] sm:$0xff]
        %v643 = vld [vmem:[%s284 + $0x22] sm:$0xff]
        %v644 = vld [vmem:[%s284 + $0x32] sm:$0xff]
        %v645 = vld [vmem:[%s284 + $0x3a] sm:$0xff]
        %v646 = vld [vmem:[%s284 + $0x4a] sm:$0xff]
        %v647 = vld [vmem:[%s284 + $0x52] sm:$0xff]
        %v648 = vld [vmem:[%s284 + $0x62] sm:$0xff]
        %v649 = vld [vmem:[%s284 + $0x6a] sm:$0xff]
        %v650 = vld [vmem:[%s284 + $0x7a] sm:$0xff]
        %v651 = vld [vmem:[%s284 + $0x82] sm:$0xff]
        %v652 = vld [vmem:[%s284 + $0x92] sm:$0xff]
        %v653 = vld [vmem:[%s284 + $0x9a] sm:$0xff]
        %v654 = vld [vmem:[%s284 + $0xaa] sm:$0xff]
        %v655 = vld [vmem:[%s284 + $0xb2] sm:$0xff]
        %s656 = scalar_lea.vmem %s1, 256
        %v657 = vld [vmem:[%s656] sm:$0xff]
        %v658 = vld [vmem:[%s656 + $0x8] sm:$0xff]
        %v659 = vld [vmem:[%s656 + $0x10] sm:$0xff]
        %v660 = vld [vmem:[%s656 + $0x18] sm:$0xff]
        %v661 = vld [vmem:[%s656 + $0x20] sm:$0xff]
        %v662 = vld [vmem:[%s656 + $0x28] sm:$0xff]
        %v663 = vld [vmem:[%s656 + $0x30] sm:$0xff]
        %v664 = vld [vmem:[%s656 + $0x38] sm:$0xff]
        %v665 = vld [vmem:[%s656 + $0x40] sm:$0xff]
        %v666 = vld [vmem:[%s656 + $0x48] sm:$0xff]
        %v667 = vld [vmem:[%s656 + $0x50] sm:$0xff]
        %v668 = vld [vmem:[%s656 + $0x58] sm:$0xff]
        %v669 = vld [vmem:[%s656 + $0x60] sm:$0xff]
        %v670 = vld [vmem:[%s656 + $0x68] sm:$0xff]
        %v671 = vld [vmem:[%s656 + $0x70] sm:$0xff]
        %v672 = vld [vmem:[%s656 + $0x78] sm:$0xff]
        %673 = vmatprep.subr.mxu0 0.0
        %674 = vmatpush1.msra.mxu0 %v672
        %675 = vmatprep.subr.mxu0 0.0
        %676 = vmatpush1.msra.mxu0 %v671
        %677 = vmatprep.subr.mxu0 0.0
        %678 = vmatpush1.msra.mxu0 %v670
        %679 = vmatprep.subr.mxu0 0.0
        %680 = vmatpush1.msra.mxu0 %v669
        %681 = vmatprep.subr.mxu0 0.0
        %682 = vmatpush1.msra.mxu0 %v668
        %683 = vmatprep.subr.mxu0 0.0
        %684 = vmatpush1.msra.mxu0 %v667
        %685 = vmatprep.subr.mxu0 0.0
        %686 = vmatpush1.msra.mxu0 %v666
        %687 = vmatprep.subr.mxu0 0.0
        %688 = vmatpush1.msra.mxu0 %v665
        %689 = vmatprep.subr.mxu0 0.0
        %690 = vmatpush1.msra.mxu0 %v664
        %691 = vmatprep.subr.mxu0 0.0
        %692 = vmatpush1.msra.mxu0 %v663
        %693 = vmatprep.subr.mxu0 0.0
        %694 = vmatpush1.msra.mxu0 %v662
        %695 = vmatprep.subr.mxu0 0.0
        %696 = vmatpush1.msra.mxu0 %v661
        %697 = vmatprep.subr.mxu0 0.0
        %698 = vmatpush1.msra.mxu0 %v660
        %699 = vmatprep.subr.mxu0 0.0
        %700 = vmatpush1.msra.mxu0 %v659
        %701 = vmatprep.subr.mxu0 0.0
        %702 = vmatpush1.msra.mxu0 %v658
        %703 = vmatprep.subr.mxu0 0.0
        %704 = vmatpush1.msra.mxu0 %v657
        %705 = vmatprep.subr.mxu0 0.0
        %706 = vmatpush2.msra.mxu0 0.0
        %707 = vmatprep.subr.mxu0 0.0
        %708 = vmatpush2.msra.mxu0 0.0
        %709 = vmatprep.subr.mxu0 0.0
        %710 = vmatpush2.msra.mxu0 0.0
        %711 = vmatprep.subr.mxu0 0.0
        %712 = vmatpush2.msra.mxu0 0.0
        %713 = vmatprep.subr.mxu0 0.0
        %714 = vmatpush2.msra.mxu0 0.0
        %715 = vmatprep.subr.mxu0 0.0
        %716 = vmatpush2.msra.mxu0 0.0
        %717 = vmatprep.subr.mxu0 0.0
        %718 = vmatpush2.msra.mxu0 0.0
        %719 = vmatprep.subr.mxu0 0.0
        %720 = vmatpush2.msra.mxu0 0.0
        %721 = vmatprep.subr.mxu0 0.0
        %722 = vmatpush2.msra.mxu0 0.0
        %723 = vmatprep.subr.mxu0 0.0
        %724 = vmatpush2.msra.mxu0 0.0
        %725 = vmatprep.subr.mxu0 0.0
        %726 = vmatpush2.msra.mxu0 0.0
        %727 = vmatprep.subr.mxu0 0.0
        %728 = vmatpush2.msra.mxu0 0.0
        %729 = vmatprep.subr.mxu0 0.0
        %730 = vmatpush2.msra.mxu0 0.0
        %731 = vmatprep.subr.mxu0 0.0
        %732 = vmatpush2.msra.mxu0 0.0
        %733 = vmatprep.subr.mxu0 0.0
        %734 = vmatpush2.msra.mxu0 0.0
        %735 = vmatprep.subr.mxu0 0.0
        %736 = vmatpush2.msra.mxu0 0.0
        %737 = vmatprep.mubr.f32.mxu0 0.0
        %738 = vmatmul.mubr.f32.gmra.mxu0 %v640
        %v739 = vpop.f32.mrf.mxu0
        %v740 = vadd.f32 0.0, %v739
        %v741 = vpop.f32.mrf.mxu0
        %742 = vmatprep.mubr.f32.mxu0 0.0
        %743 = vmatmul.mubr.f32.gmra.mxu0 %v641
        %v744 = vpop.f32.mrf.mxu0
        %v745 = vadd.f32 0.0, %v744
        %v746 = vpop.f32.mrf.mxu0
        %747 = vmatprep.mubr.f32.mxu0 0.0
        %748 = vmatmul.mubr.f32.gmra.mxu0 %v642
        %v749 = vpop.f32.mrf.mxu0
        %v750 = vadd.f32 0.0, %v749
        %v751 = vpop.f32.mrf.mxu0
        %752 = vmatprep.mubr.f32.mxu0 0.0
        %753 = vmatmul.mubr.f32.gmra.mxu0 %v643
        %v754 = vpop.f32.mrf.mxu0
        %v755 = vadd.f32 0.0, %v754
        %v756 = vpop.f32.mrf.mxu0
        %757 = vmatprep.mubr.f32.mxu0 0.0
        %758 = vmatmul.mubr.f32.gmra.mxu0 %v644
        %v759 = vpop.f32.mrf.mxu0
        %v760 = vadd.f32 0.0, %v759
        %v761 = vpop.f32.mrf.mxu0
        %762 = vmatprep.mubr.f32.mxu0 0.0
        %763 = vmatmul.mubr.f32.gmra.mxu0 %v645
        %v764 = vpop.f32.mrf.mxu0
        %v765 = vadd.f32 0.0, %v764
        %v766 = vpop.f32.mrf.mxu0
        %767 = vmatprep.mubr.f32.mxu0 0.0
        %768 = vmatmul.mubr.f32.gmra.mxu0 %v646
        %v769 = vpop.f32.mrf.mxu0
        %v770 = vadd.f32 0.0, %v769
        %v771 = vpop.f32.mrf.mxu0
        %772 = vmatprep.mubr.f32.mxu0 0.0
        %773 = vmatmul.mubr.f32.gmra.mxu0 %v647
        %v774 = vpop.f32.mrf.mxu0
        %v775 = vadd.f32 0.0, %v774
        %v776 = vpop.f32.mrf.mxu0
        %777 = vmatprep.mubr.f32.mxu0 0.0
        %778 = vmatmul.mubr.f32.gmra.mxu0 %v648
        %v779 = vpop.f32.mrf.mxu0
        %v780 = vadd.f32 0.0, %v779
        %v781 = vpop.f32.mrf.mxu0
        %782 = vmatprep.mubr.f32.mxu0 0.0
        %783 = vmatmul.mubr.f32.gmra.mxu0 %v649
        %v784 = vpop.f32.mrf.mxu0
        %v785 = vadd.f32 0.0, %v784
        %v786 = vpop.f32.mrf.mxu0
        %787 = vmatprep.mubr.f32.mxu0 0.0
        %788 = vmatmul.mubr.f32.gmra.mxu0 %v650
        %v789 = vpop.f32.mrf.mxu0
        %v790 = vadd.f32 0.0, %v789
        %v791 = vpop.f32.mrf.mxu0
        %792 = vmatprep.mubr.f32.mxu0 0.0
        %793 = vmatmul.mubr.f32.gmra.mxu0 %v651
        %v794 = vpop.f32.mrf.mxu0
        %v795 = vadd.f32 0.0, %v794
        %v796 = vpop.f32.mrf.mxu0
        %797 = vmatprep.mubr.f32.mxu0 0.0
        %798 = vmatmul.mubr.f32.gmra.mxu0 %v652
        %v799 = vpop.f32.mrf.mxu0
        %v800 = vadd.f32 0.0, %v799
        %v801 = vpop.f32.mrf.mxu0
        %802 = vmatprep.mubr.f32.mxu0 0.0
        %803 = vmatmul.mubr.f32.gmra.mxu0 %v653
        %v804 = vpop.f32.mrf.mxu0
        %v805 = vadd.f32 0.0, %v804
        %v806 = vpop.f32.mrf.mxu0
        %807 = vmatprep.mubr.f32.mxu0 0.0
        %808 = vmatmul.mubr.f32.gmra.mxu0 %v654
        %v809 = vpop.f32.mrf.mxu0
        %v810 = vadd.f32 0.0, %v809
        %v811 = vpop.f32.mrf.mxu0
        %812 = vmatprep.mubr.f32.mxu0 0.0
        %813 = vmatmul.mubr.f32.gmra.mxu0 %v655
        %v814 = vpop.f32.mrf.mxu0
        %v815 = vadd.f32 0.0, %v814
        %v816 = vpop.f32.mrf.mxu0
        %817 = vdwg.mxu0
        %v818 = vadd.f32 %v562, %v740
        %v819 = vadd.f32 %v567, %v745
        %v820 = vadd.f32 %v572, %v750
        %v821 = vadd.f32 %v577, %v755
        %v822 = vadd.f32 %v582, %v760
        %v823 = vadd.f32 %v587, %v765
        %v824 = vadd.f32 %v592, %v770
        %v825 = vadd.f32 %v597, %v775
        %v826 = vadd.f32 %v602, %v780
        %v827 = vadd.f32 %v607, %v785
        %v828 = vadd.f32 %v612, %v790
        %v829 = vadd.f32 %v617, %v795
        %v830 = vadd.f32 %v622, %v800
        %v831 = vadd.f32 %v627, %v805
        %v832 = vadd.f32 %v632, %v810
        %v833 = vadd.f32 %v637, %v815
        %s834 = sadd.s32 0, 1
        %s835 = smul.u32 %s834, 24
        %s836 = scalar_lea.vmem %s237, %s835
        %v837 = vld [vmem:[%s836] sm:$0xff]
        %v838 = vld [vmem:[%s836 + $0x8] sm:$0xff]
        %v839 = vld [vmem:[%s836 + $0x18] sm:$0xff]
        %v840 = vld [vmem:[%s836 + $0x20] sm:$0xff]
        %v841 = vld [vmem:[%s836 + $0x30] sm:$0xff]
        %v842 = vld [vmem:[%s836 + $0x38] sm:$0xff]
        %v843 = vld [vmem:[%s836 + $0x48] sm:$0xff]
        %v844 = vld [vmem:[%s836 + $0x50] sm:$0xff]
        %v845 = vld [vmem:[%s836 + $0x60] sm:$0xff]
        %v846 = vld [vmem:[%s836 + $0x68] sm:$0xff]
        %v847 = vld [vmem:[%s836 + $0x78] sm:$0xff]
        %v848 = vld [vmem:[%s836 + $0x80] sm:$0xff]
        %v849 = vld [vmem:[%s836 + $0x90] sm:$0xff]
        %v850 = vld [vmem:[%s836 + $0x98] sm:$0xff]
        %v851 = vld [vmem:[%s836 + $0xa8] sm:$0xff]
        %v852 = vld [vmem:[%s836 + $0xb0] sm:$0xff]
        %s853 = scalar_lea.vmem %s1, 384
        %v854 = vld [vmem:[%s853] sm:$0xff]
        %v855 = vld [vmem:[%s853 + $0x8] sm:$0xff]
        %v856 = vld [vmem:[%s853 + $0x10] sm:$0xff]
        %v857 = vld [vmem:[%s853 + $0x18] sm:$0xff]
        %v858 = vld [vmem:[%s853 + $0x20] sm:$0xff]
        %v859 = vld [vmem:[%s853 + $0x28] sm:$0xff]
        %v860 = vld [vmem:[%s853 + $0x30] sm:$0xff]
        %v861 = vld [vmem:[%s853 + $0x38] sm:$0xff]
        %v862 = vld [vmem:[%s853 + $0x40] sm:$0xff]
        %v863 = vld [vmem:[%s853 + $0x48] sm:$0xff]
        %v864 = vld [vmem:[%s853 + $0x50] sm:$0xff]
        %v865 = vld [vmem:[%s853 + $0x58] sm:$0xff]
        %v866 = vld [vmem:[%s853 + $0x60] sm:$0xff]
        %v867 = vld [vmem:[%s853 + $0x68] sm:$0xff]
        %v868 = vld [vmem:[%s853 + $0x70] sm:$0xff]
        %v869 = vld [vmem:[%s853 + $0x78] sm:$0xff]
        %870 = vmatprep.subr.mxu0 0.0
        %871 = vmatpush1.msra.mxu0 %v869
        %872 = vmatprep.subr.mxu0 0.0
        %873 = vmatpush1.msra.mxu0 %v868
        %874 = vmatprep.subr.mxu0 0.0
        %875 = vmatpush1.msra.mxu0 %v867
        %876 = vmatprep.subr.mxu0 0.0
        %877 = vmatpush1.msra.mxu0 %v866
        %878 = vmatprep.subr.mxu0 0.0
        %879 = vmatpush1.msra.mxu0 %v865
        %880 = vmatprep.subr.mxu0 0.0
        %881 = vmatpush1.msra.mxu0 %v864
        %882 = vmatprep.subr.mxu0 0.0
        %883 = vmatpush1.msra.mxu0 %v863
        %884 = vmatprep.subr.mxu0 0.0
        %885 = vmatpush1.msra.mxu0 %v862
        %886 = vmatprep.subr.mxu0 0.0
        %887 = vmatpush1.msra.mxu0 %v861
        %888 = vmatprep.subr.mxu0 0.0
        %889 = vmatpush1.msra.mxu0 %v860
        %890 = vmatprep.subr.mxu0 0.0
        %891 = vmatpush1.msra.mxu0 %v859
        %892 = vmatprep.subr.mxu0 0.0
        %893 = vmatpush1.msra.mxu0 %v858
        %894 = vmatprep.subr.mxu0 0.0
        %895 = vmatpush1.msra.mxu0 %v857
        %896 = vmatprep.subr.mxu0 0.0
        %897 = vmatpush1.msra.mxu0 %v856
        %898 = vmatprep.subr.mxu0 0.0
        %899 = vmatpush1.msra.mxu0 %v855
        %900 = vmatprep.subr.mxu0 0.0
        %901 = vmatpush1.msra.mxu0 %v854
        %902 = vmatprep.subr.mxu0 0.0
        %903 = vmatpush2.msra.mxu0 0.0
        %904 = vmatprep.subr.mxu0 0.0
        %905 = vmatpush2.msra.mxu0 0.0
        %906 = vmatprep.subr.mxu0 0.0
        %907 = vmatpush2.msra.mxu0 0.0
        %908 = vmatprep.subr.mxu0 0.0
        %909 = vmatpush2.msra.mxu0 0.0
        %910 = vmatprep.subr.mxu0 0.0
        %911 = vmatpush2.msra.mxu0 0.0
        %912 = vmatprep.subr.mxu0 0.0
        %913 = vmatpush2.msra.mxu0 0.0
        %914 = vmatprep.subr.mxu0 0.0
        %915 = vmatpush2.msra.mxu0 0.0
        %916 = vmatprep.subr.mxu0 0.0
        %917 = vmatpush2.msra.mxu0 0.0
        %918 = vmatprep.subr.mxu0 0.0
        %919 = vmatpush2.msra.mxu0 0.0
        %920 = vmatprep.subr.mxu0 0.0
        %921 = vmatpush2.msra.mxu0 0.0
        %922 = vmatprep.subr.mxu0 0.0
        %923 = vmatpush2.msra.mxu0 0.0
        %924 = vmatprep.subr.mxu0 0.0
        %925 = vmatpush2.msra.mxu0 0.0
        %926 = vmatprep.subr.mxu0 0.0
        %927 = vmatpush2.msra.mxu0 0.0
        %928 = vmatprep.subr.mxu0 0.0
        %929 = vmatpush2.msra.mxu0 0.0
        %930 = vmatprep.subr.mxu0 0.0
        %931 = vmatpush2.msra.mxu0 0.0
        %932 = vmatprep.subr.mxu0 0.0
        %933 = vmatpush2.msra.mxu0 0.0
        %934 = vmatprep.mubr.f32.mxu0 0.0
        %935 = vmatmul.mubr.f32.gmra.mxu0 %v837
        %v936 = vpop.f32.mrf.mxu0
        %v937 = vadd.f32 0.0, %v936
        %v938 = vpop.f32.mrf.mxu0
        %939 = vmatprep.mubr.f32.mxu0 0.0
        %940 = vmatmul.mubr.f32.gmra.mxu0 %v838
        %v941 = vpop.f32.mrf.mxu0
        %v942 = vadd.f32 0.0, %v941
        %v943 = vpop.f32.mrf.mxu0
        %944 = vmatprep.mubr.f32.mxu0 0.0
        %945 = vmatmul.mubr.f32.gmra.mxu0 %v839
        %v946 = vpop.f32.mrf.mxu0
        %v947 = vadd.f32 0.0, %v946
        %v948 = vpop.f32.mrf.mxu0
        %949 = vmatprep.mubr.f32.mxu0 0.0
        %950 = vmatmul.mubr.f32.gmra.mxu0 %v840
        %v951 = vpop.f32.mrf.mxu0
        %v952 = vadd.f32 0.0, %v951
        %v953 = vpop.f32.mrf.mxu0
        %954 = vmatprep.mubr.f32.mxu0 0.0
        %955 = vmatmul.mubr.f32.gmra.mxu0 %v841
        %v956 = vpop.f32.mrf.mxu0
        %v957 = vadd.f32 0.0, %v956
        %v958 = vpop.f32.mrf.mxu0
        %959 = vmatprep.mubr.f32.mxu0 0.0
        %960 = vmatmul.mubr.f32.gmra.mxu0 %v842
        %v961 = vpop.f32.mrf.mxu0
        %v962 = vadd.f32 0.0, %v961
        %v963 = vpop.f32.mrf.mxu0
        %964 = vmatprep.mubr.f32.mxu0 0.0
        %965 = vmatmul.mubr.f32.gmra.mxu0 %v843
        %v966 = vpop.f32.mrf.mxu0
        %v967 = vadd.f32 0.0, %v966
        %v968 = vpop.f32.mrf.mxu0
        %969 = vmatprep.mubr.f32.mxu0 0.0
        %970 = vmatmul.mubr.f32.gmra.mxu0 %v844
        %v971 = vpop.f32.mrf.mxu0
        %v972 = vadd.f32 0.0, %v971
        %v973 = vpop.f32.mrf.mxu0
        %974 = vmatprep.mubr.f32.mxu0 0.0
        %975 = vmatmul.mubr.f32.gmra.mxu0 %v845
        %v976 = vpop.f32.mrf.mxu0
        %v977 = vadd.f32 0.0, %v976
        %v978 = vpop.f32.mrf.mxu0
        %979 = vmatprep.mubr.f32.mxu0 0.0
        %980 = vmatmul.mubr.f32.gmra.mxu0 %v846
        %v981 = vpop.f32.mrf.mxu0
        %v982 = vadd.f32 0.0, %v981
        %v983 = vpop.f32.mrf.mxu0
        %984 = vmatprep.mubr.f32.mxu0 0.0
        %985 = vmatmul.mubr.f32.gmra.mxu0 %v847
        %v986 = vpop.f32.mrf.mxu0
        %v987 = vadd.f32 0.0, %v986
        %v988 = vpop.f32.mrf.mxu0
        %989 = vmatprep.mubr.f32.mxu0 0.0
        %990 = vmatmul.mubr.f32.gmra.mxu0 %v848
        %v991 = vpop.f32.mrf.mxu0
        %v992 = vadd.f32 0.0, %v991
        %v993 = vpop.f32.mrf.mxu0
        %994 = vmatprep.mubr.f32.mxu0 0.0
        %995 = vmatmul.mubr.f32.gmra.mxu0 %v849
        %v996 = vpop.f32.mrf.mxu0
        %v997 = vadd.f32 0.0, %v996
        %v998 = vpop.f32.mrf.mxu0
        %999 = vmatprep.mubr.f32.mxu0 0.0
        %1000 = vmatmul.mubr.f32.gmra.mxu0 %v850
        %v1001 = vpop.f32.mrf.mxu0
        %v1002 = vadd.f32 0.0, %v1001
        %v1003 = vpop.f32.mrf.mxu0
        %1004 = vmatprep.mubr.f32.mxu0 0.0
        %1005 = vmatmul.mubr.f32.gmra.mxu0 %v851
        %v1006 = vpop.f32.mrf.mxu0
        %v1007 = vadd.f32 0.0, %v1006
        %v1008 = vpop.f32.mrf.mxu0
        %1009 = vmatprep.mubr.f32.mxu0 0.0
        %1010 = vmatmul.mubr.f32.gmra.mxu0 %v852
        %v1011 = vpop.f32.mrf.mxu0
        %v1012 = vadd.f32 0.0, %v1011
        %v1013 = vpop.f32.mrf.mxu0
        %1014 = vdwg.mxu0
        %v1015 = vadd.f32 %v818, %v937
        %v1016 = vadd.f32 %v819, %v942
        %v1017 = vadd.f32 %v820, %v947
        %v1018 = vadd.f32 %v821, %v952
        %v1019 = vadd.f32 %v822, %v957
        %v1020 = vadd.f32 %v823, %v962
        %v1021 = vadd.f32 %v824, %v967
        %v1022 = vadd.f32 %v825, %v972
        %v1023 = vadd.f32 %v826, %v977
        %v1024 = vadd.f32 %v827, %v982
        %v1025 = vadd.f32 %v828, %v987
        %v1026 = vadd.f32 %v829, %v992
        %v1027 = vadd.f32 %v830, %v997
        %v1028 = vadd.f32 %v831, %v1002
        %v1029 = vadd.f32 %v832, %v1007
        %v1030 = vadd.f32 %v833, %v1012
        %v1031 = vld [vmem:[%s836 + $0x1] sm:$0xff]
        %v1032 = vld [vmem:[%s836 + $0x9] sm:$0xff]
        %v1033 = vld [vmem:[%s836 + $0x19] sm:$0xff]
        %v1034 = vld [vmem:[%s836 + $0x21] sm:$0xff]
        %v1035 = vld [vmem:[%s836 + $0x31] sm:$0xff]
        %v1036 = vld [vmem:[%s836 + $0x39] sm:$0xff]
        %v1037 = vld [vmem:[%s836 + $0x49] sm:$0xff]
        %v1038 = vld [vmem:[%s836 + $0x51] sm:$0xff]
        %v1039 = vld [vmem:[%s836 + $0x61] sm:$0xff]
        %v1040 = vld [vmem:[%s836 + $0x69] sm:$0xff]
        %v1041 = vld [vmem:[%s836 + $0x79] sm:$0xff]
        %v1042 = vld [vmem:[%s836 + $0x81] sm:$0xff]
        %v1043 = vld [vmem:[%s836 + $0x91] sm:$0xff]
        %v1044 = vld [vmem:[%s836 + $0x99] sm:$0xff]
        %v1045 = vld [vmem:[%s836 + $0xa9] sm:$0xff]
        %v1046 = vld [vmem:[%s836 + $0xb1] sm:$0xff]
        %s1047 = scalar_lea.vmem %s1, 512
        %v1048 = vld [vmem:[%s1047] sm:$0xff]
        %v1049 = vld [vmem:[%s1047 + $0x8] sm:$0xff]
        %v1050 = vld [vmem:[%s1047 + $0x10] sm:$0xff]
        %v1051 = vld [vmem:[%s1047 + $0x18] sm:$0xff]
        %v1052 = vld [vmem:[%s1047 + $0x20] sm:$0xff]
        %v1053 = vld [vmem:[%s1047 + $0x28] sm:$0xff]
        %v1054 = vld [vmem:[%s1047 + $0x30] sm:$0xff]
        %v1055 = vld [vmem:[%s1047 + $0x38] sm:$0xff]
        %v1056 = vld [vmem:[%s1047 + $0x40] sm:$0xff]
        %v1057 = vld [vmem:[%s1047 + $0x48] sm:$0xff]
        %v1058 = vld [vmem:[%s1047 + $0x50] sm:$0xff]
        %v1059 = vld [vmem:[%s1047 + $0x58] sm:$0xff]
        %v1060 = vld [vmem:[%s1047 + $0x60] sm:$0xff]
        %v1061 = vld [vmem:[%s1047 + $0x68] sm:$0xff]
        %v1062 = vld [vmem:[%s1047 + $0x70] sm:$0xff]
        %v1063 = vld [vmem:[%s1047 + $0x78] sm:$0xff]
        %1064 = vmatprep.subr.mxu0 0.0
        %1065 = vmatpush1.msra.mxu0 %v1063
        %1066 = vmatprep.subr.mxu0 0.0
        %1067 = vmatpush1.msra.mxu0 %v1062
        %1068 = vmatprep.subr.mxu0 0.0
        %1069 = vmatpush1.msra.mxu0 %v1061
        %1070 = vmatprep.subr.mxu0 0.0
        %1071 = vmatpush1.msra.mxu0 %v1060
        %1072 = vmatprep.subr.mxu0 0.0
        %1073 = vmatpush1.msra.mxu0 %v1059
        %1074 = vmatprep.subr.mxu0 0.0
        %1075 = vmatpush1.msra.mxu0 %v1058
        %1076 = vmatprep.subr.mxu0 0.0
        %1077 = vmatpush1.msra.mxu0 %v1057
        %1078 = vmatprep.subr.mxu0 0.0
        %1079 = vmatpush1.msra.mxu0 %v1056
        %1080 = vmatprep.subr.mxu0 0.0
        %1081 = vmatpush1.msra.mxu0 %v1055
        %1082 = vmatprep.subr.mxu0 0.0
        %1083 = vmatpush1.msra.mxu0 %v1054
        %1084 = vmatprep.subr.mxu0 0.0
        %1085 = vmatpush1.msra.mxu0 %v1053
        %1086 = vmatprep.subr.mxu0 0.0
        %1087 = vmatpush1.msra.mxu0 %v1052
        %1088 = vmatprep.subr.mxu0 0.0
        %1089 = vmatpush1.msra.mxu0 %v1051
        %1090 = vmatprep.subr.mxu0 0.0
        %1091 = vmatpush1.msra.mxu0 %v1050
        %1092 = vmatprep.subr.mxu0 0.0
        %1093 = vmatpush1.msra.mxu0 %v1049
        %1094 = vmatprep.subr.mxu0 0.0
        %1095 = vmatpush1.msra.mxu0 %v1048
        %1096 = vmatprep.subr.mxu0 0.0
        %1097 = vmatpush2.msra.mxu0 0.0
        %1098 = vmatprep.subr.mxu0 0.0
        %1099 = vmatpush2.msra.mxu0 0.0
        %1100 = vmatprep.subr.mxu0 0.0
        %1101 = vmatpush2.msra.mxu0 0.0
        %1102 = vmatprep.subr.mxu0 0.0
        %1103 = vmatpush2.msra.mxu0 0.0
        %1104 = vmatprep.subr.mxu0 0.0
        %1105 = vmatpush2.msra.mxu0 0.0
        %1106 = vmatprep.subr.mxu0 0.0
        %1107 = vmatpush2.msra.mxu0 0.0
        %1108 = vmatprep.subr.mxu0 0.0
        %1109 = vmatpush2.msra.mxu0 0.0
        %1110 = vmatprep.subr.mxu0 0.0
        %1111 = vmatpush2.msra.mxu0 0.0
        %1112 = vmatprep.subr.mxu0 0.0
        %1113 = vmatpush2.msra.mxu0 0.0
        %1114 = vmatprep.subr.mxu0 0.0
        %1115 = vmatpush2.msra.mxu0 0.0
        %1116 = vmatprep.subr.mxu0 0.0
        %1117 = vmatpush2.msra.mxu0 0.0
        %1118 = vmatprep.subr.mxu0 0.0
        %1119 = vmatpush2.msra.mxu0 0.0
        %1120 = vmatprep.subr.mxu0 0.0
        %1121 = vmatpush2.msra.mxu0 0.0
        %1122 = vmatprep.subr.mxu0 0.0
        %1123 = vmatpush2.msra.mxu0 0.0
        %1124 = vmatprep.subr.mxu0 0.0
        %1125 = vmatpush2.msra.mxu0 0.0
        %1126 = vmatprep.subr.mxu0 0.0
        %1127 = vmatpush2.msra.mxu0 0.0
        %1128 = vmatprep.mubr.f32.mxu0 0.0
        %1129 = vmatmul.mubr.f32.gmra.mxu0 %v1031
        %v1130 = vpop.f32.mrf.mxu0
        %v1131 = vadd.f32 0.0, %v1130
        %v1132 = vpop.f32.mrf.mxu0
        %1133 = vmatprep.mubr.f32.mxu0 0.0
        %1134 = vmatmul.mubr.f32.gmra.mxu0 %v1032
        %v1135 = vpop.f32.mrf.mxu0
        %v1136 = vadd.f32 0.0, %v1135
        %v1137 = vpop.f32.mrf.mxu0
        %1138 = vmatprep.mubr.f32.mxu0 0.0
        %1139 = vmatmul.mubr.f32.gmra.mxu0 %v1033
        %v1140 = vpop.f32.mrf.mxu0
        %v1141 = vadd.f32 0.0, %v1140
        %v1142 = vpop.f32.mrf.mxu0
        %1143 = vmatprep.mubr.f32.mxu0 0.0
        %1144 = vmatmul.mubr.f32.gmra.mxu0 %v1034
        %v1145 = vpop.f32.mrf.mxu0
        %v1146 = vadd.f32 0.0, %v1145
        %v1147 = vpop.f32.mrf.mxu0
        %1148 = vmatprep.mubr.f32.mxu0 0.0
        %1149 = vmatmul.mubr.f32.gmra.mxu0 %v1035
        %v1150 = vpop.f32.mrf.mxu0
        %v1151 = vadd.f32 0.0, %v1150
        %v1152 = vpop.f32.mrf.mxu0
        %1153 = vmatprep.mubr.f32.mxu0 0.0
        %1154 = vmatmul.mubr.f32.gmra.mxu0 %v1036
        %v1155 = vpop.f32.mrf.mxu0
        %v1156 = vadd.f32 0.0, %v1155
        %v1157 = vpop.f32.mrf.mxu0
        %1158 = vmatprep.mubr.f32.mxu0 0.0
        %1159 = vmatmul.mubr.f32.gmra.mxu0 %v1037
        %v1160 = vpop.f32.mrf.mxu0
        %v1161 = vadd.f32 0.0, %v1160
        %v1162 = vpop.f32.mrf.mxu0
        %1163 = vmatprep.mubr.f32.mxu0 0.0
        %1164 = vmatmul.mubr.f32.gmra.mxu0 %v1038
        %v1165 = vpop.f32.mrf.mxu0
        %v1166 = vadd.f32 0.0, %v1165
        %v1167 = vpop.f32.mrf.mxu0
        %1168 = vmatprep.mubr.f32.mxu0 0.0
        %1169 = vmatmul.mubr.f32.gmra.mxu0 %v1039
        %v1170 = vpop.f32.mrf.mxu0
        %v1171 = vadd.f32 0.0, %v1170
        %v1172 = vpop.f32.mrf.mxu0
        %1173 = vmatprep.mubr.f32.mxu0 0.0
        %1174 = vmatmul.mubr.f32.gmra.mxu0 %v1040
        %v1175 = vpop.f32.mrf.mxu0
        %v1176 = vadd.f32 0.0, %v1175
        %v1177 = vpop.f32.mrf.mxu0
        %1178 = vmatprep.mubr.f32.mxu0 0.0
        %1179 = vmatmul.mubr.f32.gmra.mxu0 %v1041
        %v1180 = vpop.f32.mrf.mxu0
        %v1181 = vadd.f32 0.0, %v1180
        %v1182 = vpop.f32.mrf.mxu0
        %1183 = vmatprep.mubr.f32.mxu0 0.0
        %1184 = vmatmul.mubr.f32.gmra.mxu0 %v1042
        %v1185 = vpop.f32.mrf.mxu0
        %v1186 = vadd.f32 0.0, %v1185
        %v1187 = vpop.f32.mrf.mxu0
        %1188 = vmatprep.mubr.f32.mxu0 0.0
        %1189 = vmatmul.mubr.f32.gmra.mxu0 %v1043
        %v1190 = vpop.f32.mrf.mxu0
        %v1191 = vadd.f32 0.0, %v1190
        %v1192 = vpop.f32.mrf.mxu0
        %1193 = vmatprep.mubr.f32.mxu0 0.0
        %1194 = vmatmul.mubr.f32.gmra.mxu0 %v1044
        %v1195 = vpop.f32.mrf.mxu0
        %v1196 = vadd.f32 0.0, %v1195
        %v1197 = vpop.f32.mrf.mxu0
        %1198 = vmatprep.mubr.f32.mxu0 0.0
        %1199 = vmatmul.mubr.f32.gmra.mxu0 %v1045
        %v1200 = vpop.f32.mrf.mxu0
        %v1201 = vadd.f32 0.0, %v1200
        %v1202 = vpop.f32.mrf.mxu0
        %1203 = vmatprep.mubr.f32.mxu0 0.0
        %1204 = vmatmul.mubr.f32.gmra.mxu0 %v1046
        %v1205 = vpop.f32.mrf.mxu0
        %v1206 = vadd.f32 0.0, %v1205
        %v1207 = vpop.f32.mrf.mxu0
        %1208 = vdwg.mxu0
        %v1209 = vadd.f32 %v1015, %v1131
        %v1210 = vadd.f32 %v1016, %v1136
        %v1211 = vadd.f32 %v1017, %v1141
        %v1212 = vadd.f32 %v1018, %v1146
        %v1213 = vadd.f32 %v1019, %v1151
        %v1214 = vadd.f32 %v1020, %v1156
        %v1215 = vadd.f32 %v1021, %v1161
        %v1216 = vadd.f32 %v1022, %v1166
        %v1217 = vadd.f32 %v1023, %v1171
        %v1218 = vadd.f32 %v1024, %v1176
        %v1219 = vadd.f32 %v1025, %v1181
        %v1220 = vadd.f32 %v1026, %v1186
        %v1221 = vadd.f32 %v1027, %v1191
        %v1222 = vadd.f32 %v1028, %v1196
        %v1223 = vadd.f32 %v1029, %v1201
        %v1224 = vadd.f32 %v1030, %v1206
        %v1225 = vld [vmem:[%s836 + $0x2] sm:$0xff]
        %v1226 = vld [vmem:[%s836 + $0xa] sm:$0xff]
        %v1227 = vld [vmem:[%s836 + $0x1a] sm:$0xff]
        %v1228 = vld [vmem:[%s836 + $0x22] sm:$0xff]
        %v1229 = vld [vmem:[%s836 + $0x32] sm:$0xff]
        %v1230 = vld [vmem:[%s836 + $0x3a] sm:$0xff]
        %v1231 = vld [vmem:[%s836 + $0x4a] sm:$0xff]
        %v1232 = vld [vmem:[%s836 + $0x52] sm:$0xff]
        %v1233 = vld [vmem:[%s836 + $0x62] sm:$0xff]
        %v1234 = vld [vmem:[%s836 + $0x6a] sm:$0xff]
        %v1235 = vld [vmem:[%s836 + $0x7a] sm:$0xff]
        %v1236 = vld [vmem:[%s836 + $0x82] sm:$0xff]
        %v1237 = vld [vmem:[%s836 + $0x92] sm:$0xff]
        %v1238 = vld [vmem:[%s836 + $0x9a] sm:$0xff]
        %v1239 = vld [vmem:[%s836 + $0xaa] sm:$0xff]
        %v1240 = vld [vmem:[%s836 + $0xb2] sm:$0xff]
        %s1241 = scalar_lea.vmem %s1, 640
        %v1242 = vld [vmem:[%s1241] sm:$0xff]
        %v1243 = vld [vmem:[%s1241 + $0x8] sm:$0xff]
        %v1244 = vld [vmem:[%s1241 + $0x10] sm:$0xff]
        %v1245 = vld [vmem:[%s1241 + $0x18] sm:$0xff]
        %v1246 = vld [vmem:[%s1241 + $0x20] sm:$0xff]
        %v1247 = vld [vmem:[%s1241 + $0x28] sm:$0xff]
        %v1248 = vld [vmem:[%s1241 + $0x30] sm:$0xff]
        %v1249 = vld [vmem:[%s1241 + $0x38] sm:$0xff]
        %v1250 = vld [vmem:[%s1241 + $0x40] sm:$0xff]
        %v1251 = vld [vmem:[%s1241 + $0x48] sm:$0xff]
        %v1252 = vld [vmem:[%s1241 + $0x50] sm:$0xff]
        %v1253 = vld [vmem:[%s1241 + $0x58] sm:$0xff]
        %v1254 = vld [vmem:[%s1241 + $0x60] sm:$0xff]
        %v1255 = vld [vmem:[%s1241 + $0x68] sm:$0xff]
        %v1256 = vld [vmem:[%s1241 + $0x70] sm:$0xff]
        %v1257 = vld [vmem:[%s1241 + $0x78] sm:$0xff]
        %1258 = vmatprep.subr.mxu0 0.0
        %1259 = vmatpush1.msra.mxu0 %v1257
        %1260 = vmatprep.subr.mxu0 0.0
        %1261 = vmatpush1.msra.mxu0 %v1256
        %1262 = vmatprep.subr.mxu0 0.0
        %1263 = vmatpush1.msra.mxu0 %v1255
        %1264 = vmatprep.subr.mxu0 0.0
        %1265 = vmatpush1.msra.mxu0 %v1254
        %1266 = vmatprep.subr.mxu0 0.0
        %1267 = vmatpush1.msra.mxu0 %v1253
        %1268 = vmatprep.subr.mxu0 0.0
        %1269 = vmatpush1.msra.mxu0 %v1252
        %1270 = vmatprep.subr.mxu0 0.0
        %1271 = vmatpush1.msra.mxu0 %v1251
        %1272 = vmatprep.subr.mxu0 0.0
        %1273 = vmatpush1.msra.mxu0 %v1250
        %1274 = vmatprep.subr.mxu0 0.0
        %1275 = vmatpush1.msra.mxu0 %v1249
        %1276 = vmatprep.subr.mxu0 0.0
        %1277 = vmatpush1.msra.mxu0 %v1248
        %1278 = vmatprep.subr.mxu0 0.0
        %1279 = vmatpush1.msra.mxu0 %v1247
        %1280 = vmatprep.subr.mxu0 0.0
        %1281 = vmatpush1.msra.mxu0 %v1246
        %1282 = vmatprep.subr.mxu0 0.0
        %1283 = vmatpush1.msra.mxu0 %v1245
        %1284 = vmatprep.subr.mxu0 0.0
        %1285 = vmatpush1.msra.mxu0 %v1244
        %1286 = vmatprep.subr.mxu0 0.0
        %1287 = vmatpush1.msra.mxu0 %v1243
        %1288 = vmatprep.subr.mxu0 0.0
        %1289 = vmatpush1.msra.mxu0 %v1242
        %1290 = vmatprep.subr.mxu0 0.0
        %1291 = vmatpush2.msra.mxu0 0.0
        %1292 = vmatprep.subr.mxu0 0.0
        %1293 = vmatpush2.msra.mxu0 0.0
        %1294 = vmatprep.subr.mxu0 0.0
        %1295 = vmatpush2.msra.mxu0 0.0
        %1296 = vmatprep.subr.mxu0 0.0
        %1297 = vmatpush2.msra.mxu0 0.0
        %1298 = vmatprep.subr.mxu0 0.0
        %1299 = vmatpush2.msra.mxu0 0.0
        %1300 = vmatprep.subr.mxu0 0.0
        %1301 = vmatpush2.msra.mxu0 0.0
        %1302 = vmatprep.subr.mxu0 0.0
        %1303 = vmatpush2.msra.mxu0 0.0
        %1304 = vmatprep.subr.mxu0 0.0
        %1305 = vmatpush2.msra.mxu0 0.0
        %1306 = vmatprep.subr.mxu0 0.0
        %1307 = vmatpush2.msra.mxu0 0.0
        %1308 = vmatprep.subr.mxu0 0.0
        %1309 = vmatpush2.msra.mxu0 0.0
        %1310 = vmatprep.subr.mxu0 0.0
        %1311 = vmatpush2.msra.mxu0 0.0
        %1312 = vmatprep.subr.mxu0 0.0
        %1313 = vmatpush2.msra.mxu0 0.0
        %1314 = vmatprep.subr.mxu0 0.0
        %1315 = vmatpush2.msra.mxu0 0.0
        %1316 = vmatprep.subr.mxu0 0.0
        %1317 = vmatpush2.msra.mxu0 0.0
        %1318 = vmatprep.subr.mxu0 0.0
        %1319 = vmatpush2.msra.mxu0 0.0
        %1320 = vmatprep.subr.mxu0 0.0
        %1321 = vmatpush2.msra.mxu0 0.0
        %1322 = vmatprep.mubr.f32.mxu0 0.0
        %1323 = vmatmul.mubr.f32.gmra.mxu0 %v1225
        %v1324 = vpop.f32.mrf.mxu0
        %v1325 = vadd.f32 0.0, %v1324
        %v1326 = vpop.f32.mrf.mxu0
        %1327 = vmatprep.mubr.f32.mxu0 0.0
        %1328 = vmatmul.mubr.f32.gmra.mxu0 %v1226
        %v1329 = vpop.f32.mrf.mxu0
        %v1330 = vadd.f32 0.0, %v1329
        %v1331 = vpop.f32.mrf.mxu0
        %1332 = vmatprep.mubr.f32.mxu0 0.0
        %1333 = vmatmul.mubr.f32.gmra.mxu0 %v1227
        %v1334 = vpop.f32.mrf.mxu0
        %v1335 = vadd.f32 0.0, %v1334
        %v1336 = vpop.f32.mrf.mxu0
        %1337 = vmatprep.mubr.f32.mxu0 0.0
        %1338 = vmatmul.mubr.f32.gmra.mxu0 %v1228
        %v1339 = vpop.f32.mrf.mxu0
        %v1340 = vadd.f32 0.0, %v1339
        %v1341 = vpop.f32.mrf.mxu0
        %1342 = vmatprep.mubr.f32.mxu0 0.0
        %1343 = vmatmul.mubr.f32.gmra.mxu0 %v1229
        %v1344 = vpop.f32.mrf.mxu0
        %v1345 = vadd.f32 0.0, %v1344
        %v1346 = vpop.f32.mrf.mxu0
        %1347 = vmatprep.mubr.f32.mxu0 0.0
        %1348 = vmatmul.mubr.f32.gmra.mxu0 %v1230
        %v1349 = vpop.f32.mrf.mxu0
        %v1350 = vadd.f32 0.0, %v1349
        %v1351 = vpop.f32.mrf.mxu0
        %1352 = vmatprep.mubr.f32.mxu0 0.0
        %1353 = vmatmul.mubr.f32.gmra.mxu0 %v1231
        %v1354 = vpop.f32.mrf.mxu0
        %v1355 = vadd.f32 0.0, %v1354
        %v1356 = vpop.f32.mrf.mxu0
        %1357 = vmatprep.mubr.f32.mxu0 0.0
        %1358 = vmatmul.mubr.f32.gmra.mxu0 %v1232
        %v1359 = vpop.f32.mrf.mxu0
        %v1360 = vadd.f32 0.0, %v1359
        %v1361 = vpop.f32.mrf.mxu0
        %1362 = vmatprep.mubr.f32.mxu0 0.0
        %1363 = vmatmul.mubr.f32.gmra.mxu0 %v1233
        %v1364 = vpop.f32.mrf.mxu0
        %v1365 = vadd.f32 0.0, %v1364
        %v1366 = vpop.f32.mrf.mxu0
        %1367 = vmatprep.mubr.f32.mxu0 0.0
        %1368 = vmatmul.mubr.f32.gmra.mxu0 %v1234
        %v1369 = vpop.f32.mrf.mxu0
        %v1370 = vadd.f32 0.0, %v1369
        %v1371 = vpop.f32.mrf.mxu0
        %1372 = vmatprep.mubr.f32.mxu0 0.0
        %1373 = vmatmul.mubr.f32.gmra.mxu0 %v1235
        %v1374 = vpop.f32.mrf.mxu0
        %v1375 = vadd.f32 0.0, %v1374
        %v1376 = vpop.f32.mrf.mxu0
        %1377 = vmatprep.mubr.f32.mxu0 0.0
        %1378 = vmatmul.mubr.f32.gmra.mxu0 %v1236
        %v1379 = vpop.f32.mrf.mxu0
        %v1380 = vadd.f32 0.0, %v1379
        %v1381 = vpop.f32.mrf.mxu0
        %1382 = vmatprep.mubr.f32.mxu0 0.0
        %1383 = vmatmul.mubr.f32.gmra.mxu0 %v1237
        %v1384 = vpop.f32.mrf.mxu0
        %v1385 = vadd.f32 0.0, %v1384
        %v1386 = vpop.f32.mrf.mxu0
        %1387 = vmatprep.mubr.f32.mxu0 0.0
        %1388 = vmatmul.mubr.f32.gmra.mxu0 %v1238
        %v1389 = vpop.f32.mrf.mxu0
        %v1390 = vadd.f32 0.0, %v1389
        %v1391 = vpop.f32.mrf.mxu0
        %1392 = vmatprep.mubr.f32.mxu0 0.0
        %1393 = vmatmul.mubr.f32.gmra.mxu0 %v1239
        %v1394 = vpop.f32.mrf.mxu0
        %v1395 = vadd.f32 0.0, %v1394
        %v1396 = vpop.f32.mrf.mxu0
        %1397 = vmatprep.mubr.f32.mxu0 0.0
        %1398 = vmatmul.mubr.f32.gmra.mxu0 %v1240
        %v1399 = vpop.f32.mrf.mxu0
        %v1400 = vadd.f32 0.0, %v1399
        %v1401 = vpop.f32.mrf.mxu0
        %1402 = vdwg.mxu0
        %v1403 = vadd.f32 %v1209, %v1325
        %v1404 = vadd.f32 %v1210, %v1330
        %v1405 = vadd.f32 %v1211, %v1335
        %v1406 = vadd.f32 %v1212, %v1340
        %v1407 = vadd.f32 %v1213, %v1345
        %v1408 = vadd.f32 %v1214, %v1350
        %v1409 = vadd.f32 %v1215, %v1355
        %v1410 = vadd.f32 %v1216, %v1360
        %v1411 = vadd.f32 %v1217, %v1365
        %v1412 = vadd.f32 %v1218, %v1370
        %v1413 = vadd.f32 %v1219, %v1375
        %v1414 = vadd.f32 %v1220, %v1380
        %v1415 = vadd.f32 %v1221, %v1385
        %v1416 = vadd.f32 %v1222, %v1390
        %v1417 = vadd.f32 %v1223, %v1395
        %v1418 = vadd.f32 %v1224, %v1400
        %s1419 = sadd.s32 0, 2
        %s1420 = smul.u32 %s1419, 24
        %s1421 = scalar_lea.vmem %s237, %s1420
        %v1422 = vld [vmem:[%s1421] sm:$0xff]
        %v1423 = vld [vmem:[%s1421 + $0x8] sm:$0xff]
        %v1424 = vld [vmem:[%s1421 + $0x18] sm:$0xff]
        %v1425 = vld [vmem:[%s1421 + $0x20] sm:$0xff]
        %v1426 = vld [vmem:[%s1421 + $0x30] sm:$0xff]
        %v1427 = vld [vmem:[%s1421 + $0x38] sm:$0xff]
        %v1428 = vld [vmem:[%s1421 + $0x48] sm:$0xff]
        %v1429 = vld [vmem:[%s1421 + $0x50] sm:$0xff]
        %v1430 = vld [vmem:[%s1421 + $0x60] sm:$0xff]
        %v1431 = vld [vmem:[%s1421 + $0x68] sm:$0xff]
        %v1432 = vld [vmem:[%s1421 + $0x78] sm:$0xff]
        %v1433 = vld [vmem:[%s1421 + $0x80] sm:$0xff]
        %v1434 = vld [vmem:[%s1421 + $0x90] sm:$0xff]
        %v1435 = vld [vmem:[%s1421 + $0x98] sm:$0xff]
        %v1436 = vld [vmem:[%s1421 + $0xa8] sm:$0xff]
        %v1437 = vld [vmem:[%s1421 + $0xb0] sm:$0xff]
        %s1438 = scalar_lea.vmem %s1, 768
        %v1439 = vld [vmem:[%s1438] sm:$0xff]
        %v1440 = vld [vmem:[%s1438 + $0x8] sm:$0xff]
        %v1441 = vld [vmem:[%s1438 + $0x10] sm:$0xff]
        %v1442 = vld [vmem:[%s1438 + $0x18] sm:$0xff]
        %v1443 = vld [vmem:[%s1438 + $0x20] sm:$0xff]
        %v1444 = vld [vmem:[%s1438 + $0x28] sm:$0xff]
        %v1445 = vld [vmem:[%s1438 + $0x30] sm:$0xff]
        %v1446 = vld [vmem:[%s1438 + $0x38] sm:$0xff]
        %v1447 = vld [vmem:[%s1438 + $0x40] sm:$0xff]
        %v1448 = vld [vmem:[%s1438 + $0x48] sm:$0xff]
        %v1449 = vld [vmem:[%s1438 + $0x50] sm:$0xff]
        %v1450 = vld [vmem:[%s1438 + $0x58] sm:$0xff]
        %v1451 = vld [vmem:[%s1438 + $0x60] sm:$0xff]
        %v1452 = vld [vmem:[%s1438 + $0x68] sm:$0xff]
        %v1453 = vld [vmem:[%s1438 + $0x70] sm:$0xff]
        %v1454 = vld [vmem:[%s1438 + $0x78] sm:$0xff]
        %1455 = vmatprep.subr.mxu0 0.0
        %1456 = vmatpush1.msra.mxu0 %v1454
        %1457 = vmatprep.subr.mxu0 0.0
        %1458 = vmatpush1.msra.mxu0 %v1453
        %1459 = vmatprep.subr.mxu0 0.0
        %1460 = vmatpush1.msra.mxu0 %v1452
        %1461 = vmatprep.subr.mxu0 0.0
        %1462 = vmatpush1.msra.mxu0 %v1451
        %1463 = vmatprep.subr.mxu0 0.0
        %1464 = vmatpush1.msra.mxu0 %v1450
        %1465 = vmatprep.subr.mxu0 0.0
        %1466 = vmatpush1.msra.mxu0 %v1449
        %1467 = vmatprep.subr.mxu0 0.0
        %1468 = vmatpush1.msra.mxu0 %v1448
        %1469 = vmatprep.subr.mxu0 0.0
        %1470 = vmatpush1.msra.mxu0 %v1447
        %1471 = vmatprep.subr.mxu0 0.0
        %1472 = vmatpush1.msra.mxu0 %v1446
        %1473 = vmatprep.subr.mxu0 0.0
        %1474 = vmatpush1.msra.mxu0 %v1445
        %1475 = vmatprep.subr.mxu0 0.0
        %1476 = vmatpush1.msra.mxu0 %v1444
        %1477 = vmatprep.subr.mxu0 0.0
        %1478 = vmatpush1.msra.mxu0 %v1443
        %1479 = vmatprep.subr.mxu0 0.0
        %1480 = vmatpush1.msra.mxu0 %v1442
        %1481 = vmatprep.subr.mxu0 0.0
        %1482 = vmatpush1.msra.mxu0 %v1441
        %1483 = vmatprep.subr.mxu0 0.0
        %1484 = vmatpush1.msra.mxu0 %v1440
        %1485 = vmatprep.subr.mxu0 0.0
        %1486 = vmatpush1.msra.mxu0 %v1439
        %1487 = vmatprep.subr.mxu0 0.0
        %1488 = vmatpush2.msra.mxu0 0.0
        %1489 = vmatprep.subr.mxu0 0.0
        %1490 = vmatpush2.msra.mxu0 0.0
        %1491 = vmatprep.subr.mxu0 0.0
        %1492 = vmatpush2.msra.mxu0 0.0
        %1493 = vmatprep.subr.mxu0 0.0
        %1494 = vmatpush2.msra.mxu0 0.0
        %1495 = vmatprep.subr.mxu0 0.0
        %1496 = vmatpush2.msra.mxu0 0.0
        %1497 = vmatprep.subr.mxu0 0.0
        %1498 = vmatpush2.msra.mxu0 0.0
        %1499 = vmatprep.subr.mxu0 0.0
        %1500 = vmatpush2.msra.mxu0 0.0
        %1501 = vmatprep.subr.mxu0 0.0
        %1502 = vmatpush2.msra.mxu0 0.0
        %1503 = vmatprep.subr.mxu0 0.0
        %1504 = vmatpush2.msra.mxu0 0.0
        %1505 = vmatprep.subr.mxu0 0.0
        %1506 = vmatpush2.msra.mxu0 0.0
        %1507 = vmatprep.subr.mxu0 0.0
        %1508 = vmatpush2.msra.mxu0 0.0
        %1509 = vmatprep.subr.mxu0 0.0
        %1510 = vmatpush2.msra.mxu0 0.0
        %1511 = vmatprep.subr.mxu0 0.0
        %1512 = vmatpush2.msra.mxu0 0.0
        %1513 = vmatprep.subr.mxu0 0.0
        %1514 = vmatpush2.msra.mxu0 0.0
        %1515 = vmatprep.subr.mxu0 0.0
        %1516 = vmatpush2.msra.mxu0 0.0
        %1517 = vmatprep.subr.mxu0 0.0
        %1518 = vmatpush2.msra.mxu0 0.0
        %1519 = vmatprep.mubr.f32.mxu0 0.0
        %1520 = vmatmul.mubr.f32.gmra.mxu0 %v1422
        %v1521 = vpop.f32.mrf.mxu0
        %v1522 = vadd.f32 0.0, %v1521
        %v1523 = vpop.f32.mrf.mxu0
        %1524 = vmatprep.mubr.f32.mxu0 0.0
        %1525 = vmatmul.mubr.f32.gmra.mxu0 %v1423
        %v1526 = vpop.f32.mrf.mxu0
        %v1527 = vadd.f32 0.0, %v1526
        %v1528 = vpop.f32.mrf.mxu0
        %1529 = vmatprep.mubr.f32.mxu0 0.0
        %1530 = vmatmul.mubr.f32.gmra.mxu0 %v1424
        %v1531 = vpop.f32.mrf.mxu0
        %v1532 = vadd.f32 0.0, %v1531
        %v1533 = vpop.f32.mrf.mxu0
        %1534 = vmatprep.mubr.f32.mxu0 0.0
        %1535 = vmatmul.mubr.f32.gmra.mxu0 %v1425
        %v1536 = vpop.f32.mrf.mxu0
        %v1537 = vadd.f32 0.0, %v1536
        %v1538 = vpop.f32.mrf.mxu0
        %1539 = vmatprep.mubr.f32.mxu0 0.0
        %1540 = vmatmul.mubr.f32.gmra.mxu0 %v1426
        %v1541 = vpop.f32.mrf.mxu0
        %v1542 = vadd.f32 0.0, %v1541
        %v1543 = vpop.f32.mrf.mxu0
        %1544 = vmatprep.mubr.f32.mxu0 0.0
        %1545 = vmatmul.mubr.f32.gmra.mxu0 %v1427
        %v1546 = vpop.f32.mrf.mxu0
        %v1547 = vadd.f32 0.0, %v1546
        %v1548 = vpop.f32.mrf.mxu0
        %1549 = vmatprep.mubr.f32.mxu0 0.0
        %1550 = vmatmul.mubr.f32.gmra.mxu0 %v1428
        %v1551 = vpop.f32.mrf.mxu0
        %v1552 = vadd.f32 0.0, %v1551
        %v1553 = vpop.f32.mrf.mxu0
        %1554 = vmatprep.mubr.f32.mxu0 0.0
        %1555 = vmatmul.mubr.f32.gmra.mxu0 %v1429
        %v1556 = vpop.f32.mrf.mxu0
        %v1557 = vadd.f32 0.0, %v1556
        %v1558 = vpop.f32.mrf.mxu0
        %1559 = vmatprep.mubr.f32.mxu0 0.0
        %1560 = vmatmul.mubr.f32.gmra.mxu0 %v1430
        %v1561 = vpop.f32.mrf.mxu0
        %v1562 = vadd.f32 0.0, %v1561
        %v1563 = vpop.f32.mrf.mxu0
        %1564 = vmatprep.mubr.f32.mxu0 0.0
        %1565 = vmatmul.mubr.f32.gmra.mxu0 %v1431
        %v1566 = vpop.f32.mrf.mxu0
        %v1567 = vadd.f32 0.0, %v1566
        %v1568 = vpop.f32.mrf.mxu0
        %1569 = vmatprep.mubr.f32.mxu0 0.0
        %1570 = vmatmul.mubr.f32.gmra.mxu0 %v1432
        %v1571 = vpop.f32.mrf.mxu0
        %v1572 = vadd.f32 0.0, %v1571
        %v1573 = vpop.f32.mrf.mxu0
        %1574 = vmatprep.mubr.f32.mxu0 0.0
        %1575 = vmatmul.mubr.f32.gmra.mxu0 %v1433
        %v1576 = vpop.f32.mrf.mxu0
        %v1577 = vadd.f32 0.0, %v1576
        %v1578 = vpop.f32.mrf.mxu0
        %1579 = vmatprep.mubr.f32.mxu0 0.0
        %1580 = vmatmul.mubr.f32.gmra.mxu0 %v1434
        %v1581 = vpop.f32.mrf.mxu0
        %v1582 = vadd.f32 0.0, %v1581
        %v1583 = vpop.f32.mrf.mxu0
        %1584 = vmatprep.mubr.f32.mxu0 0.0
        %1585 = vmatmul.mubr.f32.gmra.mxu0 %v1435
        %v1586 = vpop.f32.mrf.mxu0
        %v1587 = vadd.f32 0.0, %v1586
        %v1588 = vpop.f32.mrf.mxu0
        %1589 = vmatprep.mubr.f32.mxu0 0.0
        %1590 = vmatmul.mubr.f32.gmra.mxu0 %v1436
        %v1591 = vpop.f32.mrf.mxu0
        %v1592 = vadd.f32 0.0, %v1591
        %v1593 = vpop.f32.mrf.mxu0
        %1594 = vmatprep.mubr.f32.mxu0 0.0
        %1595 = vmatmul.mubr.f32.gmra.mxu0 %v1437
        %v1596 = vpop.f32.mrf.mxu0
        %v1597 = vadd.f32 0.0, %v1596
        %v1598 = vpop.f32.mrf.mxu0
        %1599 = vdwg.mxu0
        %v1600 = vadd.f32 %v1403, %v1522
        %v1601 = vadd.f32 %v1404, %v1527
        %v1602 = vadd.f32 %v1405, %v1532
        %v1603 = vadd.f32 %v1406, %v1537
        %v1604 = vadd.f32 %v1407, %v1542
        %v1605 = vadd.f32 %v1408, %v1547
        %v1606 = vadd.f32 %v1409, %v1552
        %v1607 = vadd.f32 %v1410, %v1557
        %v1608 = vadd.f32 %v1411, %v1562
        %v1609 = vadd.f32 %v1412, %v1567
        %v1610 = vadd.f32 %v1413, %v1572
        %v1611 = vadd.f32 %v1414, %v1577
        %v1612 = vadd.f32 %v1415, %v1582
        %v1613 = vadd.f32 %v1416, %v1587
        %v1614 = vadd.f32 %v1417, %v1592
        %v1615 = vadd.f32 %v1418, %v1597
        %v1616 = vld [vmem:[%s1421 + $0x1] sm:$0xff]
        %v1617 = vld [vmem:[%s1421 + $0x9] sm:$0xff]
        %v1618 = vld [vmem:[%s1421 + $0x19] sm:$0xff]
        %v1619 = vld [vmem:[%s1421 + $0x21] sm:$0xff]
        %v1620 = vld [vmem:[%s1421 + $0x31] sm:$0xff]
        %v1621 = vld [vmem:[%s1421 + $0x39] sm:$0xff]
        %v1622 = vld [vmem:[%s1421 + $0x49] sm:$0xff]
        %v1623 = vld [vmem:[%s1421 + $0x51] sm:$0xff]
        %v1624 = vld [vmem:[%s1421 + $0x61] sm:$0xff]
        %v1625 = vld [vmem:[%s1421 + $0x69] sm:$0xff]
        %v1626 = vld [vmem:[%s1421 + $0x79] sm:$0xff]
        %v1627 = vld [vmem:[%s1421 + $0x81] sm:$0xff]
        %v1628 = vld [vmem:[%s1421 + $0x91] sm:$0xff]
        %v1629 = vld [vmem:[%s1421 + $0x99] sm:$0xff]
        %v1630 = vld [vmem:[%s1421 + $0xa9] sm:$0xff]
        %v1631 = vld [vmem:[%s1421 + $0xb1] sm:$0xff]
        %s1632 = scalar_lea.vmem %s1, 896
        %v1633 = vld [vmem:[%s1632] sm:$0xff]
        %v1634 = vld [vmem:[%s1632 + $0x8] sm:$0xff]
        %v1635 = vld [vmem:[%s1632 + $0x10] sm:$0xff]
        %v1636 = vld [vmem:[%s1632 + $0x18] sm:$0xff]
        %v1637 = vld [vmem:[%s1632 + $0x20] sm:$0xff]
        %v1638 = vld [vmem:[%s1632 + $0x28] sm:$0xff]
        %v1639 = vld [vmem:[%s1632 + $0x30] sm:$0xff]
        %v1640 = vld [vmem:[%s1632 + $0x38] sm:$0xff]
        %v1641 = vld [vmem:[%s1632 + $0x40] sm:$0xff]
        %v1642 = vld [vmem:[%s1632 + $0x48] sm:$0xff]
        %v1643 = vld [vmem:[%s1632 + $0x50] sm:$0xff]
        %v1644 = vld [vmem:[%s1632 + $0x58] sm:$0xff]
        %v1645 = vld [vmem:[%s1632 + $0x60] sm:$0xff]
        %v1646 = vld [vmem:[%s1632 + $0x68] sm:$0xff]
        %v1647 = vld [vmem:[%s1632 + $0x70] sm:$0xff]
        %v1648 = vld [vmem:[%s1632 + $0x78] sm:$0xff]
        %1649 = vmatprep.subr.mxu0 0.0
        %1650 = vmatpush1.msra.mxu0 %v1648
        %1651 = vmatprep.subr.mxu0 0.0
        %1652 = vmatpush1.msra.mxu0 %v1647
        %1653 = vmatprep.subr.mxu0 0.0
        %1654 = vmatpush1.msra.mxu0 %v1646
        %1655 = vmatprep.subr.mxu0 0.0
        %1656 = vmatpush1.msra.mxu0 %v1645
        %1657 = vmatprep.subr.mxu0 0.0
        %1658 = vmatpush1.msra.mxu0 %v1644
        %1659 = vmatprep.subr.mxu0 0.0
        %1660 = vmatpush1.msra.mxu0 %v1643
        %1661 = vmatprep.subr.mxu0 0.0
        %1662 = vmatpush1.msra.mxu0 %v1642
        %1663 = vmatprep.subr.mxu0 0.0
        %1664 = vmatpush1.msra.mxu0 %v1641
        %1665 = vmatprep.subr.mxu0 0.0
        %1666 = vmatpush1.msra.mxu0 %v1640
        %1667 = vmatprep.subr.mxu0 0.0
        %1668 = vmatpush1.msra.mxu0 %v1639
        %1669 = vmatprep.subr.mxu0 0.0
        %1670 = vmatpush1.msra.mxu0 %v1638
        %1671 = vmatprep.subr.mxu0 0.0
        %1672 = vmatpush1.msra.mxu0 %v1637
        %1673 = vmatprep.subr.mxu0 0.0
        %1674 = vmatpush1.msra.mxu0 %v1636
        %1675 = vmatprep.subr.mxu0 0.0
        %1676 = vmatpush1.msra.mxu0 %v1635
        %1677 = vmatprep.subr.mxu0 0.0
        %1678 = vmatpush1.msra.mxu0 %v1634
        %1679 = vmatprep.subr.mxu0 0.0
        %1680 = vmatpush1.msra.mxu0 %v1633
        %1681 = vmatprep.subr.mxu0 0.0
        %1682 = vmatpush2.msra.mxu0 0.0
        %1683 = vmatprep.subr.mxu0 0.0
        %1684 = vmatpush2.msra.mxu0 0.0
        %1685 = vmatprep.subr.mxu0 0.0
        %1686 = vmatpush2.msra.mxu0 0.0
        %1687 = vmatprep.subr.mxu0 0.0
        %1688 = vmatpush2.msra.mxu0 0.0
        %1689 = vmatprep.subr.mxu0 0.0
        %1690 = vmatpush2.msra.mxu0 0.0
        %1691 = vmatprep.subr.mxu0 0.0
        %1692 = vmatpush2.msra.mxu0 0.0
        %1693 = vmatprep.subr.mxu0 0.0
        %1694 = vmatpush2.msra.mxu0 0.0
        %1695 = vmatprep.subr.mxu0 0.0
        %1696 = vmatpush2.msra.mxu0 0.0
        %1697 = vmatprep.subr.mxu0 0.0
        %1698 = vmatpush2.msra.mxu0 0.0
        %1699 = vmatprep.subr.mxu0 0.0
        %1700 = vmatpush2.msra.mxu0 0.0
        %1701 = vmatprep.subr.mxu0 0.0
        %1702 = vmatpush2.msra.mxu0 0.0
        %1703 = vmatprep.subr.mxu0 0.0
        %1704 = vmatpush2.msra.mxu0 0.0
        %1705 = vmatprep.subr.mxu0 0.0
        %1706 = vmatpush2.msra.mxu0 0.0
        %1707 = vmatprep.subr.mxu0 0.0
        %1708 = vmatpush2.msra.mxu0 0.0
        %1709 = vmatprep.subr.mxu0 0.0
        %1710 = vmatpush2.msra.mxu0 0.0
        %1711 = vmatprep.subr.mxu0 0.0
        %1712 = vmatpush2.msra.mxu0 0.0
        %1713 = vmatprep.mubr.f32.mxu0 0.0
        %1714 = vmatmul.mubr.f32.gmra.mxu0 %v1616
        %v1715 = vpop.f32.mrf.mxu0
        %v1716 = vadd.f32 0.0, %v1715
        %v1717 = vpop.f32.mrf.mxu0
        %1718 = vmatprep.mubr.f32.mxu0 0.0
        %1719 = vmatmul.mubr.f32.gmra.mxu0 %v1617
        %v1720 = vpop.f32.mrf.mxu0
        %v1721 = vadd.f32 0.0, %v1720
        %v1722 = vpop.f32.mrf.mxu0
        %1723 = vmatprep.mubr.f32.mxu0 0.0
        %1724 = vmatmul.mubr.f32.gmra.mxu0 %v1618
        %v1725 = vpop.f32.mrf.mxu0
        %v1726 = vadd.f32 0.0, %v1725
        %v1727 = vpop.f32.mrf.mxu0
        %1728 = vmatprep.mubr.f32.mxu0 0.0
        %1729 = vmatmul.mubr.f32.gmra.mxu0 %v1619
        %v1730 = vpop.f32.mrf.mxu0
        %v1731 = vadd.f32 0.0, %v1730
        %v1732 = vpop.f32.mrf.mxu0
        %1733 = vmatprep.mubr.f32.mxu0 0.0
        %1734 = vmatmul.mubr.f32.gmra.mxu0 %v1620
        %v1735 = vpop.f32.mrf.mxu0
        %v1736 = vadd.f32 0.0, %v1735
        %v1737 = vpop.f32.mrf.mxu0
        %1738 = vmatprep.mubr.f32.mxu0 0.0
        %1739 = vmatmul.mubr.f32.gmra.mxu0 %v1621
        %v1740 = vpop.f32.mrf.mxu0
        %v1741 = vadd.f32 0.0, %v1740
        %v1742 = vpop.f32.mrf.mxu0
        %1743 = vmatprep.mubr.f32.mxu0 0.0
        %1744 = vmatmul.mubr.f32.gmra.mxu0 %v1622
        %v1745 = vpop.f32.mrf.mxu0
        %v1746 = vadd.f32 0.0, %v1745
        %v1747 = vpop.f32.mrf.mxu0
        %1748 = vmatprep.mubr.f32.mxu0 0.0
        %1749 = vmatmul.mubr.f32.gmra.mxu0 %v1623
        %v1750 = vpop.f32.mrf.mxu0
        %v1751 = vadd.f32 0.0, %v1750
        %v1752 = vpop.f32.mrf.mxu0
        %1753 = vmatprep.mubr.f32.mxu0 0.0
        %1754 = vmatmul.mubr.f32.gmra.mxu0 %v1624
        %v1755 = vpop.f32.mrf.mxu0
        %v1756 = vadd.f32 0.0, %v1755
        %v1757 = vpop.f32.mrf.mxu0
        %1758 = vmatprep.mubr.f32.mxu0 0.0
        %1759 = vmatmul.mubr.f32.gmra.mxu0 %v1625
        %v1760 = vpop.f32.mrf.mxu0
        %v1761 = vadd.f32 0.0, %v1760
        %v1762 = vpop.f32.mrf.mxu0
        %1763 = vmatprep.mubr.f32.mxu0 0.0
        %1764 = vmatmul.mubr.f32.gmra.mxu0 %v1626
        %v1765 = vpop.f32.mrf.mxu0
        %v1766 = vadd.f32 0.0, %v1765
        %v1767 = vpop.f32.mrf.mxu0
        %1768 = vmatprep.mubr.f32.mxu0 0.0
        %1769 = vmatmul.mubr.f32.gmra.mxu0 %v1627
        %v1770 = vpop.f32.mrf.mxu0
        %v1771 = vadd.f32 0.0, %v1770
        %v1772 = vpop.f32.mrf.mxu0
        %1773 = vmatprep.mubr.f32.mxu0 0.0
        %1774 = vmatmul.mubr.f32.gmra.mxu0 %v1628
        %v1775 = vpop.f32.mrf.mxu0
        %v1776 = vadd.f32 0.0, %v1775
        %v1777 = vpop.f32.mrf.mxu0
        %1778 = vmatprep.mubr.f32.mxu0 0.0
        %1779 = vmatmul.mubr.f32.gmra.mxu0 %v1629
        %v1780 = vpop.f32.mrf.mxu0
        %v1781 = vadd.f32 0.0, %v1780
        %v1782 = vpop.f32.mrf.mxu0
        %1783 = vmatprep.mubr.f32.mxu0 0.0
        %1784 = vmatmul.mubr.f32.gmra.mxu0 %v1630
        %v1785 = vpop.f32.mrf.mxu0
        %v1786 = vadd.f32 0.0, %v1785
        %v1787 = vpop.f32.mrf.mxu0
        %1788 = vmatprep.mubr.f32.mxu0 0.0
        %1789 = vmatmul.mubr.f32.gmra.mxu0 %v1631
        %v1790 = vpop.f32.mrf.mxu0
        %v1791 = vadd.f32 0.0, %v1790
        %v1792 = vpop.f32.mrf.mxu0
        %1793 = vdwg.mxu0
        %v1794 = vadd.f32 %v1600, %v1716
        %v1795 = vadd.f32 %v1601, %v1721
        %v1796 = vadd.f32 %v1602, %v1726
        %v1797 = vadd.f32 %v1603, %v1731
        %v1798 = vadd.f32 %v1604, %v1736
        %v1799 = vadd.f32 %v1605, %v1741
        %v1800 = vadd.f32 %v1606, %v1746
        %v1801 = vadd.f32 %v1607, %v1751
        %v1802 = vadd.f32 %v1608, %v1756
        %v1803 = vadd.f32 %v1609, %v1761
        %v1804 = vadd.f32 %v1610, %v1766
        %v1805 = vadd.f32 %v1611, %v1771
        %v1806 = vadd.f32 %v1612, %v1776
        %v1807 = vadd.f32 %v1613, %v1781
        %v1808 = vadd.f32 %v1614, %v1786
        %v1809 = vadd.f32 %v1615, %v1791
        %v1810 = vld [vmem:[%s1421 + $0x2] sm:$0xff]
        %v1811 = vld [vmem:[%s1421 + $0xa] sm:$0xff]
        %v1812 = vld [vmem:[%s1421 + $0x1a] sm:$0xff]
        %v1813 = vld [vmem:[%s1421 + $0x22] sm:$0xff]
        %v1814 = vld [vmem:[%s1421 + $0x32] sm:$0xff]
        %v1815 = vld [vmem:[%s1421 + $0x3a] sm:$0xff]
        %v1816 = vld [vmem:[%s1421 + $0x4a] sm:$0xff]
        %v1817 = vld [vmem:[%s1421 + $0x52] sm:$0xff]
        %v1818 = vld [vmem:[%s1421 + $0x62] sm:$0xff]
        %v1819 = vld [vmem:[%s1421 + $0x6a] sm:$0xff]
        %v1820 = vld [vmem:[%s1421 + $0x7a] sm:$0xff]
        %v1821 = vld [vmem:[%s1421 + $0x82] sm:$0xff]
        %v1822 = vld [vmem:[%s1421 + $0x92] sm:$0xff]
        %v1823 = vld [vmem:[%s1421 + $0x9a] sm:$0xff]
        %v1824 = vld [vmem:[%s1421 + $0xaa] sm:$0xff]
        %v1825 = vld [vmem:[%s1421 + $0xb2] sm:$0xff]
        %s1826 = scalar_lea.vmem %s1, 1024
        %v1827 = vld [vmem:[%s1826] sm:$0xff]
        %v1828 = vld [vmem:[%s1826 + $0x8] sm:$0xff]
        %v1829 = vld [vmem:[%s1826 + $0x10] sm:$0xff]
        %v1830 = vld [vmem:[%s1826 + $0x18] sm:$0xff]
        %v1831 = vld [vmem:[%s1826 + $0x20] sm:$0xff]
        %v1832 = vld [vmem:[%s1826 + $0x28] sm:$0xff]
        %v1833 = vld [vmem:[%s1826 + $0x30] sm:$0xff]
        %v1834 = vld [vmem:[%s1826 + $0x38] sm:$0xff]
        %v1835 = vld [vmem:[%s1826 + $0x40] sm:$0xff]
        %v1836 = vld [vmem:[%s1826 + $0x48] sm:$0xff]
        %v1837 = vld [vmem:[%s1826 + $0x50] sm:$0xff]
        %v1838 = vld [vmem:[%s1826 + $0x58] sm:$0xff]
        %v1839 = vld [vmem:[%s1826 + $0x60] sm:$0xff]
        %v1840 = vld [vmem:[%s1826 + $0x68] sm:$0xff]
        %v1841 = vld [vmem:[%s1826 + $0x70] sm:$0xff]
        %v1842 = vld [vmem:[%s1826 + $0x78] sm:$0xff]
        %1843 = vmatprep.subr.mxu0 0.0
        %1844 = vmatpush1.msra.mxu0 %v1842
        %1845 = vmatprep.subr.mxu0 0.0
        %1846 = vmatpush1.msra.mxu0 %v1841
        %1847 = vmatprep.subr.mxu0 0.0
        %1848 = vmatpush1.msra.mxu0 %v1840
        %1849 = vmatprep.subr.mxu0 0.0
        %1850 = vmatpush1.msra.mxu0 %v1839
        %1851 = vmatprep.subr.mxu0 0.0
        %1852 = vmatpush1.msra.mxu0 %v1838
        %1853 = vmatprep.subr.mxu0 0.0
        %1854 = vmatpush1.msra.mxu0 %v1837
        %1855 = vmatprep.subr.mxu0 0.0
        %1856 = vmatpush1.msra.mxu0 %v1836
        %1857 = vmatprep.subr.mxu0 0.0
        %1858 = vmatpush1.msra.mxu0 %v1835
        %1859 = vmatprep.subr.mxu0 0.0
        %1860 = vmatpush1.msra.mxu0 %v1834
        %1861 = vmatprep.subr.mxu0 0.0
        %1862 = vmatpush1.msra.mxu0 %v1833
        %1863 = vmatprep.subr.mxu0 0.0
        %1864 = vmatpush1.msra.mxu0 %v1832
        %1865 = vmatprep.subr.mxu0 0.0
        %1866 = vmatpush1.msra.mxu0 %v1831
        %1867 = vmatprep.subr.mxu0 0.0
        %1868 = vmatpush1.msra.mxu0 %v1830
        %1869 = vmatprep.subr.mxu0 0.0
        %1870 = vmatpush1.msra.mxu0 %v1829
        %1871 = vmatprep.subr.mxu0 0.0
        %1872 = vmatpush1.msra.mxu0 %v1828
        %1873 = vmatprep.subr.mxu0 0.0
        %1874 = vmatpush1.msra.mxu0 %v1827
        %1875 = vmatprep.subr.mxu0 0.0
        %1876 = vmatpush2.msra.mxu0 0.0
        %1877 = vmatprep.subr.mxu0 0.0
        %1878 = vmatpush2.msra.mxu0 0.0
        %1879 = vmatprep.subr.mxu0 0.0
        %1880 = vmatpush2.msra.mxu0 0.0
        %1881 = vmatprep.subr.mxu0 0.0
        %1882 = vmatpush2.msra.mxu0 0.0
        %1883 = vmatprep.subr.mxu0 0.0
        %1884 = vmatpush2.msra.mxu0 0.0
        %1885 = vmatprep.subr.mxu0 0.0
        %1886 = vmatpush2.msra.mxu0 0.0
        %1887 = vmatprep.subr.mxu0 0.0
        %1888 = vmatpush2.msra.mxu0 0.0
        %1889 = vmatprep.subr.mxu0 0.0
        %1890 = vmatpush2.msra.mxu0 0.0
        %1891 = vmatprep.subr.mxu0 0.0
        %1892 = vmatpush2.msra.mxu0 0.0
        %1893 = vmatprep.subr.mxu0 0.0
        %1894 = vmatpush2.msra.mxu0 0.0
        %1895 = vmatprep.subr.mxu0 0.0
        %1896 = vmatpush2.msra.mxu0 0.0
        %1897 = vmatprep.subr.mxu0 0.0
        %1898 = vmatpush2.msra.mxu0 0.0
        %1899 = vmatprep.subr.mxu0 0.0
        %1900 = vmatpush2.msra.mxu0 0.0
        %1901 = vmatprep.subr.mxu0 0.0
        %1902 = vmatpush2.msra.mxu0 0.0
        %1903 = vmatprep.subr.mxu0 0.0
        %1904 = vmatpush2.msra.mxu0 0.0
        %1905 = vmatprep.subr.mxu0 0.0
        %1906 = vmatpush2.msra.mxu0 0.0
        %1907 = vmatprep.mubr.f32.mxu0 0.0
        %1908 = vmatmul.mubr.f32.gmra.mxu0 %v1810
        %v1909 = vpop.f32.mrf.mxu0
        %v1910 = vadd.f32 0.0, %v1909
        %v1911 = vpop.f32.mrf.mxu0
        %1912 = vmatprep.mubr.f32.mxu0 0.0
        %1913 = vmatmul.mubr.f32.gmra.mxu0 %v1811
        %v1914 = vpop.f32.mrf.mxu0
        %v1915 = vadd.f32 0.0, %v1914
        %v1916 = vpop.f32.mrf.mxu0
        %1917 = vmatprep.mubr.f32.mxu0 0.0
        %1918 = vmatmul.mubr.f32.gmra.mxu0 %v1812
        %v1919 = vpop.f32.mrf.mxu0
        %v1920 = vadd.f32 0.0, %v1919
        %v1921 = vpop.f32.mrf.mxu0
        %1922 = vmatprep.mubr.f32.mxu0 0.0
        %1923 = vmatmul.mubr.f32.gmra.mxu0 %v1813
        %v1924 = vpop.f32.mrf.mxu0
        %v1925 = vadd.f32 0.0, %v1924
        %v1926 = vpop.f32.mrf.mxu0
        %1927 = vmatprep.mubr.f32.mxu0 0.0
        %1928 = vmatmul.mubr.f32.gmra.mxu0 %v1814
        %v1929 = vpop.f32.mrf.mxu0
        %v1930 = vadd.f32 0.0, %v1929
        %v1931 = vpop.f32.mrf.mxu0
        %1932 = vmatprep.mubr.f32.mxu0 0.0
        %1933 = vmatmul.mubr.f32.gmra.mxu0 %v1815
        %v1934 = vpop.f32.mrf.mxu0
        %v1935 = vadd.f32 0.0, %v1934
        %v1936 = vpop.f32.mrf.mxu0
        %1937 = vmatprep.mubr.f32.mxu0 0.0
        %1938 = vmatmul.mubr.f32.gmra.mxu0 %v1816
        %v1939 = vpop.f32.mrf.mxu0
        %v1940 = vadd.f32 0.0, %v1939
        %v1941 = vpop.f32.mrf.mxu0
        %1942 = vmatprep.mubr.f32.mxu0 0.0
        %1943 = vmatmul.mubr.f32.gmra.mxu0 %v1817
        %v1944 = vpop.f32.mrf.mxu0
        %v1945 = vadd.f32 0.0, %v1944
        %v1946 = vpop.f32.mrf.mxu0
        %1947 = vmatprep.mubr.f32.mxu0 0.0
        %1948 = vmatmul.mubr.f32.gmra.mxu0 %v1818
        %v1949 = vpop.f32.mrf.mxu0
        %v1950 = vadd.f32 0.0, %v1949
        %v1951 = vpop.f32.mrf.mxu0
        %1952 = vmatprep.mubr.f32.mxu0 0.0
        %1953 = vmatmul.mubr.f32.gmra.mxu0 %v1819
        %v1954 = vpop.f32.mrf.mxu0
        %v1955 = vadd.f32 0.0, %v1954
        %v1956 = vpop.f32.mrf.mxu0
        %1957 = vmatprep.mubr.f32.mxu0 0.0
        %1958 = vmatmul.mubr.f32.gmra.mxu0 %v1820
        %v1959 = vpop.f32.mrf.mxu0
        %v1960 = vadd.f32 0.0, %v1959
        %v1961 = vpop.f32.mrf.mxu0
        %1962 = vmatprep.mubr.f32.mxu0 0.0
        %1963 = vmatmul.mubr.f32.gmra.mxu0 %v1821
        %v1964 = vpop.f32.mrf.mxu0
        %v1965 = vadd.f32 0.0, %v1964
        %v1966 = vpop.f32.mrf.mxu0
        %1967 = vmatprep.mubr.f32.mxu0 0.0
        %1968 = vmatmul.mubr.f32.gmra.mxu0 %v1822
        %v1969 = vpop.f32.mrf.mxu0
        %v1970 = vadd.f32 0.0, %v1969
        %v1971 = vpop.f32.mrf.mxu0
        %1972 = vmatprep.mubr.f32.mxu0 0.0
        %1973 = vmatmul.mubr.f32.gmra.mxu0 %v1823
        %v1974 = vpop.f32.mrf.mxu0
        %v1975 = vadd.f32 0.0, %v1974
        %v1976 = vpop.f32.mrf.mxu0
        %1977 = vmatprep.mubr.f32.mxu0 0.0
        %1978 = vmatmul.mubr.f32.gmra.mxu0 %v1824
        %v1979 = vpop.f32.mrf.mxu0
        %v1980 = vadd.f32 0.0, %v1979
        %v1981 = vpop.f32.mrf.mxu0
        %1982 = vmatprep.mubr.f32.mxu0 0.0
        %1983 = vmatmul.mubr.f32.gmra.mxu0 %v1825
        %v1984 = vpop.f32.mrf.mxu0
        %v1985 = vadd.f32 0.0, %v1984
        %v1986 = vpop.f32.mrf.mxu0
        %1987 = vdwg.mxu0
        %v1988 = vadd.f32 %v1794, %v1910
        %v1989 = vadd.f32 %v1795, %v1915
        %v1990 = vadd.f32 %v1796, %v1920
        %v1991 = vadd.f32 %v1797, %v1925
        %v1992 = vadd.f32 %v1798, %v1930
        %v1993 = vadd.f32 %v1799, %v1935
        %v1994 = vadd.f32 %v1800, %v1940
        %v1995 = vadd.f32 %v1801, %v1945
        %v1996 = vadd.f32 %v1802, %v1950
        %v1997 = vadd.f32 %v1803, %v1955
        %v1998 = vadd.f32 %v1804, %v1960
        %v1999 = vadd.f32 %v1805, %v1965
        %v2000 = vadd.f32 %v1806, %v1970
        %v2001 = vadd.f32 %v1807, %v1975
        %v2002 = vadd.f32 %v1808, %v1980
        %v2003 = vadd.f32 %v1809, %v1985
        %v2005 = vlaneseq
        %v2006 = vshrl.u32 %v2005, 7
        %v2007 = vsub.s32 0, %v2006
        %v2008 = vrot.slane %v281, %v2007
        %v2010 = vadd.f32 %v1988, %v2008
        %v2011 = vadd.f32 %v1989, %v2008
        %v2012 = vadd.f32 %v1990, %v2008
        %v2013 = vadd.f32 %v1991, %v2008
        %v2014 = vadd.f32 %v1992, %v2008
        %v2015 = vadd.f32 %v1993, %v2008
        %v2016 = vadd.f32 %v1994, %v2008
        %v2017 = vadd.f32 %v1995, %v2008
        %v2018 = vadd.f32 %v1996, %v2008
        %v2019 = vadd.f32 %v1997, %v2008
        %v2020 = vadd.f32 %v1998, %v2008
        %v2021 = vadd.f32 %v1999, %v2008
        %v2022 = vadd.f32 %v2000, %v2008
        %v2023 = vadd.f32 %v2001, %v2008
        %v2024 = vadd.f32 %v2002, %v2008
        %v2025 = vadd.f32 %v2003, %v2008
        %v2026 = vmax.f32 %v2010, 0.0
        %v2027 = vmax.f32 %v2011, 0.0
        %v2028 = vmax.f32 %v2012, 0.0
        %v2029 = vmax.f32 %v2013, 0.0
        %v2030 = vmax.f32 %v2014, 0.0
        %v2031 = vmax.f32 %v2015, 0.0
        %v2032 = vmax.f32 %v2016, 0.0
        %v2033 = vmax.f32 %v2017, 0.0
        %v2034 = vmax.f32 %v2018, 0.0
        %v2035 = vmax.f32 %v2019, 0.0
        %v2036 = vmax.f32 %v2020, 0.0
        %v2037 = vmax.f32 %v2021, 0.0
        %v2038 = vmax.f32 %v2022, 0.0
        %v2039 = vmax.f32 %v2023, 0.0
        %v2040 = vmax.f32 %v2024, 0.0
        %v2041 = vmax.f32 %v2025, 0.0
        %s2042 = scalar_lea.vmem [#allocation2], %s835
        %2043 = vst [vmem:[%s2042 + $0x1] sm:$0xff] %v2026
        %2044 = vst [vmem:[%s2042 + $0x9] sm:$0xff] %v2027
        %2045 = vst [vmem:[%s2042 + $0x19] sm:$0xff] %v2028
        %2046 = vst [vmem:[%s2042 + $0x21] sm:$0xff] %v2029
        %2047 = vst [vmem:[%s2042 + $0x31] sm:$0xff] %v2030
        %2048 = vst [vmem:[%s2042 + $0x39] sm:$0xff] %v2031
        %2049 = vst [vmem:[%s2042 + $0x49] sm:$0xff] %v2032
        %2050 = vst [vmem:[%s2042 + $0x51] sm:$0xff] %v2033
        %2051 = vst [vmem:[%s2042 + $0x61] sm:$0xff] %v2034
        %2052 = vst [vmem:[%s2042 + $0x69] sm:$0xff] %v2035
        %2053 = vst [vmem:[%s2042 + $0x79] sm:$0xff] %v2036
        %2054 = vst [vmem:[%s2042 + $0x81] sm:$0xff] %v2037
        %2055 = vst [vmem:[%s2042 + $0x91] sm:$0xff] %v2038
        %2056 = vst [vmem:[%s2042 + $0x99] sm:$0xff] %v2039
        %2057 = vst [vmem:[%s2042 + $0xa9] sm:$0xff] %v2040
        %2058 = vst [vmem:[%s2042 + $0xb1] sm:$0xff] %v2041
        %s2059 = smul.u32 8, 24
        %s2060 = scalar_lea.vmem %s237, %s2059
        %v2061 = vld [vmem:[%s2060] sm:$0xff]
        %v2062 = vld [vmem:[%s2060 + $0x8] sm:$0xff]
        %v2063 = vld [vmem:[%s2060 + $0x18] sm:$0xff]
        %v2064 = vld [vmem:[%s2060 + $0x20] sm:$0xff]
        %v2065 = vld [vmem:[%s2060 + $0x30] sm:$0xff]
        %v2066 = vld [vmem:[%s2060 + $0x38] sm:$0xff]
        %v2067 = vld [vmem:[%s2060 + $0x48] sm:$0xff]
        %v2068 = vld [vmem:[%s2060 + $0x50] sm:$0xff]
        %v2069 = vld [vmem:[%s2060 + $0x60] sm:$0xff]
        %v2070 = vld [vmem:[%s2060 + $0x68] sm:$0xff]
        %v2071 = vld [vmem:[%s2060 + $0x78] sm:$0xff]
        %v2072 = vld [vmem:[%s2060 + $0x80] sm:$0xff]
        %v2073 = vld [vmem:[%s2060 + $0x90] sm:$0xff]
        %v2074 = vld [vmem:[%s2060 + $0x98] sm:$0xff]
        %v2075 = vld [vmem:[%s2060 + $0xa8] sm:$0xff]
        %v2076 = vld [vmem:[%s2060 + $0xb0] sm:$0xff]
        %v2077 = vld [vmem:[%s1] sm:$0xff]
        %v2078 = vld [vmem:[%s1 + $0x8] sm:$0xff]
        %v2079 = vld [vmem:[%s1 + $0x10] sm:$0xff]
        %v2080 = vld [vmem:[%s1 + $0x18] sm:$0xff]
        %v2081 = vld [vmem:[%s1 + $0x20] sm:$0xff]
        %v2082 = vld [vmem:[%s1 + $0x28] sm:$0xff]
        %v2083 = vld [vmem:[%s1 + $0x30] sm:$0xff]
        %v2084 = vld [vmem:[%s1 + $0x38] sm:$0xff]
        %v2085 = vld [vmem:[%s1 + $0x40] sm:$0xff]
        %v2086 = vld [vmem:[%s1 + $0x48] sm:$0xff]
        %v2087 = vld [vmem:[%s1 + $0x50] sm:$0xff]
        %v2088 = vld [vmem:[%s1 + $0x58] sm:$0xff]
        %v2089 = vld [vmem:[%s1 + $0x60] sm:$0xff]
        %v2090 = vld [vmem:[%s1 + $0x68] sm:$0xff]
        %v2091 = vld [vmem:[%s1 + $0x70] sm:$0xff]
        %v2092 = vld [vmem:[%s1 + $0x78] sm:$0xff]
        %v2093 = vld [vmem:[%s2060 + $0x1] sm:$0xff]
        %v2094 = vld [vmem:[%s2060 + $0x9] sm:$0xff]
        %v2095 = vld [vmem:[%s2060 + $0x19] sm:$0xff]
        %v2096 = vld [vmem:[%s2060 + $0x21] sm:$0xff]
        %v2097 = vld [vmem:[%s2060 + $0x31] sm:$0xff]
        %v2098 = vld [vmem:[%s2060 + $0x39] sm:$0xff]
        %v2099 = vld [vmem:[%s2060 + $0x49] sm:$0xff]
        %v2100 = vld [vmem:[%s2060 + $0x51] sm:$0xff]
        %v2101 = vld [vmem:[%s2060 + $0x61] sm:$0xff]
        %v2102 = vld [vmem:[%s2060 + $0x69] sm:$0xff]
        %v2103 = vld [vmem:[%s2060 + $0x79] sm:$0xff]
        %v2104 = vld [vmem:[%s2060 + $0x81] sm:$0xff]
        %v2105 = vld [vmem:[%s2060 + $0x91] sm:$0xff]
        %v2106 = vld [vmem:[%s2060 + $0x99] sm:$0xff]
        %v2107 = vld [vmem:[%s2060 + $0xa9] sm:$0xff]
        %v2108 = vld [vmem:[%s2060 + $0xb1] sm:$0xff]
        %v2109 = vld [vmem:[%s333] sm:$0xff]
        %v2110 = vld [vmem:[%s333 + $0x8] sm:$0xff]
        %v2111 = vld [vmem:[%s333 + $0x10] sm:$0xff]
        %v2112 = vld [vmem:[%s333 + $0x18] sm:$0xff]
        %v2113 = vld [vmem:[%s333 + $0x20] sm:$0xff]
        %v2114 = vld [vmem:[%s333 + $0x28] sm:$0xff]
        %v2115 = vld [vmem:[%s333 + $0x30] sm:$0xff]
        %v2116 = vld [vmem:[%s333 + $0x38] sm:$0xff]
        %v2117 = vld [vmem:[%s333 + $0x40] sm:$0xff]
        %v2118 = vld [vmem:[%s333 + $0x48] sm:$0xff]
        %v2119 = vld [vmem:[%s333 + $0x50] sm:$0xff]
        %v2120 = vld [vmem:[%s333 + $0x58] sm:$0xff]
        %v2121 = vld [vmem:[%s333 + $0x60] sm:$0xff]
        %v2122 = vld [vmem:[%s333 + $0x68] sm:$0xff]
        %v2123 = vld [vmem:[%s333 + $0x70] sm:$0xff]
        %v2124 = vld [vmem:[%s333 + $0x78] sm:$0xff]
        %2125 = vmatprep.subr.mxu0 0.0
        %2126 = vmatpush1.msra.mxu0 %v2124
        %2127 = vmatprep.subr.mxu0 0.0
        %2128 = vmatpush1.msra.mxu0 %v2123
        %2129 = vmatprep.subr.mxu0 0.0
        %2130 = vmatpush1.msra.mxu0 %v2122
        %2131 = vmatprep.subr.mxu0 0.0
        %2132 = vmatpush1.msra.mxu0 %v2121
        %2133 = vmatprep.subr.mxu0 0.0
        %2134 = vmatpush1.msra.mxu0 %v2120
        %2135 = vmatprep.subr.mxu0 0.0
        %2136 = vmatpush1.msra.mxu0 %v2119
        %2137 = vmatprep.subr.mxu0 0.0
        %2138 = vmatpush1.msra.mxu0 %v2118
        %2139 = vmatprep.subr.mxu0 0.0
        %2140 = vmatpush1.msra.mxu0 %v2117
        %2141 = vmatprep.subr.mxu0 0.0
        %2142 = vmatpush1.msra.mxu0 %v2116
        %2143 = vmatprep.subr.mxu0 0.0
        %2144 = vmatpush1.msra.mxu0 %v2115
        %2145 = vmatprep.subr.mxu0 0.0
        %2146 = vmatpush1.msra.mxu0 %v2114
        %2147 = vmatprep.subr.mxu0 0.0
        %2148 = vmatpush1.msra.mxu0 %v2113
        %2149 = vmatprep.subr.mxu0 0.0
        %2150 = vmatpush1.msra.mxu0 %v2112
        %2151 = vmatprep.subr.mxu0 0.0
        %2152 = vmatpush1.msra.mxu0 %v2111
        %2153 = vmatprep.subr.mxu0 0.0
        %2154 = vmatpush1.msra.mxu0 %v2110
        %2155 = vmatprep.subr.mxu0 0.0
        %2156 = vmatpush1.msra.mxu0 %v2109
        %2157 = vmatprep.subr.mxu0 0.0
        %2158 = vmatpush2.msra.mxu0 0.0
        %2159 = vmatprep.subr.mxu0 0.0
        %2160 = vmatpush2.msra.mxu0 0.0
        %2161 = vmatprep.subr.mxu0 0.0
        %2162 = vmatpush2.msra.mxu0 0.0
        %2163 = vmatprep.subr.mxu0 0.0
        %2164 = vmatpush2.msra.mxu0 0.0
        %2165 = vmatprep.subr.mxu0 0.0
        %2166 = vmatpush2.msra.mxu0 0.0
        %2167 = vmatprep.subr.mxu0 0.0
        %2168 = vmatpush2.msra.mxu0 0.0
        %2169 = vmatprep.subr.mxu0 0.0
        %2170 = vmatpush2.msra.mxu0 0.0
        %2171 = vmatprep.subr.mxu0 0.0
        %2172 = vmatpush2.msra.mxu0 0.0
        %2173 = vmatprep.subr.mxu0 0.0
        %2174 = vmatpush2.msra.mxu0 0.0
        %2175 = vmatprep.subr.mxu0 0.0
        %2176 = vmatpush2.msra.mxu0 0.0
        %2177 = vmatprep.subr.mxu0 0.0
        %2178 = vmatpush2.msra.mxu0 0.0
        %2179 = vmatprep.subr.mxu0 0.0
        %2180 = vmatpush2.msra.mxu0 0.0
        %2181 = vmatprep.subr.mxu0 0.0
        %2182 = vmatpush2.msra.mxu0 0.0
        %2183 = vmatprep.subr.mxu0 0.0
        %2184 = vmatpush2.msra.mxu0 0.0
        %2185 = vmatprep.subr.mxu0 0.0
        %2186 = vmatpush2.msra.mxu0 0.0
        %2187 = vmatprep.subr.mxu0 0.0
        %2188 = vmatpush2.msra.mxu0 0.0
        %2189 = vmatprep.mubr.f32.mxu0 0.0
        %2190 = vmatmul.mubr.f32.gmra.mxu0 %v2093
        %v2191 = vpop.f32.mrf.mxu0
        %v2192 = vadd.f32 0.0, %v2191
        %v2193 = vpop.f32.mrf.mxu0
        %2194 = vmatprep.mubr.f32.mxu0 0.0
        %2195 = vmatmul.mubr.f32.gmra.mxu0 %v2094
        %v2196 = vpop.f32.mrf.mxu0
        %v2197 = vadd.f32 0.0, %v2196
        %v2198 = vpop.f32.mrf.mxu0
        %2199 = vmatprep.mubr.f32.mxu0 0.0
        %2200 = vmatmul.mubr.f32.gmra.mxu0 %v2095
        %v2201 = vpop.f32.mrf.mxu0
        %v2202 = vadd.f32 0.0, %v2201
        %v2203 = vpop.f32.mrf.mxu0
        %2204 = vmatprep.mubr.f32.mxu0 0.0
        %2205 = vmatmul.mubr.f32.gmra.mxu0 %v2096
        %v2206 = vpop.f32.mrf.mxu0
        %v2207 = vadd.f32 0.0, %v2206
        %v2208 = vpop.f32.mrf.mxu0
        %2209 = vmatprep.mubr.f32.mxu0 0.0
        %2210 = vmatmul.mubr.f32.gmra.mxu0 %v2097
        %v2211 = vpop.f32.mrf.mxu0
        %v2212 = vadd.f32 0.0, %v2211
        %v2213 = vpop.f32.mrf.mxu0
        %2214 = vmatprep.mubr.f32.mxu0 0.0
        %2215 = vmatmul.mubr.f32.gmra.mxu0 %v2098
        %v2216 = vpop.f32.mrf.mxu0
        %v2217 = vadd.f32 0.0, %v2216
        %v2218 = vpop.f32.mrf.mxu0
        %2219 = vmatprep.mubr.f32.mxu0 0.0
        %2220 = vmatmul.mubr.f32.gmra.mxu0 %v2099
        %v2221 = vpop.f32.mrf.mxu0
        %v2222 = vadd.f32 0.0, %v2221
        %v2223 = vpop.f32.mrf.mxu0
        %2224 = vmatprep.mubr.f32.mxu0 0.0
        %2225 = vmatmul.mubr.f32.gmra.mxu0 %v2100
        %v2226 = vpop.f32.mrf.mxu0
        %v2227 = vadd.f32 0.0, %v2226
        %v2228 = vpop.f32.mrf.mxu0
        %2229 = vmatprep.mubr.f32.mxu0 0.0
        %2230 = vmatmul.mubr.f32.gmra.mxu0 %v2101
        %v2231 = vpop.f32.mrf.mxu0
        %v2232 = vadd.f32 0.0, %v2231
        %v2233 = vpop.f32.mrf.mxu0
        %2234 = vmatprep.mubr.f32.mxu0 0.0
        %2235 = vmatmul.mubr.f32.gmra.mxu0 %v2102
        %v2236 = vpop.f32.mrf.mxu0
        %v2237 = vadd.f32 0.0, %v2236
        %v2238 = vpop.f32.mrf.mxu0
        %2239 = vmatprep.mubr.f32.mxu0 0.0
        %2240 = vmatmul.mubr.f32.gmra.mxu0 %v2103
        %v2241 = vpop.f32.mrf.mxu0
        %v2242 = vadd.f32 0.0, %v2241
        %v2243 = vpop.f32.mrf.mxu0
        %2244 = vmatprep.mubr.f32.mxu0 0.0
        %2245 = vmatmul.mubr.f32.gmra.mxu0 %v2104
        %v2246 = vpop.f32.mrf.mxu0
        %v2247 = vadd.f32 0.0, %v2246
        %v2248 = vpop.f32.mrf.mxu0
        %2249 = vmatprep.mubr.f32.mxu0 0.0
        %2250 = vmatmul.mubr.f32.gmra.mxu0 %v2105
        %v2251 = vpop.f32.mrf.mxu0
        %v2252 = vadd.f32 0.0, %v2251
        %v2253 = vpop.f32.mrf.mxu0
        %2254 = vmatprep.mubr.f32.mxu0 0.0
        %2255 = vmatmul.mubr.f32.gmra.mxu0 %v2106
        %v2256 = vpop.f32.mrf.mxu0
        %v2257 = vadd.f32 0.0, %v2256
        %v2258 = vpop.f32.mrf.mxu0
        %2259 = vmatprep.mubr.f32.mxu0 0.0
        %2260 = vmatmul.mubr.f32.gmra.mxu0 %v2107
        %v2261 = vpop.f32.mrf.mxu0
        %v2262 = vadd.f32 0.0, %v2261
        %v2263 = vpop.f32.mrf.mxu0
        %2264 = vmatprep.mubr.f32.mxu0 0.0
        %2265 = vmatmul.mubr.f32.gmra.mxu0 %v2108
        %v2266 = vpop.f32.mrf.mxu0
        %v2267 = vadd.f32 0.0, %v2266
        %v2268 = vpop.f32.mrf.mxu0
        %2269 = vdwg.mxu0
        %2270 = vmatprep.subr.mxu0 0.0
        %2271 = vmatpush1.msra.mxu0 %v2092
        %2272 = vmatprep.subr.mxu0 0.0
        %2273 = vmatpush1.msra.mxu0 %v2091
        %2274 = vmatprep.subr.mxu0 0.0
        %2275 = vmatpush1.msra.mxu0 %v2090
        %2276 = vmatprep.subr.mxu0 0.0
        %2277 = vmatpush1.msra.mxu0 %v2089
        %2278 = vmatprep.subr.mxu0 0.0
        %2279 = vmatpush1.msra.mxu0 %v2088
        %2280 = vmatprep.subr.mxu0 0.0
        %2281 = vmatpush1.msra.mxu0 %v2087
        %2282 = vmatprep.subr.mxu0 0.0
        %2283 = vmatpush1.msra.mxu0 %v2086
        %2284 = vmatprep.subr.mxu0 0.0
        %2285 = vmatpush1.msra.mxu0 %v2085
        %2286 = vmatprep.subr.mxu0 0.0
        %2287 = vmatpush1.msra.mxu0 %v2084
        %2288 = vmatprep.subr.mxu0 0.0
        %2289 = vmatpush1.msra.mxu0 %v2083
        %2290 = vmatprep.subr.mxu0 0.0
        %2291 = vmatpush1.msra.mxu0 %v2082
        %2292 = vmatprep.subr.mxu0 0.0
        %2293 = vmatpush1.msra.mxu0 %v2081
        %2294 = vmatprep.subr.mxu0 0.0
        %2295 = vmatpush1.msra.mxu0 %v2080
        %2296 = vmatprep.subr.mxu0 0.0
        %2297 = vmatpush1.msra.mxu0 %v2079
        %2298 = vmatprep.subr.mxu0 0.0
        %2299 = vmatpush1.msra.mxu0 %v2078
        %2300 = vmatprep.subr.mxu0 0.0
        %2301 = vmatpush1.msra.mxu0 %v2077
        %2302 = vmatprep.subr.mxu0 0.0
        %2303 = vmatpush2.msra.mxu0 0.0
        %2304 = vmatprep.subr.mxu0 0.0
        %2305 = vmatpush2.msra.mxu0 0.0
        %2306 = vmatprep.subr.mxu0 0.0
        %2307 = vmatpush2.msra.mxu0 0.0
        %2308 = vmatprep.subr.mxu0 0.0
        %2309 = vmatpush2.msra.mxu0 0.0
        %2310 = vmatprep.subr.mxu0 0.0
        %2311 = vmatpush2.msra.mxu0 0.0
        %2312 = vmatprep.subr.mxu0 0.0
        %2313 = vmatpush2.msra.mxu0 0.0
        %2314 = vmatprep.subr.mxu0 0.0
        %2315 = vmatpush2.msra.mxu0 0.0
        %2316 = vmatprep.subr.mxu0 0.0
        %2317 = vmatpush2.msra.mxu0 0.0
        %2318 = vmatprep.subr.mxu0 0.0
        %2319 = vmatpush2.msra.mxu0 0.0
        %2320 = vmatprep.subr.mxu0 0.0
        %2321 = vmatpush2.msra.mxu0 0.0
        %2322 = vmatprep.subr.mxu0 0.0
        %2323 = vmatpush2.msra.mxu0 0.0
        %2324 = vmatprep.subr.mxu0 0.0
        %2325 = vmatpush2.msra.mxu0 0.0
        %2326 = vmatprep.subr.mxu0 0.0
        %2327 = vmatpush2.msra.mxu0 0.0
        %2328 = vmatprep.subr.mxu0 0.0
        %2329 = vmatpush2.msra.mxu0 0.0
        %2330 = vmatprep.subr.mxu0 0.0
        %2331 = vmatpush2.msra.mxu0 0.0
        %2332 = vmatprep.subr.mxu0 0.0
        %2333 = vmatpush2.msra.mxu0 0.0
        %2334 = vmatprep.mubr.f32.mxu0 0.0
        %2335 = vmatmul.mubr.f32.gmra.mxu0 %v2061
        %v2336 = vpop.f32.mrf.mxu0
        %v2337 = vadd.f32 %v2192, %v2336
        %v2338 = vpop.f32.mrf.mxu0
        %2339 = vmatprep.mubr.f32.mxu0 0.0
        %2340 = vmatmul.mubr.f32.gmra.mxu0 %v2062
        %v2341 = vpop.f32.mrf.mxu0
        %v2342 = vadd.f32 %v2197, %v2341
        %v2343 = vpop.f32.mrf.mxu0
        %2344 = vmatprep.mubr.f32.mxu0 0.0
        %2345 = vmatmul.mubr.f32.gmra.mxu0 %v2063
        %v2346 = vpop.f32.mrf.mxu0
        %v2347 = vadd.f32 %v2202, %v2346
        %v2348 = vpop.f32.mrf.mxu0
        %2349 = vmatprep.mubr.f32.mxu0 0.0
        %2350 = vmatmul.mubr.f32.gmra.mxu0 %v2064
        %v2351 = vpop.f32.mrf.mxu0
        %v2352 = vadd.f32 %v2207, %v2351
        %v2353 = vpop.f32.mrf.mxu0
        %2354 = vmatprep.mubr.f32.mxu0 0.0
        %2355 = vmatmul.mubr.f32.gmra.mxu0 %v2065
        %v2356 = vpop.f32.mrf.mxu0
        %v2357 = vadd.f32 %v2212, %v2356
        %v2358 = vpop.f32.mrf.mxu0
        %2359 = vmatprep.mubr.f32.mxu0 0.0
        %2360 = vmatmul.mubr.f32.gmra.mxu0 %v2066
        %v2361 = vpop.f32.mrf.mxu0
        %v2362 = vadd.f32 %v2217, %v2361
        %v2363 = vpop.f32.mrf.mxu0
        %2364 = vmatprep.mubr.f32.mxu0 0.0
        %2365 = vmatmul.mubr.f32.gmra.mxu0 %v2067
        %v2366 = vpop.f32.mrf.mxu0
        %v2367 = vadd.f32 %v2222, %v2366
        %v2368 = vpop.f32.mrf.mxu0
        %2369 = vmatprep.mubr.f32.mxu0 0.0
        %2370 = vmatmul.mubr.f32.gmra.mxu0 %v2068
        %v2371 = vpop.f32.mrf.mxu0
        %v2372 = vadd.f32 %v2227, %v2371
        %v2373 = vpop.f32.mrf.mxu0
        %2374 = vmatprep.mubr.f32.mxu0 0.0
        %2375 = vmatmul.mubr.f32.gmra.mxu0 %v2069
        %v2376 = vpop.f32.mrf.mxu0
        %v2377 = vadd.f32 %v2232, %v2376
        %v2378 = vpop.f32.mrf.mxu0
        %2379 = vmatprep.mubr.f32.mxu0 0.0
        %2380 = vmatmul.mubr.f32.gmra.mxu0 %v2070
        %v2381 = vpop.f32.mrf.mxu0
        %v2382 = vadd.f32 %v2237, %v2381
        %v2383 = vpop.f32.mrf.mxu0
        %2384 = vmatprep.mubr.f32.mxu0 0.0
        %2385 = vmatmul.mubr.f32.gmra.mxu0 %v2071
        %v2386 = vpop.f32.mrf.mxu0
        %v2387 = vadd.f32 %v2242, %v2386
        %v2388 = vpop.f32.mrf.mxu0
        %2389 = vmatprep.mubr.f32.mxu0 0.0
        %2390 = vmatmul.mubr.f32.gmra.mxu0 %v2072
        %v2391 = vpop.f32.mrf.mxu0
        %v2392 = vadd.f32 %v2247, %v2391
        %v2393 = vpop.f32.mrf.mxu0
        %2394 = vmatprep.mubr.f32.mxu0 0.0
        %2395 = vmatmul.mubr.f32.gmra.mxu0 %v2073
        %v2396 = vpop.f32.mrf.mxu0
        %v2397 = vadd.f32 %v2252, %v2396
        %v2398 = vpop.f32.mrf.mxu0
        %2399 = vmatprep.mubr.f32.mxu0 0.0
        %2400 = vmatmul.mubr.f32.gmra.mxu0 %v2074
        %v2401 = vpop.f32.mrf.mxu0
        %v2402 = vadd.f32 %v2257, %v2401
        %v2403 = vpop.f32.mrf.mxu0
        %2404 = vmatprep.mubr.f32.mxu0 0.0
        %2405 = vmatmul.mubr.f32.gmra.mxu0 %v2075
        %v2406 = vpop.f32.mrf.mxu0
        %v2407 = vadd.f32 %v2262, %v2406
        %v2408 = vpop.f32.mrf.mxu0
        %2409 = vmatprep.mubr.f32.mxu0 0.0
        %2410 = vmatmul.mubr.f32.gmra.mxu0 %v2076
        %v2411 = vpop.f32.mrf.mxu0
        %v2412 = vadd.f32 %v2267, %v2411
        %v2413 = vpop.f32.mrf.mxu0
        %2414 = vdwg.mxu0
        %v2415 = vld [vmem:[%s2060 + $0x2] sm:$0xff]
        %v2416 = vld [vmem:[%s2060 + $0xa] sm:$0xff]
        %v2417 = vld [vmem:[%s2060 + $0x1a] sm:$0xff]
        %v2418 = vld [vmem:[%s2060 + $0x22] sm:$0xff]
        %v2419 = vld [vmem:[%s2060 + $0x32] sm:$0xff]
        %v2420 = vld [vmem:[%s2060 + $0x3a] sm:$0xff]
        %v2421 = vld [vmem:[%s2060 + $0x4a] sm:$0xff]
        %v2422 = vld [vmem:[%s2060 + $0x52] sm:$0xff]
        %v2423 = vld [vmem:[%s2060 + $0x62] sm:$0xff]
        %v2424 = vld [vmem:[%s2060 + $0x6a] sm:$0xff]
        %v2425 = vld [vmem:[%s2060 + $0x7a] sm:$0xff]
        %v2426 = vld [vmem:[%s2060 + $0x82] sm:$0xff]
        %v2427 = vld [vmem:[%s2060 + $0x92] sm:$0xff]
        %v2428 = vld [vmem:[%s2060 + $0x9a] sm:$0xff]
        %v2429 = vld [vmem:[%s2060 + $0xaa] sm:$0xff]
        %v2430 = vld [vmem:[%s2060 + $0xb2] sm:$0xff]
        %v2431 = vld [vmem:[%s656] sm:$0xff]
        %v2432 = vld [vmem:[%s656 + $0x8] sm:$0xff]
        %v2433 = vld [vmem:[%s656 + $0x10] sm:$0xff]
        %v2434 = vld [vmem:[%s656 + $0x18] sm:$0xff]
        %v2435 = vld [vmem:[%s656 + $0x20] sm:$0xff]
        %v2436 = vld [vmem:[%s656 + $0x28] sm:$0xff]
        %v2437 = vld [vmem:[%s656 + $0x30] sm:$0xff]
        %v2438 = vld [vmem:[%s656 + $0x38] sm:$0xff]
        %v2439 = vld [vmem:[%s656 + $0x40] sm:$0xff]
        %v2440 = vld [vmem:[%s656 + $0x48] sm:$0xff]
        %v2441 = vld [vmem:[%s656 + $0x50] sm:$0xff]
        %v2442 = vld [vmem:[%s656 + $0x58] sm:$0xff]
        %v2443 = vld [vmem:[%s656 + $0x60] sm:$0xff]
        %v2444 = vld [vmem:[%s656 + $0x68] sm:$0xff]
        %v2445 = vld [vmem:[%s656 + $0x70] sm:$0xff]
        %v2446 = vld [vmem:[%s656 + $0x78] sm:$0xff]
        %2447 = vmatprep.subr.mxu0 0.0
        %2448 = vmatpush1.msra.mxu0 %v2446
        %2449 = vmatprep.subr.mxu0 0.0
        %2450 = vmatpush1.msra.mxu0 %v2445
        %2451 = vmatprep.subr.mxu0 0.0
        %2452 = vmatpush1.msra.mxu0 %v2444
        %2453 = vmatprep.subr.mxu0 0.0
        %2454 = vmatpush1.msra.mxu0 %v2443
        %2455 = vmatprep.subr.mxu0 0.0
        %2456 = vmatpush1.msra.mxu0 %v2442
        %2457 = vmatprep.subr.mxu0 0.0
        %2458 = vmatpush1.msra.mxu0 %v2441
        %2459 = vmatprep.subr.mxu0 0.0
        %2460 = vmatpush1.msra.mxu0 %v2440
        %2461 = vmatprep.subr.mxu0 0.0
        %2462 = vmatpush1.msra.mxu0 %v2439
        %2463 = vmatprep.subr.mxu0 0.0
        %2464 = vmatpush1.msra.mxu0 %v2438
        %2465 = vmatprep.subr.mxu0 0.0
        %2466 = vmatpush1.msra.mxu0 %v2437
        %2467 = vmatprep.subr.mxu0 0.0
        %2468 = vmatpush1.msra.mxu0 %v2436
        %2469 = vmatprep.subr.mxu0 0.0
        %2470 = vmatpush1.msra.mxu0 %v2435
        %2471 = vmatprep.subr.mxu0 0.0
        %2472 = vmatpush1.msra.mxu0 %v2434
        %2473 = vmatprep.subr.mxu0 0.0
        %2474 = vmatpush1.msra.mxu0 %v2433
        %2475 = vmatprep.subr.mxu0 0.0
        %2476 = vmatpush1.msra.mxu0 %v2432
        %2477 = vmatprep.subr.mxu0 0.0
        %2478 = vmatpush1.msra.mxu0 %v2431
        %2479 = vmatprep.subr.mxu0 0.0
        %2480 = vmatpush2.msra.mxu0 0.0
        %2481 = vmatprep.subr.mxu0 0.0
        %2482 = vmatpush2.msra.mxu0 0.0
        %2483 = vmatprep.subr.mxu0 0.0
        %2484 = vmatpush2.msra.mxu0 0.0
        %2485 = vmatprep.subr.mxu0 0.0
        %2486 = vmatpush2.msra.mxu0 0.0
        %2487 = vmatprep.subr.mxu0 0.0
        %2488 = vmatpush2.msra.mxu0 0.0
        %2489 = vmatprep.subr.mxu0 0.0
        %2490 = vmatpush2.msra.mxu0 0.0
        %2491 = vmatprep.subr.mxu0 0.0
        %2492 = vmatpush2.msra.mxu0 0.0
        %2493 = vmatprep.subr.mxu0 0.0
        %2494 = vmatpush2.msra.mxu0 0.0
        %2495 = vmatprep.subr.mxu0 0.0
        %2496 = vmatpush2.msra.mxu0 0.0
        %2497 = vmatprep.subr.mxu0 0.0
        %2498 = vmatpush2.msra.mxu0 0.0
        %2499 = vmatprep.subr.mxu0 0.0
        %2500 = vmatpush2.msra.mxu0 0.0
        %2501 = vmatprep.subr.mxu0 0.0
        %2502 = vmatpush2.msra.mxu0 0.0
        %2503 = vmatprep.subr.mxu0 0.0
        %2504 = vmatpush2.msra.mxu0 0.0
        %2505 = vmatprep.subr.mxu0 0.0
        %2506 = vmatpush2.msra.mxu0 0.0
        %2507 = vmatprep.subr.mxu0 0.0
        %2508 = vmatpush2.msra.mxu0 0.0
        %2509 = vmatprep.subr.mxu0 0.0
        %2510 = vmatpush2.msra.mxu0 0.0
        %2511 = vmatprep.mubr.f32.mxu0 0.0
        %2512 = vmatmul.mubr.f32.gmra.mxu0 %v2415
        %v2513 = vpop.f32.mrf.mxu0
        %v2514 = vadd.f32 0.0, %v2513
        %v2515 = vpop.f32.mrf.mxu0
        %2516 = vmatprep.mubr.f32.mxu0 0.0
        %2517 = vmatmul.mubr.f32.gmra.mxu0 %v2416
        %v2518 = vpop.f32.mrf.mxu0
        %v2519 = vadd.f32 0.0, %v2518
        %v2520 = vpop.f32.mrf.mxu0
        %2521 = vmatprep.mubr.f32.mxu0 0.0
        %2522 = vmatmul.mubr.f32.gmra.mxu0 %v2417
        %v2523 = vpop.f32.mrf.mxu0
        %v2524 = vadd.f32 0.0, %v2523
        %v2525 = vpop.f32.mrf.mxu0
        %2526 = vmatprep.mubr.f32.mxu0 0.0
        %2527 = vmatmul.mubr.f32.gmra.mxu0 %v2418
        %v2528 = vpop.f32.mrf.mxu0
        %v2529 = vadd.f32 0.0, %v2528
        %v2530 = vpop.f32.mrf.mxu0
        %2531 = vmatprep.mubr.f32.mxu0 0.0
        %2532 = vmatmul.mubr.f32.gmra.mxu0 %v2419
        %v2533 = vpop.f32.mrf.mxu0
        %v2534 = vadd.f32 0.0, %v2533
        %v2535 = vpop.f32.mrf.mxu0
        %2536 = vmatprep.mubr.f32.mxu0 0.0
        %2537 = vmatmul.mubr.f32.gmra.mxu0 %v2420
        %v2538 = vpop.f32.mrf.mxu0
        %v2539 = vadd.f32 0.0, %v2538
        %v2540 = vpop.f32.mrf.mxu0
        %2541 = vmatprep.mubr.f32.mxu0 0.0
        %2542 = vmatmul.mubr.f32.gmra.mxu0 %v2421
        %v2543 = vpop.f32.mrf.mxu0
        %v2544 = vadd.f32 0.0, %v2543
        %v2545 = vpop.f32.mrf.mxu0
        %2546 = vmatprep.mubr.f32.mxu0 0.0
        %2547 = vmatmul.mubr.f32.gmra.mxu0 %v2422
        %v2548 = vpop.f32.mrf.mxu0
        %v2549 = vadd.f32 0.0, %v2548
        %v2550 = vpop.f32.mrf.mxu0
        %2551 = vmatprep.mubr.f32.mxu0 0.0
        %2552 = vmatmul.mubr.f32.gmra.mxu0 %v2423
        %v2553 = vpop.f32.mrf.mxu0
        %v2554 = vadd.f32 0.0, %v2553
        %v2555 = vpop.f32.mrf.mxu0
        %2556 = vmatprep.mubr.f32.mxu0 0.0
        %2557 = vmatmul.mubr.f32.gmra.mxu0 %v2424
        %v2558 = vpop.f32.mrf.mxu0
        %v2559 = vadd.f32 0.0, %v2558
        %v2560 = vpop.f32.mrf.mxu0
        %2561 = vmatprep.mubr.f32.mxu0 0.0
        %2562 = vmatmul.mubr.f32.gmra.mxu0 %v2425
        %v2563 = vpop.f32.mrf.mxu0
        %v2564 = vadd.f32 0.0, %v2563
        %v2565 = vpop.f32.mrf.mxu0
        %2566 = vmatprep.mubr.f32.mxu0 0.0
        %2567 = vmatmul.mubr.f32.gmra.mxu0 %v2426
        %v2568 = vpop.f32.mrf.mxu0
        %v2569 = vadd.f32 0.0, %v2568
        %v2570 = vpop.f32.mrf.mxu0
        %2571 = vmatprep.mubr.f32.mxu0 0.0
        %2572 = vmatmul.mubr.f32.gmra.mxu0 %v2427
        %v2573 = vpop.f32.mrf.mxu0
        %v2574 = vadd.f32 0.0, %v2573
        %v2575 = vpop.f32.mrf.mxu0
        %2576 = vmatprep.mubr.f32.mxu0 0.0
        %2577 = vmatmul.mubr.f32.gmra.mxu0 %v2428
        %v2578 = vpop.f32.mrf.mxu0
        %v2579 = vadd.f32 0.0, %v2578
        %v2580 = vpop.f32.mrf.mxu0
        %2581 = vmatprep.mubr.f32.mxu0 0.0
        %2582 = vmatmul.mubr.f32.gmra.mxu0 %v2429
        %v2583 = vpop.f32.mrf.mxu0
        %v2584 = vadd.f32 0.0, %v2583
        %v2585 = vpop.f32.mrf.mxu0
        %2586 = vmatprep.mubr.f32.mxu0 0.0
        %2587 = vmatmul.mubr.f32.gmra.mxu0 %v2430
        %v2588 = vpop.f32.mrf.mxu0
        %v2589 = vadd.f32 0.0, %v2588
        %v2590 = vpop.f32.mrf.mxu0
        %2591 = vdwg.mxu0
        %v2592 = vadd.f32 %v2337, %v2514
        %v2593 = vadd.f32 %v2342, %v2519
        %v2594 = vadd.f32 %v2347, %v2524
        %v2595 = vadd.f32 %v2352, %v2529
        %v2596 = vadd.f32 %v2357, %v2534
        %v2597 = vadd.f32 %v2362, %v2539
        %v2598 = vadd.f32 %v2367, %v2544
        %v2599 = vadd.f32 %v2372, %v2549
        %v2600 = vadd.f32 %v2377, %v2554
        %v2601 = vadd.f32 %v2382, %v2559
        %v2602 = vadd.f32 %v2387, %v2564
        %v2603 = vadd.f32 %v2392, %v2569
        %v2604 = vadd.f32 %v2397, %v2574
        %v2605 = vadd.f32 %v2402, %v2579
        %v2606 = vadd.f32 %v2407, %v2584
        %v2607 = vadd.f32 %v2412, %v2589
        %s2608 = sadd.s32 8, 1
        %s2609 = smul.u32 %s2608, 24
        %s2610 = scalar_lea.vmem %s237, %s2609
        %v2611 = vld [vmem:[%s2610] sm:$0xff]
        %v2612 = vld [vmem:[%s2610 + $0x8] sm:$0xff]
        %v2613 = vld [vmem:[%s2610 + $0x18] sm:$0xff]
        %v2614 = vld [vmem:[%s2610 + $0x20] sm:$0xff]
        %v2615 = vld [vmem:[%s2610 + $0x30] sm:$0xff]
        %v2616 = vld [vmem:[%s2610 + $0x38] sm:$0xff]
        %v2617 = vld [vmem:[%s2610 + $0x48] sm:$0xff]
        %v2618 = vld [vmem:[%s2610 + $0x50] sm:$0xff]
        %v2619 = vld [vmem:[%s2610 + $0x60] sm:$0xff]
        %v2620 = vld [vmem:[%s2610 + $0x68] sm:$0xff]
        %v2621 = vld [vmem:[%s2610 + $0x78] sm:$0xff]
        %v2622 = vld [vmem:[%s2610 + $0x80] sm:$0xff]
        %v2623 = vld [vmem:[%s2610 + $0x90] sm:$0xff]
        %v2624 = vld [vmem:[%s2610 + $0x98] sm:$0xff]
        %v2625 = vld [vmem:[%s2610 + $0xa8] sm:$0xff]
        %v2626 = vld [vmem:[%s2610 + $0xb0] sm:$0xff]
        %v2627 = vld [vmem:[%s853] sm:$0xff]
        %v2628 = vld [vmem:[%s853 + $0x8] sm:$0xff]
        %v2629 = vld [vmem:[%s853 + $0x10] sm:$0xff]
        %v2630 = vld [vmem:[%s853 + $0x18] sm:$0xff]
        %v2631 = vld [vmem:[%s853 + $0x20] sm:$0xff]
        %v2632 = vld [vmem:[%s853 + $0x28] sm:$0xff]
        %v2633 = vld [vmem:[%s853 + $0x30] sm:$0xff]
        %v2634 = vld [vmem:[%s853 + $0x38] sm:$0xff]
        %v2635 = vld [vmem:[%s853 + $0x40] sm:$0xff]
        %v2636 = vld [vmem:[%s853 + $0x48] sm:$0xff]
        %v2637 = vld [vmem:[%s853 + $0x50] sm:$0xff]
        %v2638 = vld [vmem:[%s853 + $0x58] sm:$0xff]
        %v2639 = vld [vmem:[%s853 + $0x60] sm:$0xff]
        %v2640 = vld [vmem:[%s853 + $0x68] sm:$0xff]
        %v2641 = vld [vmem:[%s853 + $0x70] sm:$0xff]
        %v2642 = vld [vmem:[%s853 + $0x78] sm:$0xff]
        %2643 = vmatprep.subr.mxu0 0.0
        %2644 = vmatpush1.msra.mxu0 %v2642
        %2645 = vmatprep.subr.mxu0 0.0
        %2646 = vmatpush1.msra.mxu0 %v2641
        %2647 = vmatprep.subr.mxu0 0.0
        %2648 = vmatpush1.msra.mxu0 %v2640
        %2649 = vmatprep.subr.mxu0 0.0
        %2650 = vmatpush1.msra.mxu0 %v2639
        %2651 = vmatprep.subr.mxu0 0.0
        %2652 = vmatpush1.msra.mxu0 %v2638
        %2653 = vmatprep.subr.mxu0 0.0
        %2654 = vmatpush1.msra.mxu0 %v2637
        %2655 = vmatprep.subr.mxu0 0.0
        %2656 = vmatpush1.msra.mxu0 %v2636
        %2657 = vmatprep.subr.mxu0 0.0
        %2658 = vmatpush1.msra.mxu0 %v2635
        %2659 = vmatprep.subr.mxu0 0.0
        %2660 = vmatpush1.msra.mxu0 %v2634
        %2661 = vmatprep.subr.mxu0 0.0
        %2662 = vmatpush1.msra.mxu0 %v2633
        %2663 = vmatprep.subr.mxu0 0.0
        %2664 = vmatpush1.msra.mxu0 %v2632
        %2665 = vmatprep.subr.mxu0 0.0
        %2666 = vmatpush1.msra.mxu0 %v2631
        %2667 = vmatprep.subr.mxu0 0.0
        %2668 = vmatpush1.msra.mxu0 %v2630
        %2669 = vmatprep.subr.mxu0 0.0
        %2670 = vmatpush1.msra.mxu0 %v2629
        %2671 = vmatprep.subr.mxu0 0.0
        %2672 = vmatpush1.msra.mxu0 %v2628
        %2673 = vmatprep.subr.mxu0 0.0
        %2674 = vmatpush1.msra.mxu0 %v2627
        %2675 = vmatprep.subr.mxu0 0.0
        %2676 = vmatpush2.msra.mxu0 0.0
        %2677 = vmatprep.subr.mxu0 0.0
        %2678 = vmatpush2.msra.mxu0 0.0
        %2679 = vmatprep.subr.mxu0 0.0
        %2680 = vmatpush2.msra.mxu0 0.0
        %2681 = vmatprep.subr.mxu0 0.0
        %2682 = vmatpush2.msra.mxu0 0.0
        %2683 = vmatprep.subr.mxu0 0.0
        %2684 = vmatpush2.msra.mxu0 0.0
        %2685 = vmatprep.subr.mxu0 0.0
        %2686 = vmatpush2.msra.mxu0 0.0
        %2687 = vmatprep.subr.mxu0 0.0
        %2688 = vmatpush2.msra.mxu0 0.0
        %2689 = vmatprep.subr.mxu0 0.0
        %2690 = vmatpush2.msra.mxu0 0.0
        %2691 = vmatprep.subr.mxu0 0.0
        %2692 = vmatpush2.msra.mxu0 0.0
        %2693 = vmatprep.subr.mxu0 0.0
        %2694 = vmatpush2.msra.mxu0 0.0
        %2695 = vmatprep.subr.mxu0 0.0
        %2696 = vmatpush2.msra.mxu0 0.0
        %2697 = vmatprep.subr.mxu0 0.0
        %2698 = vmatpush2.msra.mxu0 0.0
        %2699 = vmatprep.subr.mxu0 0.0
        %2700 = vmatpush2.msra.mxu0 0.0
        %2701 = vmatprep.subr.mxu0 0.0
        %2702 = vmatpush2.msra.mxu0 0.0
        %2703 = vmatprep.subr.mxu0 0.0
        %2704 = vmatpush2.msra.mxu0 0.0
        %2705 = vmatprep.subr.mxu0 0.0
        %2706 = vmatpush2.msra.mxu0 0.0
        %2707 = vmatprep.mubr.f32.mxu0 0.0
        %2708 = vmatmul.mubr.f32.gmra.mxu0 %v2611
        %v2709 = vpop.f32.mrf.mxu0
        %v2710 = vadd.f32 0.0, %v2709
        %v2711 = vpop.f32.mrf.mxu0
        %2712 = vmatprep.mubr.f32.mxu0 0.0
        %2713 = vmatmul.mubr.f32.gmra.mxu0 %v2612
        %v2714 = vpop.f32.mrf.mxu0
        %v2715 = vadd.f32 0.0, %v2714
        %v2716 = vpop.f32.mrf.mxu0
        %2717 = vmatprep.mubr.f32.mxu0 0.0
        %2718 = vmatmul.mubr.f32.gmra.mxu0 %v2613
        %v2719 = vpop.f32.mrf.mxu0
        %v2720 = vadd.f32 0.0, %v2719
        %v2721 = vpop.f32.mrf.mxu0
        %2722 = vmatprep.mubr.f32.mxu0 0.0
        %2723 = vmatmul.mubr.f32.gmra.mxu0 %v2614
        %v2724 = vpop.f32.mrf.mxu0
        %v2725 = vadd.f32 0.0, %v2724
        %v2726 = vpop.f32.mrf.mxu0
        %2727 = vmatprep.mubr.f32.mxu0 0.0
        %2728 = vmatmul.mubr.f32.gmra.mxu0 %v2615
        %v2729 = vpop.f32.mrf.mxu0
        %v2730 = vadd.f32 0.0, %v2729
        %v2731 = vpop.f32.mrf.mxu0
        %2732 = vmatprep.mubr.f32.mxu0 0.0
        %2733 = vmatmul.mubr.f32.gmra.mxu0 %v2616
        %v2734 = vpop.f32.mrf.mxu0
        %v2735 = vadd.f32 0.0, %v2734
        %v2736 = vpop.f32.mrf.mxu0
        %2737 = vmatprep.mubr.f32.mxu0 0.0
        %2738 = vmatmul.mubr.f32.gmra.mxu0 %v2617
        %v2739 = vpop.f32.mrf.mxu0
        %v2740 = vadd.f32 0.0, %v2739
        %v2741 = vpop.f32.mrf.mxu0
        %2742 = vmatprep.mubr.f32.mxu0 0.0
        %2743 = vmatmul.mubr.f32.gmra.mxu0 %v2618
        %v2744 = vpop.f32.mrf.mxu0
        %v2745 = vadd.f32 0.0, %v2744
        %v2746 = vpop.f32.mrf.mxu0
        %2747 = vmatprep.mubr.f32.mxu0 0.0
        %2748 = vmatmul.mubr.f32.gmra.mxu0 %v2619
        %v2749 = vpop.f32.mrf.mxu0
        %v2750 = vadd.f32 0.0, %v2749
        %v2751 = vpop.f32.mrf.mxu0
        %2752 = vmatprep.mubr.f32.mxu0 0.0
        %2753 = vmatmul.mubr.f32.gmra.mxu0 %v2620
        %v2754 = vpop.f32.mrf.mxu0
        %v2755 = vadd.f32 0.0, %v2754
        %v2756 = vpop.f32.mrf.mxu0
        %2757 = vmatprep.mubr.f32.mxu0 0.0
        %2758 = vmatmul.mubr.f32.gmra.mxu0 %v2621
        %v2759 = vpop.f32.mrf.mxu0
        %v2760 = vadd.f32 0.0, %v2759
        %v2761 = vpop.f32.mrf.mxu0
        %2762 = vmatprep.mubr.f32.mxu0 0.0
        %2763 = vmatmul.mubr.f32.gmra.mxu0 %v2622
        %v2764 = vpop.f32.mrf.mxu0
        %v2765 = vadd.f32 0.0, %v2764
        %v2766 = vpop.f32.mrf.mxu0
        %2767 = vmatprep.mubr.f32.mxu0 0.0
        %2768 = vmatmul.mubr.f32.gmra.mxu0 %v2623
        %v2769 = vpop.f32.mrf.mxu0
        %v2770 = vadd.f32 0.0, %v2769
        %v2771 = vpop.f32.mrf.mxu0
        %2772 = vmatprep.mubr.f32.mxu0 0.0
        %2773 = vmatmul.mubr.f32.gmra.mxu0 %v2624
        %v2774 = vpop.f32.mrf.mxu0
        %v2775 = vadd.f32 0.0, %v2774
        %v2776 = vpop.f32.mrf.mxu0
        %2777 = vmatprep.mubr.f32.mxu0 0.0
        %2778 = vmatmul.mubr.f32.gmra.mxu0 %v2625
        %v2779 = vpop.f32.mrf.mxu0
        %v2780 = vadd.f32 0.0, %v2779
        %v2781 = vpop.f32.mrf.mxu0
        %2782 = vmatprep.mubr.f32.mxu0 0.0
        %2783 = vmatmul.mubr.f32.gmra.mxu0 %v2626
        %v2784 = vpop.f32.mrf.mxu0
        %v2785 = vadd.f32 0.0, %v2784
        %v2786 = vpop.f32.mrf.mxu0
        %2787 = vdwg.mxu0
        %v2788 = vadd.f32 %v2592, %v2710
        %v2789 = vadd.f32 %v2593, %v2715
        %v2790 = vadd.f32 %v2594, %v2720
        %v2791 = vadd.f32 %v2595, %v2725
        %v2792 = vadd.f32 %v2596, %v2730
        %v2793 = vadd.f32 %v2597, %v2735
        %v2794 = vadd.f32 %v2598, %v2740
        %v2795 = vadd.f32 %v2599, %v2745
        %v2796 = vadd.f32 %v2600, %v2750
        %v2797 = vadd.f32 %v2601, %v2755
        %v2798 = vadd.f32 %v2602, %v2760
        %v2799 = vadd.f32 %v2603, %v2765
        %v2800 = vadd.f32 %v2604, %v2770
        %v2801 = vadd.f32 %v2605, %v2775
        %v2802 = vadd.f32 %v2606, %v2780
        %v2803 = vadd.f32 %v2607, %v2785
        %v2804 = vld [vmem:[%s2610 + $0x1] sm:$0xff]
        %v2805 = vld [vmem:[%s2610 + $0x9] sm:$0xff]
        %v2806 = vld [vmem:[%s2610 + $0x19] sm:$0xff]
        %v2807 = vld [vmem:[%s2610 + $0x21] sm:$0xff]
        %v2808 = vld [vmem:[%s2610 + $0x31] sm:$0xff]
        %v2809 = vld [vmem:[%s2610 + $0x39] sm:$0xff]
        %v2810 = vld [vmem:[%s2610 + $0x49] sm:$0xff]
        %v2811 = vld [vmem:[%s2610 + $0x51] sm:$0xff]
        %v2812 = vld [vmem:[%s2610 + $0x61] sm:$0xff]
        %v2813 = vld [vmem:[%s2610 + $0x69] sm:$0xff]
        %v2814 = vld [vmem:[%s2610 + $0x79] sm:$0xff]
        %v2815 = vld [vmem:[%s2610 + $0x81] sm:$0xff]
        %v2816 = vld [vmem:[%s2610 + $0x91] sm:$0xff]
        %v2817 = vld [vmem:[%s2610 + $0x99] sm:$0xff]
        %v2818 = vld [vmem:[%s2610 + $0xa9] sm:$0xff]
        %v2819 = vld [vmem:[%s2610 + $0xb1] sm:$0xff]
        %v2820 = vld [vmem:[%s1047] sm:$0xff]
        %v2821 = vld [vmem:[%s1047 + $0x8] sm:$0xff]
        %v2822 = vld [vmem:[%s1047 + $0x10] sm:$0xff]
        %v2823 = vld [vmem:[%s1047 + $0x18] sm:$0xff]
        %v2824 = vld [vmem:[%s1047 + $0x20] sm:$0xff]
        %v2825 = vld [vmem:[%s1047 + $0x28] sm:$0xff]
        %v2826 = vld [vmem:[%s1047 + $0x30] sm:$0xff]
        %v2827 = vld [vmem:[%s1047 + $0x38] sm:$0xff]
        %v2828 = vld [vmem:[%s1047 + $0x40] sm:$0xff]
        %v2829 = vld [vmem:[%s1047 + $0x48] sm:$0xff]
        %v2830 = vld [vmem:[%s1047 + $0x50] sm:$0xff]
        %v2831 = vld [vmem:[%s1047 + $0x58] sm:$0xff]
        %v2832 = vld [vmem:[%s1047 + $0x60] sm:$0xff]
        %v2833 = vld [vmem:[%s1047 + $0x68] sm:$0xff]
        %v2834 = vld [vmem:[%s1047 + $0x70] sm:$0xff]
        %v2835 = vld [vmem:[%s1047 + $0x78] sm:$0xff]
        %2836 = vmatprep.subr.mxu0 0.0
        %2837 = vmatpush1.msra.mxu0 %v2835
        %2838 = vmatprep.subr.mxu0 0.0
        %2839 = vmatpush1.msra.mxu0 %v2834
        %2840 = vmatprep.subr.mxu0 0.0
        %2841 = vmatpush1.msra.mxu0 %v2833
        %2842 = vmatprep.subr.mxu0 0.0
        %2843 = vmatpush1.msra.mxu0 %v2832
        %2844 = vmatprep.subr.mxu0 0.0
        %2845 = vmatpush1.msra.mxu0 %v2831
        %2846 = vmatprep.subr.mxu0 0.0
        %2847 = vmatpush1.msra.mxu0 %v2830
        %2848 = vmatprep.subr.mxu0 0.0
        %2849 = vmatpush1.msra.mxu0 %v2829
        %2850 = vmatprep.subr.mxu0 0.0
        %2851 = vmatpush1.msra.mxu0 %v2828
        %2852 = vmatprep.subr.mxu0 0.0
        %2853 = vmatpush1.msra.mxu0 %v2827
        %2854 = vmatprep.subr.mxu0 0.0
        %2855 = vmatpush1.msra.mxu0 %v2826
        %2856 = vmatprep.subr.mxu0 0.0
        %2857 = vmatpush1.msra.mxu0 %v2825
        %2858 = vmatprep.subr.mxu0 0.0
        %2859 = vmatpush1.msra.mxu0 %v2824
        %2860 = vmatprep.subr.mxu0 0.0
        %2861 = vmatpush1.msra.mxu0 %v2823
        %2862 = vmatprep.subr.mxu0 0.0
        %2863 = vmatpush1.msra.mxu0 %v2822
        %2864 = vmatprep.subr.mxu0 0.0
        %2865 = vmatpush1.msra.mxu0 %v2821
        %2866 = vmatprep.subr.mxu0 0.0
        %2867 = vmatpush1.msra.mxu0 %v2820
        %2868 = vmatprep.subr.mxu0 0.0
        %2869 = vmatpush2.msra.mxu0 0.0
        %2870 = vmatprep.subr.mxu0 0.0
        %2871 = vmatpush2.msra.mxu0 0.0
        %2872 = vmatprep.subr.mxu0 0.0
        %2873 = vmatpush2.msra.mxu0 0.0
        %2874 = vmatprep.subr.mxu0 0.0
        %2875 = vmatpush2.msra.mxu0 0.0
        %2876 = vmatprep.subr.mxu0 0.0
        %2877 = vmatpush2.msra.mxu0 0.0
        %2878 = vmatprep.subr.mxu0 0.0
        %2879 = vmatpush2.msra.mxu0 0.0
        %2880 = vmatprep.subr.mxu0 0.0
        %2881 = vmatpush2.msra.mxu0 0.0
        %2882 = vmatprep.subr.mxu0 0.0
        %2883 = vmatpush2.msra.mxu0 0.0
        %2884 = vmatprep.subr.mxu0 0.0
        %2885 = vmatpush2.msra.mxu0 0.0
        %2886 = vmatprep.subr.mxu0 0.0
        %2887 = vmatpush2.msra.mxu0 0.0
        %2888 = vmatprep.subr.mxu0 0.0
        %2889 = vmatpush2.msra.mxu0 0.0
        %2890 = vmatprep.subr.mxu0 0.0
        %2891 = vmatpush2.msra.mxu0 0.0
        %2892 = vmatprep.subr.mxu0 0.0
        %2893 = vmatpush2.msra.mxu0 0.0
        %2894 = vmatprep.subr.mxu0 0.0
        %2895 = vmatpush2.msra.mxu0 0.0
        %2896 = vmatprep.subr.mxu0 0.0
        %2897 = vmatpush2.msra.mxu0 0.0
        %2898 = vmatprep.subr.mxu0 0.0
        %2899 = vmatpush2.msra.mxu0 0.0
        %2900 = vmatprep.mubr.f32.mxu0 0.0
        %2901 = vmatmul.mubr.f32.gmra.mxu0 %v2804
        %v2902 = vpop.f32.mrf.mxu0
        %v2903 = vadd.f32 0.0, %v2902
        %v2904 = vpop.f32.mrf.mxu0
        %2905 = vmatprep.mubr.f32.mxu0 0.0
        %2906 = vmatmul.mubr.f32.gmra.mxu0 %v2805
        %v2907 = vpop.f32.mrf.mxu0
        %v2908 = vadd.f32 0.0, %v2907
        %v2909 = vpop.f32.mrf.mxu0
        %2910 = vmatprep.mubr.f32.mxu0 0.0
        %2911 = vmatmul.mubr.f32.gmra.mxu0 %v2806
        %v2912 = vpop.f32.mrf.mxu0
        %v2913 = vadd.f32 0.0, %v2912
        %v2914 = vpop.f32.mrf.mxu0
        %2915 = vmatprep.mubr.f32.mxu0 0.0
        %2916 = vmatmul.mubr.f32.gmra.mxu0 %v2807
        %v2917 = vpop.f32.mrf.mxu0
        %v2918 = vadd.f32 0.0, %v2917
        %v2919 = vpop.f32.mrf.mxu0
        %2920 = vmatprep.mubr.f32.mxu0 0.0
        %2921 = vmatmul.mubr.f32.gmra.mxu0 %v2808
        %v2922 = vpop.f32.mrf.mxu0
        %v2923 = vadd.f32 0.0, %v2922
        %v2924 = vpop.f32.mrf.mxu0
        %2925 = vmatprep.mubr.f32.mxu0 0.0
        %2926 = vmatmul.mubr.f32.gmra.mxu0 %v2809
        %v2927 = vpop.f32.mrf.mxu0
        %v2928 = vadd.f32 0.0, %v2927
        %v2929 = vpop.f32.mrf.mxu0
        %2930 = vmatprep.mubr.f32.mxu0 0.0
        %2931 = vmatmul.mubr.f32.gmra.mxu0 %v2810
        %v2932 = vpop.f32.mrf.mxu0
        %v2933 = vadd.f32 0.0, %v2932
        %v2934 = vpop.f32.mrf.mxu0
        %2935 = vmatprep.mubr.f32.mxu0 0.0
        %2936 = vmatmul.mubr.f32.gmra.mxu0 %v2811
        %v2937 = vpop.f32.mrf.mxu0
        %v2938 = vadd.f32 0.0, %v2937
        %v2939 = vpop.f32.mrf.mxu0
        %2940 = vmatprep.mubr.f32.mxu0 0.0
        %2941 = vmatmul.mubr.f32.gmra.mxu0 %v2812
        %v2942 = vpop.f32.mrf.mxu0
        %v2943 = vadd.f32 0.0, %v2942
        %v2944 = vpop.f32.mrf.mxu0
        %2945 = vmatprep.mubr.f32.mxu0 0.0
        %2946 = vmatmul.mubr.f32.gmra.mxu0 %v2813
        %v2947 = vpop.f32.mrf.mxu0
        %v2948 = vadd.f32 0.0, %v2947
        %v2949 = vpop.f32.mrf.mxu0
        %2950 = vmatprep.mubr.f32.mxu0 0.0
        %2951 = vmatmul.mubr.f32.gmra.mxu0 %v2814
        %v2952 = vpop.f32.mrf.mxu0
        %v2953 = vadd.f32 0.0, %v2952
        %v2954 = vpop.f32.mrf.mxu0
        %2955 = vmatprep.mubr.f32.mxu0 0.0
        %2956 = vmatmul.mubr.f32.gmra.mxu0 %v2815
        %v2957 = vpop.f32.mrf.mxu0
        %v2958 = vadd.f32 0.0, %v2957
        %v2959 = vpop.f32.mrf.mxu0
        %2960 = vmatprep.mubr.f32.mxu0 0.0
        %2961 = vmatmul.mubr.f32.gmra.mxu0 %v2816
        %v2962 = vpop.f32.mrf.mxu0
        %v2963 = vadd.f32 0.0, %v2962
        %v2964 = vpop.f32.mrf.mxu0
        %2965 = vmatprep.mubr.f32.mxu0 0.0
        %2966 = vmatmul.mubr.f32.gmra.mxu0 %v2817
        %v2967 = vpop.f32.mrf.mxu0
        %v2968 = vadd.f32 0.0, %v2967
        %v2969 = vpop.f32.mrf.mxu0
        %2970 = vmatprep.mubr.f32.mxu0 0.0
        %2971 = vmatmul.mubr.f32.gmra.mxu0 %v2818
        %v2972 = vpop.f32.mrf.mxu0
        %v2973 = vadd.f32 0.0, %v2972
        %v2974 = vpop.f32.mrf.mxu0
        %2975 = vmatprep.mubr.f32.mxu0 0.0
        %2976 = vmatmul.mubr.f32.gmra.mxu0 %v2819
        %v2977 = vpop.f32.mrf.mxu0
        %v2978 = vadd.f32 0.0, %v2977
        %v2979 = vpop.f32.mrf.mxu0
        %2980 = vdwg.mxu0
        %v2981 = vadd.f32 %v2788, %v2903
        %v2982 = vadd.f32 %v2789, %v2908
        %v2983 = vadd.f32 %v2790, %v2913
        %v2984 = vadd.f32 %v2791, %v2918
        %v2985 = vadd.f32 %v2792, %v2923
        %v2986 = vadd.f32 %v2793, %v2928
        %v2987 = vadd.f32 %v2794, %v2933
        %v2988 = vadd.f32 %v2795, %v2938
        %v2989 = vadd.f32 %v2796, %v2943
        %v2990 = vadd.f32 %v2797, %v2948
        %v2991 = vadd.f32 %v2798, %v2953
        %v2992 = vadd.f32 %v2799, %v2958
        %v2993 = vadd.f32 %v2800, %v2963
        %v2994 = vadd.f32 %v2801, %v2968
        %v2995 = vadd.f32 %v2802, %v2973
        %v2996 = vadd.f32 %v2803, %v2978
        %v2997 = vld [vmem:[%s2610 + $0x2] sm:$0xff]
        %v2998 = vld [vmem:[%s2610 + $0xa] sm:$0xff]
        %v2999 = vld [vmem:[%s2610 + $0x1a] sm:$0xff]
        %v3000 = vld [vmem:[%s2610 + $0x22] sm:$0xff]
        %v3001 = vld [vmem:[%s2610 + $0x32] sm:$0xff]
        %v3002 = vld [vmem:[%s2610 + $0x3a] sm:$0xff]
        %v3003 = vld [vmem:[%s2610 + $0x4a] sm:$0xff]
        %v3004 = vld [vmem:[%s2610 + $0x52] sm:$0xff]
        %v3005 = vld [vmem:[%s2610 + $0x62] sm:$0xff]
        %v3006 = vld [vmem:[%s2610 + $0x6a] sm:$0xff]
        %v3007 = vld [vmem:[%s2610 + $0x7a] sm:$0xff]
        %v3008 = vld [vmem:[%s2610 + $0x82] sm:$0xff]
        %v3009 = vld [vmem:[%s2610 + $0x92] sm:$0xff]
        %v3010 = vld [vmem:[%s2610 + $0x9a] sm:$0xff]
        %v3011 = vld [vmem:[%s2610 + $0xaa] sm:$0xff]
        %v3012 = vld [vmem:[%s2610 + $0xb2] sm:$0xff]
        %v3013 = vld [vmem:[%s1241] sm:$0xff]
        %v3014 = vld [vmem:[%s1241 + $0x8] sm:$0xff]
        %v3015 = vld [vmem:[%s1241 + $0x10] sm:$0xff]
        %v3016 = vld [vmem:[%s1241 + $0x18] sm:$0xff]
        %v3017 = vld [vmem:[%s1241 + $0x20] sm:$0xff]
        %v3018 = vld [vmem:[%s1241 + $0x28] sm:$0xff]
        %v3019 = vld [vmem:[%s1241 + $0x30] sm:$0xff]
        %v3020 = vld [vmem:[%s1241 + $0x38] sm:$0xff]
        %v3021 = vld [vmem:[%s1241 + $0x40] sm:$0xff]
        %v3022 = vld [vmem:[%s1241 + $0x48] sm:$0xff]
        %v3023 = vld [vmem:[%s1241 + $0x50] sm:$0xff]
        %v3024 = vld [vmem:[%s1241 + $0x58] sm:$0xff]
        %v3025 = vld [vmem:[%s1241 + $0x60] sm:$0xff]
        %v3026 = vld [vmem:[%s1241 + $0x68] sm:$0xff]
        %v3027 = vld [vmem:[%s1241 + $0x70] sm:$0xff]
        %v3028 = vld [vmem:[%s1241 + $0x78] sm:$0xff]
        %3029 = vmatprep.subr.mxu0 0.0
        %3030 = vmatpush1.msra.mxu0 %v3028
        %3031 = vmatprep.subr.mxu0 0.0
        %3032 = vmatpush1.msra.mxu0 %v3027
        %3033 = vmatprep.subr.mxu0 0.0
        %3034 = vmatpush1.msra.mxu0 %v3026
        %3035 = vmatprep.subr.mxu0 0.0
        %3036 = vmatpush1.msra.mxu0 %v3025
        %3037 = vmatprep.subr.mxu0 0.0
        %3038 = vmatpush1.msra.mxu0 %v3024
        %3039 = vmatprep.subr.mxu0 0.0
        %3040 = vmatpush1.msra.mxu0 %v3023
        %3041 = vmatprep.subr.mxu0 0.0
        %3042 = vmatpush1.msra.mxu0 %v3022
        %3043 = vmatprep.subr.mxu0 0.0
        %3044 = vmatpush1.msra.mxu0 %v3021
        %3045 = vmatprep.subr.mxu0 0.0
        %3046 = vmatpush1.msra.mxu0 %v3020
        %3047 = vmatprep.subr.mxu0 0.0
        %3048 = vmatpush1.msra.mxu0 %v3019
        %3049 = vmatprep.subr.mxu0 0.0
        %3050 = vmatpush1.msra.mxu0 %v3018
        %3051 = vmatprep.subr.mxu0 0.0
        %3052 = vmatpush1.msra.mxu0 %v3017
        %3053 = vmatprep.subr.mxu0 0.0
        %3054 = vmatpush1.msra.mxu0 %v3016
        %3055 = vmatprep.subr.mxu0 0.0
        %3056 = vmatpush1.msra.mxu0 %v3015
        %3057 = vmatprep.subr.mxu0 0.0
        %3058 = vmatpush1.msra.mxu0 %v3014
        %3059 = vmatprep.subr.mxu0 0.0
        %3060 = vmatpush1.msra.mxu0 %v3013
        %3061 = vmatprep.subr.mxu0 0.0
        %3062 = vmatpush2.msra.mxu0 0.0
        %3063 = vmatprep.subr.mxu0 0.0
        %3064 = vmatpush2.msra.mxu0 0.0
        %3065 = vmatprep.subr.mxu0 0.0
        %3066 = vmatpush2.msra.mxu0 0.0
        %3067 = vmatprep.subr.mxu0 0.0
        %3068 = vmatpush2.msra.mxu0 0.0
        %3069 = vmatprep.subr.mxu0 0.0
        %3070 = vmatpush2.msra.mxu0 0.0
        %3071 = vmatprep.subr.mxu0 0.0
        %3072 = vmatpush2.msra.mxu0 0.0
        %3073 = vmatprep.subr.mxu0 0.0
        %3074 = vmatpush2.msra.mxu0 0.0
        %3075 = vmatprep.subr.mxu0 0.0
        %3076 = vmatpush2.msra.mxu0 0.0
        %3077 = vmatprep.subr.mxu0 0.0
        %3078 = vmatpush2.msra.mxu0 0.0
        %3079 = vmatprep.subr.mxu0 0.0
        %3080 = vmatpush2.msra.mxu0 0.0
        %3081 = vmatprep.subr.mxu0 0.0
        %3082 = vmatpush2.msra.mxu0 0.0
        %3083 = vmatprep.subr.mxu0 0.0
        %3084 = vmatpush2.msra.mxu0 0.0
        %3085 = vmatprep.subr.mxu0 0.0
        %3086 = vmatpush2.msra.mxu0 0.0
        %3087 = vmatprep.subr.mxu0 0.0
        %3088 = vmatpush2.msra.mxu0 0.0
        %3089 = vmatprep.subr.mxu0 0.0
        %3090 = vmatpush2.msra.mxu0 0.0
        %3091 = vmatprep.subr.mxu0 0.0
        %3092 = vmatpush2.msra.mxu0 0.0
        %3093 = vmatprep.mubr.f32.mxu0 0.0
        %3094 = vmatmul.mubr.f32.gmra.mxu0 %v2997
        %v3095 = vpop.f32.mrf.mxu0
        %v3096 = vadd.f32 0.0, %v3095
        %v3097 = vpop.f32.mrf.mxu0
        %3098 = vmatprep.mubr.f32.mxu0 0.0
        %3099 = vmatmul.mubr.f32.gmra.mxu0 %v2998
        %v3100 = vpop.f32.mrf.mxu0
        %v3101 = vadd.f32 0.0, %v3100
        %v3102 = vpop.f32.mrf.mxu0
        %3103 = vmatprep.mubr.f32.mxu0 0.0
        %3104 = vmatmul.mubr.f32.gmra.mxu0 %v2999
        %v3105 = vpop.f32.mrf.mxu0
        %v3106 = vadd.f32 0.0, %v3105
        %v3107 = vpop.f32.mrf.mxu0
        %3108 = vmatprep.mubr.f32.mxu0 0.0
        %3109 = vmatmul.mubr.f32.gmra.mxu0 %v3000
        %v3110 = vpop.f32.mrf.mxu0
        %v3111 = vadd.f32 0.0, %v3110
        %v3112 = vpop.f32.mrf.mxu0
        %3113 = vmatprep.mubr.f32.mxu0 0.0
        %3114 = vmatmul.mubr.f32.gmra.mxu0 %v3001
        %v3115 = vpop.f32.mrf.mxu0
        %v3116 = vadd.f32 0.0, %v3115
        %v3117 = vpop.f32.mrf.mxu0
        %3118 = vmatprep.mubr.f32.mxu0 0.0
        %3119 = vmatmul.mubr.f32.gmra.mxu0 %v3002
        %v3120 = vpop.f32.mrf.mxu0
        %v3121 = vadd.f32 0.0, %v3120
        %v3122 = vpop.f32.mrf.mxu0
        %3123 = vmatprep.mubr.f32.mxu0 0.0
        %3124 = vmatmul.mubr.f32.gmra.mxu0 %v3003
        %v3125 = vpop.f32.mrf.mxu0
        %v3126 = vadd.f32 0.0, %v3125
        %v3127 = vpop.f32.mrf.mxu0
        %3128 = vmatprep.mubr.f32.mxu0 0.0
        %3129 = vmatmul.mubr.f32.gmra.mxu0 %v3004
        %v3130 = vpop.f32.mrf.mxu0
        %v3131 = vadd.f32 0.0, %v3130
        %v3132 = vpop.f32.mrf.mxu0
        %3133 = vmatprep.mubr.f32.mxu0 0.0
        %3134 = vmatmul.mubr.f32.gmra.mxu0 %v3005
        %v3135 = vpop.f32.mrf.mxu0
        %v3136 = vadd.f32 0.0, %v3135
        %v3137 = vpop.f32.mrf.mxu0
        %3138 = vmatprep.mubr.f32.mxu0 0.0
        %3139 = vmatmul.mubr.f32.gmra.mxu0 %v3006
        %v3140 = vpop.f32.mrf.mxu0
        %v3141 = vadd.f32 0.0, %v3140
        %v3142 = vpop.f32.mrf.mxu0
        %3143 = vmatprep.mubr.f32.mxu0 0.0
        %3144 = vmatmul.mubr.f32.gmra.mxu0 %v3007
        %v3145 = vpop.f32.mrf.mxu0
        %v3146 = vadd.f32 0.0, %v3145
        %v3147 = vpop.f32.mrf.mxu0
        %3148 = vmatprep.mubr.f32.mxu0 0.0
        %3149 = vmatmul.mubr.f32.gmra.mxu0 %v3008
        %v3150 = vpop.f32.mrf.mxu0
        %v3151 = vadd.f32 0.0, %v3150
        %v3152 = vpop.f32.mrf.mxu0
        %3153 = vmatprep.mubr.f32.mxu0 0.0
        %3154 = vmatmul.mubr.f32.gmra.mxu0 %v3009
        %v3155 = vpop.f32.mrf.mxu0
        %v3156 = vadd.f32 0.0, %v3155
        %v3157 = vpop.f32.mrf.mxu0
        %3158 = vmatprep.mubr.f32.mxu0 0.0
        %3159 = vmatmul.mubr.f32.gmra.mxu0 %v3010
        %v3160 = vpop.f32.mrf.mxu0
        %v3161 = vadd.f32 0.0, %v3160
        %v3162 = vpop.f32.mrf.mxu0
        %3163 = vmatprep.mubr.f32.mxu0 0.0
        %3164 = vmatmul.mubr.f32.gmra.mxu0 %v3011
        %v3165 = vpop.f32.mrf.mxu0
        %v3166 = vadd.f32 0.0, %v3165
        %v3167 = vpop.f32.mrf.mxu0
        %3168 = vmatprep.mubr.f32.mxu0 0.0
        %3169 = vmatmul.mubr.f32.gmra.mxu0 %v3012
        %v3170 = vpop.f32.mrf.mxu0
        %v3171 = vadd.f32 0.0, %v3170
        %v3172 = vpop.f32.mrf.mxu0
        %3173 = vdwg.mxu0
        %v3174 = vadd.f32 %v2981, %v3096
        %v3175 = vadd.f32 %v2982, %v3101
        %v3176 = vadd.f32 %v2983, %v3106
        %v3177 = vadd.f32 %v2984, %v3111
        %v3178 = vadd.f32 %v2985, %v3116
        %v3179 = vadd.f32 %v2986, %v3121
        %v3180 = vadd.f32 %v2987, %v3126
        %v3181 = vadd.f32 %v2988, %v3131
        %v3182 = vadd.f32 %v2989, %v3136
        %v3183 = vadd.f32 %v2990, %v3141
        %v3184 = vadd.f32 %v2991, %v3146
        %v3185 = vadd.f32 %v2992, %v3151
        %v3186 = vadd.f32 %v2993, %v3156
        %v3187 = vadd.f32 %v2994, %v3161
        %v3188 = vadd.f32 %v2995, %v3166
        %v3189 = vadd.f32 %v2996, %v3171
        %s3190 = sadd.s32 8, 2
        %s3191 = smul.u32 %s3190, 24
        %s3192 = scalar_lea.vmem %s237, %s3191
        %v3193 = vld [vmem:[%s3192] sm:$0xff]
        %v3194 = vld [vmem:[%s3192 + $0x8] sm:$0xff]
        %v3195 = vld [vmem:[%s3192 + $0x18] sm:$0xff]
        %v3196 = vld [vmem:[%s3192 + $0x20] sm:$0xff]
        %v3197 = vld [vmem:[%s3192 + $0x30] sm:$0xff]
        %v3198 = vld [vmem:[%s3192 + $0x38] sm:$0xff]
        %v3199 = vld [vmem:[%s3192 + $0x48] sm:$0xff]
        %v3200 = vld [vmem:[%s3192 + $0x50] sm:$0xff]
        %v3201 = vld [vmem:[%s3192 + $0x60] sm:$0xff]
        %v3202 = vld [vmem:[%s3192 + $0x68] sm:$0xff]
        %v3203 = vld [vmem:[%s3192 + $0x78] sm:$0xff]
        %v3204 = vld [vmem:[%s3192 + $0x80] sm:$0xff]
        %v3205 = vld [vmem:[%s3192 + $0x90] sm:$0xff]
        %v3206 = vld [vmem:[%s3192 + $0x98] sm:$0xff]
        %v3207 = vld [vmem:[%s3192 + $0xa8] sm:$0xff]
        %v3208 = vld [vmem:[%s3192 + $0xb0] sm:$0xff]
        %v3209 = vld [vmem:[%s1438] sm:$0xff]
        %v3210 = vld [vmem:[%s1438 + $0x8] sm:$0xff]
        %v3211 = vld [vmem:[%s1438 + $0x10] sm:$0xff]
        %v3212 = vld [vmem:[%s1438 + $0x18] sm:$0xff]
        %v3213 = vld [vmem:[%s1438 + $0x20] sm:$0xff]
        %v3214 = vld [vmem:[%s1438 + $0x28] sm:$0xff]
        %v3215 = vld [vmem:[%s1438 + $0x30] sm:$0xff]
        %v3216 = vld [vmem:[%s1438 + $0x38] sm:$0xff]
        %v3217 = vld [vmem:[%s1438 + $0x40] sm:$0xff]
        %v3218 = vld [vmem:[%s1438 + $0x48] sm:$0xff]
        %v3219 = vld [vmem:[%s1438 + $0x50] sm:$0xff]
        %v3220 = vld [vmem:[%s1438 + $0x58] sm:$0xff]
        %v3221 = vld [vmem:[%s1438 + $0x60] sm:$0xff]
        %v3222 = vld [vmem:[%s1438 + $0x68] sm:$0xff]
        %v3223 = vld [vmem:[%s1438 + $0x70] sm:$0xff]
        %v3224 = vld [vmem:[%s1438 + $0x78] sm:$0xff]
        %3225 = vmatprep.subr.mxu0 0.0
        %3226 = vmatpush1.msra.mxu0 %v3224
        %3227 = vmatprep.subr.mxu0 0.0
        %3228 = vmatpush1.msra.mxu0 %v3223
        %3229 = vmatprep.subr.mxu0 0.0
        %3230 = vmatpush1.msra.mxu0 %v3222
        %3231 = vmatprep.subr.mxu0 0.0
        %3232 = vmatpush1.msra.mxu0 %v3221
        %3233 = vmatprep.subr.mxu0 0.0
        %3234 = vmatpush1.msra.mxu0 %v3220
        %3235 = vmatprep.subr.mxu0 0.0
        %3236 = vmatpush1.msra.mxu0 %v3219
        %3237 = vmatprep.subr.mxu0 0.0
        %3238 = vmatpush1.msra.mxu0 %v3218
        %3239 = vmatprep.subr.mxu0 0.0
        %3240 = vmatpush1.msra.mxu0 %v3217
        %3241 = vmatprep.subr.mxu0 0.0
        %3242 = vmatpush1.msra.mxu0 %v3216
        %3243 = vmatprep.subr.mxu0 0.0
        %3244 = vmatpush1.msra.mxu0 %v3215
        %3245 = vmatprep.subr.mxu0 0.0
        %3246 = vmatpush1.msra.mxu0 %v3214
        %3247 = vmatprep.subr.mxu0 0.0
        %3248 = vmatpush1.msra.mxu0 %v3213
        %3249 = vmatprep.subr.mxu0 0.0
        %3250 = vmatpush1.msra.mxu0 %v3212
        %3251 = vmatprep.subr.mxu0 0.0
        %3252 = vmatpush1.msra.mxu0 %v3211
        %3253 = vmatprep.subr.mxu0 0.0
        %3254 = vmatpush1.msra.mxu0 %v3210
        %3255 = vmatprep.subr.mxu0 0.0
        %3256 = vmatpush1.msra.mxu0 %v3209
        %3257 = vmatprep.subr.mxu0 0.0
        %3258 = vmatpush2.msra.mxu0 0.0
        %3259 = vmatprep.subr.mxu0 0.0
        %3260 = vmatpush2.msra.mxu0 0.0
        %3261 = vmatprep.subr.mxu0 0.0
        %3262 = vmatpush2.msra.mxu0 0.0
        %3263 = vmatprep.subr.mxu0 0.0
        %3264 = vmatpush2.msra.mxu0 0.0
        %3265 = vmatprep.subr.mxu0 0.0
        %3266 = vmatpush2.msra.mxu0 0.0
        %3267 = vmatprep.subr.mxu0 0.0
        %3268 = vmatpush2.msra.mxu0 0.0
        %3269 = vmatprep.subr.mxu0 0.0
        %3270 = vmatpush2.msra.mxu0 0.0
        %3271 = vmatprep.subr.mxu0 0.0
        %3272 = vmatpush2.msra.mxu0 0.0
        %3273 = vmatprep.subr.mxu0 0.0
        %3274 = vmatpush2.msra.mxu0 0.0
        %3275 = vmatprep.subr.mxu0 0.0
        %3276 = vmatpush2.msra.mxu0 0.0
        %3277 = vmatprep.subr.mxu0 0.0
        %3278 = vmatpush2.msra.mxu0 0.0
        %3279 = vmatprep.subr.mxu0 0.0
        %3280 = vmatpush2.msra.mxu0 0.0
        %3281 = vmatprep.subr.mxu0 0.0
        %3282 = vmatpush2.msra.mxu0 0.0
        %3283 = vmatprep.subr.mxu0 0.0
        %3284 = vmatpush2.msra.mxu0 0.0
        %3285 = vmatprep.subr.mxu0 0.0
        %3286 = vmatpush2.msra.mxu0 0.0
        %3287 = vmatprep.subr.mxu0 0.0
        %3288 = vmatpush2.msra.mxu0 0.0
        %3289 = vmatprep.mubr.f32.mxu0 0.0
        %3290 = vmatmul.mubr.f32.gmra.mxu0 %v3193
        %v3291 = vpop.f32.mrf.mxu0
        %v3292 = vadd.f32 0.0, %v3291
        %v3293 = vpop.f32.mrf.mxu0
        %3294 = vmatprep.mubr.f32.mxu0 0.0
        %3295 = vmatmul.mubr.f32.gmra.mxu0 %v3194
        %v3296 = vpop.f32.mrf.mxu0
        %v3297 = vadd.f32 0.0, %v3296
        %v3298 = vpop.f32.mrf.mxu0
        %3299 = vmatprep.mubr.f32.mxu0 0.0
        %3300 = vmatmul.mubr.f32.gmra.mxu0 %v3195
        %v3301 = vpop.f32.mrf.mxu0
        %v3302 = vadd.f32 0.0, %v3301
        %v3303 = vpop.f32.mrf.mxu0
        %3304 = vmatprep.mubr.f32.mxu0 0.0
        %3305 = vmatmul.mubr.f32.gmra.mxu0 %v3196
        %v3306 = vpop.f32.mrf.mxu0
        %v3307 = vadd.f32 0.0, %v3306
        %v3308 = vpop.f32.mrf.mxu0
        %3309 = vmatprep.mubr.f32.mxu0 0.0
        %3310 = vmatmul.mubr.f32.gmra.mxu0 %v3197
        %v3311 = vpop.f32.mrf.mxu0
        %v3312 = vadd.f32 0.0, %v3311
        %v3313 = vpop.f32.mrf.mxu0
        %3314 = vmatprep.mubr.f32.mxu0 0.0
        %3315 = vmatmul.mubr.f32.gmra.mxu0 %v3198
        %v3316 = vpop.f32.mrf.mxu0
        %v3317 = vadd.f32 0.0, %v3316
        %v3318 = vpop.f32.mrf.mxu0
        %3319 = vmatprep.mubr.f32.mxu0 0.0
        %3320 = vmatmul.mubr.f32.gmra.mxu0 %v3199
        %v3321 = vpop.f32.mrf.mxu0
        %v3322 = vadd.f32 0.0, %v3321
        %v3323 = vpop.f32.mrf.mxu0
        %3324 = vmatprep.mubr.f32.mxu0 0.0
        %3325 = vmatmul.mubr.f32.gmra.mxu0 %v3200
        %v3326 = vpop.f32.mrf.mxu0
        %v3327 = vadd.f32 0.0, %v3326
        %v3328 = vpop.f32.mrf.mxu0
        %3329 = vmatprep.mubr.f32.mxu0 0.0
        %3330 = vmatmul.mubr.f32.gmra.mxu0 %v3201
        %v3331 = vpop.f32.mrf.mxu0
        %v3332 = vadd.f32 0.0, %v3331
        %v3333 = vpop.f32.mrf.mxu0
        %3334 = vmatprep.mubr.f32.mxu0 0.0
        %3335 = vmatmul.mubr.f32.gmra.mxu0 %v3202
        %v3336 = vpop.f32.mrf.mxu0
        %v3337 = vadd.f32 0.0, %v3336
        %v3338 = vpop.f32.mrf.mxu0
        %3339 = vmatprep.mubr.f32.mxu0 0.0
        %3340 = vmatmul.mubr.f32.gmra.mxu0 %v3203
        %v3341 = vpop.f32.mrf.mxu0
        %v3342 = vadd.f32 0.0, %v3341
        %v3343 = vpop.f32.mrf.mxu0
        %3344 = vmatprep.mubr.f32.mxu0 0.0
        %3345 = vmatmul.mubr.f32.gmra.mxu0 %v3204
        %v3346 = vpop.f32.mrf.mxu0
        %v3347 = vadd.f32 0.0, %v3346
        %v3348 = vpop.f32.mrf.mxu0
        %3349 = vmatprep.mubr.f32.mxu0 0.0
        %3350 = vmatmul.mubr.f32.gmra.mxu0 %v3205
        %v3351 = vpop.f32.mrf.mxu0
        %v3352 = vadd.f32 0.0, %v3351
        %v3353 = vpop.f32.mrf.mxu0
        %3354 = vmatprep.mubr.f32.mxu0 0.0
        %3355 = vmatmul.mubr.f32.gmra.mxu0 %v3206
        %v3356 = vpop.f32.mrf.mxu0
        %v3357 = vadd.f32 0.0, %v3356
        %v3358 = vpop.f32.mrf.mxu0
        %3359 = vmatprep.mubr.f32.mxu0 0.0
        %3360 = vmatmul.mubr.f32.gmra.mxu0 %v3207
        %v3361 = vpop.f32.mrf.mxu0
        %v3362 = vadd.f32 0.0, %v3361
        %v3363 = vpop.f32.mrf.mxu0
        %3364 = vmatprep.mubr.f32.mxu0 0.0
        %3365 = vmatmul.mubr.f32.gmra.mxu0 %v3208
        %v3366 = vpop.f32.mrf.mxu0
        %v3367 = vadd.f32 0.0, %v3366
        %v3368 = vpop.f32.mrf.mxu0
        %3369 = vdwg.mxu0
        %v3370 = vadd.f32 %v3174, %v3292
        %v3371 = vadd.f32 %v3175, %v3297
        %v3372 = vadd.f32 %v3176, %v3302
        %v3373 = vadd.f32 %v3177, %v3307
        %v3374 = vadd.f32 %v3178, %v3312
        %v3375 = vadd.f32 %v3179, %v3317
        %v3376 = vadd.f32 %v3180, %v3322
        %v3377 = vadd.f32 %v3181, %v3327
        %v3378 = vadd.f32 %v3182, %v3332
        %v3379 = vadd.f32 %v3183, %v3337
        %v3380 = vadd.f32 %v3184, %v3342
        %v3381 = vadd.f32 %v3185, %v3347
        %v3382 = vadd.f32 %v3186, %v3352
        %v3383 = vadd.f32 %v3187, %v3357
        %v3384 = vadd.f32 %v3188, %v3362
        %v3385 = vadd.f32 %v3189, %v3367
        %v3386 = vld [vmem:[%s3192 + $0x1] sm:$0xff]
        %v3387 = vld [vmem:[%s3192 + $0x9] sm:$0xff]
        %v3388 = vld [vmem:[%s3192 + $0x19] sm:$0xff]
        %v3389 = vld [vmem:[%s3192 + $0x21] sm:$0xff]
        %v3390 = vld [vmem:[%s3192 + $0x31] sm:$0xff]
        %v3391 = vld [vmem:[%s3192 + $0x39] sm:$0xff]
        %v3392 = vld [vmem:[%s3192 + $0x49] sm:$0xff]
        %v3393 = vld [vmem:[%s3192 + $0x51] sm:$0xff]
        %v3394 = vld [vmem:[%s3192 + $0x61] sm:$0xff]
        %v3395 = vld [vmem:[%s3192 + $0x69] sm:$0xff]
        %v3396 = vld [vmem:[%s3192 + $0x79] sm:$0xff]
        %v3397 = vld [vmem:[%s3192 + $0x81] sm:$0xff]
        %v3398 = vld [vmem:[%s3192 + $0x91] sm:$0xff]
        %v3399 = vld [vmem:[%s3192 + $0x99] sm:$0xff]
        %v3400 = vld [vmem:[%s3192 + $0xa9] sm:$0xff]
        %v3401 = vld [vmem:[%s3192 + $0xb1] sm:$0xff]
        %v3402 = vld [vmem:[%s1632] sm:$0xff]
        %v3403 = vld [vmem:[%s1632 + $0x8] sm:$0xff]
        %v3404 = vld [vmem:[%s1632 + $0x10] sm:$0xff]
        %v3405 = vld [vmem:[%s1632 + $0x18] sm:$0xff]
        %v3406 = vld [vmem:[%s1632 + $0x20] sm:$0xff]
        %v3407 = vld [vmem:[%s1632 + $0x28] sm:$0xff]
        %v3408 = vld [vmem:[%s1632 + $0x30] sm:$0xff]
        %v3409 = vld [vmem:[%s1632 + $0x38] sm:$0xff]
        %v3410 = vld [vmem:[%s1632 + $0x40] sm:$0xff]
        %v3411 = vld [vmem:[%s1632 + $0x48] sm:$0xff]
        %v3412 = vld [vmem:[%s1632 + $0x50] sm:$0xff]
        %v3413 = vld [vmem:[%s1632 + $0x58] sm:$0xff]
        %v3414 = vld [vmem:[%s1632 + $0x60] sm:$0xff]
        %v3415 = vld [vmem:[%s1632 + $0x68] sm:$0xff]
        %v3416 = vld [vmem:[%s1632 + $0x70] sm:$0xff]
        %v3417 = vld [vmem:[%s1632 + $0x78] sm:$0xff]
        %3418 = vmatprep.subr.mxu0 0.0
        %3419 = vmatpush1.msra.mxu0 %v3417
        %3420 = vmatprep.subr.mxu0 0.0
        %3421 = vmatpush1.msra.mxu0 %v3416
        %3422 = vmatprep.subr.mxu0 0.0
        %3423 = vmatpush1.msra.mxu0 %v3415
        %3424 = vmatprep.subr.mxu0 0.0
        %3425 = vmatpush1.msra.mxu0 %v3414
        %3426 = vmatprep.subr.mxu0 0.0
        %3427 = vmatpush1.msra.mxu0 %v3413
        %3428 = vmatprep.subr.mxu0 0.0
        %3429 = vmatpush1.msra.mxu0 %v3412
        %3430 = vmatprep.subr.mxu0 0.0
        %3431 = vmatpush1.msra.mxu0 %v3411
        %3432 = vmatprep.subr.mxu0 0.0
        %3433 = vmatpush1.msra.mxu0 %v3410
        %3434 = vmatprep.subr.mxu0 0.0
        %3435 = vmatpush1.msra.mxu0 %v3409
        %3436 = vmatprep.subr.mxu0 0.0
        %3437 = vmatpush1.msra.mxu0 %v3408
        %3438 = vmatprep.subr.mxu0 0.0
        %3439 = vmatpush1.msra.mxu0 %v3407
        %3440 = vmatprep.subr.mxu0 0.0
        %3441 = vmatpush1.msra.mxu0 %v3406
        %3442 = vmatprep.subr.mxu0 0.0
        %3443 = vmatpush1.msra.mxu0 %v3405
        %3444 = vmatprep.subr.mxu0 0.0
        %3445 = vmatpush1.msra.mxu0 %v3404
        %3446 = vmatprep.subr.mxu0 0.0
        %3447 = vmatpush1.msra.mxu0 %v3403
        %3448 = vmatprep.subr.mxu0 0.0
        %3449 = vmatpush1.msra.mxu0 %v3402
        %3450 = vmatprep.subr.mxu0 0.0
        %3451 = vmatpush2.msra.mxu0 0.0
        %3452 = vmatprep.subr.mxu0 0.0
        %3453 = vmatpush2.msra.mxu0 0.0
        %3454 = vmatprep.subr.mxu0 0.0
        %3455 = vmatpush2.msra.mxu0 0.0
        %3456 = vmatprep.subr.mxu0 0.0
        %3457 = vmatpush2.msra.mxu0 0.0
        %3458 = vmatprep.subr.mxu0 0.0
        %3459 = vmatpush2.msra.mxu0 0.0
        %3460 = vmatprep.subr.mxu0 0.0
        %3461 = vmatpush2.msra.mxu0 0.0
        %3462 = vmatprep.subr.mxu0 0.0
        %3463 = vmatpush2.msra.mxu0 0.0
        %3464 = vmatprep.subr.mxu0 0.0
        %3465 = vmatpush2.msra.mxu0 0.0
        %3466 = vmatprep.subr.mxu0 0.0
        %3467 = vmatpush2.msra.mxu0 0.0
        %3468 = vmatprep.subr.mxu0 0.0
        %3469 = vmatpush2.msra.mxu0 0.0
        %3470 = vmatprep.subr.mxu0 0.0
        %3471 = vmatpush2.msra.mxu0 0.0
        %3472 = vmatprep.subr.mxu0 0.0
        %3473 = vmatpush2.msra.mxu0 0.0
        %3474 = vmatprep.subr.mxu0 0.0
        %3475 = vmatpush2.msra.mxu0 0.0
        %3476 = vmatprep.subr.mxu0 0.0
        %3477 = vmatpush2.msra.mxu0 0.0
        %3478 = vmatprep.subr.mxu0 0.0
        %3479 = vmatpush2.msra.mxu0 0.0
        %3480 = vmatprep.subr.mxu0 0.0
        %3481 = vmatpush2.msra.mxu0 0.0
        %3482 = vmatprep.mubr.f32.mxu0 0.0
        %3483 = vmatmul.mubr.f32.gmra.mxu0 %v3386
        %v3484 = vpop.f32.mrf.mxu0
        %v3485 = vadd.f32 0.0, %v3484
        %v3486 = vpop.f32.mrf.mxu0
        %3487 = vmatprep.mubr.f32.mxu0 0.0
        %3488 = vmatmul.mubr.f32.gmra.mxu0 %v3387
        %v3489 = vpop.f32.mrf.mxu0
        %v3490 = vadd.f32 0.0, %v3489
        %v3491 = vpop.f32.mrf.mxu0
        %3492 = vmatprep.mubr.f32.mxu0 0.0
        %3493 = vmatmul.mubr.f32.gmra.mxu0 %v3388
        %v3494 = vpop.f32.mrf.mxu0
        %v3495 = vadd.f32 0.0, %v3494
        %v3496 = vpop.f32.mrf.mxu0
        %3497 = vmatprep.mubr.f32.mxu0 0.0
        %3498 = vmatmul.mubr.f32.gmra.mxu0 %v3389
        %v3499 = vpop.f32.mrf.mxu0
        %v3500 = vadd.f32 0.0, %v3499
        %v3501 = vpop.f32.mrf.mxu0
        %3502 = vmatprep.mubr.f32.mxu0 0.0
        %3503 = vmatmul.mubr.f32.gmra.mxu0 %v3390
        %v3504 = vpop.f32.mrf.mxu0
        %v3505 = vadd.f32 0.0, %v3504
        %v3506 = vpop.f32.mrf.mxu0
        %3507 = vmatprep.mubr.f32.mxu0 0.0
        %3508 = vmatmul.mubr.f32.gmra.mxu0 %v3391
        %v3509 = vpop.f32.mrf.mxu0
        %v3510 = vadd.f32 0.0, %v3509
        %v3511 = vpop.f32.mrf.mxu0
        %3512 = vmatprep.mubr.f32.mxu0 0.0
        %3513 = vmatmul.mubr.f32.gmra.mxu0 %v3392
        %v3514 = vpop.f32.mrf.mxu0
        %v3515 = vadd.f32 0.0, %v3514
        %v3516 = vpop.f32.mrf.mxu0
        %3517 = vmatprep.mubr.f32.mxu0 0.0
        %3518 = vmatmul.mubr.f32.gmra.mxu0 %v3393
        %v3519 = vpop.f32.mrf.mxu0
        %v3520 = vadd.f32 0.0, %v3519
        %v3521 = vpop.f32.mrf.mxu0
        %3522 = vmatprep.mubr.f32.mxu0 0.0
        %3523 = vmatmul.mubr.f32.gmra.mxu0 %v3394
        %v3524 = vpop.f32.mrf.mxu0
        %v3525 = vadd.f32 0.0, %v3524
        %v3526 = vpop.f32.mrf.mxu0
        %3527 = vmatprep.mubr.f32.mxu0 0.0
        %3528 = vmatmul.mubr.f32.gmra.mxu0 %v3395
        %v3529 = vpop.f32.mrf.mxu0
        %v3530 = vadd.f32 0.0, %v3529
        %v3531 = vpop.f32.mrf.mxu0
        %3532 = vmatprep.mubr.f32.mxu0 0.0
        %3533 = vmatmul.mubr.f32.gmra.mxu0 %v3396
        %v3534 = vpop.f32.mrf.mxu0
        %v3535 = vadd.f32 0.0, %v3534
        %v3536 = vpop.f32.mrf.mxu0
        %3537 = vmatprep.mubr.f32.mxu0 0.0
        %3538 = vmatmul.mubr.f32.gmra.mxu0 %v3397
        %v3539 = vpop.f32.mrf.mxu0
        %v3540 = vadd.f32 0.0, %v3539
        %v3541 = vpop.f32.mrf.mxu0
        %3542 = vmatprep.mubr.f32.mxu0 0.0
        %3543 = vmatmul.mubr.f32.gmra.mxu0 %v3398
        %v3544 = vpop.f32.mrf.mxu0
        %v3545 = vadd.f32 0.0, %v3544
        %v3546 = vpop.f32.mrf.mxu0
        %3547 = vmatprep.mubr.f32.mxu0 0.0
        %3548 = vmatmul.mubr.f32.gmra.mxu0 %v3399
        %v3549 = vpop.f32.mrf.mxu0
        %v3550 = vadd.f32 0.0, %v3549
        %v3551 = vpop.f32.mrf.mxu0
        %3552 = vmatprep.mubr.f32.mxu0 0.0
        %3553 = vmatmul.mubr.f32.gmra.mxu0 %v3400
        %v3554 = vpop.f32.mrf.mxu0
        %v3555 = vadd.f32 0.0, %v3554
        %v3556 = vpop.f32.mrf.mxu0
        %3557 = vmatprep.mubr.f32.mxu0 0.0
        %3558 = vmatmul.mubr.f32.gmra.mxu0 %v3401
        %v3559 = vpop.f32.mrf.mxu0
        %v3560 = vadd.f32 0.0, %v3559
        %v3561 = vpop.f32.mrf.mxu0
        %3562 = vdwg.mxu0
        %v3563 = vadd.f32 %v3370, %v3485
        %v3564 = vadd.f32 %v3371, %v3490
        %v3565 = vadd.f32 %v3372, %v3495
        %v3566 = vadd.f32 %v3373, %v3500
        %v3567 = vadd.f32 %v3374, %v3505
        %v3568 = vadd.f32 %v3375, %v3510
        %v3569 = vadd.f32 %v3376, %v3515
        %v3570 = vadd.f32 %v3377, %v3520
        %v3571 = vadd.f32 %v3378, %v3525
        %v3572 = vadd.f32 %v3379, %v3530
        %v3573 = vadd.f32 %v3380, %v3535
        %v3574 = vadd.f32 %v3381, %v3540
        %v3575 = vadd.f32 %v3382, %v3545
        %v3576 = vadd.f32 %v3383, %v3550
        %v3577 = vadd.f32 %v3384, %v3555
        %v3578 = vadd.f32 %v3385, %v3560
        %v3579 = vld [vmem:[%s3192 + $0x2] sm:$0xff]
        %v3580 = vld [vmem:[%s3192 + $0xa] sm:$0xff]
        %v3581 = vld [vmem:[%s3192 + $0x1a] sm:$0xff]
        %v3582 = vld [vmem:[%s3192 + $0x22] sm:$0xff]
        %v3583 = vld [vmem:[%s3192 + $0x32] sm:$0xff]
        %v3584 = vld [vmem:[%s3192 + $0x3a] sm:$0xff]
        %v3585 = vld [vmem:[%s3192 + $0x4a] sm:$0xff]
        %v3586 = vld [vmem:[%s3192 + $0x52] sm:$0xff]
        %v3587 = vld [vmem:[%s3192 + $0x62] sm:$0xff]
        %v3588 = vld [vmem:[%s3192 + $0x6a] sm:$0xff]
        %v3589 = vld [vmem:[%s3192 + $0x7a] sm:$0xff]
        %v3590 = vld [vmem:[%s3192 + $0x82] sm:$0xff]
        %v3591 = vld [vmem:[%s3192 + $0x92] sm:$0xff]
        %v3592 = vld [vmem:[%s3192 + $0x9a] sm:$0xff]
        %v3593 = vld [vmem:[%s3192 + $0xaa] sm:$0xff]
        %v3594 = vld [vmem:[%s3192 + $0xb2] sm:$0xff]
        %v3595 = vld [vmem:[%s1826] sm:$0xff]
        %v3596 = vld [vmem:[%s1826 + $0x8] sm:$0xff]
        %v3597 = vld [vmem:[%s1826 + $0x10] sm:$0xff]
        %v3598 = vld [vmem:[%s1826 + $0x18] sm:$0xff]
        %v3599 = vld [vmem:[%s1826 + $0x20] sm:$0xff]
        %v3600 = vld [vmem:[%s1826 + $0x28] sm:$0xff]
        %v3601 = vld [vmem:[%s1826 + $0x30] sm:$0xff]
        %v3602 = vld [vmem:[%s1826 + $0x38] sm:$0xff]
        %v3603 = vld [vmem:[%s1826 + $0x40] sm:$0xff]
        %v3604 = vld [vmem:[%s1826 + $0x48] sm:$0xff]
        %v3605 = vld [vmem:[%s1826 + $0x50] sm:$0xff]
        %v3606 = vld [vmem:[%s1826 + $0x58] sm:$0xff]
        %v3607 = vld [vmem:[%s1826 + $0x60] sm:$0xff]
        %v3608 = vld [vmem:[%s1826 + $0x68] sm:$0xff]
        %v3609 = vld [vmem:[%s1826 + $0x70] sm:$0xff]
        %v3610 = vld [vmem:[%s1826 + $0x78] sm:$0xff]
        %3611 = vmatprep.subr.mxu0 0.0
        %3612 = vmatpush1.msra.mxu0 %v3610
        %3613 = vmatprep.subr.mxu0 0.0
        %3614 = vmatpush1.msra.mxu0 %v3609
        %3615 = vmatprep.subr.mxu0 0.0
        %3616 = vmatpush1.msra.mxu0 %v3608
        %3617 = vmatprep.subr.mxu0 0.0
        %3618 = vmatpush1.msra.mxu0 %v3607
        %3619 = vmatprep.subr.mxu0 0.0
        %3620 = vmatpush1.msra.mxu0 %v3606
        %3621 = vmatprep.subr.mxu0 0.0
        %3622 = vmatpush1.msra.mxu0 %v3605
        %3623 = vmatprep.subr.mxu0 0.0
        %3624 = vmatpush1.msra.mxu0 %v3604
        %3625 = vmatprep.subr.mxu0 0.0
        %3626 = vmatpush1.msra.mxu0 %v3603
        %3627 = vmatprep.subr.mxu0 0.0
        %3628 = vmatpush1.msra.mxu0 %v3602
        %3629 = vmatprep.subr.mxu0 0.0
        %3630 = vmatpush1.msra.mxu0 %v3601
        %3631 = vmatprep.subr.mxu0 0.0
        %3632 = vmatpush1.msra.mxu0 %v3600
        %3633 = vmatprep.subr.mxu0 0.0
        %3634 = vmatpush1.msra.mxu0 %v3599
        %3635 = vmatprep.subr.mxu0 0.0
        %3636 = vmatpush1.msra.mxu0 %v3598
        %3637 = vmatprep.subr.mxu0 0.0
        %3638 = vmatpush1.msra.mxu0 %v3597
        %3639 = vmatprep.subr.mxu0 0.0
        %3640 = vmatpush1.msra.mxu0 %v3596
        %3641 = vmatprep.subr.mxu0 0.0
        %3642 = vmatpush1.msra.mxu0 %v3595
        %3643 = vmatprep.subr.mxu0 0.0
        %3644 = vmatpush2.msra.mxu0 0.0
        %3645 = vmatprep.subr.mxu0 0.0
        %3646 = vmatpush2.msra.mxu0 0.0
        %3647 = vmatprep.subr.mxu0 0.0
        %3648 = vmatpush2.msra.mxu0 0.0
        %3649 = vmatprep.subr.mxu0 0.0
        %3650 = vmatpush2.msra.mxu0 0.0
        %3651 = vmatprep.subr.mxu0 0.0
        %3652 = vmatpush2.msra.mxu0 0.0
        %3653 = vmatprep.subr.mxu0 0.0
        %3654 = vmatpush2.msra.mxu0 0.0
        %3655 = vmatprep.subr.mxu0 0.0
        %3656 = vmatpush2.msra.mxu0 0.0
        %3657 = vmatprep.subr.mxu0 0.0
        %3658 = vmatpush2.msra.mxu0 0.0
        %3659 = vmatprep.subr.mxu0 0.0
        %3660 = vmatpush2.msra.mxu0 0.0
        %3661 = vmatprep.subr.mxu0 0.0
        %3662 = vmatpush2.msra.mxu0 0.0
        %3663 = vmatprep.subr.mxu0 0.0
        %3664 = vmatpush2.msra.mxu0 0.0
        %3665 = vmatprep.subr.mxu0 0.0
        %3666 = vmatpush2.msra.mxu0 0.0
        %3667 = vmatprep.subr.mxu0 0.0
        %3668 = vmatpush2.msra.mxu0 0.0
        %3669 = vmatprep.subr.mxu0 0.0
        %3670 = vmatpush2.msra.mxu0 0.0
        %3671 = vmatprep.subr.mxu0 0.0
        %3672 = vmatpush2.msra.mxu0 0.0
        %3673 = vmatprep.subr.mxu0 0.0
        %3674 = vmatpush2.msra.mxu0 0.0
        %3675 = vmatprep.mubr.f32.mxu0 0.0
        %3676 = vmatmul.mubr.f32.gmra.mxu0 %v3579
        %v3677 = vpop.f32.mrf.mxu0
        %v3678 = vadd.f32 0.0, %v3677
        %v3679 = vpop.f32.mrf.mxu0
        %3680 = vmatprep.mubr.f32.mxu0 0.0
        %3681 = vmatmul.mubr.f32.gmra.mxu0 %v3580
        %v3682 = vpop.f32.mrf.mxu0
        %v3683 = vadd.f32 0.0, %v3682
        %v3684 = vpop.f32.mrf.mxu0
        %3685 = vmatprep.mubr.f32.mxu0 0.0
        %3686 = vmatmul.mubr.f32.gmra.mxu0 %v3581
        %v3687 = vpop.f32.mrf.mxu0
        %v3688 = vadd.f32 0.0, %v3687
        %v3689 = vpop.f32.mrf.mxu0
        %3690 = vmatprep.mubr.f32.mxu0 0.0
        %3691 = vmatmul.mubr.f32.gmra.mxu0 %v3582
        %v3692 = vpop.f32.mrf.mxu0
        %v3693 = vadd.f32 0.0, %v3692
        %v3694 = vpop.f32.mrf.mxu0
        %3695 = vmatprep.mubr.f32.mxu0 0.0
        %3696 = vmatmul.mubr.f32.gmra.mxu0 %v3583
        %v3697 = vpop.f32.mrf.mxu0
        %v3698 = vadd.f32 0.0, %v3697
        %v3699 = vpop.f32.mrf.mxu0
        %3700 = vmatprep.mubr.f32.mxu0 0.0
        %3701 = vmatmul.mubr.f32.gmra.mxu0 %v3584
        %v3702 = vpop.f32.mrf.mxu0
        %v3703 = vadd.f32 0.0, %v3702
        %v3704 = vpop.f32.mrf.mxu0
        %3705 = vmatprep.mubr.f32.mxu0 0.0
        %3706 = vmatmul.mubr.f32.gmra.mxu0 %v3585
        %v3707 = vpop.f32.mrf.mxu0
        %v3708 = vadd.f32 0.0, %v3707
        %v3709 = vpop.f32.mrf.mxu0
        %3710 = vmatprep.mubr.f32.mxu0 0.0
        %3711 = vmatmul.mubr.f32.gmra.mxu0 %v3586
        %v3712 = vpop.f32.mrf.mxu0
        %v3713 = vadd.f32 0.0, %v3712
        %v3714 = vpop.f32.mrf.mxu0
        %3715 = vmatprep.mubr.f32.mxu0 0.0
        %3716 = vmatmul.mubr.f32.gmra.mxu0 %v3587
        %v3717 = vpop.f32.mrf.mxu0
        %v3718 = vadd.f32 0.0, %v3717
        %v3719 = vpop.f32.mrf.mxu0
        %3720 = vmatprep.mubr.f32.mxu0 0.0
        %3721 = vmatmul.mubr.f32.gmra.mxu0 %v3588
        %v3722 = vpop.f32.mrf.mxu0
        %v3723 = vadd.f32 0.0, %v3722
        %v3724 = vpop.f32.mrf.mxu0
        %3725 = vmatprep.mubr.f32.mxu0 0.0
        %3726 = vmatmul.mubr.f32.gmra.mxu0 %v3589
        %v3727 = vpop.f32.mrf.mxu0
        %v3728 = vadd.f32 0.0, %v3727
        %v3729 = vpop.f32.mrf.mxu0
        %3730 = vmatprep.mubr.f32.mxu0 0.0
        %3731 = vmatmul.mubr.f32.gmra.mxu0 %v3590
        %v3732 = vpop.f32.mrf.mxu0
        %v3733 = vadd.f32 0.0, %v3732
        %v3734 = vpop.f32.mrf.mxu0
        %3735 = vmatprep.mubr.f32.mxu0 0.0
        %3736 = vmatmul.mubr.f32.gmra.mxu0 %v3591
        %v3737 = vpop.f32.mrf.mxu0
        %v3738 = vadd.f32 0.0, %v3737
        %v3739 = vpop.f32.mrf.mxu0
        %3740 = vmatprep.mubr.f32.mxu0 0.0
        %3741 = vmatmul.mubr.f32.gmra.mxu0 %v3592
        %v3742 = vpop.f32.mrf.mxu0
        %v3743 = vadd.f32 0.0, %v3742
        %v3744 = vpop.f32.mrf.mxu0
        %3745 = vmatprep.mubr.f32.mxu0 0.0
        %3746 = vmatmul.mubr.f32.gmra.mxu0 %v3593
        %v3747 = vpop.f32.mrf.mxu0
        %v3748 = vadd.f32 0.0, %v3747
        %v3749 = vpop.f32.mrf.mxu0
        %3750 = vmatprep.mubr.f32.mxu0 0.0
        %3751 = vmatmul.mubr.f32.gmra.mxu0 %v3594
        %v3752 = vpop.f32.mrf.mxu0
        %v3753 = vadd.f32 0.0, %v3752
        %v3754 = vpop.f32.mrf.mxu0
        %3755 = vdwg.mxu0
        %v3756 = vadd.f32 %v3563, %v3678
        %v3757 = vadd.f32 %v3564, %v3683
        %v3758 = vadd.f32 %v3565, %v3688
        %v3759 = vadd.f32 %v3566, %v3693
        %v3760 = vadd.f32 %v3567, %v3698
        %v3761 = vadd.f32 %v3568, %v3703
        %v3762 = vadd.f32 %v3569, %v3708
        %v3763 = vadd.f32 %v3570, %v3713
        %v3764 = vadd.f32 %v3571, %v3718
        %v3765 = vadd.f32 %v3572, %v3723
        %v3766 = vadd.f32 %v3573, %v3728
        %v3767 = vadd.f32 %v3574, %v3733
        %v3768 = vadd.f32 %v3575, %v3738
        %v3769 = vadd.f32 %v3576, %v3743
        %v3770 = vadd.f32 %v3577, %v3748
        %v3771 = vadd.f32 %v3578, %v3753
        %v3772 = vadd.f32 %v3756, %v2008
        %v3773 = vadd.f32 %v3757, %v2008
        %v3774 = vadd.f32 %v3758, %v2008
        %v3775 = vadd.f32 %v3759, %v2008
        %v3776 = vadd.f32 %v3760, %v2008
        %v3777 = vadd.f32 %v3761, %v2008
        %v3778 = vadd.f32 %v3762, %v2008
        %v3779 = vadd.f32 %v3763, %v2008
        %v3780 = vadd.f32 %v3764, %v2008
        %v3781 = vadd.f32 %v3765, %v2008
        %v3782 = vadd.f32 %v3766, %v2008
        %v3783 = vadd.f32 %v3767, %v2008
        %v3784 = vadd.f32 %v3768, %v2008
        %v3785 = vadd.f32 %v3769, %v2008
        %v3786 = vadd.f32 %v3770, %v2008
        %v3787 = vadd.f32 %v3771, %v2008
        %v3788 = vmax.f32 %v3772, 0.0
        %v3789 = vmax.f32 %v3773, 0.0
        %v3790 = vmax.f32 %v3774, 0.0
        %v3791 = vmax.f32 %v3775, 0.0
        %v3792 = vmax.f32 %v3776, 0.0
        %v3793 = vmax.f32 %v3777, 0.0
        %v3794 = vmax.f32 %v3778, 0.0
        %v3795 = vmax.f32 %v3779, 0.0
        %v3796 = vmax.f32 %v3780, 0.0
        %v3797 = vmax.f32 %v3781, 0.0
        %v3798 = vmax.f32 %v3782, 0.0
        %v3799 = vmax.f32 %v3783, 0.0
        %v3800 = vmax.f32 %v3784, 0.0
        %v3801 = vmax.f32 %v3785, 0.0
        %v3802 = vmax.f32 %v3786, 0.0
        %v3803 = vmax.f32 %v3787, 0.0
        %s3804 = scalar_lea.vmem [#allocation2], %s2609
        %3805 = vst [vmem:[%s3804 + $0x1] sm:$0xff] %v3788
        %3806 = vst [vmem:[%s3804 + $0x9] sm:$0xff] %v3789
        %3807 = vst [vmem:[%s3804 + $0x19] sm:$0xff] %v3790
        %3808 = vst [vmem:[%s3804 + $0x21] sm:$0xff] %v3791
        %3809 = vst [vmem:[%s3804 + $0x31] sm:$0xff] %v3792
        %3810 = vst [vmem:[%s3804 + $0x39] sm:$0xff] %v3793
        %3811 = vst [vmem:[%s3804 + $0x49] sm:$0xff] %v3794
        %3812 = vst [vmem:[%s3804 + $0x51] sm:$0xff] %v3795
        %3813 = vst [vmem:[%s3804 + $0x61] sm:$0xff] %v3796
        %3814 = vst [vmem:[%s3804 + $0x69] sm:$0xff] %v3797
        %3815 = vst [vmem:[%s3804 + $0x79] sm:$0xff] %v3798
        %3816 = vst [vmem:[%s3804 + $0x81] sm:$0xff] %v3799
        %3817 = vst [vmem:[%s3804 + $0x91] sm:$0xff] %v3800
        %3818 = vst [vmem:[%s3804 + $0x99] sm:$0xff] %v3801
        %3819 = vst [vmem:[%s3804 + $0xa9] sm:$0xff] %v3802
        %3820 = vst [vmem:[%s3804 + $0xb1] sm:$0xff] %v3803
        %s3821 = scalar_lea.vmem [#allocation2], %s283
        %v3822 = vld [vmem:[%s3821] sm:$0xff]
        %v3823 = vld [vmem:[%s3821 + $0x8] sm:$0xff]
        %v3824 = vld [vmem:[%s3821 + $0x18] sm:$0xff]
        %v3825 = vld [vmem:[%s3821 + $0x20] sm:$0xff]
        %v3826 = vld [vmem:[%s3821 + $0x30] sm:$0xff]
        %v3827 = vld [vmem:[%s3821 + $0x38] sm:$0xff]
        %v3828 = vld [vmem:[%s3821 + $0x48] sm:$0xff]
        %v3829 = vld [vmem:[%s3821 + $0x50] sm:$0xff]
        %v3830 = vld [vmem:[%s3821 + $0x60] sm:$0xff]
        %v3831 = vld [vmem:[%s3821 + $0x68] sm:$0xff]
        %v3832 = vld [vmem:[%s3821 + $0x78] sm:$0xff]
        %v3833 = vld [vmem:[%s3821 + $0x80] sm:$0xff]
        %v3834 = vld [vmem:[%s3821 + $0x90] sm:$0xff]
        %v3835 = vld [vmem:[%s3821 + $0x98] sm:$0xff]
        %v3836 = vld [vmem:[%s3821 + $0xa8] sm:$0xff]
        %v3837 = vld [vmem:[%s3821 + $0xb0] sm:$0xff]
        %v3838 = vld [vmem:[#allocation3] sm:$0xff]
        %v3839 = vld [vmem:[#allocation3 + $0x8] sm:$0xff]
        %v3840 = vld [vmem:[#allocation3 + $0x10] sm:$0xff]
        %v3841 = vld [vmem:[#allocation3 + $0x18] sm:$0xff]
        %v3842 = vld [vmem:[#allocation3 + $0x20] sm:$0xff]
        %v3843 = vld [vmem:[#allocation3 + $0x28] sm:$0xff]
        %v3844 = vld [vmem:[#allocation3 + $0x30] sm:$0xff]
        %v3845 = vld [vmem:[#allocation3 + $0x38] sm:$0xff]
        %v3846 = vld [vmem:[#allocation3 + $0x40] sm:$0xff]
        %v3847 = vld [vmem:[#allocation3 + $0x48] sm:$0xff]
        %v3848 = vld [vmem:[#allocation3 + $0x50] sm:$0xff]
        %v3849 = vld [vmem:[#allocation3 + $0x58] sm:$0xff]
        %v3850 = vld [vmem:[#allocation3 + $0x60] sm:$0xff]
        %v3851 = vld [vmem:[#allocation3 + $0x68] sm:$0xff]
        %v3852 = vld [vmem:[#allocation3 + $0x70] sm:$0xff]
        %v3853 = vld [vmem:[#allocation3 + $0x78] sm:$0xff]
        %v3854 = vld [vmem:[%s3821 + $0x1] sm:$0xff]
        %v3855 = vld [vmem:[%s3821 + $0x9] sm:$0xff]
        %v3856 = vld [vmem:[%s3821 + $0x19] sm:$0xff]
        %v3857 = vld [vmem:[%s3821 + $0x21] sm:$0xff]
        %v3858 = vld [vmem:[%s3821 + $0x31] sm:$0xff]
        %v3859 = vld [vmem:[%s3821 + $0x39] sm:$0xff]
        %v3860 = vld [vmem:[%s3821 + $0x49] sm:$0xff]
        %v3861 = vld [vmem:[%s3821 + $0x51] sm:$0xff]
        %v3862 = vld [vmem:[%s3821 + $0x61] sm:$0xff]
        %v3863 = vld [vmem:[%s3821 + $0x69] sm:$0xff]
        %v3864 = vld [vmem:[%s3821 + $0x79] sm:$0xff]
        %v3865 = vld [vmem:[%s3821 + $0x81] sm:$0xff]
        %v3866 = vld [vmem:[%s3821 + $0x91] sm:$0xff]
        %v3867 = vld [vmem:[%s3821 + $0x99] sm:$0xff]
        %v3868 = vld [vmem:[%s3821 + $0xa9] sm:$0xff]
        %v3869 = vld [vmem:[%s3821 + $0xb1] sm:$0xff]
        %s3870 = scalar_lea.vmem [#allocation3], 128
        %v3871 = vld [vmem:[%s3870] sm:$0xff]
        %v3872 = vld [vmem:[%s3870 + $0x8] sm:$0xff]
        %v3873 = vld [vmem:[%s3870 + $0x10] sm:$0xff]
        %v3874 = vld [vmem:[%s3870 + $0x18] sm:$0xff]
        %v3875 = vld [vmem:[%s3870 + $0x20] sm:$0xff]
        %v3876 = vld [vmem:[%s3870 + $0x28] sm:$0xff]
        %v3877 = vld [vmem:[%s3870 + $0x30] sm:$0xff]
        %v3878 = vld [vmem:[%s3870 + $0x38] sm:$0xff]
        %v3879 = vld [vmem:[%s3870 + $0x40] sm:$0xff]
        %v3880 = vld [vmem:[%s3870 + $0x48] sm:$0xff]
        %v3881 = vld [vmem:[%s3870 + $0x50] sm:$0xff]
        %v3882 = vld [vmem:[%s3870 + $0x58] sm:$0xff]
        %v3883 = vld [vmem:[%s3870 + $0x60] sm:$0xff]
        %v3884 = vld [vmem:[%s3870 + $0x68] sm:$0xff]
        %v3885 = vld [vmem:[%s3870 + $0x70] sm:$0xff]
        %v3886 = vld [vmem:[%s3870 + $0x78] sm:$0xff]
        %3887 = vmatprep.subr.mxu0 0.0
        %3888 = vmatpush1.msra.mxu0 %v3886
        %3889 = vmatprep.subr.mxu0 0.0
        %3890 = vmatpush1.msra.mxu0 %v3885
        %3891 = vmatprep.subr.mxu0 0.0
        %3892 = vmatpush1.msra.mxu0 %v3884
        %3893 = vmatprep.subr.mxu0 0.0
        %3894 = vmatpush1.msra.mxu0 %v3883
        %3895 = vmatprep.subr.mxu0 0.0
        %3896 = vmatpush1.msra.mxu0 %v3882
        %3897 = vmatprep.subr.mxu0 0.0
        %3898 = vmatpush1.msra.mxu0 %v3881
        %3899 = vmatprep.subr.mxu0 0.0
        %3900 = vmatpush1.msra.mxu0 %v3880
        %3901 = vmatprep.subr.mxu0 0.0
        %3902 = vmatpush1.msra.mxu0 %v3879
        %3903 = vmatprep.subr.mxu0 0.0
        %3904 = vmatpush1.msra.mxu0 %v3878
        %3905 = vmatprep.subr.mxu0 0.0
        %3906 = vmatpush1.msra.mxu0 %v3877
        %3907 = vmatprep.subr.mxu0 0.0
        %3908 = vmatpush1.msra.mxu0 %v3876
        %3909 = vmatprep.subr.mxu0 0.0
        %3910 = vmatpush1.msra.mxu0 %v3875
        %3911 = vmatprep.subr.mxu0 0.0
        %3912 = vmatpush1.msra.mxu0 %v3874
        %3913 = vmatprep.subr.mxu0 0.0
        %3914 = vmatpush1.msra.mxu0 %v3873
        %3915 = vmatprep.subr.mxu0 0.0
        %3916 = vmatpush1.msra.mxu0 %v3872
        %3917 = vmatprep.subr.mxu0 0.0
        %3918 = vmatpush1.msra.mxu0 %v3871
        %3919 = vmatprep.subr.mxu0 0.0
        %3920 = vmatpush2.msra.mxu0 0.0
        %3921 = vmatprep.subr.mxu0 0.0
        %3922 = vmatpush2.msra.mxu0 0.0
        %3923 = vmatprep.subr.mxu0 0.0
        %3924 = vmatpush2.msra.mxu0 0.0
        %3925 = vmatprep.subr.mxu0 0.0
        %3926 = vmatpush2.msra.mxu0 0.0
        %3927 = vmatprep.subr.mxu0 0.0
        %3928 = vmatpush2.msra.mxu0 0.0
        %3929 = vmatprep.subr.mxu0 0.0
        %3930 = vmatpush2.msra.mxu0 0.0
        %3931 = vmatprep.subr.mxu0 0.0
        %3932 = vmatpush2.msra.mxu0 0.0
        %3933 = vmatprep.subr.mxu0 0.0
        %3934 = vmatpush2.msra.mxu0 0.0
        %3935 = vmatprep.subr.mxu0 0.0
        %3936 = vmatpush2.msra.mxu0 0.0
        %3937 = vmatprep.subr.mxu0 0.0
        %3938 = vmatpush2.msra.mxu0 0.0
        %3939 = vmatprep.subr.mxu0 0.0
        %3940 = vmatpush2.msra.mxu0 0.0
        %3941 = vmatprep.subr.mxu0 0.0
        %3942 = vmatpush2.msra.mxu0 0.0
        %3943 = vmatprep.subr.mxu0 0.0
        %3944 = vmatpush2.msra.mxu0 0.0
        %3945 = vmatprep.subr.mxu0 0.0
        %3946 = vmatpush2.msra.mxu0 0.0
        %3947 = vmatprep.subr.mxu0 0.0
        %3948 = vmatpush2.msra.mxu0 0.0
        %3949 = vmatprep.subr.mxu0 0.0
        %3950 = vmatpush2.msra.mxu0 0.0
        %3951 = vmatprep.mubr.f32.mxu0 0.0
        %3952 = vmatmul.mubr.f32.gmra.mxu0 %v3854
        %v3953 = vpop.f32.mrf.mxu0
        %v3954 = vadd.f32 0.0, %v3953
        %v3955 = vpop.f32.mrf.mxu0
        %3956 = vmatprep.mubr.f32.mxu0 0.0
        %3957 = vmatmul.mubr.f32.gmra.mxu0 %v3855
        %v3958 = vpop.f32.mrf.mxu0
        %v3959 = vadd.f32 0.0, %v3958
        %v3960 = vpop.f32.mrf.mxu0
        %3961 = vmatprep.mubr.f32.mxu0 0.0
        %3962 = vmatmul.mubr.f32.gmra.mxu0 %v3856
        %v3963 = vpop.f32.mrf.mxu0
        %v3964 = vadd.f32 0.0, %v3963
        %v3965 = vpop.f32.mrf.mxu0
        %3966 = vmatprep.mubr.f32.mxu0 0.0
        %3967 = vmatmul.mubr.f32.gmra.mxu0 %v3857
        %v3968 = vpop.f32.mrf.mxu0
        %v3969 = vadd.f32 0.0, %v3968
        %v3970 = vpop.f32.mrf.mxu0
        %3971 = vmatprep.mubr.f32.mxu0 0.0
        %3972 = vmatmul.mubr.f32.gmra.mxu0 %v3858
        %v3973 = vpop.f32.mrf.mxu0
        %v3974 = vadd.f32 0.0, %v3973
        %v3975 = vpop.f32.mrf.mxu0
        %3976 = vmatprep.mubr.f32.mxu0 0.0
        %3977 = vmatmul.mubr.f32.gmra.mxu0 %v3859
        %v3978 = vpop.f32.mrf.mxu0
        %v3979 = vadd.f32 0.0, %v3978
        %v3980 = vpop.f32.mrf.mxu0
        %3981 = vmatprep.mubr.f32.mxu0 0.0
        %3982 = vmatmul.mubr.f32.gmra.mxu0 %v3860
        %v3983 = vpop.f32.mrf.mxu0
        %v3984 = vadd.f32 0.0, %v3983
        %v3985 = vpop.f32.mrf.mxu0
        %3986 = vmatprep.mubr.f32.mxu0 0.0
        %3987 = vmatmul.mubr.f32.gmra.mxu0 %v3861
        %v3988 = vpop.f32.mrf.mxu0
        %v3989 = vadd.f32 0.0, %v3988
        %v3990 = vpop.f32.mrf.mxu0
        %3991 = vmatprep.mubr.f32.mxu0 0.0
        %3992 = vmatmul.mubr.f32.gmra.mxu0 %v3862
        %v3993 = vpop.f32.mrf.mxu0
        %v3994 = vadd.f32 0.0, %v3993
        %v3995 = vpop.f32.mrf.mxu0
        %3996 = vmatprep.mubr.f32.mxu0 0.0
        %3997 = vmatmul.mubr.f32.gmra.mxu0 %v3863
        %v3998 = vpop.f32.mrf.mxu0
        %v3999 = vadd.f32 0.0, %v3998
        %v4000 = vpop.f32.mrf.mxu0
        %4001 = vmatprep.mubr.f32.mxu0 0.0
        %4002 = vmatmul.mubr.f32.gmra.mxu0 %v3864
        %v4003 = vpop.f32.mrf.mxu0
        %v4004 = vadd.f32 0.0, %v4003
        %v4005 = vpop.f32.mrf.mxu0
        %4006 = vmatprep.mubr.f32.mxu0 0.0
        %4007 = vmatmul.mubr.f32.gmra.mxu0 %v3865
        %v4008 = vpop.f32.mrf.mxu0
        %v4009 = vadd.f32 0.0, %v4008
        %v4010 = vpop.f32.mrf.mxu0
        %4011 = vmatprep.mubr.f32.mxu0 0.0
        %4012 = vmatmul.mubr.f32.gmra.mxu0 %v3866
        %v4013 = vpop.f32.mrf.mxu0
        %v4014 = vadd.f32 0.0, %v4013
        %v4015 = vpop.f32.mrf.mxu0
        %4016 = vmatprep.mubr.f32.mxu0 0.0
        %4017 = vmatmul.mubr.f32.gmra.mxu0 %v3867
        %v4018 = vpop.f32.mrf.mxu0
        %v4019 = vadd.f32 0.0, %v4018
        %v4020 = vpop.f32.mrf.mxu0
        %4021 = vmatprep.mubr.f32.mxu0 0.0
        %4022 = vmatmul.mubr.f32.gmra.mxu0 %v3868
        %v4023 = vpop.f32.mrf.mxu0
        %v4024 = vadd.f32 0.0, %v4023
        %v4025 = vpop.f32.mrf.mxu0
        %4026 = vmatprep.mubr.f32.mxu0 0.0
        %4027 = vmatmul.mubr.f32.gmra.mxu0 %v3869
        %v4028 = vpop.f32.mrf.mxu0
        %v4029 = vadd.f32 0.0, %v4028
        %v4030 = vpop.f32.mrf.mxu0
        %4031 = vdwg.mxu0
        %4032 = vmatprep.subr.mxu0 0.0
        %4033 = vmatpush1.msra.mxu0 %v3853
        %4034 = vmatprep.subr.mxu0 0.0
        %4035 = vmatpush1.msra.mxu0 %v3852
        %4036 = vmatprep.subr.mxu0 0.0
        %4037 = vmatpush1.msra.mxu0 %v3851
        %4038 = vmatprep.subr.mxu0 0.0
        %4039 = vmatpush1.msra.mxu0 %v3850
        %4040 = vmatprep.subr.mxu0 0.0
        %4041 = vmatpush1.msra.mxu0 %v3849
        %4042 = vmatprep.subr.mxu0 0.0
        %4043 = vmatpush1.msra.mxu0 %v3848
        %4044 = vmatprep.subr.mxu0 0.0
        %4045 = vmatpush1.msra.mxu0 %v3847
        %4046 = vmatprep.subr.mxu0 0.0
        %4047 = vmatpush1.msra.mxu0 %v3846
        %4048 = vmatprep.subr.mxu0 0.0
        %4049 = vmatpush1.msra.mxu0 %v3845
        %4050 = vmatprep.subr.mxu0 0.0
        %4051 = vmatpush1.msra.mxu0 %v3844
        %4052 = vmatprep.subr.mxu0 0.0
        %4053 = vmatpush1.msra.mxu0 %v3843
        %4054 = vmatprep.subr.mxu0 0.0
        %4055 = vmatpush1.msra.mxu0 %v3842
        %4056 = vmatprep.subr.mxu0 0.0
        %4057 = vmatpush1.msra.mxu0 %v3841
        %4058 = vmatprep.subr.mxu0 0.0
        %4059 = vmatpush1.msra.mxu0 %v3840
        %4060 = vmatprep.subr.mxu0 0.0
        %4061 = vmatpush1.msra.mxu0 %v3839
        %4062 = vmatprep.subr.mxu0 0.0
        %4063 = vmatpush1.msra.mxu0 %v3838
        %4064 = vmatprep.subr.mxu0 0.0
        %4065 = vmatpush2.msra.mxu0 0.0
        %4066 = vmatprep.subr.mxu0 0.0
        %4067 = vmatpush2.msra.mxu0 0.0
        %4068 = vmatprep.subr.mxu0 0.0
        %4069 = vmatpush2.msra.mxu0 0.0
        %4070 = vmatprep.subr.mxu0 0.0
        %4071 = vmatpush2.msra.mxu0 0.0
        %4072 = vmatprep.subr.mxu0 0.0
        %4073 = vmatpush2.msra.mxu0 0.0
        %4074 = vmatprep.subr.mxu0 0.0
        %4075 = vmatpush2.msra.mxu0 0.0
        %4076 = vmatprep.subr.mxu0 0.0
        %4077 = vmatpush2.msra.mxu0 0.0
        %4078 = vmatprep.subr.mxu0 0.0
        %4079 = vmatpush2.msra.mxu0 0.0
        %4080 = vmatprep.subr.mxu0 0.0
        %4081 = vmatpush2.msra.mxu0 0.0
        %4082 = vmatprep.subr.mxu0 0.0
        %4083 = vmatpush2.msra.mxu0 0.0
        %4084 = vmatprep.subr.mxu0 0.0
        %4085 = vmatpush2.msra.mxu0 0.0
        %4086 = vmatprep.subr.mxu0 0.0
        %4087 = vmatpush2.msra.mxu0 0.0
        %4088 = vmatprep.subr.mxu0 0.0
        %4089 = vmatpush2.msra.mxu0 0.0
        %4090 = vmatprep.subr.mxu0 0.0
        %4091 = vmatpush2.msra.mxu0 0.0
        %4092 = vmatprep.subr.mxu0 0.0
        %4093 = vmatpush2.msra.mxu0 0.0
        %4094 = vmatprep.subr.mxu0 0.0
        %4095 = vmatpush2.msra.mxu0 0.0
        %4096 = vmatprep.mubr.f32.mxu0 0.0
        %4097 = vmatmul.mubr.f32.gmra.mxu0 %v3822
        %v4098 = vpop.f32.mrf.mxu0
        %v4099 = vadd.f32 %v3954, %v4098
        %v4100 = vpop.f32.mrf.mxu0
        %4101 = vmatprep.mubr.f32.mxu0 0.0
        %4102 = vmatmul.mubr.f32.gmra.mxu0 %v3823
        %v4103 = vpop.f32.mrf.mxu0
        %v4104 = vadd.f32 %v3959, %v4103
        %v4105 = vpop.f32.mrf.mxu0
        %4106 = vmatprep.mubr.f32.mxu0 0.0
        %4107 = vmatmul.mubr.f32.gmra.mxu0 %v3824
        %v4108 = vpop.f32.mrf.mxu0
        %v4109 = vadd.f32 %v3964, %v4108
        %v4110 = vpop.f32.mrf.mxu0
        %4111 = vmatprep.mubr.f32.mxu0 0.0
        %4112 = vmatmul.mubr.f32.gmra.mxu0 %v3825
        %v4113 = vpop.f32.mrf.mxu0
        %v4114 = vadd.f32 %v3969, %v4113
        %v4115 = vpop.f32.mrf.mxu0
        %4116 = vmatprep.mubr.f32.mxu0 0.0
        %4117 = vmatmul.mubr.f32.gmra.mxu0 %v3826
        %v4118 = vpop.f32.mrf.mxu0
        %v4119 = vadd.f32 %v3974, %v4118
        %v4120 = vpop.f32.mrf.mxu0
        %4121 = vmatprep.mubr.f32.mxu0 0.0
        %4122 = vmatmul.mubr.f32.gmra.mxu0 %v3827
        %v4123 = vpop.f32.mrf.mxu0
        %v4124 = vadd.f32 %v3979, %v4123
        %v4125 = vpop.f32.mrf.mxu0
        %4126 = vmatprep.mubr.f32.mxu0 0.0
        %4127 = vmatmul.mubr.f32.gmra.mxu0 %v3828
        %v4128 = vpop.f32.mrf.mxu0
        %v4129 = vadd.f32 %v3984, %v4128
        %v4130 = vpop.f32.mrf.mxu0
        %4131 = vmatprep.mubr.f32.mxu0 0.0
        %4132 = vmatmul.mubr.f32.gmra.mxu0 %v3829
        %v4133 = vpop.f32.mrf.mxu0
        %v4134 = vadd.f32 %v3989, %v4133
        %v4135 = vpop.f32.mrf.mxu0
        %4136 = vmatprep.mubr.f32.mxu0 0.0
        %4137 = vmatmul.mubr.f32.gmra.mxu0 %v3830
        %v4138 = vpop.f32.mrf.mxu0
        %v4139 = vadd.f32 %v3994, %v4138
        %v4140 = vpop.f32.mrf.mxu0
        %4141 = vmatprep.mubr.f32.mxu0 0.0
        %4142 = vmatmul.mubr.f32.gmra.mxu0 %v3831
        %v4143 = vpop.f32.mrf.mxu0
        %v4144 = vadd.f32 %v3999, %v4143
        %v4145 = vpop.f32.mrf.mxu0
        %4146 = vmatprep.mubr.f32.mxu0 0.0
        %4147 = vmatmul.mubr.f32.gmra.mxu0 %v3832
        %v4148 = vpop.f32.mrf.mxu0
        %v4149 = vadd.f32 %v4004, %v4148
        %v4150 = vpop.f32.mrf.mxu0
        %4151 = vmatprep.mubr.f32.mxu0 0.0
        %4152 = vmatmul.mubr.f32.gmra.mxu0 %v3833
        %v4153 = vpop.f32.mrf.mxu0
        %v4154 = vadd.f32 %v4009, %v4153
        %v4155 = vpop.f32.mrf.mxu0
        %4156 = vmatprep.mubr.f32.mxu0 0.0
        %4157 = vmatmul.mubr.f32.gmra.mxu0 %v3834
        %v4158 = vpop.f32.mrf.mxu0
        %v4159 = vadd.f32 %v4014, %v4158
        %v4160 = vpop.f32.mrf.mxu0
        %4161 = vmatprep.mubr.f32.mxu0 0.0
        %4162 = vmatmul.mubr.f32.gmra.mxu0 %v3835
        %v4163 = vpop.f32.mrf.mxu0
        %v4164 = vadd.f32 %v4019, %v4163
        %v4165 = vpop.f32.mrf.mxu0
        %4166 = vmatprep.mubr.f32.mxu0 0.0
        %4167 = vmatmul.mubr.f32.gmra.mxu0 %v3836
        %v4168 = vpop.f32.mrf.mxu0
        %v4169 = vadd.f32 %v4024, %v4168
        %v4170 = vpop.f32.mrf.mxu0
        %4171 = vmatprep.mubr.f32.mxu0 0.0
        %4172 = vmatmul.mubr.f32.gmra.mxu0 %v3837
        %v4173 = vpop.f32.mrf.mxu0
        %v4174 = vadd.f32 %v4029, %v4173
        %v4175 = vpop.f32.mrf.mxu0
        %4176 = vdwg.mxu0
        %v4177 = vld [vmem:[%s3821 + $0x2] sm:$0xff]
        %v4178 = vld [vmem:[%s3821 + $0xa] sm:$0xff]
        %v4179 = vld [vmem:[%s3821 + $0x1a] sm:$0xff]
        %v4180 = vld [vmem:[%s3821 + $0x22] sm:$0xff]
        %v4181 = vld [vmem:[%s3821 + $0x32] sm:$0xff]
        %v4182 = vld [vmem:[%s3821 + $0x3a] sm:$0xff]
        %v4183 = vld [vmem:[%s3821 + $0x4a] sm:$0xff]
        %v4184 = vld [vmem:[%s3821 + $0x52] sm:$0xff]
        %v4185 = vld [vmem:[%s3821 + $0x62] sm:$0xff]
        %v4186 = vld [vmem:[%s3821 + $0x6a] sm:$0xff]
        %v4187 = vld [vmem:[%s3821 + $0x7a] sm:$0xff]
        %v4188 = vld [vmem:[%s3821 + $0x82] sm:$0xff]
        %v4189 = vld [vmem:[%s3821 + $0x92] sm:$0xff]
        %v4190 = vld [vmem:[%s3821 + $0x9a] sm:$0xff]
        %v4191 = vld [vmem:[%s3821 + $0xaa] sm:$0xff]
        %v4192 = vld [vmem:[%s3821 + $0xb2] sm:$0xff]
        %s4193 = scalar_lea.vmem [#allocation3], 256
        %v4194 = vld [vmem:[%s4193] sm:$0xff]
        %v4195 = vld [vmem:[%s4193 + $0x8] sm:$0xff]
        %v4196 = vld [vmem:[%s4193 + $0x10] sm:$0xff]
        %v4197 = vld [vmem:[%s4193 + $0x18] sm:$0xff]
        %v4198 = vld [vmem:[%s4193 + $0x20] sm:$0xff]
        %v4199 = vld [vmem:[%s4193 + $0x28] sm:$0xff]
        %v4200 = vld [vmem:[%s4193 + $0x30] sm:$0xff]
        %v4201 = vld [vmem:[%s4193 + $0x38] sm:$0xff]
        %v4202 = vld [vmem:[%s4193 + $0x40] sm:$0xff]
        %v4203 = vld [vmem:[%s4193 + $0x48] sm:$0xff]
        %v4204 = vld [vmem:[%s4193 + $0x50] sm:$0xff]
        %v4205 = vld [vmem:[%s4193 + $0x58] sm:$0xff]
        %v4206 = vld [vmem:[%s4193 + $0x60] sm:$0xff]
        %v4207 = vld [vmem:[%s4193 + $0x68] sm:$0xff]
        %v4208 = vld [vmem:[%s4193 + $0x70] sm:$0xff]
        %v4209 = vld [vmem:[%s4193 + $0x78] sm:$0xff]
        %4210 = vmatprep.subr.mxu0 0.0
        %4211 = vmatpush1.msra.mxu0 %v4209
        %4212 = vmatprep.subr.mxu0 0.0
        %4213 = vmatpush1.msra.mxu0 %v4208
        %4214 = vmatprep.subr.mxu0 0.0
        %4215 = vmatpush1.msra.mxu0 %v4207
        %4216 = vmatprep.subr.mxu0 0.0
        %4217 = vmatpush1.msra.mxu0 %v4206
        %4218 = vmatprep.subr.mxu0 0.0
        %4219 = vmatpush1.msra.mxu0 %v4205
        %4220 = vmatprep.subr.mxu0 0.0
        %4221 = vmatpush1.msra.mxu0 %v4204
        %4222 = vmatprep.subr.mxu0 0.0
        %4223 = vmatpush1.msra.mxu0 %v4203
        %4224 = vmatprep.subr.mxu0 0.0
        %4225 = vmatpush1.msra.mxu0 %v4202
        %4226 = vmatprep.subr.mxu0 0.0
        %4227 = vmatpush1.msra.mxu0 %v4201
        %4228 = vmatprep.subr.mxu0 0.0
        %4229 = vmatpush1.msra.mxu0 %v4200
        %4230 = vmatprep.subr.mxu0 0.0
        %4231 = vmatpush1.msra.mxu0 %v4199
        %4232 = vmatprep.subr.mxu0 0.0
        %4233 = vmatpush1.msra.mxu0 %v4198
        %4234 = vmatprep.subr.mxu0 0.0
        %4235 = vmatpush1.msra.mxu0 %v4197
        %4236 = vmatprep.subr.mxu0 0.0
        %4237 = vmatpush1.msra.mxu0 %v4196
        %4238 = vmatprep.subr.mxu0 0.0
        %4239 = vmatpush1.msra.mxu0 %v4195
        %4240 = vmatprep.subr.mxu0 0.0
        %4241 = vmatpush1.msra.mxu0 %v4194
        %4242 = vmatprep.subr.mxu0 0.0
        %4243 = vmatpush2.msra.mxu0 0.0
        %4244 = vmatprep.subr.mxu0 0.0
        %4245 = vmatpush2.msra.mxu0 0.0
        %4246 = vmatprep.subr.mxu0 0.0
        %4247 = vmatpush2.msra.mxu0 0.0
        %4248 = vmatprep.subr.mxu0 0.0
        %4249 = vmatpush2.msra.mxu0 0.0
        %4250 = vmatprep.subr.mxu0 0.0
        %4251 = vmatpush2.msra.mxu0 0.0
        %4252 = vmatprep.subr.mxu0 0.0
        %4253 = vmatpush2.msra.mxu0 0.0
        %4254 = vmatprep.subr.mxu0 0.0
        %4255 = vmatpush2.msra.mxu0 0.0
        %4256 = vmatprep.subr.mxu0 0.0
        %4257 = vmatpush2.msra.mxu0 0.0
        %4258 = vmatprep.subr.mxu0 0.0
        %4259 = vmatpush2.msra.mxu0 0.0
        %4260 = vmatprep.subr.mxu0 0.0
        %4261 = vmatpush2.msra.mxu0 0.0
        %4262 = vmatprep.subr.mxu0 0.0
        %4263 = vmatpush2.msra.mxu0 0.0
        %4264 = vmatprep.subr.mxu0 0.0
        %4265 = vmatpush2.msra.mxu0 0.0
        %4266 = vmatprep.subr.mxu0 0.0
        %4267 = vmatpush2.msra.mxu0 0.0
        %4268 = vmatprep.subr.mxu0 0.0
        %4269 = vmatpush2.msra.mxu0 0.0
        %4270 = vmatprep.subr.mxu0 0.0
        %4271 = vmatpush2.msra.mxu0 0.0
        %4272 = vmatprep.subr.mxu0 0.0
        %4273 = vmatpush2.msra.mxu0 0.0
        %4274 = vmatprep.mubr.f32.mxu0 0.0
        %4275 = vmatmul.mubr.f32.gmra.mxu0 %v4177
        %v4276 = vpop.f32.mrf.mxu0
        %v4277 = vadd.f32 0.0, %v4276
        %v4278 = vpop.f32.mrf.mxu0
        %4279 = vmatprep.mubr.f32.mxu0 0.0
        %4280 = vmatmul.mubr.f32.gmra.mxu0 %v4178
        %v4281 = vpop.f32.mrf.mxu0
        %v4282 = vadd.f32 0.0, %v4281
        %v4283 = vpop.f32.mrf.mxu0
        %4284 = vmatprep.mubr.f32.mxu0 0.0
        %4285 = vmatmul.mubr.f32.gmra.mxu0 %v4179
        %v4286 = vpop.f32.mrf.mxu0
        %v4287 = vadd.f32 0.0, %v4286
        %v4288 = vpop.f32.mrf.mxu0
        %4289 = vmatprep.mubr.f32.mxu0 0.0
        %4290 = vmatmul.mubr.f32.gmra.mxu0 %v4180
        %v4291 = vpop.f32.mrf.mxu0
        %v4292 = vadd.f32 0.0, %v4291
        %v4293 = vpop.f32.mrf.mxu0
        %4294 = vmatprep.mubr.f32.mxu0 0.0
        %4295 = vmatmul.mubr.f32.gmra.mxu0 %v4181
        %v4296 = vpop.f32.mrf.mxu0
        %v4297 = vadd.f32 0.0, %v4296
        %v4298 = vpop.f32.mrf.mxu0
        %4299 = vmatprep.mubr.f32.mxu0 0.0
        %4300 = vmatmul.mubr.f32.gmra.mxu0 %v4182
        %v4301 = vpop.f32.mrf.mxu0
        %v4302 = vadd.f32 0.0, %v4301
        %v4303 = vpop.f32.mrf.mxu0
        %4304 = vmatprep.mubr.f32.mxu0 0.0
        %4305 = vmatmul.mubr.f32.gmra.mxu0 %v4183
        %v4306 = vpop.f32.mrf.mxu0
        %v4307 = vadd.f32 0.0, %v4306
        %v4308 = vpop.f32.mrf.mxu0
        %4309 = vmatprep.mubr.f32.mxu0 0.0
        %4310 = vmatmul.mubr.f32.gmra.mxu0 %v4184
        %v4311 = vpop.f32.mrf.mxu0
        %v4312 = vadd.f32 0.0, %v4311
        %v4313 = vpop.f32.mrf.mxu0
        %4314 = vmatprep.mubr.f32.mxu0 0.0
        %4315 = vmatmul.mubr.f32.gmra.mxu0 %v4185
        %v4316 = vpop.f32.mrf.mxu0
        %v4317 = vadd.f32 0.0, %v4316
        %v4318 = vpop.f32.mrf.mxu0
        %4319 = vmatprep.mubr.f32.mxu0 0.0
        %4320 = vmatmul.mubr.f32.gmra.mxu0 %v4186
        %v4321 = vpop.f32.mrf.mxu0
        %v4322 = vadd.f32 0.0, %v4321
        %v4323 = vpop.f32.mrf.mxu0
        %4324 = vmatprep.mubr.f32.mxu0 0.0
        %4325 = vmatmul.mubr.f32.gmra.mxu0 %v4187
        %v4326 = vpop.f32.mrf.mxu0
        %v4327 = vadd.f32 0.0, %v4326
        %v4328 = vpop.f32.mrf.mxu0
        %4329 = vmatprep.mubr.f32.mxu0 0.0
        %4330 = vmatmul.mubr.f32.gmra.mxu0 %v4188
        %v4331 = vpop.f32.mrf.mxu0
        %v4332 = vadd.f32 0.0, %v4331
        %v4333 = vpop.f32.mrf.mxu0
        %4334 = vmatprep.mubr.f32.mxu0 0.0
        %4335 = vmatmul.mubr.f32.gmra.mxu0 %v4189
        %v4336 = vpop.f32.mrf.mxu0
        %v4337 = vadd.f32 0.0, %v4336
        %v4338 = vpop.f32.mrf.mxu0
        %4339 = vmatprep.mubr.f32.mxu0 0.0
        %4340 = vmatmul.mubr.f32.gmra.mxu0 %v4190
        %v4341 = vpop.f32.mrf.mxu0
        %v4342 = vadd.f32 0.0, %v4341
        %v4343 = vpop.f32.mrf.mxu0
        %4344 = vmatprep.mubr.f32.mxu0 0.0
        %4345 = vmatmul.mubr.f32.gmra.mxu0 %v4191
        %v4346 = vpop.f32.mrf.mxu0
        %v4347 = vadd.f32 0.0, %v4346
        %v4348 = vpop.f32.mrf.mxu0
        %4349 = vmatprep.mubr.f32.mxu0 0.0
        %4350 = vmatmul.mubr.f32.gmra.mxu0 %v4192
        %v4351 = vpop.f32.mrf.mxu0
        %v4352 = vadd.f32 0.0, %v4351
        %v4353 = vpop.f32.mrf.mxu0
        %4354 = vdwg.mxu0
        %v4355 = vadd.f32 %v4099, %v4277
        %v4356 = vadd.f32 %v4104, %v4282
        %v4357 = vadd.f32 %v4109, %v4287
        %v4358 = vadd.f32 %v4114, %v4292
        %v4359 = vadd.f32 %v4119, %v4297
        %v4360 = vadd.f32 %v4124, %v4302
        %v4361 = vadd.f32 %v4129, %v4307
        %v4362 = vadd.f32 %v4134, %v4312
        %v4363 = vadd.f32 %v4139, %v4317
        %v4364 = vadd.f32 %v4144, %v4322
        %v4365 = vadd.f32 %v4149, %v4327
        %v4366 = vadd.f32 %v4154, %v4332
        %v4367 = vadd.f32 %v4159, %v4337
        %v4368 = vadd.f32 %v4164, %v4342
        %v4369 = vadd.f32 %v4169, %v4347
        %v4370 = vadd.f32 %v4174, %v4352
        %v4371 = vld [vmem:[%s2042] sm:$0xff]
        %v4372 = vld [vmem:[%s2042 + $0x8] sm:$0xff]
        %v4373 = vld [vmem:[%s2042 + $0x18] sm:$0xff]
        %v4374 = vld [vmem:[%s2042 + $0x20] sm:$0xff]
        %v4375 = vld [vmem:[%s2042 + $0x30] sm:$0xff]
        %v4376 = vld [vmem:[%s2042 + $0x38] sm:$0xff]
        %v4377 = vld [vmem:[%s2042 + $0x48] sm:$0xff]
        %v4378 = vld [vmem:[%s2042 + $0x50] sm:$0xff]
        %v4379 = vld [vmem:[%s2042 + $0x60] sm:$0xff]
        %v4380 = vld [vmem:[%s2042 + $0x68] sm:$0xff]
        %v4381 = vld [vmem:[%s2042 + $0x78] sm:$0xff]
        %v4382 = vld [vmem:[%s2042 + $0x80] sm:$0xff]
        %v4383 = vld [vmem:[%s2042 + $0x90] sm:$0xff]
        %v4384 = vld [vmem:[%s2042 + $0x98] sm:$0xff]
        %v4385 = vld [vmem:[%s2042 + $0xa8] sm:$0xff]
        %v4386 = vld [vmem:[%s2042 + $0xb0] sm:$0xff]
        %s4387 = scalar_lea.vmem [#allocation3], 384
        %v4388 = vld [vmem:[%s4387] sm:$0xff]
        %v4389 = vld [vmem:[%s4387 + $0x8] sm:$0xff]
        %v4390 = vld [vmem:[%s4387 + $0x10] sm:$0xff]
        %v4391 = vld [vmem:[%s4387 + $0x18] sm:$0xff]
        %v4392 = vld [vmem:[%s4387 + $0x20] sm:$0xff]
        %v4393 = vld [vmem:[%s4387 + $0x28] sm:$0xff]
        %v4394 = vld [vmem:[%s4387 + $0x30] sm:$0xff]
        %v4395 = vld [vmem:[%s4387 + $0x38] sm:$0xff]
        %v4396 = vld [vmem:[%s4387 + $0x40] sm:$0xff]
        %v4397 = vld [vmem:[%s4387 + $0x48] sm:$0xff]
        %v4398 = vld [vmem:[%s4387 + $0x50] sm:$0xff]
        %v4399 = vld [vmem:[%s4387 + $0x58] sm:$0xff]
        %v4400 = vld [vmem:[%s4387 + $0x60] sm:$0xff]
        %v4401 = vld [vmem:[%s4387 + $0x68] sm:$0xff]
        %v4402 = vld [vmem:[%s4387 + $0x70] sm:$0xff]
        %v4403 = vld [vmem:[%s4387 + $0x78] sm:$0xff]
        %4404 = vmatprep.subr.mxu0 0.0
        %4405 = vmatpush1.msra.mxu0 %v4403
        %4406 = vmatprep.subr.mxu0 0.0
        %4407 = vmatpush1.msra.mxu0 %v4402
        %4408 = vmatprep.subr.mxu0 0.0
        %4409 = vmatpush1.msra.mxu0 %v4401
        %4410 = vmatprep.subr.mxu0 0.0
        %4411 = vmatpush1.msra.mxu0 %v4400
        %4412 = vmatprep.subr.mxu0 0.0
        %4413 = vmatpush1.msra.mxu0 %v4399
        %4414 = vmatprep.subr.mxu0 0.0
        %4415 = vmatpush1.msra.mxu0 %v4398
        %4416 = vmatprep.subr.mxu0 0.0
        %4417 = vmatpush1.msra.mxu0 %v4397
        %4418 = vmatprep.subr.mxu0 0.0
        %4419 = vmatpush1.msra.mxu0 %v4396
        %4420 = vmatprep.subr.mxu0 0.0
        %4421 = vmatpush1.msra.mxu0 %v4395
        %4422 = vmatprep.subr.mxu0 0.0
        %4423 = vmatpush1.msra.mxu0 %v4394
        %4424 = vmatprep.subr.mxu0 0.0
        %4425 = vmatpush1.msra.mxu0 %v4393
        %4426 = vmatprep.subr.mxu0 0.0
        %4427 = vmatpush1.msra.mxu0 %v4392
        %4428 = vmatprep.subr.mxu0 0.0
        %4429 = vmatpush1.msra.mxu0 %v4391
        %4430 = vmatprep.subr.mxu0 0.0
        %4431 = vmatpush1.msra.mxu0 %v4390
        %4432 = vmatprep.subr.mxu0 0.0
        %4433 = vmatpush1.msra.mxu0 %v4389
        %4434 = vmatprep.subr.mxu0 0.0
        %4435 = vmatpush1.msra.mxu0 %v4388
        %4436 = vmatprep.subr.mxu0 0.0
        %4437 = vmatpush2.msra.mxu0 0.0
        %4438 = vmatprep.subr.mxu0 0.0
        %4439 = vmatpush2.msra.mxu0 0.0
        %4440 = vmatprep.subr.mxu0 0.0
        %4441 = vmatpush2.msra.mxu0 0.0
        %4442 = vmatprep.subr.mxu0 0.0
        %4443 = vmatpush2.msra.mxu0 0.0
        %4444 = vmatprep.subr.mxu0 0.0
        %4445 = vmatpush2.msra.mxu0 0.0
        %4446 = vmatprep.subr.mxu0 0.0
        %4447 = vmatpush2.msra.mxu0 0.0
        %4448 = vmatprep.subr.mxu0 0.0
        %4449 = vmatpush2.msra.mxu0 0.0
        %4450 = vmatprep.subr.mxu0 0.0
        %4451 = vmatpush2.msra.mxu0 0.0
        %4452 = vmatprep.subr.mxu0 0.0
        %4453 = vmatpush2.msra.mxu0 0.0
        %4454 = vmatprep.subr.mxu0 0.0
        %4455 = vmatpush2.msra.mxu0 0.0
        %4456 = vmatprep.subr.mxu0 0.0
        %4457 = vmatpush2.msra.mxu0 0.0
        %4458 = vmatprep.subr.mxu0 0.0
        %4459 = vmatpush2.msra.mxu0 0.0
        %4460 = vmatprep.subr.mxu0 0.0
        %4461 = vmatpush2.msra.mxu0 0.0
        %4462 = vmatprep.subr.mxu0 0.0
        %4463 = vmatpush2.msra.mxu0 0.0
        %4464 = vmatprep.subr.mxu0 0.0
        %4465 = vmatpush2.msra.mxu0 0.0
        %4466 = vmatprep.subr.mxu0 0.0
        %4467 = vmatpush2.msra.mxu0 0.0
        %4468 = vmatprep.mubr.f32.mxu0 0.0
        %4469 = vmatmul.mubr.f32.gmra.mxu0 %v4371
        %v4470 = vpop.f32.mrf.mxu0
        %v4471 = vadd.f32 0.0, %v4470
        %v4472 = vpop.f32.mrf.mxu0
        %4473 = vmatprep.mubr.f32.mxu0 0.0
        %4474 = vmatmul.mubr.f32.gmra.mxu0 %v4372
        %v4475 = vpop.f32.mrf.mxu0
        %v4476 = vadd.f32 0.0, %v4475
        %v4477 = vpop.f32.mrf.mxu0
        %4478 = vmatprep.mubr.f32.mxu0 0.0
        %4479 = vmatmul.mubr.f32.gmra.mxu0 %v4373
        %v4480 = vpop.f32.mrf.mxu0
        %v4481 = vadd.f32 0.0, %v4480
        %v4482 = vpop.f32.mrf.mxu0
        %4483 = vmatprep.mubr.f32.mxu0 0.0
        %4484 = vmatmul.mubr.f32.gmra.mxu0 %v4374
        %v4485 = vpop.f32.mrf.mxu0
        %v4486 = vadd.f32 0.0, %v4485
        %v4487 = vpop.f32.mrf.mxu0
        %4488 = vmatprep.mubr.f32.mxu0 0.0
        %4489 = vmatmul.mubr.f32.gmra.mxu0 %v4375
        %v4490 = vpop.f32.mrf.mxu0
        %v4491 = vadd.f32 0.0, %v4490
        %v4492 = vpop.f32.mrf.mxu0
        %4493 = vmatprep.mubr.f32.mxu0 0.0
        %4494 = vmatmul.mubr.f32.gmra.mxu0 %v4376
        %v4495 = vpop.f32.mrf.mxu0
        %v4496 = vadd.f32 0.0, %v4495
        %v4497 = vpop.f32.mrf.mxu0
        %4498 = vmatprep.mubr.f32.mxu0 0.0
        %4499 = vmatmul.mubr.f32.gmra.mxu0 %v4377
        %v4500 = vpop.f32.mrf.mxu0
        %v4501 = vadd.f32 0.0, %v4500
        %v4502 = vpop.f32.mrf.mxu0
        %4503 = vmatprep.mubr.f32.mxu0 0.0
        %4504 = vmatmul.mubr.f32.gmra.mxu0 %v4378
        %v4505 = vpop.f32.mrf.mxu0
        %v4506 = vadd.f32 0.0, %v4505
        %v4507 = vpop.f32.mrf.mxu0
        %4508 = vmatprep.mubr.f32.mxu0 0.0
        %4509 = vmatmul.mubr.f32.gmra.mxu0 %v4379
        %v4510 = vpop.f32.mrf.mxu0
        %v4511 = vadd.f32 0.0, %v4510
        %v4512 = vpop.f32.mrf.mxu0
        %4513 = vmatprep.mubr.f32.mxu0 0.0
        %4514 = vmatmul.mubr.f32.gmra.mxu0 %v4380
        %v4515 = vpop.f32.mrf.mxu0
        %v4516 = vadd.f32 0.0, %v4515
        %v4517 = vpop.f32.mrf.mxu0
        %4518 = vmatprep.mubr.f32.mxu0 0.0
        %4519 = vmatmul.mubr.f32.gmra.mxu0 %v4381
        %v4520 = vpop.f32.mrf.mxu0
        %v4521 = vadd.f32 0.0, %v4520
        %v4522 = vpop.f32.mrf.mxu0
        %4523 = vmatprep.mubr.f32.mxu0 0.0
        %4524 = vmatmul.mubr.f32.gmra.mxu0 %v4382
        %v4525 = vpop.f32.mrf.mxu0
        %v4526 = vadd.f32 0.0, %v4525
        %v4527 = vpop.f32.mrf.mxu0
        %4528 = vmatprep.mubr.f32.mxu0 0.0
        %4529 = vmatmul.mubr.f32.gmra.mxu0 %v4383
        %v4530 = vpop.f32.mrf.mxu0
        %v4531 = vadd.f32 0.0, %v4530
        %v4532 = vpop.f32.mrf.mxu0
        %4533 = vmatprep.mubr.f32.mxu0 0.0
        %4534 = vmatmul.mubr.f32.gmra.mxu0 %v4384
        %v4535 = vpop.f32.mrf.mxu0
        %v4536 = vadd.f32 0.0, %v4535
        %v4537 = vpop.f32.mrf.mxu0
        %4538 = vmatprep.mubr.f32.mxu0 0.0
        %4539 = vmatmul.mubr.f32.gmra.mxu0 %v4385
        %v4540 = vpop.f32.mrf.mxu0
        %v4541 = vadd.f32 0.0, %v4540
        %v4542 = vpop.f32.mrf.mxu0
        %4543 = vmatprep.mubr.f32.mxu0 0.0
        %4544 = vmatmul.mubr.f32.gmra.mxu0 %v4386
        %v4545 = vpop.f32.mrf.mxu0
        %v4546 = vadd.f32 0.0, %v4545
        %v4547 = vpop.f32.mrf.mxu0
        %4548 = vdwg.mxu0
        %v4549 = vadd.f32 %v4355, %v4471
        %v4550 = vadd.f32 %v4356, %v4476
        %v4551 = vadd.f32 %v4357, %v4481
        %v4552 = vadd.f32 %v4358, %v4486
        %v4553 = vadd.f32 %v4359, %v4491
        %v4554 = vadd.f32 %v4360, %v4496
        %v4555 = vadd.f32 %v4361, %v4501
        %v4556 = vadd.f32 %v4362, %v4506
        %v4557 = vadd.f32 %v4363, %v4511
        %v4558 = vadd.f32 %v4364, %v4516
        %v4559 = vadd.f32 %v4365, %v4521
        %v4560 = vadd.f32 %v4366, %v4526
        %v4561 = vadd.f32 %v4367, %v4531
        %v4562 = vadd.f32 %v4368, %v4536
        %v4563 = vadd.f32 %v4369, %v4541
        %v4564 = vadd.f32 %v4370, %v4546
        %v4565 = vld [vmem:[%s2042 + $0x1] sm:$0xff]
        %v4566 = vld [vmem:[%s2042 + $0x9] sm:$0xff]
        %v4567 = vld [vmem:[%s2042 + $0x19] sm:$0xff]
        %v4568 = vld [vmem:[%s2042 + $0x21] sm:$0xff]
        %v4569 = vld [vmem:[%s2042 + $0x31] sm:$0xff]
        %v4570 = vld [vmem:[%s2042 + $0x39] sm:$0xff]
        %v4571 = vld [vmem:[%s2042 + $0x49] sm:$0xff]
        %v4572 = vld [vmem:[%s2042 + $0x51] sm:$0xff]
        %v4573 = vld [vmem:[%s2042 + $0x61] sm:$0xff]
        %v4574 = vld [vmem:[%s2042 + $0x69] sm:$0xff]
        %v4575 = vld [vmem:[%s2042 + $0x79] sm:$0xff]
        %v4576 = vld [vmem:[%s2042 + $0x81] sm:$0xff]
        %v4577 = vld [vmem:[%s2042 + $0x91] sm:$0xff]
        %v4578 = vld [vmem:[%s2042 + $0x99] sm:$0xff]
        %v4579 = vld [vmem:[%s2042 + $0xa9] sm:$0xff]
        %v4580 = vld [vmem:[%s2042 + $0xb1] sm:$0xff]
        %s4581 = scalar_lea.vmem [#allocation3], 512
        %v4582 = vld [vmem:[%s4581] sm:$0xff]
        %v4583 = vld [vmem:[%s4581 + $0x8] sm:$0xff]
        %v4584 = vld [vmem:[%s4581 + $0x10] sm:$0xff]
        %v4585 = vld [vmem:[%s4581 + $0x18] sm:$0xff]
        %v4586 = vld [vmem:[%s4581 + $0x20] sm:$0xff]
        %v4587 = vld [vmem:[%s4581 + $0x28] sm:$0xff]
        %v4588 = vld [vmem:[%s4581 + $0x30] sm:$0xff]
        %v4589 = vld [vmem:[%s4581 + $0x38] sm:$0xff]
        %v4590 = vld [vmem:[%s4581 + $0x40] sm:$0xff]
        %v4591 = vld [vmem:[%s4581 + $0x48] sm:$0xff]
        %v4592 = vld [vmem:[%s4581 + $0x50] sm:$0xff]
        %v4593 = vld [vmem:[%s4581 + $0x58] sm:$0xff]
        %v4594 = vld [vmem:[%s4581 + $0x60] sm:$0xff]
        %v4595 = vld [vmem:[%s4581 + $0x68] sm:$0xff]
        %v4596 = vld [vmem:[%s4581 + $0x70] sm:$0xff]
        %v4597 = vld [vmem:[%s4581 + $0x78] sm:$0xff]
        %4598 = vmatprep.subr.mxu0 0.0
        %4599 = vmatpush1.msra.mxu0 %v4597
        %4600 = vmatprep.subr.mxu0 0.0
        %4601 = vmatpush1.msra.mxu0 %v4596
        %4602 = vmatprep.subr.mxu0 0.0
        %4603 = vmatpush1.msra.mxu0 %v4595
        %4604 = vmatprep.subr.mxu0 0.0
        %4605 = vmatpush1.msra.mxu0 %v4594
        %4606 = vmatprep.subr.mxu0 0.0
        %4607 = vmatpush1.msra.mxu0 %v4593
        %4608 = vmatprep.subr.mxu0 0.0
        %4609 = vmatpush1.msra.mxu0 %v4592
        %4610 = vmatprep.subr.mxu0 0.0
        %4611 = vmatpush1.msra.mxu0 %v4591
        %4612 = vmatprep.subr.mxu0 0.0
        %4613 = vmatpush1.msra.mxu0 %v4590
        %4614 = vmatprep.subr.mxu0 0.0
        %4615 = vmatpush1.msra.mxu0 %v4589
        %4616 = vmatprep.subr.mxu0 0.0
        %4617 = vmatpush1.msra.mxu0 %v4588
        %4618 = vmatprep.subr.mxu0 0.0
        %4619 = vmatpush1.msra.mxu0 %v4587
        %4620 = vmatprep.subr.mxu0 0.0
        %4621 = vmatpush1.msra.mxu0 %v4586
        %4622 = vmatprep.subr.mxu0 0.0
        %4623 = vmatpush1.msra.mxu0 %v4585
        %4624 = vmatprep.subr.mxu0 0.0
        %4625 = vmatpush1.msra.mxu0 %v4584
        %4626 = vmatprep.subr.mxu0 0.0
        %4627 = vmatpush1.msra.mxu0 %v4583
        %4628 = vmatprep.subr.mxu0 0.0
        %4629 = vmatpush1.msra.mxu0 %v4582
        %4630 = vmatprep.subr.mxu0 0.0
        %4631 = vmatpush2.msra.mxu0 0.0
        %4632 = vmatprep.subr.mxu0 0.0
        %4633 = vmatpush2.msra.mxu0 0.0
        %4634 = vmatprep.subr.mxu0 0.0
        %4635 = vmatpush2.msra.mxu0 0.0
        %4636 = vmatprep.subr.mxu0 0.0
        %4637 = vmatpush2.msra.mxu0 0.0
        %4638 = vmatprep.subr.mxu0 0.0
        %4639 = vmatpush2.msra.mxu0 0.0
        %4640 = vmatprep.subr.mxu0 0.0
        %4641 = vmatpush2.msra.mxu0 0.0
        %4642 = vmatprep.subr.mxu0 0.0
        %4643 = vmatpush2.msra.mxu0 0.0
        %4644 = vmatprep.subr.mxu0 0.0
        %4645 = vmatpush2.msra.mxu0 0.0
        %4646 = vmatprep.subr.mxu0 0.0
        %4647 = vmatpush2.msra.mxu0 0.0
        %4648 = vmatprep.subr.mxu0 0.0
        %4649 = vmatpush2.msra.mxu0 0.0
        %4650 = vmatprep.subr.mxu0 0.0
        %4651 = vmatpush2.msra.mxu0 0.0
        %4652 = vmatprep.subr.mxu0 0.0
        %4653 = vmatpush2.msra.mxu0 0.0
        %4654 = vmatprep.subr.mxu0 0.0
        %4655 = vmatpush2.msra.mxu0 0.0
        %4656 = vmatprep.subr.mxu0 0.0
        %4657 = vmatpush2.msra.mxu0 0.0
        %4658 = vmatprep.subr.mxu0 0.0
        %4659 = vmatpush2.msra.mxu0 0.0
        %4660 = vmatprep.subr.mxu0 0.0
        %4661 = vmatpush2.msra.mxu0 0.0
        %4662 = vmatprep.mubr.f32.mxu0 0.0
        %4663 = vmatmul.mubr.f32.gmra.mxu0 %v4565
        %v4664 = vpop.f32.mrf.mxu0
        %v4665 = vadd.f32 0.0, %v4664
        %v4666 = vpop.f32.mrf.mxu0
        %4667 = vmatprep.mubr.f32.mxu0 0.0
        %4668 = vmatmul.mubr.f32.gmra.mxu0 %v4566
        %v4669 = vpop.f32.mrf.mxu0
        %v4670 = vadd.f32 0.0, %v4669
        %v4671 = vpop.f32.mrf.mxu0
        %4672 = vmatprep.mubr.f32.mxu0 0.0
        %4673 = vmatmul.mubr.f32.gmra.mxu0 %v4567
        %v4674 = vpop.f32.mrf.mxu0
        %v4675 = vadd.f32 0.0, %v4674
        %v4676 = vpop.f32.mrf.mxu0
        %4677 = vmatprep.mubr.f32.mxu0 0.0
        %4678 = vmatmul.mubr.f32.gmra.mxu0 %v4568
        %v4679 = vpop.f32.mrf.mxu0
        %v4680 = vadd.f32 0.0, %v4679
        %v4681 = vpop.f32.mrf.mxu0
        %4682 = vmatprep.mubr.f32.mxu0 0.0
        %4683 = vmatmul.mubr.f32.gmra.mxu0 %v4569
        %v4684 = vpop.f32.mrf.mxu0
        %v4685 = vadd.f32 0.0, %v4684
        %v4686 = vpop.f32.mrf.mxu0
        %4687 = vmatprep.mubr.f32.mxu0 0.0
        %4688 = vmatmul.mubr.f32.gmra.mxu0 %v4570
        %v4689 = vpop.f32.mrf.mxu0
        %v4690 = vadd.f32 0.0, %v4689
        %v4691 = vpop.f32.mrf.mxu0
        %4692 = vmatprep.mubr.f32.mxu0 0.0
        %4693 = vmatmul.mubr.f32.gmra.mxu0 %v4571
        %v4694 = vpop.f32.mrf.mxu0
        %v4695 = vadd.f32 0.0, %v4694
        %v4696 = vpop.f32.mrf.mxu0
        %4697 = vmatprep.mubr.f32.mxu0 0.0
        %4698 = vmatmul.mubr.f32.gmra.mxu0 %v4572
        %v4699 = vpop.f32.mrf.mxu0
        %v4700 = vadd.f32 0.0, %v4699
        %v4701 = vpop.f32.mrf.mxu0
        %4702 = vmatprep.mubr.f32.mxu0 0.0
        %4703 = vmatmul.mubr.f32.gmra.mxu0 %v4573
        %v4704 = vpop.f32.mrf.mxu0
        %v4705 = vadd.f32 0.0, %v4704
        %v4706 = vpop.f32.mrf.mxu0
        %4707 = vmatprep.mubr.f32.mxu0 0.0
        %4708 = vmatmul.mubr.f32.gmra.mxu0 %v4574
        %v4709 = vpop.f32.mrf.mxu0
        %v4710 = vadd.f32 0.0, %v4709
        %v4711 = vpop.f32.mrf.mxu0
        %4712 = vmatprep.mubr.f32.mxu0 0.0
        %4713 = vmatmul.mubr.f32.gmra.mxu0 %v4575
        %v4714 = vpop.f32.mrf.mxu0
        %v4715 = vadd.f32 0.0, %v4714
        %v4716 = vpop.f32.mrf.mxu0
        %4717 = vmatprep.mubr.f32.mxu0 0.0
        %4718 = vmatmul.mubr.f32.gmra.mxu0 %v4576
        %v4719 = vpop.f32.mrf.mxu0
        %v4720 = vadd.f32 0.0, %v4719
        %v4721 = vpop.f32.mrf.mxu0
        %4722 = vmatprep.mubr.f32.mxu0 0.0
        %4723 = vmatmul.mubr.f32.gmra.mxu0 %v4577
        %v4724 = vpop.f32.mrf.mxu0
        %v4725 = vadd.f32 0.0, %v4724
        %v4726 = vpop.f32.mrf.mxu0
        %4727 = vmatprep.mubr.f32.mxu0 0.0
        %4728 = vmatmul.mubr.f32.gmra.mxu0 %v4578
        %v4729 = vpop.f32.mrf.mxu0
        %v4730 = vadd.f32 0.0, %v4729
        %v4731 = vpop.f32.mrf.mxu0
        %4732 = vmatprep.mubr.f32.mxu0 0.0
        %4733 = vmatmul.mubr.f32.gmra.mxu0 %v4579
        %v4734 = vpop.f32.mrf.mxu0
        %v4735 = vadd.f32 0.0, %v4734
        %v4736 = vpop.f32.mrf.mxu0
        %4737 = vmatprep.mubr.f32.mxu0 0.0
        %4738 = vmatmul.mubr.f32.gmra.mxu0 %v4580
        %v4739 = vpop.f32.mrf.mxu0
        %v4740 = vadd.f32 0.0, %v4739
        %v4741 = vpop.f32.mrf.mxu0
        %4742 = vdwg.mxu0
        %v4743 = vadd.f32 %v4549, %v4665
        %v4744 = vadd.f32 %v4550, %v4670
        %v4745 = vadd.f32 %v4551, %v4675
        %v4746 = vadd.f32 %v4552, %v4680
        %v4747 = vadd.f32 %v4553, %v4685
        %v4748 = vadd.f32 %v4554, %v4690
        %v4749 = vadd.f32 %v4555, %v4695
        %v4750 = vadd.f32 %v4556, %v4700
        %v4751 = vadd.f32 %v4557, %v4705
        %v4752 = vadd.f32 %v4558, %v4710
        %v4753 = vadd.f32 %v4559, %v4715
        %v4754 = vadd.f32 %v4560, %v4720
        %v4755 = vadd.f32 %v4561, %v4725
        %v4756 = vadd.f32 %v4562, %v4730
        %v4757 = vadd.f32 %v4563, %v4735
        %v4758 = vadd.f32 %v4564, %v4740
        %v4759 = vld [vmem:[%s2042 + $0x2] sm:$0xff]
        %v4760 = vld [vmem:[%s2042 + $0xa] sm:$0xff]
        %v4761 = vld [vmem:[%s2042 + $0x1a] sm:$0xff]
        %v4762 = vld [vmem:[%s2042 + $0x22] sm:$0xff]
        %v4763 = vld [vmem:[%s2042 + $0x32] sm:$0xff]
        %v4764 = vld [vmem:[%s2042 + $0x3a] sm:$0xff]
        %v4765 = vld [vmem:[%s2042 + $0x4a] sm:$0xff]
        %v4766 = vld [vmem:[%s2042 + $0x52] sm:$0xff]
        %v4767 = vld [vmem:[%s2042 + $0x62] sm:$0xff]
        %v4768 = vld [vmem:[%s2042 + $0x6a] sm:$0xff]
        %v4769 = vld [vmem:[%s2042 + $0x7a] sm:$0xff]
        %v4770 = vld [vmem:[%s2042 + $0x82] sm:$0xff]
        %v4771 = vld [vmem:[%s2042 + $0x92] sm:$0xff]
        %v4772 = vld [vmem:[%s2042 + $0x9a] sm:$0xff]
        %v4773 = vld [vmem:[%s2042 + $0xaa] sm:$0xff]
        %v4774 = vld [vmem:[%s2042 + $0xb2] sm:$0xff]
        %s4775 = scalar_lea.vmem [#allocation3], 640
        %v4776 = vld [vmem:[%s4775] sm:$0xff]
        %v4777 = vld [vmem:[%s4775 + $0x8] sm:$0xff]
        %v4778 = vld [vmem:[%s4775 + $0x10] sm:$0xff]
        %v4779 = vld [vmem:[%s4775 + $0x18] sm:$0xff]
        %v4780 = vld [vmem:[%s4775 + $0x20] sm:$0xff]
        %v4781 = vld [vmem:[%s4775 + $0x28] sm:$0xff]
        %v4782 = vld [vmem:[%s4775 + $0x30] sm:$0xff]
        %v4783 = vld [vmem:[%s4775 + $0x38] sm:$0xff]
        %v4784 = vld [vmem:[%s4775 + $0x40] sm:$0xff]
        %v4785 = vld [vmem:[%s4775 + $0x48] sm:$0xff]
        %v4786 = vld [vmem:[%s4775 + $0x50] sm:$0xff]
        %v4787 = vld [vmem:[%s4775 + $0x58] sm:$0xff]
        %v4788 = vld [vmem:[%s4775 + $0x60] sm:$0xff]
        %v4789 = vld [vmem:[%s4775 + $0x68] sm:$0xff]
        %v4790 = vld [vmem:[%s4775 + $0x70] sm:$0xff]
        %v4791 = vld [vmem:[%s4775 + $0x78] sm:$0xff]
        %4792 = vmatprep.subr.mxu0 0.0
        %4793 = vmatpush1.msra.mxu0 %v4791
        %4794 = vmatprep.subr.mxu0 0.0
        %4795 = vmatpush1.msra.mxu0 %v4790
        %4796 = vmatprep.subr.mxu0 0.0
        %4797 = vmatpush1.msra.mxu0 %v4789
        %4798 = vmatprep.subr.mxu0 0.0
        %4799 = vmatpush1.msra.mxu0 %v4788
        %4800 = vmatprep.subr.mxu0 0.0
        %4801 = vmatpush1.msra.mxu0 %v4787
        %4802 = vmatprep.subr.mxu0 0.0
        %4803 = vmatpush1.msra.mxu0 %v4786
        %4804 = vmatprep.subr.mxu0 0.0
        %4805 = vmatpush1.msra.mxu0 %v4785
        %4806 = vmatprep.subr.mxu0 0.0
        %4807 = vmatpush1.msra.mxu0 %v4784
        %4808 = vmatprep.subr.mxu0 0.0
        %4809 = vmatpush1.msra.mxu0 %v4783
        %4810 = vmatprep.subr.mxu0 0.0
        %4811 = vmatpush1.msra.mxu0 %v4782
        %4812 = vmatprep.subr.mxu0 0.0
        %4813 = vmatpush1.msra.mxu0 %v4781
        %4814 = vmatprep.subr.mxu0 0.0
        %4815 = vmatpush1.msra.mxu0 %v4780
        %4816 = vmatprep.subr.mxu0 0.0
        %4817 = vmatpush1.msra.mxu0 %v4779
        %4818 = vmatprep.subr.mxu0 0.0
        %4819 = vmatpush1.msra.mxu0 %v4778
        %4820 = vmatprep.subr.mxu0 0.0
        %4821 = vmatpush1.msra.mxu0 %v4777
        %4822 = vmatprep.subr.mxu0 0.0
        %4823 = vmatpush1.msra.mxu0 %v4776
        %4824 = vmatprep.subr.mxu0 0.0
        %4825 = vmatpush2.msra.mxu0 0.0
        %4826 = vmatprep.subr.mxu0 0.0
        %4827 = vmatpush2.msra.mxu0 0.0
        %4828 = vmatprep.subr.mxu0 0.0
        %4829 = vmatpush2.msra.mxu0 0.0
        %4830 = vmatprep.subr.mxu0 0.0
        %4831 = vmatpush2.msra.mxu0 0.0
        %4832 = vmatprep.subr.mxu0 0.0
        %4833 = vmatpush2.msra.mxu0 0.0
        %4834 = vmatprep.subr.mxu0 0.0
        %4835 = vmatpush2.msra.mxu0 0.0
        %4836 = vmatprep.subr.mxu0 0.0
        %4837 = vmatpush2.msra.mxu0 0.0
        %4838 = vmatprep.subr.mxu0 0.0
        %4839 = vmatpush2.msra.mxu0 0.0
        %4840 = vmatprep.subr.mxu0 0.0
        %4841 = vmatpush2.msra.mxu0 0.0
        %4842 = vmatprep.subr.mxu0 0.0
        %4843 = vmatpush2.msra.mxu0 0.0
        %4844 = vmatprep.subr.mxu0 0.0
        %4845 = vmatpush2.msra.mxu0 0.0
        %4846 = vmatprep.subr.mxu0 0.0
        %4847 = vmatpush2.msra.mxu0 0.0
        %4848 = vmatprep.subr.mxu0 0.0
        %4849 = vmatpush2.msra.mxu0 0.0
        %4850 = vmatprep.subr.mxu0 0.0
        %4851 = vmatpush2.msra.mxu0 0.0
        %4852 = vmatprep.subr.mxu0 0.0
        %4853 = vmatpush2.msra.mxu0 0.0
        %4854 = vmatprep.subr.mxu0 0.0
        %4855 = vmatpush2.msra.mxu0 0.0
        %4856 = vmatprep.mubr.f32.mxu0 0.0
        %4857 = vmatmul.mubr.f32.gmra.mxu0 %v4759
        %v4858 = vpop.f32.mrf.mxu0
        %v4859 = vadd.f32 0.0, %v4858
        %v4860 = vpop.f32.mrf.mxu0
        %4861 = vmatprep.mubr.f32.mxu0 0.0
        %4862 = vmatmul.mubr.f32.gmra.mxu0 %v4760
        %v4863 = vpop.f32.mrf.mxu0
        %v4864 = vadd.f32 0.0, %v4863
        %v4865 = vpop.f32.mrf.mxu0
        %4866 = vmatprep.mubr.f32.mxu0 0.0
        %4867 = vmatmul.mubr.f32.gmra.mxu0 %v4761
        %v4868 = vpop.f32.mrf.mxu0
        %v4869 = vadd.f32 0.0, %v4868
        %v4870 = vpop.f32.mrf.mxu0
        %4871 = vmatprep.mubr.f32.mxu0 0.0
        %4872 = vmatmul.mubr.f32.gmra.mxu0 %v4762
        %v4873 = vpop.f32.mrf.mxu0
        %v4874 = vadd.f32 0.0, %v4873
        %v4875 = vpop.f32.mrf.mxu0
        %4876 = vmatprep.mubr.f32.mxu0 0.0
        %4877 = vmatmul.mubr.f32.gmra.mxu0 %v4763
        %v4878 = vpop.f32.mrf.mxu0
        %v4879 = vadd.f32 0.0, %v4878
        %v4880 = vpop.f32.mrf.mxu0
        %4881 = vmatprep.mubr.f32.mxu0 0.0
        %4882 = vmatmul.mubr.f32.gmra.mxu0 %v4764
        %v4883 = vpop.f32.mrf.mxu0
        %v4884 = vadd.f32 0.0, %v4883
        %v4885 = vpop.f32.mrf.mxu0
        %4886 = vmatprep.mubr.f32.mxu0 0.0
        %4887 = vmatmul.mubr.f32.gmra.mxu0 %v4765
        %v4888 = vpop.f32.mrf.mxu0
        %v4889 = vadd.f32 0.0, %v4888
        %v4890 = vpop.f32.mrf.mxu0
        %4891 = vmatprep.mubr.f32.mxu0 0.0
        %4892 = vmatmul.mubr.f32.gmra.mxu0 %v4766
        %v4893 = vpop.f32.mrf.mxu0
        %v4894 = vadd.f32 0.0, %v4893
        %v4895 = vpop.f32.mrf.mxu0
        %4896 = vmatprep.mubr.f32.mxu0 0.0
        %4897 = vmatmul.mubr.f32.gmra.mxu0 %v4767
        %v4898 = vpop.f32.mrf.mxu0
        %v4899 = vadd.f32 0.0, %v4898
        %v4900 = vpop.f32.mrf.mxu0
        %4901 = vmatprep.mubr.f32.mxu0 0.0
        %4902 = vmatmul.mubr.f32.gmra.mxu0 %v4768
        %v4903 = vpop.f32.mrf.mxu0
        %v4904 = vadd.f32 0.0, %v4903
        %v4905 = vpop.f32.mrf.mxu0
        %4906 = vmatprep.mubr.f32.mxu0 0.0
        %4907 = vmatmul.mubr.f32.gmra.mxu0 %v4769
        %v4908 = vpop.f32.mrf.mxu0
        %v4909 = vadd.f32 0.0, %v4908
        %v4910 = vpop.f32.mrf.mxu0
        %4911 = vmatprep.mubr.f32.mxu0 0.0
        %4912 = vmatmul.mubr.f32.gmra.mxu0 %v4770
        %v4913 = vpop.f32.mrf.mxu0
        %v4914 = vadd.f32 0.0, %v4913
        %v4915 = vpop.f32.mrf.mxu0
        %4916 = vmatprep.mubr.f32.mxu0 0.0
        %4917 = vmatmul.mubr.f32.gmra.mxu0 %v4771
        %v4918 = vpop.f32.mrf.mxu0
        %v4919 = vadd.f32 0.0, %v4918
        %v4920 = vpop.f32.mrf.mxu0
        %4921 = vmatprep.mubr.f32.mxu0 0.0
        %4922 = vmatmul.mubr.f32.gmra.mxu0 %v4772
        %v4923 = vpop.f32.mrf.mxu0
        %v4924 = vadd.f32 0.0, %v4923
        %v4925 = vpop.f32.mrf.mxu0
        %4926 = vmatprep.mubr.f32.mxu0 0.0
        %4927 = vmatmul.mubr.f32.gmra.mxu0 %v4773
        %v4928 = vpop.f32.mrf.mxu0
        %v4929 = vadd.f32 0.0, %v4928
        %v4930 = vpop.f32.mrf.mxu0
        %4931 = vmatprep.mubr.f32.mxu0 0.0
        %4932 = vmatmul.mubr.f32.gmra.mxu0 %v4774
        %v4933 = vpop.f32.mrf.mxu0
        %v4934 = vadd.f32 0.0, %v4933
        %v4935 = vpop.f32.mrf.mxu0
        %4936 = vdwg.mxu0
        %v4937 = vadd.f32 %v4743, %v4859
        %v4938 = vadd.f32 %v4744, %v4864
        %v4939 = vadd.f32 %v4745, %v4869
        %v4940 = vadd.f32 %v4746, %v4874
        %v4941 = vadd.f32 %v4747, %v4879
        %v4942 = vadd.f32 %v4748, %v4884
        %v4943 = vadd.f32 %v4749, %v4889
        %v4944 = vadd.f32 %v4750, %v4894
        %v4945 = vadd.f32 %v4751, %v4899
        %v4946 = vadd.f32 %v4752, %v4904
        %v4947 = vadd.f32 %v4753, %v4909
        %v4948 = vadd.f32 %v4754, %v4914
        %v4949 = vadd.f32 %v4755, %v4919
        %v4950 = vadd.f32 %v4756, %v4924
        %v4951 = vadd.f32 %v4757, %v4929
        %v4952 = vadd.f32 %v4758, %v4934
        %s4953 = scalar_lea.vmem [#allocation2], %s1420
        %v4954 = vld [vmem:[%s4953] sm:$0xff]
        %v4955 = vld [vmem:[%s4953 + $0x8] sm:$0xff]
        %v4956 = vld [vmem:[%s4953 + $0x18] sm:$0xff]
        %v4957 = vld [vmem:[%s4953 + $0x20] sm:$0xff]
        %v4958 = vld [vmem:[%s4953 + $0x30] sm:$0xff]
        %v4959 = vld [vmem:[%s4953 + $0x38] sm:$0xff]
        %v4960 = vld [vmem:[%s4953 + $0x48] sm:$0xff]
        %v4961 = vld [vmem:[%s4953 + $0x50] sm:$0xff]
        %v4962 = vld [vmem:[%s4953 + $0x60] sm:$0xff]
        %v4963 = vld [vmem:[%s4953 + $0x68] sm:$0xff]
        %v4964 = vld [vmem:[%s4953 + $0x78] sm:$0xff]
        %v4965 = vld [vmem:[%s4953 + $0x80] sm:$0xff]
        %v4966 = vld [vmem:[%s4953 + $0x90] sm:$0xff]
        %v4967 = vld [vmem:[%s4953 + $0x98] sm:$0xff]
        %v4968 = vld [vmem:[%s4953 + $0xa8] sm:$0xff]
        %v4969 = vld [vmem:[%s4953 + $0xb0] sm:$0xff]
        %s4970 = scalar_lea.vmem [#allocation3], 768
        %v4971 = vld [vmem:[%s4970] sm:$0xff]
        %v4972 = vld [vmem:[%s4970 + $0x8] sm:$0xff]
        %v4973 = vld [vmem:[%s4970 + $0x10] sm:$0xff]
        %v4974 = vld [vmem:[%s4970 + $0x18] sm:$0xff]
        %v4975 = vld [vmem:[%s4970 + $0x20] sm:$0xff]
        %v4976 = vld [vmem:[%s4970 + $0x28] sm:$0xff]
        %v4977 = vld [vmem:[%s4970 + $0x30] sm:$0xff]
        %v4978 = vld [vmem:[%s4970 + $0x38] sm:$0xff]
        %v4979 = vld [vmem:[%s4970 + $0x40] sm:$0xff]
        %v4980 = vld [vmem:[%s4970 + $0x48] sm:$0xff]
        %v4981 = vld [vmem:[%s4970 + $0x50] sm:$0xff]
        %v4982 = vld [vmem:[%s4970 + $0x58] sm:$0xff]
        %v4983 = vld [vmem:[%s4970 + $0x60] sm:$0xff]
        %v4984 = vld [vmem:[%s4970 + $0x68] sm:$0xff]
        %v4985 = vld [vmem:[%s4970 + $0x70] sm:$0xff]
        %v4986 = vld [vmem:[%s4970 + $0x78] sm:$0xff]
        %4987 = vmatprep.subr.mxu0 0.0
        %4988 = vmatpush1.msra.mxu0 %v4986
        %4989 = vmatprep.subr.mxu0 0.0
        %4990 = vmatpush1.msra.mxu0 %v4985
        %4991 = vmatprep.subr.mxu0 0.0
        %4992 = vmatpush1.msra.mxu0 %v4984
        %4993 = vmatprep.subr.mxu0 0.0
        %4994 = vmatpush1.msra.mxu0 %v4983
        %4995 = vmatprep.subr.mxu0 0.0
        %4996 = vmatpush1.msra.mxu0 %v4982
        %4997 = vmatprep.subr.mxu0 0.0
        %4998 = vmatpush1.msra.mxu0 %v4981
        %4999 = vmatprep.subr.mxu0 0.0
        %5000 = vmatpush1.msra.mxu0 %v4980
        %5001 = vmatprep.subr.mxu0 0.0
        %5002 = vmatpush1.msra.mxu0 %v4979
        %5003 = vmatprep.subr.mxu0 0.0
        %5004 = vmatpush1.msra.mxu0 %v4978
        %5005 = vmatprep.subr.mxu0 0.0
        %5006 = vmatpush1.msra.mxu0 %v4977
        %5007 = vmatprep.subr.mxu0 0.0
        %5008 = vmatpush1.msra.mxu0 %v4976
        %5009 = vmatprep.subr.mxu0 0.0
        %5010 = vmatpush1.msra.mxu0 %v4975
        %5011 = vmatprep.subr.mxu0 0.0
        %5012 = vmatpush1.msra.mxu0 %v4974
        %5013 = vmatprep.subr.mxu0 0.0
        %5014 = vmatpush1.msra.mxu0 %v4973
        %5015 = vmatprep.subr.mxu0 0.0
        %5016 = vmatpush1.msra.mxu0 %v4972
        %5017 = vmatprep.subr.mxu0 0.0
        %5018 = vmatpush1.msra.mxu0 %v4971
        %5019 = vmatprep.subr.mxu0 0.0
        %5020 = vmatpush2.msra.mxu0 0.0
        %5021 = vmatprep.subr.mxu0 0.0
        %5022 = vmatpush2.msra.mxu0 0.0
        %5023 = vmatprep.subr.mxu0 0.0
        %5024 = vmatpush2.msra.mxu0 0.0
        %5025 = vmatprep.subr.mxu0 0.0
        %5026 = vmatpush2.msra.mxu0 0.0
        %5027 = vmatprep.subr.mxu0 0.0
        %5028 = vmatpush2.msra.mxu0 0.0
        %5029 = vmatprep.subr.mxu0 0.0
        %5030 = vmatpush2.msra.mxu0 0.0
        %5031 = vmatprep.subr.mxu0 0.0
        %5032 = vmatpush2.msra.mxu0 0.0
        %5033 = vmatprep.subr.mxu0 0.0
        %5034 = vmatpush2.msra.mxu0 0.0
        %5035 = vmatprep.subr.mxu0 0.0
        %5036 = vmatpush2.msra.mxu0 0.0
        %5037 = vmatprep.subr.mxu0 0.0
        %5038 = vmatpush2.msra.mxu0 0.0
        %5039 = vmatprep.subr.mxu0 0.0
        %5040 = vmatpush2.msra.mxu0 0.0
        %5041 = vmatprep.subr.mxu0 0.0
        %5042 = vmatpush2.msra.mxu0 0.0
        %5043 = vmatprep.subr.mxu0 0.0
        %5044 = vmatpush2.msra.mxu0 0.0
        %5045 = vmatprep.subr.mxu0 0.0
        %5046 = vmatpush2.msra.mxu0 0.0
        %5047 = vmatprep.subr.mxu0 0.0
        %5048 = vmatpush2.msra.mxu0 0.0
        %5049 = vmatprep.subr.mxu0 0.0
        %5050 = vmatpush2.msra.mxu0 0.0
        %5051 = vmatprep.mubr.f32.mxu0 0.0
        %5052 = vmatmul.mubr.f32.gmra.mxu0 %v4954
        %v5053 = vpop.f32.mrf.mxu0
        %v5054 = vadd.f32 0.0, %v5053
        %v5055 = vpop.f32.mrf.mxu0
        %5056 = vmatprep.mubr.f32.mxu0 0.0
        %5057 = vmatmul.mubr.f32.gmra.mxu0 %v4955
        %v5058 = vpop.f32.mrf.mxu0
        %v5059 = vadd.f32 0.0, %v5058
        %v5060 = vpop.f32.mrf.mxu0
        %5061 = vmatprep.mubr.f32.mxu0 0.0
        %5062 = vmatmul.mubr.f32.gmra.mxu0 %v4956
        %v5063 = vpop.f32.mrf.mxu0
        %v5064 = vadd.f32 0.0, %v5063
        %v5065 = vpop.f32.mrf.mxu0
        %5066 = vmatprep.mubr.f32.mxu0 0.0
        %5067 = vmatmul.mubr.f32.gmra.mxu0 %v4957
        %v5068 = vpop.f32.mrf.mxu0
        %v5069 = vadd.f32 0.0, %v5068
        %v5070 = vpop.f32.mrf.mxu0
        %5071 = vmatprep.mubr.f32.mxu0 0.0
        %5072 = vmatmul.mubr.f32.gmra.mxu0 %v4958
        %v5073 = vpop.f32.mrf.mxu0
        %v5074 = vadd.f32 0.0, %v5073
        %v5075 = vpop.f32.mrf.mxu0
        %5076 = vmatprep.mubr.f32.mxu0 0.0
        %5077 = vmatmul.mubr.f32.gmra.mxu0 %v4959
        %v5078 = vpop.f32.mrf.mxu0
        %v5079 = vadd.f32 0.0, %v5078
        %v5080 = vpop.f32.mrf.mxu0
        %5081 = vmatprep.mubr.f32.mxu0 0.0
        %5082 = vmatmul.mubr.f32.gmra.mxu0 %v4960
        %v5083 = vpop.f32.mrf.mxu0
        %v5084 = vadd.f32 0.0, %v5083
        %v5085 = vpop.f32.mrf.mxu0
        %5086 = vmatprep.mubr.f32.mxu0 0.0
        %5087 = vmatmul.mubr.f32.gmra.mxu0 %v4961
        %v5088 = vpop.f32.mrf.mxu0
        %v5089 = vadd.f32 0.0, %v5088
        %v5090 = vpop.f32.mrf.mxu0
        %5091 = vmatprep.mubr.f32.mxu0 0.0
        %5092 = vmatmul.mubr.f32.gmra.mxu0 %v4962
        %v5093 = vpop.f32.mrf.mxu0
        %v5094 = vadd.f32 0.0, %v5093
        %v5095 = vpop.f32.mrf.mxu0
        %5096 = vmatprep.mubr.f32.mxu0 0.0
        %5097 = vmatmul.mubr.f32.gmra.mxu0 %v4963
        %v5098 = vpop.f32.mrf.mxu0
        %v5099 = vadd.f32 0.0, %v5098
        %v5100 = vpop.f32.mrf.mxu0
        %5101 = vmatprep.mubr.f32.mxu0 0.0
        %5102 = vmatmul.mubr.f32.gmra.mxu0 %v4964
        %v5103 = vpop.f32.mrf.mxu0
        %v5104 = vadd.f32 0.0, %v5103
        %v5105 = vpop.f32.mrf.mxu0
        %5106 = vmatprep.mubr.f32.mxu0 0.0
        %5107 = vmatmul.mubr.f32.gmra.mxu0 %v4965
        %v5108 = vpop.f32.mrf.mxu0
        %v5109 = vadd.f32 0.0, %v5108
        %v5110 = vpop.f32.mrf.mxu0
        %5111 = vmatprep.mubr.f32.mxu0 0.0
        %5112 = vmatmul.mubr.f32.gmra.mxu0 %v4966
        %v5113 = vpop.f32.mrf.mxu0
        %v5114 = vadd.f32 0.0, %v5113
        %v5115 = vpop.f32.mrf.mxu0
        %5116 = vmatprep.mubr.f32.mxu0 0.0
        %5117 = vmatmul.mubr.f32.gmra.mxu0 %v4967
        %v5118 = vpop.f32.mrf.mxu0
        %v5119 = vadd.f32 0.0, %v5118
        %v5120 = vpop.f32.mrf.mxu0
        %5121 = vmatprep.mubr.f32.mxu0 0.0
        %5122 = vmatmul.mubr.f32.gmra.mxu0 %v4968
        %v5123 = vpop.f32.mrf.mxu0
        %v5124 = vadd.f32 0.0, %v5123
        %v5125 = vpop.f32.mrf.mxu0
        %5126 = vmatprep.mubr.f32.mxu0 0.0
        %5127 = vmatmul.mubr.f32.gmra.mxu0 %v4969
        %v5128 = vpop.f32.mrf.mxu0
        %v5129 = vadd.f32 0.0, %v5128
        %v5130 = vpop.f32.mrf.mxu0
        %5131 = vdwg.mxu0
        %v5132 = vadd.f32 %v4937, %v5054
        %v5133 = vadd.f32 %v4938, %v5059
        %v5134 = vadd.f32 %v4939, %v5064
        %v5135 = vadd.f32 %v4940, %v5069
        %v5136 = vadd.f32 %v4941, %v5074
        %v5137 = vadd.f32 %v4942, %v5079
        %v5138 = vadd.f32 %v4943, %v5084
        %v5139 = vadd.f32 %v4944, %v5089
        %v5140 = vadd.f32 %v4945, %v5094
        %v5141 = vadd.f32 %v4946, %v5099
        %v5142 = vadd.f32 %v4947, %v5104
        %v5143 = vadd.f32 %v4948, %v5109
        %v5144 = vadd.f32 %v4949, %v5114
        %v5145 = vadd.f32 %v4950, %v5119
        %v5146 = vadd.f32 %v4951, %v5124
        %v5147 = vadd.f32 %v4952, %v5129
        %v5148 = vld [vmem:[%s4953 + $0x1] sm:$0xff]
        %v5149 = vld [vmem:[%s4953 + $0x9] sm:$0xff]
        %v5150 = vld [vmem:[%s4953 + $0x19] sm:$0xff]
        %v5151 = vld [vmem:[%s4953 + $0x21] sm:$0xff]
        %v5152 = vld [vmem:[%s4953 + $0x31] sm:$0xff]
        %v5153 = vld [vmem:[%s4953 + $0x39] sm:$0xff]
        %v5154 = vld [vmem:[%s4953 + $0x49] sm:$0xff]
        %v5155 = vld [vmem:[%s4953 + $0x51] sm:$0xff]
        %v5156 = vld [vmem:[%s4953 + $0x61] sm:$0xff]
        %v5157 = vld [vmem:[%s4953 + $0x69] sm:$0xff]
        %v5158 = vld [vmem:[%s4953 + $0x79] sm:$0xff]
        %v5159 = vld [vmem:[%s4953 + $0x81] sm:$0xff]
        %v5160 = vld [vmem:[%s4953 + $0x91] sm:$0xff]
        %v5161 = vld [vmem:[%s4953 + $0x99] sm:$0xff]
        %v5162 = vld [vmem:[%s4953 + $0xa9] sm:$0xff]
        %v5163 = vld [vmem:[%s4953 + $0xb1] sm:$0xff]
        %s5164 = scalar_lea.vmem [#allocation3], 896
        %v5165 = vld [vmem:[%s5164] sm:$0xff]
        %v5166 = vld [vmem:[%s5164 + $0x8] sm:$0xff]
        %v5167 = vld [vmem:[%s5164 + $0x10] sm:$0xff]
        %v5168 = vld [vmem:[%s5164 + $0x18] sm:$0xff]
        %v5169 = vld [vmem:[%s5164 + $0x20] sm:$0xff]
        %v5170 = vld [vmem:[%s5164 + $0x28] sm:$0xff]
        %v5171 = vld [vmem:[%s5164 + $0x30] sm:$0xff]
        %v5172 = vld [vmem:[%s5164 + $0x38] sm:$0xff]
        %v5173 = vld [vmem:[%s5164 + $0x40] sm:$0xff]
        %v5174 = vld [vmem:[%s5164 + $0x48] sm:$0xff]
        %v5175 = vld [vmem:[%s5164 + $0x50] sm:$0xff]
        %v5176 = vld [vmem:[%s5164 + $0x58] sm:$0xff]
        %v5177 = vld [vmem:[%s5164 + $0x60] sm:$0xff]
        %v5178 = vld [vmem:[%s5164 + $0x68] sm:$0xff]
        %v5179 = vld [vmem:[%s5164 + $0x70] sm:$0xff]
        %v5180 = vld [vmem:[%s5164 + $0x78] sm:$0xff]
        %5181 = vmatprep.subr.mxu0 0.0
        %5182 = vmatpush1.msra.mxu0 %v5180
        %5183 = vmatprep.subr.mxu0 0.0
        %5184 = vmatpush1.msra.mxu0 %v5179
        %5185 = vmatprep.subr.mxu0 0.0
        %5186 = vmatpush1.msra.mxu0 %v5178
        %5187 = vmatprep.subr.mxu0 0.0
        %5188 = vmatpush1.msra.mxu0 %v5177
        %5189 = vmatprep.subr.mxu0 0.0
        %5190 = vmatpush1.msra.mxu0 %v5176
        %5191 = vmatprep.subr.mxu0 0.0
        %5192 = vmatpush1.msra.mxu0 %v5175
        %5193 = vmatprep.subr.mxu0 0.0
        %5194 = vmatpush1.msra.mxu0 %v5174
        %5195 = vmatprep.subr.mxu0 0.0
        %5196 = vmatpush1.msra.mxu0 %v5173
        %5197 = vmatprep.subr.mxu0 0.0
        %5198 = vmatpush1.msra.mxu0 %v5172
        %5199 = vmatprep.subr.mxu0 0.0
        %5200 = vmatpush1.msra.mxu0 %v5171
        %5201 = vmatprep.subr.mxu0 0.0
        %5202 = vmatpush1.msra.mxu0 %v5170
        %5203 = vmatprep.subr.mxu0 0.0
        %5204 = vmatpush1.msra.mxu0 %v5169
        %5205 = vmatprep.subr.mxu0 0.0
        %5206 = vmatpush1.msra.mxu0 %v5168
        %5207 = vmatprep.subr.mxu0 0.0
        %5208 = vmatpush1.msra.mxu0 %v5167
        %5209 = vmatprep.subr.mxu0 0.0
        %5210 = vmatpush1.msra.mxu0 %v5166
        %5211 = vmatprep.subr.mxu0 0.0
        %5212 = vmatpush1.msra.mxu0 %v5165
        %5213 = vmatprep.subr.mxu0 0.0
        %5214 = vmatpush2.msra.mxu0 0.0
        %5215 = vmatprep.subr.mxu0 0.0
        %5216 = vmatpush2.msra.mxu0 0.0
        %5217 = vmatprep.subr.mxu0 0.0
        %5218 = vmatpush2.msra.mxu0 0.0
        %5219 = vmatprep.subr.mxu0 0.0
        %5220 = vmatpush2.msra.mxu0 0.0
        %5221 = vmatprep.subr.mxu0 0.0
        %5222 = vmatpush2.msra.mxu0 0.0
        %5223 = vmatprep.subr.mxu0 0.0
        %5224 = vmatpush2.msra.mxu0 0.0
        %5225 = vmatprep.subr.mxu0 0.0
        %5226 = vmatpush2.msra.mxu0 0.0
        %5227 = vmatprep.subr.mxu0 0.0
        %5228 = vmatpush2.msra.mxu0 0.0
        %5229 = vmatprep.subr.mxu0 0.0
        %5230 = vmatpush2.msra.mxu0 0.0
        %5231 = vmatprep.subr.mxu0 0.0
        %5232 = vmatpush2.msra.mxu0 0.0
        %5233 = vmatprep.subr.mxu0 0.0
        %5234 = vmatpush2.msra.mxu0 0.0
        %5235 = vmatprep.subr.mxu0 0.0
        %5236 = vmatpush2.msra.mxu0 0.0
        %5237 = vmatprep.subr.mxu0 0.0
        %5238 = vmatpush2.msra.mxu0 0.0
        %5239 = vmatprep.subr.mxu0 0.0
        %5240 = vmatpush2.msra.mxu0 0.0
        %5241 = vmatprep.subr.mxu0 0.0
        %5242 = vmatpush2.msra.mxu0 0.0
        %5243 = vmatprep.subr.mxu0 0.0
        %5244 = vmatpush2.msra.mxu0 0.0
        %5245 = vmatprep.mubr.f32.mxu0 0.0
        %5246 = vmatmul.mubr.f32.gmra.mxu0 %v5148
        %v5247 = vpop.f32.mrf.mxu0
        %v5248 = vadd.f32 0.0, %v5247
        %v5249 = vpop.f32.mrf.mxu0
        %5250 = vmatprep.mubr.f32.mxu0 0.0
        %5251 = vmatmul.mubr.f32.gmra.mxu0 %v5149
        %v5252 = vpop.f32.mrf.mxu0
        %v5253 = vadd.f32 0.0, %v5252
        %v5254 = vpop.f32.mrf.mxu0
        %5255 = vmatprep.mubr.f32.mxu0 0.0
        %5256 = vmatmul.mubr.f32.gmra.mxu0 %v5150
        %v5257 = vpop.f32.mrf.mxu0
        %v5258 = vadd.f32 0.0, %v5257
        %v5259 = vpop.f32.mrf.mxu0
        %5260 = vmatprep.mubr.f32.mxu0 0.0
        %5261 = vmatmul.mubr.f32.gmra.mxu0 %v5151
        %v5262 = vpop.f32.mrf.mxu0
        %v5263 = vadd.f32 0.0, %v5262
        %v5264 = vpop.f32.mrf.mxu0
        %5265 = vmatprep.mubr.f32.mxu0 0.0
        %5266 = vmatmul.mubr.f32.gmra.mxu0 %v5152
        %v5267 = vpop.f32.mrf.mxu0
        %v5268 = vadd.f32 0.0, %v5267
        %v5269 = vpop.f32.mrf.mxu0
        %5270 = vmatprep.mubr.f32.mxu0 0.0
        %5271 = vmatmul.mubr.f32.gmra.mxu0 %v5153
        %v5272 = vpop.f32.mrf.mxu0
        %v5273 = vadd.f32 0.0, %v5272
        %v5274 = vpop.f32.mrf.mxu0
        %5275 = vmatprep.mubr.f32.mxu0 0.0
        %5276 = vmatmul.mubr.f32.gmra.mxu0 %v5154
        %v5277 = vpop.f32.mrf.mxu0
        %v5278 = vadd.f32 0.0, %v5277
        %v5279 = vpop.f32.mrf.mxu0
        %5280 = vmatprep.mubr.f32.mxu0 0.0
        %5281 = vmatmul.mubr.f32.gmra.mxu0 %v5155
        %v5282 = vpop.f32.mrf.mxu0
        %v5283 = vadd.f32 0.0, %v5282
        %v5284 = vpop.f32.mrf.mxu0
        %5285 = vmatprep.mubr.f32.mxu0 0.0
        %5286 = vmatmul.mubr.f32.gmra.mxu0 %v5156
        %v5287 = vpop.f32.mrf.mxu0
        %v5288 = vadd.f32 0.0, %v5287
        %v5289 = vpop.f32.mrf.mxu0
        %5290 = vmatprep.mubr.f32.mxu0 0.0
        %5291 = vmatmul.mubr.f32.gmra.mxu0 %v5157
        %v5292 = vpop.f32.mrf.mxu0
        %v5293 = vadd.f32 0.0, %v5292
        %v5294 = vpop.f32.mrf.mxu0
        %5295 = vmatprep.mubr.f32.mxu0 0.0
        %5296 = vmatmul.mubr.f32.gmra.mxu0 %v5158
        %v5297 = vpop.f32.mrf.mxu0
        %v5298 = vadd.f32 0.0, %v5297
        %v5299 = vpop.f32.mrf.mxu0
        %5300 = vmatprep.mubr.f32.mxu0 0.0
        %5301 = vmatmul.mubr.f32.gmra.mxu0 %v5159
        %v5302 = vpop.f32.mrf.mxu0
        %v5303 = vadd.f32 0.0, %v5302
        %v5304 = vpop.f32.mrf.mxu0
        %5305 = vmatprep.mubr.f32.mxu0 0.0
        %5306 = vmatmul.mubr.f32.gmra.mxu0 %v5160
        %v5307 = vpop.f32.mrf.mxu0
        %v5308 = vadd.f32 0.0, %v5307
        %v5309 = vpop.f32.mrf.mxu0
        %5310 = vmatprep.mubr.f32.mxu0 0.0
        %5311 = vmatmul.mubr.f32.gmra.mxu0 %v5161
        %v5312 = vpop.f32.mrf.mxu0
        %v5313 = vadd.f32 0.0, %v5312
        %v5314 = vpop.f32.mrf.mxu0
        %5315 = vmatprep.mubr.f32.mxu0 0.0
        %5316 = vmatmul.mubr.f32.gmra.mxu0 %v5162
        %v5317 = vpop.f32.mrf.mxu0
        %v5318 = vadd.f32 0.0, %v5317
        %v5319 = vpop.f32.mrf.mxu0
        %5320 = vmatprep.mubr.f32.mxu0 0.0
        %5321 = vmatmul.mubr.f32.gmra.mxu0 %v5163
        %v5322 = vpop.f32.mrf.mxu0
        %v5323 = vadd.f32 0.0, %v5322
        %v5324 = vpop.f32.mrf.mxu0
        %5325 = vdwg.mxu0
        %v5326 = vadd.f32 %v5132, %v5248
        %v5327 = vadd.f32 %v5133, %v5253
        %v5328 = vadd.f32 %v5134, %v5258
        %v5329 = vadd.f32 %v5135, %v5263
        %v5330 = vadd.f32 %v5136, %v5268
        %v5331 = vadd.f32 %v5137, %v5273
        %v5332 = vadd.f32 %v5138, %v5278
        %v5333 = vadd.f32 %v5139, %v5283
        %v5334 = vadd.f32 %v5140, %v5288
        %v5335 = vadd.f32 %v5141, %v5293
        %v5336 = vadd.f32 %v5142, %v5298
        %v5337 = vadd.f32 %v5143, %v5303
        %v5338 = vadd.f32 %v5144, %v5308
        %v5339 = vadd.f32 %v5145, %v5313
        %v5340 = vadd.f32 %v5146, %v5318
        %v5341 = vadd.f32 %v5147, %v5323
        %v5342 = vld [vmem:[%s4953 + $0x2] sm:$0xff]
        %v5343 = vld [vmem:[%s4953 + $0xa] sm:$0xff]
        %v5344 = vld [vmem:[%s4953 + $0x1a] sm:$0xff]
        %v5345 = vld [vmem:[%s4953 + $0x22] sm:$0xff]
        %v5346 = vld [vmem:[%s4953 + $0x32] sm:$0xff]
        %v5347 = vld [vmem:[%s4953 + $0x3a] sm:$0xff]
        %v5348 = vld [vmem:[%s4953 + $0x4a] sm:$0xff]
        %v5349 = vld [vmem:[%s4953 + $0x52] sm:$0xff]
        %v5350 = vld [vmem:[%s4953 + $0x62] sm:$0xff]
        %v5351 = vld [vmem:[%s4953 + $0x6a] sm:$0xff]
        %v5352 = vld [vmem:[%s4953 + $0x7a] sm:$0xff]
        %v5353 = vld [vmem:[%s4953 + $0x82] sm:$0xff]
        %v5354 = vld [vmem:[%s4953 + $0x92] sm:$0xff]
        %v5355 = vld [vmem:[%s4953 + $0x9a] sm:$0xff]
        %v5356 = vld [vmem:[%s4953 + $0xaa] sm:$0xff]
        %v5357 = vld [vmem:[%s4953 + $0xb2] sm:$0xff]
        %s5358 = scalar_lea.vmem [#allocation3], 1024
        %v5359 = vld [vmem:[%s5358] sm:$0xff]
        %v5360 = vld [vmem:[%s5358 + $0x8] sm:$0xff]
        %v5361 = vld [vmem:[%s5358 + $0x10] sm:$0xff]
        %v5362 = vld [vmem:[%s5358 + $0x18] sm:$0xff]
        %v5363 = vld [vmem:[%s5358 + $0x20] sm:$0xff]
        %v5364 = vld [vmem:[%s5358 + $0x28] sm:$0xff]
        %v5365 = vld [vmem:[%s5358 + $0x30] sm:$0xff]
        %v5366 = vld [vmem:[%s5358 + $0x38] sm:$0xff]
        %v5367 = vld [vmem:[%s5358 + $0x40] sm:$0xff]
        %v5368 = vld [vmem:[%s5358 + $0x48] sm:$0xff]
        %v5369 = vld [vmem:[%s5358 + $0x50] sm:$0xff]
        %v5370 = vld [vmem:[%s5358 + $0x58] sm:$0xff]
        %v5371 = vld [vmem:[%s5358 + $0x60] sm:$0xff]
        %v5372 = vld [vmem:[%s5358 + $0x68] sm:$0xff]
        %v5373 = vld [vmem:[%s5358 + $0x70] sm:$0xff]
        %v5374 = vld [vmem:[%s5358 + $0x78] sm:$0xff]
        %5375 = vmatprep.subr.mxu0 0.0
        %5376 = vmatpush1.msra.mxu0 %v5374
        %5377 = vmatprep.subr.mxu0 0.0
        %5378 = vmatpush1.msra.mxu0 %v5373
        %5379 = vmatprep.subr.mxu0 0.0
        %5380 = vmatpush1.msra.mxu0 %v5372
        %5381 = vmatprep.subr.mxu0 0.0
        %5382 = vmatpush1.msra.mxu0 %v5371
        %5383 = vmatprep.subr.mxu0 0.0
        %5384 = vmatpush1.msra.mxu0 %v5370
        %5385 = vmatprep.subr.mxu0 0.0
        %5386 = vmatpush1.msra.mxu0 %v5369
        %5387 = vmatprep.subr.mxu0 0.0
        %5388 = vmatpush1.msra.mxu0 %v5368
        %5389 = vmatprep.subr.mxu0 0.0
        %5390 = vmatpush1.msra.mxu0 %v5367
        %5391 = vmatprep.subr.mxu0 0.0
        %5392 = vmatpush1.msra.mxu0 %v5366
        %5393 = vmatprep.subr.mxu0 0.0
        %5394 = vmatpush1.msra.mxu0 %v5365
        %5395 = vmatprep.subr.mxu0 0.0
        %5396 = vmatpush1.msra.mxu0 %v5364
        %5397 = vmatprep.subr.mxu0 0.0
        %5398 = vmatpush1.msra.mxu0 %v5363
        %5399 = vmatprep.subr.mxu0 0.0
        %5400 = vmatpush1.msra.mxu0 %v5362
        %5401 = vmatprep.subr.mxu0 0.0
        %5402 = vmatpush1.msra.mxu0 %v5361
        %5403 = vmatprep.subr.mxu0 0.0
        %5404 = vmatpush1.msra.mxu0 %v5360
        %5405 = vmatprep.subr.mxu0 0.0
        %5406 = vmatpush1.msra.mxu0 %v5359
        %5407 = vmatprep.subr.mxu0 0.0
        %5408 = vmatpush2.msra.mxu0 0.0
        %5409 = vmatprep.subr.mxu0 0.0
        %5410 = vmatpush2.msra.mxu0 0.0
        %5411 = vmatprep.subr.mxu0 0.0
        %5412 = vmatpush2.msra.mxu0 0.0
        %5413 = vmatprep.subr.mxu0 0.0
        %5414 = vmatpush2.msra.mxu0 0.0
        %5415 = vmatprep.subr.mxu0 0.0
        %5416 = vmatpush2.msra.mxu0 0.0
        %5417 = vmatprep.subr.mxu0 0.0
        %5418 = vmatpush2.msra.mxu0 0.0
        %5419 = vmatprep.subr.mxu0 0.0
        %5420 = vmatpush2.msra.mxu0 0.0
        %5421 = vmatprep.subr.mxu0 0.0
        %5422 = vmatpush2.msra.mxu0 0.0
        %5423 = vmatprep.subr.mxu0 0.0
        %5424 = vmatpush2.msra.mxu0 0.0
        %5425 = vmatprep.subr.mxu0 0.0
        %5426 = vmatpush2.msra.mxu0 0.0
        %5427 = vmatprep.subr.mxu0 0.0
        %5428 = vmatpush2.msra.mxu0 0.0
        %5429 = vmatprep.subr.mxu0 0.0
        %5430 = vmatpush2.msra.mxu0 0.0
        %5431 = vmatprep.subr.mxu0 0.0
        %5432 = vmatpush2.msra.mxu0 0.0
        %5433 = vmatprep.subr.mxu0 0.0
        %5434 = vmatpush2.msra.mxu0 0.0
        %5435 = vmatprep.subr.mxu0 0.0
        %5436 = vmatpush2.msra.mxu0 0.0
        %5437 = vmatprep.subr.mxu0 0.0
        %5438 = vmatpush2.msra.mxu0 0.0
        %5439 = vmatprep.mubr.f32.mxu0 0.0
        %5440 = vmatmul.mubr.f32.gmra.mxu0 %v5342
        %v5441 = vpop.f32.mrf.mxu0
        %v5442 = vadd.f32 0.0, %v5441
        %v5443 = vpop.f32.mrf.mxu0
        %5444 = vmatprep.mubr.f32.mxu0 0.0
        %5445 = vmatmul.mubr.f32.gmra.mxu0 %v5343
        %v5446 = vpop.f32.mrf.mxu0
        %v5447 = vadd.f32 0.0, %v5446
        %v5448 = vpop.f32.mrf.mxu0
        %5449 = vmatprep.mubr.f32.mxu0 0.0
        %5450 = vmatmul.mubr.f32.gmra.mxu0 %v5344
        %v5451 = vpop.f32.mrf.mxu0
        %v5452 = vadd.f32 0.0, %v5451
        %v5453 = vpop.f32.mrf.mxu0
        %5454 = vmatprep.mubr.f32.mxu0 0.0
        %5455 = vmatmul.mubr.f32.gmra.mxu0 %v5345
        %v5456 = vpop.f32.mrf.mxu0
        %v5457 = vadd.f32 0.0, %v5456
        %v5458 = vpop.f32.mrf.mxu0
        %5459 = vmatprep.mubr.f32.mxu0 0.0
        %5460 = vmatmul.mubr.f32.gmra.mxu0 %v5346
        %v5461 = vpop.f32.mrf.mxu0
        %v5462 = vadd.f32 0.0, %v5461
        %v5463 = vpop.f32.mrf.mxu0
        %5464 = vmatprep.mubr.f32.mxu0 0.0
        %5465 = vmatmul.mubr.f32.gmra.mxu0 %v5347
        %v5466 = vpop.f32.mrf.mxu0
        %v5467 = vadd.f32 0.0, %v5466
        %v5468 = vpop.f32.mrf.mxu0
        %5469 = vmatprep.mubr.f32.mxu0 0.0
        %5470 = vmatmul.mubr.f32.gmra.mxu0 %v5348
        %v5471 = vpop.f32.mrf.mxu0
        %v5472 = vadd.f32 0.0, %v5471
        %v5473 = vpop.f32.mrf.mxu0
        %5474 = vmatprep.mubr.f32.mxu0 0.0
        %5475 = vmatmul.mubr.f32.gmra.mxu0 %v5349
        %v5476 = vpop.f32.mrf.mxu0
        %v5477 = vadd.f32 0.0, %v5476
        %v5478 = vpop.f32.mrf.mxu0
        %5479 = vmatprep.mubr.f32.mxu0 0.0
        %5480 = vmatmul.mubr.f32.gmra.mxu0 %v5350
        %v5481 = vpop.f32.mrf.mxu0
        %v5482 = vadd.f32 0.0, %v5481
        %v5483 = vpop.f32.mrf.mxu0
        %5484 = vmatprep.mubr.f32.mxu0 0.0
        %5485 = vmatmul.mubr.f32.gmra.mxu0 %v5351
        %v5486 = vpop.f32.mrf.mxu0
        %v5487 = vadd.f32 0.0, %v5486
        %v5488 = vpop.f32.mrf.mxu0
        %5489 = vmatprep.mubr.f32.mxu0 0.0
        %5490 = vmatmul.mubr.f32.gmra.mxu0 %v5352
        %v5491 = vpop.f32.mrf.mxu0
        %v5492 = vadd.f32 0.0, %v5491
        %v5493 = vpop.f32.mrf.mxu0
        %5494 = vmatprep.mubr.f32.mxu0 0.0
        %5495 = vmatmul.mubr.f32.gmra.mxu0 %v5353
        %v5496 = vpop.f32.mrf.mxu0
        %v5497 = vadd.f32 0.0, %v5496
        %v5498 = vpop.f32.mrf.mxu0
        %5499 = vmatprep.mubr.f32.mxu0 0.0
        %5500 = vmatmul.mubr.f32.gmra.mxu0 %v5354
        %v5501 = vpop.f32.mrf.mxu0
        %v5502 = vadd.f32 0.0, %v5501
        %v5503 = vpop.f32.mrf.mxu0
        %5504 = vmatprep.mubr.f32.mxu0 0.0
        %5505 = vmatmul.mubr.f32.gmra.mxu0 %v5355
        %v5506 = vpop.f32.mrf.mxu0
        %v5507 = vadd.f32 0.0, %v5506
        %v5508 = vpop.f32.mrf.mxu0
        %5509 = vmatprep.mubr.f32.mxu0 0.0
        %5510 = vmatmul.mubr.f32.gmra.mxu0 %v5356
        %v5511 = vpop.f32.mrf.mxu0
        %v5512 = vadd.f32 0.0, %v5511
        %v5513 = vpop.f32.mrf.mxu0
        %5514 = vmatprep.mubr.f32.mxu0 0.0
        %5515 = vmatmul.mubr.f32.gmra.mxu0 %v5357
        %v5516 = vpop.f32.mrf.mxu0
        %v5517 = vadd.f32 0.0, %v5516
        %v5518 = vpop.f32.mrf.mxu0
        %5519 = vdwg.mxu0
        %v5520 = vadd.f32 %v5326, %v5442
        %v5521 = vadd.f32 %v5327, %v5447
        %v5522 = vadd.f32 %v5328, %v5452
        %v5523 = vadd.f32 %v5329, %v5457
        %v5524 = vadd.f32 %v5330, %v5462
        %v5525 = vadd.f32 %v5331, %v5467
        %v5526 = vadd.f32 %v5332, %v5472
        %v5527 = vadd.f32 %v5333, %v5477
        %v5528 = vadd.f32 %v5334, %v5482
        %v5529 = vadd.f32 %v5335, %v5487
        %v5530 = vadd.f32 %v5336, %v5492
        %v5531 = vadd.f32 %v5337, %v5497
        %v5532 = vadd.f32 %v5338, %v5502
        %v5533 = vadd.f32 %v5339, %v5507
        %v5534 = vadd.f32 %v5340, %v5512
        %v5535 = vadd.f32 %v5341, %v5517
        %v5536 = vld [vmem:[%s836 + $0x1] sm:$0xff]
        %v5537 = vld [vmem:[%s836 + $0x9] sm:$0xff]
        %v5538 = vld [vmem:[%s836 + $0x19] sm:$0xff]
        %v5539 = vld [vmem:[%s836 + $0x21] sm:$0xff]
        %v5540 = vld [vmem:[%s836 + $0x31] sm:$0xff]
        %v5541 = vld [vmem:[%s836 + $0x39] sm:$0xff]
        %v5542 = vld [vmem:[%s836 + $0x49] sm:$0xff]
        %v5543 = vld [vmem:[%s836 + $0x51] sm:$0xff]
        %v5544 = vld [vmem:[%s836 + $0x61] sm:$0xff]
        %v5545 = vld [vmem:[%s836 + $0x69] sm:$0xff]
        %v5546 = vld [vmem:[%s836 + $0x79] sm:$0xff]
        %v5547 = vld [vmem:[%s836 + $0x81] sm:$0xff]
        %v5548 = vld [vmem:[%s836 + $0x91] sm:$0xff]
        %v5549 = vld [vmem:[%s836 + $0x99] sm:$0xff]
        %v5550 = vld [vmem:[%s836 + $0xa9] sm:$0xff]
        %v5551 = vld [vmem:[%s836 + $0xb1] sm:$0xff]
        %v5553 = vlaneseq
        %v5554 = vshrl.u32 %v5553, 7
        %v5555 = vsub.s32 0, %v5554
        %v5556 = vrot.slane %v282, %v5555
        %v5558 = vadd.f32 %v5520, %v5556
        %v5559 = vadd.f32 %v5521, %v5556
        %v5560 = vadd.f32 %v5522, %v5556
        %v5561 = vadd.f32 %v5523, %v5556
        %v5562 = vadd.f32 %v5524, %v5556
        %v5563 = vadd.f32 %v5525, %v5556
        %v5564 = vadd.f32 %v5526, %v5556
        %v5565 = vadd.f32 %v5527, %v5556
        %v5566 = vadd.f32 %v5528, %v5556
        %v5567 = vadd.f32 %v5529, %v5556
        %v5568 = vadd.f32 %v5530, %v5556
        %v5569 = vadd.f32 %v5531, %v5556
        %v5570 = vadd.f32 %v5532, %v5556
        %v5571 = vadd.f32 %v5533, %v5556
        %v5572 = vadd.f32 %v5534, %v5556
        %v5573 = vadd.f32 %v5535, %v5556
        %v5574 = vadd.f32 %v5558, %v5536
        %v5575 = vadd.f32 %v5559, %v5537
        %v5576 = vadd.f32 %v5560, %v5538
        %v5577 = vadd.f32 %v5561, %v5539
        %v5578 = vadd.f32 %v5562, %v5540
        %v5579 = vadd.f32 %v5563, %v5541
        %v5580 = vadd.f32 %v5564, %v5542
        %v5581 = vadd.f32 %v5565, %v5543
        %v5582 = vadd.f32 %v5566, %v5544
        %v5583 = vadd.f32 %v5567, %v5545
        %v5584 = vadd.f32 %v5568, %v5546
        %v5585 = vadd.f32 %v5569, %v5547
        %v5586 = vadd.f32 %v5570, %v5548
        %v5587 = vadd.f32 %v5571, %v5549
        %v5588 = vadd.f32 %v5572, %v5550
        %v5589 = vadd.f32 %v5573, %v5551
        %v5590 = vmax.f32 %v5574, 0.0
        %v5591 = vmax.f32 %v5575, 0.0
        %v5592 = vmax.f32 %v5576, 0.0
        %v5593 = vmax.f32 %v5577, 0.0
        %v5594 = vmax.f32 %v5578, 0.0
        %v5595 = vmax.f32 %v5579, 0.0
        %v5596 = vmax.f32 %v5580, 0.0
        %v5597 = vmax.f32 %v5581, 0.0
        %v5598 = vmax.f32 %v5582, 0.0
        %v5599 = vmax.f32 %v5583, 0.0
        %v5600 = vmax.f32 %v5584, 0.0
        %v5601 = vmax.f32 %v5585, 0.0
        %v5602 = vmax.f32 %v5586, 0.0
        %v5603 = vmax.f32 %v5587, 0.0
        %v5604 = vmax.f32 %v5588, 0.0
        %v5605 = vmax.f32 %v5589, 0.0
        %s5606 = smul.u32 0, 16
        %s5607 = scalar_lea.vmem %s232, %s5606 [#allocation6]
        %5608 = vst [vmem:[%s5607] sm:$0xff] %v5590
        %5609 = vst [vmem:[%s5607 + $0x8] sm:$0xff] %v5591
        %5610 = vst [vmem:[%s5607 + $0x10] sm:$0xff] %v5592
        %5611 = vst [vmem:[%s5607 + $0x18] sm:$0xff] %v5593
        %5612 = vst [vmem:[%s5607 + $0x20] sm:$0xff] %v5594
        %5613 = vst [vmem:[%s5607 + $0x28] sm:$0xff] %v5595
        %5614 = vst [vmem:[%s5607 + $0x30] sm:$0xff] %v5596
        %5615 = vst [vmem:[%s5607 + $0x38] sm:$0xff] %v5597
        %5616 = vst [vmem:[%s5607 + $0x40] sm:$0xff] %v5598
        %5617 = vst [vmem:[%s5607 + $0x48] sm:$0xff] %v5599
        %5618 = vst [vmem:[%s5607 + $0x50] sm:$0xff] %v5600
        %5619 = vst [vmem:[%s5607 + $0x58] sm:$0xff] %v5601
        %5620 = vst [vmem:[%s5607 + $0x60] sm:$0xff] %v5602
        %5621 = vst [vmem:[%s5607 + $0x68] sm:$0xff] %v5603
        %5622 = vst [vmem:[%s5607 + $0x70] sm:$0xff] %v5604
        %5623 = vst [vmem:[%s5607 + $0x78] sm:$0xff] %v5605
        %s5624 = scalar_lea.vmem [#allocation2], %s2059
        %v5625 = vld [vmem:[%s5624] sm:$0xff]
        %v5626 = vld [vmem:[%s5624 + $0x8] sm:$0xff]
        %v5627 = vld [vmem:[%s5624 + $0x18] sm:$0xff]
        %v5628 = vld [vmem:[%s5624 + $0x20] sm:$0xff]
        %v5629 = vld [vmem:[%s5624 + $0x30] sm:$0xff]
        %v5630 = vld [vmem:[%s5624 + $0x38] sm:$0xff]
        %v5631 = vld [vmem:[%s5624 + $0x48] sm:$0xff]
        %v5632 = vld [vmem:[%s5624 + $0x50] sm:$0xff]
        %v5633 = vld [vmem:[%s5624 + $0x60] sm:$0xff]
        %v5634 = vld [vmem:[%s5624 + $0x68] sm:$0xff]
        %v5635 = vld [vmem:[%s5624 + $0x78] sm:$0xff]
        %v5636 = vld [vmem:[%s5624 + $0x80] sm:$0xff]
        %v5637 = vld [vmem:[%s5624 + $0x90] sm:$0xff]
        %v5638 = vld [vmem:[%s5624 + $0x98] sm:$0xff]
        %v5639 = vld [vmem:[%s5624 + $0xa8] sm:$0xff]
        %v5640 = vld [vmem:[%s5624 + $0xb0] sm:$0xff]
        %v5641 = vld [vmem:[#allocation3] sm:$0xff]
        %v5642 = vld [vmem:[#allocation3 + $0x8] sm:$0xff]
        %v5643 = vld [vmem:[#allocation3 + $0x10] sm:$0xff]
        %v5644 = vld [vmem:[#allocation3 + $0x18] sm:$0xff]
        %v5645 = vld [vmem:[#allocation3 + $0x20] sm:$0xff]
        %v5646 = vld [vmem:[#allocation3 + $0x28] sm:$0xff]
        %v5647 = vld [vmem:[#allocation3 + $0x30] sm:$0xff]
        %v5648 = vld [vmem:[#allocation3 + $0x38] sm:$0xff]
        %v5649 = vld [vmem:[#allocation3 + $0x40] sm:$0xff]
        %v5650 = vld [vmem:[#allocation3 + $0x48] sm:$0xff]
        %v5651 = vld [vmem:[#allocation3 + $0x50] sm:$0xff]
        %v5652 = vld [vmem:[#allocation3 + $0x58] sm:$0xff]
        %v5653 = vld [vmem:[#allocation3 + $0x60] sm:$0xff]
        %v5654 = vld [vmem:[#allocation3 + $0x68] sm:$0xff]
        %v5655 = vld [vmem:[#allocation3 + $0x70] sm:$0xff]
        %v5656 = vld [vmem:[#allocation3 + $0x78] sm:$0xff]
        %v5657 = vld [vmem:[%s5624 + $0x1] sm:$0xff]
        %v5658 = vld [vmem:[%s5624 + $0x9] sm:$0xff]
        %v5659 = vld [vmem:[%s5624 + $0x19] sm:$0xff]
        %v5660 = vld [vmem:[%s5624 + $0x21] sm:$0xff]
        %v5661 = vld [vmem:[%s5624 + $0x31] sm:$0xff]
        %v5662 = vld [vmem:[%s5624 + $0x39] sm:$0xff]
        %v5663 = vld [vmem:[%s5624 + $0x49] sm:$0xff]
        %v5664 = vld [vmem:[%s5624 + $0x51] sm:$0xff]
        %v5665 = vld [vmem:[%s5624 + $0x61] sm:$0xff]
        %v5666 = vld [vmem:[%s5624 + $0x69] sm:$0xff]
        %v5667 = vld [vmem:[%s5624 + $0x79] sm:$0xff]
        %v5668 = vld [vmem:[%s5624 + $0x81] sm:$0xff]
        %v5669 = vld [vmem:[%s5624 + $0x91] sm:$0xff]
        %v5670 = vld [vmem:[%s5624 + $0x99] sm:$0xff]
        %v5671 = vld [vmem:[%s5624 + $0xa9] sm:$0xff]
        %v5672 = vld [vmem:[%s5624 + $0xb1] sm:$0xff]
        %v5673 = vld [vmem:[%s3870] sm:$0xff]
        %v5674 = vld [vmem:[%s3870 + $0x8] sm:$0xff]
        %v5675 = vld [vmem:[%s3870 + $0x10] sm:$0xff]
        %v5676 = vld [vmem:[%s3870 + $0x18] sm:$0xff]
        %v5677 = vld [vmem:[%s3870 + $0x20] sm:$0xff]
        %v5678 = vld [vmem:[%s3870 + $0x28] sm:$0xff]
        %v5679 = vld [vmem:[%s3870 + $0x30] sm:$0xff]
        %v5680 = vld [vmem:[%s3870 + $0x38] sm:$0xff]
        %v5681 = vld [vmem:[%s3870 + $0x40] sm:$0xff]
        %v5682 = vld [vmem:[%s3870 + $0x48] sm:$0xff]
        %v5683 = vld [vmem:[%s3870 + $0x50] sm:$0xff]
        %v5684 = vld [vmem:[%s3870 + $0x58] sm:$0xff]
        %v5685 = vld [vmem:[%s3870 + $0x60] sm:$0xff]
        %v5686 = vld [vmem:[%s3870 + $0x68] sm:$0xff]
        %v5687 = vld [vmem:[%s3870 + $0x70] sm:$0xff]
        %v5688 = vld [vmem:[%s3870 + $0x78] sm:$0xff]
        %5689 = vmatprep.subr.mxu0 0.0
        %5690 = vmatpush1.msra.mxu0 %v5688
        %5691 = vmatprep.subr.mxu0 0.0
        %5692 = vmatpush1.msra.mxu0 %v5687
        %5693 = vmatprep.subr.mxu0 0.0
        %5694 = vmatpush1.msra.mxu0 %v5686
        %5695 = vmatprep.subr.mxu0 0.0
        %5696 = vmatpush1.msra.mxu0 %v5685
        %5697 = vmatprep.subr.mxu0 0.0
        %5698 = vmatpush1.msra.mxu0 %v5684
        %5699 = vmatprep.subr.mxu0 0.0
        %5700 = vmatpush1.msra.mxu0 %v5683
        %5701 = vmatprep.subr.mxu0 0.0
        %5702 = vmatpush1.msra.mxu0 %v5682
        %5703 = vmatprep.subr.mxu0 0.0
        %5704 = vmatpush1.msra.mxu0 %v5681
        %5705 = vmatprep.subr.mxu0 0.0
        %5706 = vmatpush1.msra.mxu0 %v5680
        %5707 = vmatprep.subr.mxu0 0.0
        %5708 = vmatpush1.msra.mxu0 %v5679
        %5709 = vmatprep.subr.mxu0 0.0
        %5710 = vmatpush1.msra.mxu0 %v5678
        %5711 = vmatprep.subr.mxu0 0.0
        %5712 = vmatpush1.msra.mxu0 %v5677
        %5713 = vmatprep.subr.mxu0 0.0
        %5714 = vmatpush1.msra.mxu0 %v5676
        %5715 = vmatprep.subr.mxu0 0.0
        %5716 = vmatpush1.msra.mxu0 %v5675
        %5717 = vmatprep.subr.mxu0 0.0
        %5718 = vmatpush1.msra.mxu0 %v5674
        %5719 = vmatprep.subr.mxu0 0.0
        %5720 = vmatpush1.msra.mxu0 %v5673
        %5721 = vmatprep.subr.mxu0 0.0
        %5722 = vmatpush2.msra.mxu0 0.0
        %5723 = vmatprep.subr.mxu0 0.0
        %5724 = vmatpush2.msra.mxu0 0.0
        %5725 = vmatprep.subr.mxu0 0.0
        %5726 = vmatpush2.msra.mxu0 0.0
        %5727 = vmatprep.subr.mxu0 0.0
        %5728 = vmatpush2.msra.mxu0 0.0
        %5729 = vmatprep.subr.mxu0 0.0
        %5730 = vmatpush2.msra.mxu0 0.0
        %5731 = vmatprep.subr.mxu0 0.0
        %5732 = vmatpush2.msra.mxu0 0.0
        %5733 = vmatprep.subr.mxu0 0.0
        %5734 = vmatpush2.msra.mxu0 0.0
        %5735 = vmatprep.subr.mxu0 0.0
        %5736 = vmatpush2.msra.mxu0 0.0
        %5737 = vmatprep.subr.mxu0 0.0
        %5738 = vmatpush2.msra.mxu0 0.0
        %5739 = vmatprep.subr.mxu0 0.0
        %5740 = vmatpush2.msra.mxu0 0.0
        %5741 = vmatprep.subr.mxu0 0.0
        %5742 = vmatpush2.msra.mxu0 0.0
        %5743 = vmatprep.subr.mxu0 0.0
        %5744 = vmatpush2.msra.mxu0 0.0
        %5745 = vmatprep.subr.mxu0 0.0
        %5746 = vmatpush2.msra.mxu0 0.0
        %5747 = vmatprep.subr.mxu0 0.0
        %5748 = vmatpush2.msra.mxu0 0.0
        %5749 = vmatprep.subr.mxu0 0.0
        %5750 = vmatpush2.msra.mxu0 0.0
        %5751 = vmatprep.subr.mxu0 0.0
        %5752 = vmatpush2.msra.mxu0 0.0
        %5753 = vmatprep.mubr.f32.mxu0 0.0
        %5754 = vmatmul.mubr.f32.gmra.mxu0 %v5657
        %v5755 = vpop.f32.mrf.mxu0
        %v5756 = vadd.f32 0.0, %v5755
        %v5757 = vpop.f32.mrf.mxu0
        %5758 = vmatprep.mubr.f32.mxu0 0.0
        %5759 = vmatmul.mubr.f32.gmra.mxu0 %v5658
        %v5760 = vpop.f32.mrf.mxu0
        %v5761 = vadd.f32 0.0, %v5760
        %v5762 = vpop.f32.mrf.mxu0
        %5763 = vmatprep.mubr.f32.mxu0 0.0
        %5764 = vmatmul.mubr.f32.gmra.mxu0 %v5659
        %v5765 = vpop.f32.mrf.mxu0
        %v5766 = vadd.f32 0.0, %v5765
        %v5767 = vpop.f32.mrf.mxu0
        %5768 = vmatprep.mubr.f32.mxu0 0.0
        %5769 = vmatmul.mubr.f32.gmra.mxu0 %v5660
        %v5770 = vpop.f32.mrf.mxu0
        %v5771 = vadd.f32 0.0, %v5770
        %v5772 = vpop.f32.mrf.mxu0
        %5773 = vmatprep.mubr.f32.mxu0 0.0
        %5774 = vmatmul.mubr.f32.gmra.mxu0 %v5661
        %v5775 = vpop.f32.mrf.mxu0
        %v5776 = vadd.f32 0.0, %v5775
        %v5777 = vpop.f32.mrf.mxu0
        %5778 = vmatprep.mubr.f32.mxu0 0.0
        %5779 = vmatmul.mubr.f32.gmra.mxu0 %v5662
        %v5780 = vpop.f32.mrf.mxu0
        %v5781 = vadd.f32 0.0, %v5780
        %v5782 = vpop.f32.mrf.mxu0
        %5783 = vmatprep.mubr.f32.mxu0 0.0
        %5784 = vmatmul.mubr.f32.gmra.mxu0 %v5663
        %v5785 = vpop.f32.mrf.mxu0
        %v5786 = vadd.f32 0.0, %v5785
        %v5787 = vpop.f32.mrf.mxu0
        %5788 = vmatprep.mubr.f32.mxu0 0.0
        %5789 = vmatmul.mubr.f32.gmra.mxu0 %v5664
        %v5790 = vpop.f32.mrf.mxu0
        %v5791 = vadd.f32 0.0, %v5790
        %v5792 = vpop.f32.mrf.mxu0
        %5793 = vmatprep.mubr.f32.mxu0 0.0
        %5794 = vmatmul.mubr.f32.gmra.mxu0 %v5665
        %v5795 = vpop.f32.mrf.mxu0
        %v5796 = vadd.f32 0.0, %v5795
        %v5797 = vpop.f32.mrf.mxu0
        %5798 = vmatprep.mubr.f32.mxu0 0.0
        %5799 = vmatmul.mubr.f32.gmra.mxu0 %v5666
        %v5800 = vpop.f32.mrf.mxu0
        %v5801 = vadd.f32 0.0, %v5800
        %v5802 = vpop.f32.mrf.mxu0
        %5803 = vmatprep.mubr.f32.mxu0 0.0
        %5804 = vmatmul.mubr.f32.gmra.mxu0 %v5667
        %v5805 = vpop.f32.mrf.mxu0
        %v5806 = vadd.f32 0.0, %v5805
        %v5807 = vpop.f32.mrf.mxu0
        %5808 = vmatprep.mubr.f32.mxu0 0.0
        %5809 = vmatmul.mubr.f32.gmra.mxu0 %v5668
        %v5810 = vpop.f32.mrf.mxu0
        %v5811 = vadd.f32 0.0, %v5810
        %v5812 = vpop.f32.mrf.mxu0
        %5813 = vmatprep.mubr.f32.mxu0 0.0
        %5814 = vmatmul.mubr.f32.gmra.mxu0 %v5669
        %v5815 = vpop.f32.mrf.mxu0
        %v5816 = vadd.f32 0.0, %v5815
        %v5817 = vpop.f32.mrf.mxu0
        %5818 = vmatprep.mubr.f32.mxu0 0.0
        %5819 = vmatmul.mubr.f32.gmra.mxu0 %v5670
        %v5820 = vpop.f32.mrf.mxu0
        %v5821 = vadd.f32 0.0, %v5820
        %v5822 = vpop.f32.mrf.mxu0
        %5823 = vmatprep.mubr.f32.mxu0 0.0
        %5824 = vmatmul.mubr.f32.gmra.mxu0 %v5671
        %v5825 = vpop.f32.mrf.mxu0
        %v5826 = vadd.f32 0.0, %v5825
        %v5827 = vpop.f32.mrf.mxu0
        %5828 = vmatprep.mubr.f32.mxu0 0.0
        %5829 = vmatmul.mubr.f32.gmra.mxu0 %v5672
        %v5830 = vpop.f32.mrf.mxu0
        %v5831 = vadd.f32 0.0, %v5830
        %v5832 = vpop.f32.mrf.mxu0
        %5833 = vdwg.mxu0
        %5834 = vmatprep.subr.mxu0 0.0
        %5835 = vmatpush1.msra.mxu0 %v5656
        %5836 = vmatprep.subr.mxu0 0.0
        %5837 = vmatpush1.msra.mxu0 %v5655
        %5838 = vmatprep.subr.mxu0 0.0
        %5839 = vmatpush1.msra.mxu0 %v5654
        %5840 = vmatprep.subr.mxu0 0.0
        %5841 = vmatpush1.msra.mxu0 %v5653
        %5842 = vmatprep.subr.mxu0 0.0
        %5843 = vmatpush1.msra.mxu0 %v5652
        %5844 = vmatprep.subr.mxu0 0.0
        %5845 = vmatpush1.msra.mxu0 %v5651
        %5846 = vmatprep.subr.mxu0 0.0
        %5847 = vmatpush1.msra.mxu0 %v5650
        %5848 = vmatprep.subr.mxu0 0.0
        %5849 = vmatpush1.msra.mxu0 %v5649
        %5850 = vmatprep.subr.mxu0 0.0
        %5851 = vmatpush1.msra.mxu0 %v5648
        %5852 = vmatprep.subr.mxu0 0.0
        %5853 = vmatpush1.msra.mxu0 %v5647
        %5854 = vmatprep.subr.mxu0 0.0
        %5855 = vmatpush1.msra.mxu0 %v5646
        %5856 = vmatprep.subr.mxu0 0.0
        %5857 = vmatpush1.msra.mxu0 %v5645
        %5858 = vmatprep.subr.mxu0 0.0
        %5859 = vmatpush1.msra.mxu0 %v5644
        %5860 = vmatprep.subr.mxu0 0.0
        %5861 = vmatpush1.msra.mxu0 %v5643
        %5862 = vmatprep.subr.mxu0 0.0
        %5863 = vmatpush1.msra.mxu0 %v5642
        %5864 = vmatprep.subr.mxu0 0.0
        %5865 = vmatpush1.msra.mxu0 %v5641
        %5866 = vmatprep.subr.mxu0 0.0
        %5867 = vmatpush2.msra.mxu0 0.0
        %5868 = vmatprep.subr.mxu0 0.0
        %5869 = vmatpush2.msra.mxu0 0.0
        %5870 = vmatprep.subr.mxu0 0.0
        %5871 = vmatpush2.msra.mxu0 0.0
        %5872 = vmatprep.subr.mxu0 0.0
        %5873 = vmatpush2.msra.mxu0 0.0
        %5874 = vmatprep.subr.mxu0 0.0
        %5875 = vmatpush2.msra.mxu0 0.0
        %5876 = vmatprep.subr.mxu0 0.0
        %5877 = vmatpush2.msra.mxu0 0.0
        %5878 = vmatprep.subr.mxu0 0.0
        %5879 = vmatpush2.msra.mxu0 0.0
        %5880 = vmatprep.subr.mxu0 0.0
        %5881 = vmatpush2.msra.mxu0 0.0
        %5882 = vmatprep.subr.mxu0 0.0
        %5883 = vmatpush2.msra.mxu0 0.0
        %5884 = vmatprep.subr.mxu0 0.0
        %5885 = vmatpush2.msra.mxu0 0.0
        %5886 = vmatprep.subr.mxu0 0.0
        %5887 = vmatpush2.msra.mxu0 0.0
        %5888 = vmatprep.subr.mxu0 0.0
        %5889 = vmatpush2.msra.mxu0 0.0
        %5890 = vmatprep.subr.mxu0 0.0
        %5891 = vmatpush2.msra.mxu0 0.0
        %5892 = vmatprep.subr.mxu0 0.0
        %5893 = vmatpush2.msra.mxu0 0.0
        %5894 = vmatprep.subr.mxu0 0.0
        %5895 = vmatpush2.msra.mxu0 0.0
        %5896 = vmatprep.subr.mxu0 0.0
        %5897 = vmatpush2.msra.mxu0 0.0
        %5898 = vmatprep.mubr.f32.mxu0 0.0
        %5899 = vmatmul.mubr.f32.gmra.mxu0 %v5625
        %v5900 = vpop.f32.mrf.mxu0
        %v5901 = vadd.f32 %v5756, %v5900
        %v5902 = vpop.f32.mrf.mxu0
        %5903 = vmatprep.mubr.f32.mxu0 0.0
        %5904 = vmatmul.mubr.f32.gmra.mxu0 %v5626
        %v5905 = vpop.f32.mrf.mxu0
        %v5906 = vadd.f32 %v5761, %v5905
        %v5907 = vpop.f32.mrf.mxu0
        %5908 = vmatprep.mubr.f32.mxu0 0.0
        %5909 = vmatmul.mubr.f32.gmra.mxu0 %v5627
        %v5910 = vpop.f32.mrf.mxu0
        %v5911 = vadd.f32 %v5766, %v5910
        %v5912 = vpop.f32.mrf.mxu0
        %5913 = vmatprep.mubr.f32.mxu0 0.0
        %5914 = vmatmul.mubr.f32.gmra.mxu0 %v5628
        %v5915 = vpop.f32.mrf.mxu0
        %v5916 = vadd.f32 %v5771, %v5915
        %v5917 = vpop.f32.mrf.mxu0
        %5918 = vmatprep.mubr.f32.mxu0 0.0
        %5919 = vmatmul.mubr.f32.gmra.mxu0 %v5629
        %v5920 = vpop.f32.mrf.mxu0
        %v5921 = vadd.f32 %v5776, %v5920
        %v5922 = vpop.f32.mrf.mxu0
        %5923 = vmatprep.mubr.f32.mxu0 0.0
        %5924 = vmatmul.mubr.f32.gmra.mxu0 %v5630
        %v5925 = vpop.f32.mrf.mxu0
        %v5926 = vadd.f32 %v5781, %v5925
        %v5927 = vpop.f32.mrf.mxu0
        %5928 = vmatprep.mubr.f32.mxu0 0.0
        %5929 = vmatmul.mubr.f32.gmra.mxu0 %v5631
        %v5930 = vpop.f32.mrf.mxu0
        %v5931 = vadd.f32 %v5786, %v5930
        %v5932 = vpop.f32.mrf.mxu0
        %5933 = vmatprep.mubr.f32.mxu0 0.0
        %5934 = vmatmul.mubr.f32.gmra.mxu0 %v5632
        %v5935 = vpop.f32.mrf.mxu0
        %v5936 = vadd.f32 %v5791, %v5935
        %v5937 = vpop.f32.mrf.mxu0
        %5938 = vmatprep.mubr.f32.mxu0 0.0
        %5939 = vmatmul.mubr.f32.gmra.mxu0 %v5633
        %v5940 = vpop.f32.mrf.mxu0
        %v5941 = vadd.f32 %v5796, %v5940
        %v5942 = vpop.f32.mrf.mxu0
        %5943 = vmatprep.mubr.f32.mxu0 0.0
        %5944 = vmatmul.mubr.f32.gmra.mxu0 %v5634
        %v5945 = vpop.f32.mrf.mxu0
        %v5946 = vadd.f32 %v5801, %v5945
        %v5947 = vpop.f32.mrf.mxu0
        %5948 = vmatprep.mubr.f32.mxu0 0.0
        %5949 = vmatmul.mubr.f32.gmra.mxu0 %v5635
        %v5950 = vpop.f32.mrf.mxu0
        %v5951 = vadd.f32 %v5806, %v5950
        %v5952 = vpop.f32.mrf.mxu0
        %5953 = vmatprep.mubr.f32.mxu0 0.0
        %5954 = vmatmul.mubr.f32.gmra.mxu0 %v5636
        %v5955 = vpop.f32.mrf.mxu0
        %v5956 = vadd.f32 %v5811, %v5955
        %v5957 = vpop.f32.mrf.mxu0
        %5958 = vmatprep.mubr.f32.mxu0 0.0
        %5959 = vmatmul.mubr.f32.gmra.mxu0 %v5637
        %v5960 = vpop.f32.mrf.mxu0
        %v5961 = vadd.f32 %v5816, %v5960
        %v5962 = vpop.f32.mrf.mxu0
        %5963 = vmatprep.mubr.f32.mxu0 0.0
        %5964 = vmatmul.mubr.f32.gmra.mxu0 %v5638
        %v5965 = vpop.f32.mrf.mxu0
        %v5966 = vadd.f32 %v5821, %v5965
        %v5967 = vpop.f32.mrf.mxu0
        %5968 = vmatprep.mubr.f32.mxu0 0.0
        %5969 = vmatmul.mubr.f32.gmra.mxu0 %v5639
        %v5970 = vpop.f32.mrf.mxu0
        %v5971 = vadd.f32 %v5826, %v5970
        %v5972 = vpop.f32.mrf.mxu0
        %5973 = vmatprep.mubr.f32.mxu0 0.0
        %5974 = vmatmul.mubr.f32.gmra.mxu0 %v5640
        %v5975 = vpop.f32.mrf.mxu0
        %v5976 = vadd.f32 %v5831, %v5975
        %v5977 = vpop.f32.mrf.mxu0
        %5978 = vdwg.mxu0
        %v5979 = vld [vmem:[%s5624 + $0x2] sm:$0xff]
        %v5980 = vld [vmem:[%s5624 + $0xa] sm:$0xff]
        %v5981 = vld [vmem:[%s5624 + $0x1a] sm:$0xff]
        %v5982 = vld [vmem:[%s5624 + $0x22] sm:$0xff]
        %v5983 = vld [vmem:[%s5624 + $0x32] sm:$0xff]
        %v5984 = vld [vmem:[%s5624 + $0x3a] sm:$0xff]
        %v5985 = vld [vmem:[%s5624 + $0x4a] sm:$0xff]
        %v5986 = vld [vmem:[%s5624 + $0x52] sm:$0xff]
        %v5987 = vld [vmem:[%s5624 + $0x62] sm:$0xff]
        %v5988 = vld [vmem:[%s5624 + $0x6a] sm:$0xff]
        %v5989 = vld [vmem:[%s5624 + $0x7a] sm:$0xff]
        %v5990 = vld [vmem:[%s5624 + $0x82] sm:$0xff]
        %v5991 = vld [vmem:[%s5624 + $0x92] sm:$0xff]
        %v5992 = vld [vmem:[%s5624 + $0x9a] sm:$0xff]
        %v5993 = vld [vmem:[%s5624 + $0xaa] sm:$0xff]
        %v5994 = vld [vmem:[%s5624 + $0xb2] sm:$0xff]
        %v5995 = vld [vmem:[%s4193] sm:$0xff]
        %v5996 = vld [vmem:[%s4193 + $0x8] sm:$0xff]
        %v5997 = vld [vmem:[%s4193 + $0x10] sm:$0xff]
        %v5998 = vld [vmem:[%s4193 + $0x18] sm:$0xff]
        %v5999 = vld [vmem:[%s4193 + $0x20] sm:$0xff]
        %v6000 = vld [vmem:[%s4193 + $0x28] sm:$0xff]
        %v6001 = vld [vmem:[%s4193 + $0x30] sm:$0xff]
        %v6002 = vld [vmem:[%s4193 + $0x38] sm:$0xff]
        %v6003 = vld [vmem:[%s4193 + $0x40] sm:$0xff]
        %v6004 = vld [vmem:[%s4193 + $0x48] sm:$0xff]
        %v6005 = vld [vmem:[%s4193 + $0x50] sm:$0xff]
        %v6006 = vld [vmem:[%s4193 + $0x58] sm:$0xff]
        %v6007 = vld [vmem:[%s4193 + $0x60] sm:$0xff]
        %v6008 = vld [vmem:[%s4193 + $0x68] sm:$0xff]
        %v6009 = vld [vmem:[%s4193 + $0x70] sm:$0xff]
        %v6010 = vld [vmem:[%s4193 + $0x78] sm:$0xff]
        %6011 = vmatprep.subr.mxu0 0.0
        %6012 = vmatpush1.msra.mxu0 %v6010
        %6013 = vmatprep.subr.mxu0 0.0
        %6014 = vmatpush1.msra.mxu0 %v6009
        %6015 = vmatprep.subr.mxu0 0.0
        %6016 = vmatpush1.msra.mxu0 %v6008
        %6017 = vmatprep.subr.mxu0 0.0
        %6018 = vmatpush1.msra.mxu0 %v6007
        %6019 = vmatprep.subr.mxu0 0.0
        %6020 = vmatpush1.msra.mxu0 %v6006
        %6021 = vmatprep.subr.mxu0 0.0
        %6022 = vmatpush1.msra.mxu0 %v6005
        %6023 = vmatprep.subr.mxu0 0.0
        %6024 = vmatpush1.msra.mxu0 %v6004
        %6025 = vmatprep.subr.mxu0 0.0
        %6026 = vmatpush1.msra.mxu0 %v6003
        %6027 = vmatprep.subr.mxu0 0.0
        %6028 = vmatpush1.msra.mxu0 %v6002
        %6029 = vmatprep.subr.mxu0 0.0
        %6030 = vmatpush1.msra.mxu0 %v6001
        %6031 = vmatprep.subr.mxu0 0.0
        %6032 = vmatpush1.msra.mxu0 %v6000
        %6033 = vmatprep.subr.mxu0 0.0
        %6034 = vmatpush1.msra.mxu0 %v5999
        %6035 = vmatprep.subr.mxu0 0.0
        %6036 = vmatpush1.msra.mxu0 %v5998
        %6037 = vmatprep.subr.mxu0 0.0
        %6038 = vmatpush1.msra.mxu0 %v5997
        %6039 = vmatprep.subr.mxu0 0.0
        %6040 = vmatpush1.msra.mxu0 %v5996
        %6041 = vmatprep.subr.mxu0 0.0
        %6042 = vmatpush1.msra.mxu0 %v5995
        %6043 = vmatprep.subr.mxu0 0.0
        %6044 = vmatpush2.msra.mxu0 0.0
        %6045 = vmatprep.subr.mxu0 0.0
        %6046 = vmatpush2.msra.mxu0 0.0
        %6047 = vmatprep.subr.mxu0 0.0
        %6048 = vmatpush2.msra.mxu0 0.0
        %6049 = vmatprep.subr.mxu0 0.0
        %6050 = vmatpush2.msra.mxu0 0.0
        %6051 = vmatprep.subr.mxu0 0.0
        %6052 = vmatpush2.msra.mxu0 0.0
        %6053 = vmatprep.subr.mxu0 0.0
        %6054 = vmatpush2.msra.mxu0 0.0
        %6055 = vmatprep.subr.mxu0 0.0
        %6056 = vmatpush2.msra.mxu0 0.0
        %6057 = vmatprep.subr.mxu0 0.0
        %6058 = vmatpush2.msra.mxu0 0.0
        %6059 = vmatprep.subr.mxu0 0.0
        %6060 = vmatpush2.msra.mxu0 0.0
        %6061 = vmatprep.subr.mxu0 0.0
        %6062 = vmatpush2.msra.mxu0 0.0
        %6063 = vmatprep.subr.mxu0 0.0
        %6064 = vmatpush2.msra.mxu0 0.0
        %6065 = vmatprep.subr.mxu0 0.0
        %6066 = vmatpush2.msra.mxu0 0.0
        %6067 = vmatprep.subr.mxu0 0.0
        %6068 = vmatpush2.msra.mxu0 0.0
        %6069 = vmatprep.subr.mxu0 0.0
        %6070 = vmatpush2.msra.mxu0 0.0
        %6071 = vmatprep.subr.mxu0 0.0
        %6072 = vmatpush2.msra.mxu0 0.0
        %6073 = vmatprep.subr.mxu0 0.0
        %6074 = vmatpush2.msra.mxu0 0.0
        %6075 = vmatprep.mubr.f32.mxu0 0.0
        %6076 = vmatmul.mubr.f32.gmra.mxu0 %v5979
        %v6077 = vpop.f32.mrf.mxu0
        %v6078 = vadd.f32 0.0, %v6077
        %v6079 = vpop.f32.mrf.mxu0
        %6080 = vmatprep.mubr.f32.mxu0 0.0
        %6081 = vmatmul.mubr.f32.gmra.mxu0 %v5980
        %v6082 = vpop.f32.mrf.mxu0
        %v6083 = vadd.f32 0.0, %v6082
        %v6084 = vpop.f32.mrf.mxu0
        %6085 = vmatprep.mubr.f32.mxu0 0.0
        %6086 = vmatmul.mubr.f32.gmra.mxu0 %v5981
        %v6087 = vpop.f32.mrf.mxu0
        %v6088 = vadd.f32 0.0, %v6087
        %v6089 = vpop.f32.mrf.mxu0
        %6090 = vmatprep.mubr.f32.mxu0 0.0
        %6091 = vmatmul.mubr.f32.gmra.mxu0 %v5982
        %v6092 = vpop.f32.mrf.mxu0
        %v6093 = vadd.f32 0.0, %v6092
        %v6094 = vpop.f32.mrf.mxu0
        %6095 = vmatprep.mubr.f32.mxu0 0.0
        %6096 = vmatmul.mubr.f32.gmra.mxu0 %v5983
        %v6097 = vpop.f32.mrf.mxu0
        %v6098 = vadd.f32 0.0, %v6097
        %v6099 = vpop.f32.mrf.mxu0
        %6100 = vmatprep.mubr.f32.mxu0 0.0
        %6101 = vmatmul.mubr.f32.gmra.mxu0 %v5984
        %v6102 = vpop.f32.mrf.mxu0
        %v6103 = vadd.f32 0.0, %v6102
        %v6104 = vpop.f32.mrf.mxu0
        %6105 = vmatprep.mubr.f32.mxu0 0.0
        %6106 = vmatmul.mubr.f32.gmra.mxu0 %v5985
        %v6107 = vpop.f32.mrf.mxu0
        %v6108 = vadd.f32 0.0, %v6107
        %v6109 = vpop.f32.mrf.mxu0
        %6110 = vmatprep.mubr.f32.mxu0 0.0
        %6111 = vmatmul.mubr.f32.gmra.mxu0 %v5986
        %v6112 = vpop.f32.mrf.mxu0
        %v6113 = vadd.f32 0.0, %v6112
        %v6114 = vpop.f32.mrf.mxu0
        %6115 = vmatprep.mubr.f32.mxu0 0.0
        %6116 = vmatmul.mubr.f32.gmra.mxu0 %v5987
        %v6117 = vpop.f32.mrf.mxu0
        %v6118 = vadd.f32 0.0, %v6117
        %v6119 = vpop.f32.mrf.mxu0
        %6120 = vmatprep.mubr.f32.mxu0 0.0
        %6121 = vmatmul.mubr.f32.gmra.mxu0 %v5988
        %v6122 = vpop.f32.mrf.mxu0
        %v6123 = vadd.f32 0.0, %v6122
        %v6124 = vpop.f32.mrf.mxu0
        %6125 = vmatprep.mubr.f32.mxu0 0.0
        %6126 = vmatmul.mubr.f32.gmra.mxu0 %v5989
        %v6127 = vpop.f32.mrf.mxu0
        %v6128 = vadd.f32 0.0, %v6127
        %v6129 = vpop.f32.mrf.mxu0
        %6130 = vmatprep.mubr.f32.mxu0 0.0
        %6131 = vmatmul.mubr.f32.gmra.mxu0 %v5990
        %v6132 = vpop.f32.mrf.mxu0
        %v6133 = vadd.f32 0.0, %v6132
        %v6134 = vpop.f32.mrf.mxu0
        %6135 = vmatprep.mubr.f32.mxu0 0.0
        %6136 = vmatmul.mubr.f32.gmra.mxu0 %v5991
        %v6137 = vpop.f32.mrf.mxu0
        %v6138 = vadd.f32 0.0, %v6137
        %v6139 = vpop.f32.mrf.mxu0
        %6140 = vmatprep.mubr.f32.mxu0 0.0
        %6141 = vmatmul.mubr.f32.gmra.mxu0 %v5992
        %v6142 = vpop.f32.mrf.mxu0
        %v6143 = vadd.f32 0.0, %v6142
        %v6144 = vpop.f32.mrf.mxu0
        %6145 = vmatprep.mubr.f32.mxu0 0.0
        %6146 = vmatmul.mubr.f32.gmra.mxu0 %v5993
        %v6147 = vpop.f32.mrf.mxu0
        %v6148 = vadd.f32 0.0, %v6147
        %v6149 = vpop.f32.mrf.mxu0
        %6150 = vmatprep.mubr.f32.mxu0 0.0
        %6151 = vmatmul.mubr.f32.gmra.mxu0 %v5994
        %v6152 = vpop.f32.mrf.mxu0
        %v6153 = vadd.f32 0.0, %v6152
        %v6154 = vpop.f32.mrf.mxu0
        %6155 = vdwg.mxu0
        %v6156 = vadd.f32 %v5901, %v6078
        %v6157 = vadd.f32 %v5906, %v6083
        %v6158 = vadd.f32 %v5911, %v6088
        %v6159 = vadd.f32 %v5916, %v6093
        %v6160 = vadd.f32 %v5921, %v6098
        %v6161 = vadd.f32 %v5926, %v6103
        %v6162 = vadd.f32 %v5931, %v6108
        %v6163 = vadd.f32 %v5936, %v6113
        %v6164 = vadd.f32 %v5941, %v6118
        %v6165 = vadd.f32 %v5946, %v6123
        %v6166 = vadd.f32 %v5951, %v6128
        %v6167 = vadd.f32 %v5956, %v6133
        %v6168 = vadd.f32 %v5961, %v6138
        %v6169 = vadd.f32 %v5966, %v6143
        %v6170 = vadd.f32 %v5971, %v6148
        %v6171 = vadd.f32 %v5976, %v6153
        %v6172 = vld [vmem:[%s3804] sm:$0xff]
        %v6173 = vld [vmem:[%s3804 + $0x8] sm:$0xff]
        %v6174 = vld [vmem:[%s3804 + $0x18] sm:$0xff]
        %v6175 = vld [vmem:[%s3804 + $0x20] sm:$0xff]
        %v6176 = vld [vmem:[%s3804 + $0x30] sm:$0xff]
        %v6177 = vld [vmem:[%s3804 + $0x38] sm:$0xff]
        %v6178 = vld [vmem:[%s3804 + $0x48] sm:$0xff]
        %v6179 = vld [vmem:[%s3804 + $0x50] sm:$0xff]
        %v6180 = vld [vmem:[%s3804 + $0x60] sm:$0xff]
        %v6181 = vld [vmem:[%s3804 + $0x68] sm:$0xff]
        %v6182 = vld [vmem:[%s3804 + $0x78] sm:$0xff]
        %v6183 = vld [vmem:[%s3804 + $0x80] sm:$0xff]
        %v6184 = vld [vmem:[%s3804 + $0x90] sm:$0xff]
        %v6185 = vld [vmem:[%s3804 + $0x98] sm:$0xff]
        %v6186 = vld [vmem:[%s3804 + $0xa8] sm:$0xff]
        %v6187 = vld [vmem:[%s3804 + $0xb0] sm:$0xff]
        %v6188 = vld [vmem:[%s4387] sm:$0xff]
        %v6189 = vld [vmem:[%s4387 + $0x8] sm:$0xff]
        %v6190 = vld [vmem:[%s4387 + $0x10] sm:$0xff]
        %v6191 = vld [vmem:[%s4387 + $0x18] sm:$0xff]
        %v6192 = vld [vmem:[%s4387 + $0x20] sm:$0xff]
        %v6193 = vld [vmem:[%s4387 + $0x28] sm:$0xff]
        %v6194 = vld [vmem:[%s4387 + $0x30] sm:$0xff]
        %v6195 = vld [vmem:[%s4387 + $0x38] sm:$0xff]
        %v6196 = vld [vmem:[%s4387 + $0x40] sm:$0xff]
        %v6197 = vld [vmem:[%s4387 + $0x48] sm:$0xff]
        %v6198 = vld [vmem:[%s4387 + $0x50] sm:$0xff]
        %v6199 = vld [vmem:[%s4387 + $0x58] sm:$0xff]
        %v6200 = vld [vmem:[%s4387 + $0x60] sm:$0xff]
        %v6201 = vld [vmem:[%s4387 + $0x68] sm:$0xff]
        %v6202 = vld [vmem:[%s4387 + $0x70] sm:$0xff]
        %v6203 = vld [vmem:[%s4387 + $0x78] sm:$0xff]
        %6204 = vmatprep.subr.mxu0 0.0
        %6205 = vmatpush1.msra.mxu0 %v6203
        %6206 = vmatprep.subr.mxu0 0.0
        %6207 = vmatpush1.msra.mxu0 %v6202
        %6208 = vmatprep.subr.mxu0 0.0
        %6209 = vmatpush1.msra.mxu0 %v6201
        %6210 = vmatprep.subr.mxu0 0.0
        %6211 = vmatpush1.msra.mxu0 %v6200
        %6212 = vmatprep.subr.mxu0 0.0
        %6213 = vmatpush1.msra.mxu0 %v6199
        %6214 = vmatprep.subr.mxu0 0.0
        %6215 = vmatpush1.msra.mxu0 %v6198
        %6216 = vmatprep.subr.mxu0 0.0
        %6217 = vmatpush1.msra.mxu0 %v6197
        %6218 = vmatprep.subr.mxu0 0.0
        %6219 = vmatpush1.msra.mxu0 %v6196
        %6220 = vmatprep.subr.mxu0 0.0
        %6221 = vmatpush1.msra.mxu0 %v6195
        %6222 = vmatprep.subr.mxu0 0.0
        %6223 = vmatpush1.msra.mxu0 %v6194
        %6224 = vmatprep.subr.mxu0 0.0
        %6225 = vmatpush1.msra.mxu0 %v6193
        %6226 = vmatprep.subr.mxu0 0.0
        %6227 = vmatpush1.msra.mxu0 %v6192
        %6228 = vmatprep.subr.mxu0 0.0
        %6229 = vmatpush1.msra.mxu0 %v6191
        %6230 = vmatprep.subr.mxu0 0.0
        %6231 = vmatpush1.msra.mxu0 %v6190
        %6232 = vmatprep.subr.mxu0 0.0
        %6233 = vmatpush1.msra.mxu0 %v6189
        %6234 = vmatprep.subr.mxu0 0.0
        %6235 = vmatpush1.msra.mxu0 %v6188
        %6236 = vmatprep.subr.mxu0 0.0
        %6237 = vmatpush2.msra.mxu0 0.0
        %6238 = vmatprep.subr.mxu0 0.0
        %6239 = vmatpush2.msra.mxu0 0.0
        %6240 = vmatprep.subr.mxu0 0.0
        %6241 = vmatpush2.msra.mxu0 0.0
        %6242 = vmatprep.subr.mxu0 0.0
        %6243 = vmatpush2.msra.mxu0 0.0
        %6244 = vmatprep.subr.mxu0 0.0
        %6245 = vmatpush2.msra.mxu0 0.0
        %6246 = vmatprep.subr.mxu0 0.0
        %6247 = vmatpush2.msra.mxu0 0.0
        %6248 = vmatprep.subr.mxu0 0.0
        %6249 = vmatpush2.msra.mxu0 0.0
        %6250 = vmatprep.subr.mxu0 0.0
        %6251 = vmatpush2.msra.mxu0 0.0
        %6252 = vmatprep.subr.mxu0 0.0
        %6253 = vmatpush2.msra.mxu0 0.0
        %6254 = vmatprep.subr.mxu0 0.0
        %6255 = vmatpush2.msra.mxu0 0.0
        %6256 = vmatprep.subr.mxu0 0.0
        %6257 = vmatpush2.msra.mxu0 0.0
        %6258 = vmatprep.subr.mxu0 0.0
        %6259 = vmatpush2.msra.mxu0 0.0
        %6260 = vmatprep.subr.mxu0 0.0
        %6261 = vmatpush2.msra.mxu0 0.0
        %6262 = vmatprep.subr.mxu0 0.0
        %6263 = vmatpush2.msra.mxu0 0.0
        %6264 = vmatprep.subr.mxu0 0.0
        %6265 = vmatpush2.msra.mxu0 0.0
        %6266 = vmatprep.subr.mxu0 0.0
        %6267 = vmatpush2.msra.mxu0 0.0
        %6268 = vmatprep.mubr.f32.mxu0 0.0
        %6269 = vmatmul.mubr.f32.gmra.mxu0 %v6172
        %v6270 = vpop.f32.mrf.mxu0
        %v6271 = vadd.f32 0.0, %v6270
        %v6272 = vpop.f32.mrf.mxu0
        %6273 = vmatprep.mubr.f32.mxu0 0.0
        %6274 = vmatmul.mubr.f32.gmra.mxu0 %v6173
        %v6275 = vpop.f32.mrf.mxu0
        %v6276 = vadd.f32 0.0, %v6275
        %v6277 = vpop.f32.mrf.mxu0
        %6278 = vmatprep.mubr.f32.mxu0 0.0
        %6279 = vmatmul.mubr.f32.gmra.mxu0 %v6174
        %v6280 = vpop.f32.mrf.mxu0
        %v6281 = vadd.f32 0.0, %v6280
        %v6282 = vpop.f32.mrf.mxu0
        %6283 = vmatprep.mubr.f32.mxu0 0.0
        %6284 = vmatmul.mubr.f32.gmra.mxu0 %v6175
        %v6285 = vpop.f32.mrf.mxu0
        %v6286 = vadd.f32 0.0, %v6285
        %v6287 = vpop.f32.mrf.mxu0
        %6288 = vmatprep.mubr.f32.mxu0 0.0
        %6289 = vmatmul.mubr.f32.gmra.mxu0 %v6176
        %v6290 = vpop.f32.mrf.mxu0
        %v6291 = vadd.f32 0.0, %v6290
        %v6292 = vpop.f32.mrf.mxu0
        %6293 = vmatprep.mubr.f32.mxu0 0.0
        %6294 = vmatmul.mubr.f32.gmra.mxu0 %v6177
        %v6295 = vpop.f32.mrf.mxu0
        %v6296 = vadd.f32 0.0, %v6295
        %v6297 = vpop.f32.mrf.mxu0
        %6298 = vmatprep.mubr.f32.mxu0 0.0
        %6299 = vmatmul.mubr.f32.gmra.mxu0 %v6178
        %v6300 = vpop.f32.mrf.mxu0
        %v6301 = vadd.f32 0.0, %v6300
        %v6302 = vpop.f32.mrf.mxu0
        %6303 = vmatprep.mubr.f32.mxu0 0.0
        %6304 = vmatmul.mubr.f32.gmra.mxu0 %v6179
        %v6305 = vpop.f32.mrf.mxu0
        %v6306 = vadd.f32 0.0, %v6305
        %v6307 = vpop.f32.mrf.mxu0
        %6308 = vmatprep.mubr.f32.mxu0 0.0
        %6309 = vmatmul.mubr.f32.gmra.mxu0 %v6180
        %v6310 = vpop.f32.mrf.mxu0
        %v6311 = vadd.f32 0.0, %v6310
        %v6312 = vpop.f32.mrf.mxu0
        %6313 = vmatprep.mubr.f32.mxu0 0.0
        %6314 = vmatmul.mubr.f32.gmra.mxu0 %v6181
        %v6315 = vpop.f32.mrf.mxu0
        %v6316 = vadd.f32 0.0, %v6315
        %v6317 = vpop.f32.mrf.mxu0
        %6318 = vmatprep.mubr.f32.mxu0 0.0
        %6319 = vmatmul.mubr.f32.gmra.mxu0 %v6182
        %v6320 = vpop.f32.mrf.mxu0
        %v6321 = vadd.f32 0.0, %v6320
        %v6322 = vpop.f32.mrf.mxu0
        %6323 = vmatprep.mubr.f32.mxu0 0.0
        %6324 = vmatmul.mubr.f32.gmra.mxu0 %v6183
        %v6325 = vpop.f32.mrf.mxu0
        %v6326 = vadd.f32 0.0, %v6325
        %v6327 = vpop.f32.mrf.mxu0
        %6328 = vmatprep.mubr.f32.mxu0 0.0
        %6329 = vmatmul.mubr.f32.gmra.mxu0 %v6184
        %v6330 = vpop.f32.mrf.mxu0
        %v6331 = vadd.f32 0.0, %v6330
        %v6332 = vpop.f32.mrf.mxu0
        %6333 = vmatprep.mubr.f32.mxu0 0.0
        %6334 = vmatmul.mubr.f32.gmra.mxu0 %v6185
        %v6335 = vpop.f32.mrf.mxu0
        %v6336 = vadd.f32 0.0, %v6335
        %v6337 = vpop.f32.mrf.mxu0
        %6338 = vmatprep.mubr.f32.mxu0 0.0
        %6339 = vmatmul.mubr.f32.gmra.mxu0 %v6186
        %v6340 = vpop.f32.mrf.mxu0
        %v6341 = vadd.f32 0.0, %v6340
        %v6342 = vpop.f32.mrf.mxu0
        %6343 = vmatprep.mubr.f32.mxu0 0.0
        %6344 = vmatmul.mubr.f32.gmra.mxu0 %v6187
        %v6345 = vpop.f32.mrf.mxu0
        %v6346 = vadd.f32 0.0, %v6345
        %v6347 = vpop.f32.mrf.mxu0
        %6348 = vdwg.mxu0
        %v6349 = vadd.f32 %v6156, %v6271
        %v6350 = vadd.f32 %v6157, %v6276
        %v6351 = vadd.f32 %v6158, %v6281
        %v6352 = vadd.f32 %v6159, %v6286
        %v6353 = vadd.f32 %v6160, %v6291
        %v6354 = vadd.f32 %v6161, %v6296
        %v6355 = vadd.f32 %v6162, %v6301
        %v6356 = vadd.f32 %v6163, %v6306
        %v6357 = vadd.f32 %v6164, %v6311
        %v6358 = vadd.f32 %v6165, %v6316
        %v6359 = vadd.f32 %v6166, %v6321
        %v6360 = vadd.f32 %v6167, %v6326
        %v6361 = vadd.f32 %v6168, %v6331
        %v6362 = vadd.f32 %v6169, %v6336
        %v6363 = vadd.f32 %v6170, %v6341
        %v6364 = vadd.f32 %v6171, %v6346
        %v6365 = vld [vmem:[%s3804 + $0x1] sm:$0xff]
        %v6366 = vld [vmem:[%s3804 + $0x9] sm:$0xff]
        %v6367 = vld [vmem:[%s3804 + $0x19] sm:$0xff]
        %v6368 = vld [vmem:[%s3804 + $0x21] sm:$0xff]
        %v6369 = vld [vmem:[%s3804 + $0x31] sm:$0xff]
        %v6370 = vld [vmem:[%s3804 + $0x39] sm:$0xff]
        %v6371 = vld [vmem:[%s3804 + $0x49] sm:$0xff]
        %v6372 = vld [vmem:[%s3804 + $0x51] sm:$0xff]
        %v6373 = vld [vmem:[%s3804 + $0x61] sm:$0xff]
        %v6374 = vld [vmem:[%s3804 + $0x69] sm:$0xff]
        %v6375 = vld [vmem:[%s3804 + $0x79] sm:$0xff]
        %v6376 = vld [vmem:[%s3804 + $0x81] sm:$0xff]
        %v6377 = vld [vmem:[%s3804 + $0x91] sm:$0xff]
        %v6378 = vld [vmem:[%s3804 + $0x99] sm:$0xff]
        %v6379 = vld [vmem:[%s3804 + $0xa9] sm:$0xff]
        %v6380 = vld [vmem:[%s3804 + $0xb1] sm:$0xff]
        %v6381 = vld [vmem:[%s4581] sm:$0xff]
        %v6382 = vld [vmem:[%s4581 + $0x8] sm:$0xff]
        %v6383 = vld [vmem:[%s4581 + $0x10] sm:$0xff]
        %v6384 = vld [vmem:[%s4581 + $0x18] sm:$0xff]
        %v6385 = vld [vmem:[%s4581 + $0x20] sm:$0xff]
        %v6386 = vld [vmem:[%s4581 + $0x28] sm:$0xff]
        %v6387 = vld [vmem:[%s4581 + $0x30] sm:$0xff]
        %v6388 = vld [vmem:[%s4581 + $0x38] sm:$0xff]
        %v6389 = vld [vmem:[%s4581 + $0x40] sm:$0xff]
        %v6390 = vld [vmem:[%s4581 + $0x48] sm:$0xff]
        %v6391 = vld [vmem:[%s4581 + $0x50] sm:$0xff]
        %v6392 = vld [vmem:[%s4581 + $0x58] sm:$0xff]
        %v6393 = vld [vmem:[%s4581 + $0x60] sm:$0xff]
        %v6394 = vld [vmem:[%s4581 + $0x68] sm:$0xff]
        %v6395 = vld [vmem:[%s4581 + $0x70] sm:$0xff]
        %v6396 = vld [vmem:[%s4581 + $0x78] sm:$0xff]
        %6397 = vmatprep.subr.mxu0 0.0
        %6398 = vmatpush1.msra.mxu0 %v6396
        %6399 = vmatprep.subr.mxu0 0.0
        %6400 = vmatpush1.msra.mxu0 %v6395
        %6401 = vmatprep.subr.mxu0 0.0
        %6402 = vmatpush1.msra.mxu0 %v6394
        %6403 = vmatprep.subr.mxu0 0.0
        %6404 = vmatpush1.msra.mxu0 %v6393
        %6405 = vmatprep.subr.mxu0 0.0
        %6406 = vmatpush1.msra.mxu0 %v6392
        %6407 = vmatprep.subr.mxu0 0.0
        %6408 = vmatpush1.msra.mxu0 %v6391
        %6409 = vmatprep.subr.mxu0 0.0
        %6410 = vmatpush1.msra.mxu0 %v6390
        %6411 = vmatprep.subr.mxu0 0.0
        %6412 = vmatpush1.msra.mxu0 %v6389
        %6413 = vmatprep.subr.mxu0 0.0
        %6414 = vmatpush1.msra.mxu0 %v6388
        %6415 = vmatprep.subr.mxu0 0.0
        %6416 = vmatpush1.msra.mxu0 %v6387
        %6417 = vmatprep.subr.mxu0 0.0
        %6418 = vmatpush1.msra.mxu0 %v6386
        %6419 = vmatprep.subr.mxu0 0.0
        %6420 = vmatpush1.msra.mxu0 %v6385
        %6421 = vmatprep.subr.mxu0 0.0
        %6422 = vmatpush1.msra.mxu0 %v6384
        %6423 = vmatprep.subr.mxu0 0.0
        %6424 = vmatpush1.msra.mxu0 %v6383
        %6425 = vmatprep.subr.mxu0 0.0
        %6426 = vmatpush1.msra.mxu0 %v6382
        %6427 = vmatprep.subr.mxu0 0.0
        %6428 = vmatpush1.msra.mxu0 %v6381
        %6429 = vmatprep.subr.mxu0 0.0
        %6430 = vmatpush2.msra.mxu0 0.0
        %6431 = vmatprep.subr.mxu0 0.0
        %6432 = vmatpush2.msra.mxu0 0.0
        %6433 = vmatprep.subr.mxu0 0.0
        %6434 = vmatpush2.msra.mxu0 0.0
        %6435 = vmatprep.subr.mxu0 0.0
        %6436 = vmatpush2.msra.mxu0 0.0
        %6437 = vmatprep.subr.mxu0 0.0
        %6438 = vmatpush2.msra.mxu0 0.0
        %6439 = vmatprep.subr.mxu0 0.0
        %6440 = vmatpush2.msra.mxu0 0.0
        %6441 = vmatprep.subr.mxu0 0.0
        %6442 = vmatpush2.msra.mxu0 0.0
        %6443 = vmatprep.subr.mxu0 0.0
        %6444 = vmatpush2.msra.mxu0 0.0
        %6445 = vmatprep.subr.mxu0 0.0
        %6446 = vmatpush2.msra.mxu0 0.0
        %6447 = vmatprep.subr.mxu0 0.0
        %6448 = vmatpush2.msra.mxu0 0.0
        %6449 = vmatprep.subr.mxu0 0.0
        %6450 = vmatpush2.msra.mxu0 0.0
        %6451 = vmatprep.subr.mxu0 0.0
        %6452 = vmatpush2.msra.mxu0 0.0
        %6453 = vmatprep.subr.mxu0 0.0
        %6454 = vmatpush2.msra.mxu0 0.0
        %6455 = vmatprep.subr.mxu0 0.0
        %6456 = vmatpush2.msra.mxu0 0.0
        %6457 = vmatprep.subr.mxu0 0.0
        %6458 = vmatpush2.msra.mxu0 0.0
        %6459 = vmatprep.subr.mxu0 0.0
        %6460 = vmatpush2.msra.mxu0 0.0
        %6461 = vmatprep.mubr.f32.mxu0 0.0
        %6462 = vmatmul.mubr.f32.gmra.mxu0 %v6365
        %v6463 = vpop.f32.mrf.mxu0
        %v6464 = vadd.f32 0.0, %v6463
        %v6465 = vpop.f32.mrf.mxu0
        %6466 = vmatprep.mubr.f32.mxu0 0.0
        %6467 = vmatmul.mubr.f32.gmra.mxu0 %v6366
        %v6468 = vpop.f32.mrf.mxu0
        %v6469 = vadd.f32 0.0, %v6468
        %v6470 = vpop.f32.mrf.mxu0
        %6471 = vmatprep.mubr.f32.mxu0 0.0
        %6472 = vmatmul.mubr.f32.gmra.mxu0 %v6367
        %v6473 = vpop.f32.mrf.mxu0
        %v6474 = vadd.f32 0.0, %v6473
        %v6475 = vpop.f32.mrf.mxu0
        %6476 = vmatprep.mubr.f32.mxu0 0.0
        %6477 = vmatmul.mubr.f32.gmra.mxu0 %v6368
        %v6478 = vpop.f32.mrf.mxu0
        %v6479 = vadd.f32 0.0, %v6478
        %v6480 = vpop.f32.mrf.mxu0
        %6481 = vmatprep.mubr.f32.mxu0 0.0
        %6482 = vmatmul.mubr.f32.gmra.mxu0 %v6369
        %v6483 = vpop.f32.mrf.mxu0
        %v6484 = vadd.f32 0.0, %v6483
        %v6485 = vpop.f32.mrf.mxu0
        %6486 = vmatprep.mubr.f32.mxu0 0.0
        %6487 = vmatmul.mubr.f32.gmra.mxu0 %v6370
        %v6488 = vpop.f32.mrf.mxu0
        %v6489 = vadd.f32 0.0, %v6488
        %v6490 = vpop.f32.mrf.mxu0
        %6491 = vmatprep.mubr.f32.mxu0 0.0
        %6492 = vmatmul.mubr.f32.gmra.mxu0 %v6371
        %v6493 = vpop.f32.mrf.mxu0
        %v6494 = vadd.f32 0.0, %v6493
        %v6495 = vpop.f32.mrf.mxu0
        %6496 = vmatprep.mubr.f32.mxu0 0.0
        %6497 = vmatmul.mubr.f32.gmra.mxu0 %v6372
        %v6498 = vpop.f32.mrf.mxu0
        %v6499 = vadd.f32 0.0, %v6498
        %v6500 = vpop.f32.mrf.mxu0
        %6501 = vmatprep.mubr.f32.mxu0 0.0
        %6502 = vmatmul.mubr.f32.gmra.mxu0 %v6373
        %v6503 = vpop.f32.mrf.mxu0
        %v6504 = vadd.f32 0.0, %v6503
        %v6505 = vpop.f32.mrf.mxu0
        %6506 = vmatprep.mubr.f32.mxu0 0.0
        %6507 = vmatmul.mubr.f32.gmra.mxu0 %v6374
        %v6508 = vpop.f32.mrf.mxu0
        %v6509 = vadd.f32 0.0, %v6508
        %v6510 = vpop.f32.mrf.mxu0
        %6511 = vmatprep.mubr.f32.mxu0 0.0
        %6512 = vmatmul.mubr.f32.gmra.mxu0 %v6375
        %v6513 = vpop.f32.mrf.mxu0
        %v6514 = vadd.f32 0.0, %v6513
        %v6515 = vpop.f32.mrf.mxu0
        %6516 = vmatprep.mubr.f32.mxu0 0.0
        %6517 = vmatmul.mubr.f32.gmra.mxu0 %v6376
        %v6518 = vpop.f32.mrf.mxu0
        %v6519 = vadd.f32 0.0, %v6518
        %v6520 = vpop.f32.mrf.mxu0
        %6521 = vmatprep.mubr.f32.mxu0 0.0
        %6522 = vmatmul.mubr.f32.gmra.mxu0 %v6377
        %v6523 = vpop.f32.mrf.mxu0
        %v6524 = vadd.f32 0.0, %v6523
        %v6525 = vpop.f32.mrf.mxu0
        %6526 = vmatprep.mubr.f32.mxu0 0.0
        %6527 = vmatmul.mubr.f32.gmra.mxu0 %v6378
        %v6528 = vpop.f32.mrf.mxu0
        %v6529 = vadd.f32 0.0, %v6528
        %v6530 = vpop.f32.mrf.mxu0
        %6531 = vmatprep.mubr.f32.mxu0 0.0
        %6532 = vmatmul.mubr.f32.gmra.mxu0 %v6379
        %v6533 = vpop.f32.mrf.mxu0
        %v6534 = vadd.f32 0.0, %v6533
        %v6535 = vpop.f32.mrf.mxu0
        %6536 = vmatprep.mubr.f32.mxu0 0.0
        %6537 = vmatmul.mubr.f32.gmra.mxu0 %v6380
        %v6538 = vpop.f32.mrf.mxu0
        %v6539 = vadd.f32 0.0, %v6538
        %v6540 = vpop.f32.mrf.mxu0
        %6541 = vdwg.mxu0
        %v6542 = vadd.f32 %v6349, %v6464
        %v6543 = vadd.f32 %v6350, %v6469
        %v6544 = vadd.f32 %v6351, %v6474
        %v6545 = vadd.f32 %v6352, %v6479
        %v6546 = vadd.f32 %v6353, %v6484
        %v6547 = vadd.f32 %v6354, %v6489
        %v6548 = vadd.f32 %v6355, %v6494
        %v6549 = vadd.f32 %v6356, %v6499
        %v6550 = vadd.f32 %v6357, %v6504
        %v6551 = vadd.f32 %v6358, %v6509
        %v6552 = vadd.f32 %v6359, %v6514
        %v6553 = vadd.f32 %v6360, %v6519
        %v6554 = vadd.f32 %v6361, %v6524
        %v6555 = vadd.f32 %v6362, %v6529
        %v6556 = vadd.f32 %v6363, %v6534
        %v6557 = vadd.f32 %v6364, %v6539
        %v6558 = vld [vmem:[%s3804 + $0x2] sm:$0xff]
        %v6559 = vld [vmem:[%s3804 + $0xa] sm:$0xff]
        %v6560 = vld [vmem:[%s3804 + $0x1a] sm:$0xff]
        %v6561 = vld [vmem:[%s3804 + $0x22] sm:$0xff]
        %v6562 = vld [vmem:[%s3804 + $0x32] sm:$0xff]
        %v6563 = vld [vmem:[%s3804 + $0x3a] sm:$0xff]
        %v6564 = vld [vmem:[%s3804 + $0x4a] sm:$0xff]
        %v6565 = vld [vmem:[%s3804 + $0x52] sm:$0xff]
        %v6566 = vld [vmem:[%s3804 + $0x62] sm:$0xff]
        %v6567 = vld [vmem:[%s3804 + $0x6a] sm:$0xff]
        %v6568 = vld [vmem:[%s3804 + $0x7a] sm:$0xff]
        %v6569 = vld [vmem:[%s3804 + $0x82] sm:$0xff]
        %v6570 = vld [vmem:[%s3804 + $0x92] sm:$0xff]
        %v6571 = vld [vmem:[%s3804 + $0x9a] sm:$0xff]
        %v6572 = vld [vmem:[%s3804 + $0xaa] sm:$0xff]
        %v6573 = vld [vmem:[%s3804 + $0xb2] sm:$0xff]
        %v6574 = vld [vmem:[%s4775] sm:$0xff]
        %v6575 = vld [vmem:[%s4775 + $0x8] sm:$0xff]
        %v6576 = vld [vmem:[%s4775 + $0x10] sm:$0xff]
        %v6577 = vld [vmem:[%s4775 + $0x18] sm:$0xff]
        %v6578 = vld [vmem:[%s4775 + $0x20] sm:$0xff]
        %v6579 = vld [vmem:[%s4775 + $0x28] sm:$0xff]
        %v6580 = vld [vmem:[%s4775 + $0x30] sm:$0xff]
        %v6581 = vld [vmem:[%s4775 + $0x38] sm:$0xff]
        %v6582 = vld [vmem:[%s4775 + $0x40] sm:$0xff]
        %v6583 = vld [vmem:[%s4775 + $0x48] sm:$0xff]
        %v6584 = vld [vmem:[%s4775 + $0x50] sm:$0xff]
        %v6585 = vld [vmem:[%s4775 + $0x58] sm:$0xff]
        %v6586 = vld [vmem:[%s4775 + $0x60] sm:$0xff]
        %v6587 = vld [vmem:[%s4775 + $0x68] sm:$0xff]
        %v6588 = vld [vmem:[%s4775 + $0x70] sm:$0xff]
        %v6589 = vld [vmem:[%s4775 + $0x78] sm:$0xff]
        %6590 = vmatprep.subr.mxu0 0.0
        %6591 = vmatpush1.msra.mxu0 %v6589
        %6592 = vmatprep.subr.mxu0 0.0
        %6593 = vmatpush1.msra.mxu0 %v6588
        %6594 = vmatprep.subr.mxu0 0.0
        %6595 = vmatpush1.msra.mxu0 %v6587
        %6596 = vmatprep.subr.mxu0 0.0
        %6597 = vmatpush1.msra.mxu0 %v6586
        %6598 = vmatprep.subr.mxu0 0.0
        %6599 = vmatpush1.msra.mxu0 %v6585
        %6600 = vmatprep.subr.mxu0 0.0
        %6601 = vmatpush1.msra.mxu0 %v6584
        %6602 = vmatprep.subr.mxu0 0.0
        %6603 = vmatpush1.msra.mxu0 %v6583
        %6604 = vmatprep.subr.mxu0 0.0
        %6605 = vmatpush1.msra.mxu0 %v6582
        %6606 = vmatprep.subr.mxu0 0.0
        %6607 = vmatpush1.msra.mxu0 %v6581
        %6608 = vmatprep.subr.mxu0 0.0
        %6609 = vmatpush1.msra.mxu0 %v6580
        %6610 = vmatprep.subr.mxu0 0.0
        %6611 = vmatpush1.msra.mxu0 %v6579
        %6612 = vmatprep.subr.mxu0 0.0
        %6613 = vmatpush1.msra.mxu0 %v6578
        %6614 = vmatprep.subr.mxu0 0.0
        %6615 = vmatpush1.msra.mxu0 %v6577
        %6616 = vmatprep.subr.mxu0 0.0
        %6617 = vmatpush1.msra.mxu0 %v6576
        %6618 = vmatprep.subr.mxu0 0.0
        %6619 = vmatpush1.msra.mxu0 %v6575
        %6620 = vmatprep.subr.mxu0 0.0
        %6621 = vmatpush1.msra.mxu0 %v6574
        %6622 = vmatprep.subr.mxu0 0.0
        %6623 = vmatpush2.msra.mxu0 0.0
        %6624 = vmatprep.subr.mxu0 0.0
        %6625 = vmatpush2.msra.mxu0 0.0
        %6626 = vmatprep.subr.mxu0 0.0
        %6627 = vmatpush2.msra.mxu0 0.0
        %6628 = vmatprep.subr.mxu0 0.0
        %6629 = vmatpush2.msra.mxu0 0.0
        %6630 = vmatprep.subr.mxu0 0.0
        %6631 = vmatpush2.msra.mxu0 0.0
        %6632 = vmatprep.subr.mxu0 0.0
        %6633 = vmatpush2.msra.mxu0 0.0
        %6634 = vmatprep.subr.mxu0 0.0
        %6635 = vmatpush2.msra.mxu0 0.0
        %6636 = vmatprep.subr.mxu0 0.0
        %6637 = vmatpush2.msra.mxu0 0.0
        %6638 = vmatprep.subr.mxu0 0.0
        %6639 = vmatpush2.msra.mxu0 0.0
        %6640 = vmatprep.subr.mxu0 0.0
        %6641 = vmatpush2.msra.mxu0 0.0
        %6642 = vmatprep.subr.mxu0 0.0
        %6643 = vmatpush2.msra.mxu0 0.0
        %6644 = vmatprep.subr.mxu0 0.0
        %6645 = vmatpush2.msra.mxu0 0.0
        %6646 = vmatprep.subr.mxu0 0.0
        %6647 = vmatpush2.msra.mxu0 0.0
        %6648 = vmatprep.subr.mxu0 0.0
        %6649 = vmatpush2.msra.mxu0 0.0
        %6650 = vmatprep.subr.mxu0 0.0
        %6651 = vmatpush2.msra.mxu0 0.0
        %6652 = vmatprep.subr.mxu0 0.0
        %6653 = vmatpush2.msra.mxu0 0.0
        %6654 = vmatprep.mubr.f32.mxu0 0.0
        %6655 = vmatmul.mubr.f32.gmra.mxu0 %v6558
        %v6656 = vpop.f32.mrf.mxu0
        %v6657 = vadd.f32 0.0, %v6656
        %v6658 = vpop.f32.mrf.mxu0
        %6659 = vmatprep.mubr.f32.mxu0 0.0
        %6660 = vmatmul.mubr.f32.gmra.mxu0 %v6559
        %v6661 = vpop.f32.mrf.mxu0
        %v6662 = vadd.f32 0.0, %v6661
        %v6663 = vpop.f32.mrf.mxu0
        %6664 = vmatprep.mubr.f32.mxu0 0.0
        %6665 = vmatmul.mubr.f32.gmra.mxu0 %v6560
        %v6666 = vpop.f32.mrf.mxu0
        %v6667 = vadd.f32 0.0, %v6666
        %v6668 = vpop.f32.mrf.mxu0
        %6669 = vmatprep.mubr.f32.mxu0 0.0
        %6670 = vmatmul.mubr.f32.gmra.mxu0 %v6561
        %v6671 = vpop.f32.mrf.mxu0
        %v6672 = vadd.f32 0.0, %v6671
        %v6673 = vpop.f32.mrf.mxu0
        %6674 = vmatprep.mubr.f32.mxu0 0.0
        %6675 = vmatmul.mubr.f32.gmra.mxu0 %v6562
        %v6676 = vpop.f32.mrf.mxu0
        %v6677 = vadd.f32 0.0, %v6676
        %v6678 = vpop.f32.mrf.mxu0
        %6679 = vmatprep.mubr.f32.mxu0 0.0
        %6680 = vmatmul.mubr.f32.gmra.mxu0 %v6563
        %v6681 = vpop.f32.mrf.mxu0
        %v6682 = vadd.f32 0.0, %v6681
        %v6683 = vpop.f32.mrf.mxu0
        %6684 = vmatprep.mubr.f32.mxu0 0.0
        %6685 = vmatmul.mubr.f32.gmra.mxu0 %v6564
        %v6686 = vpop.f32.mrf.mxu0
        %v6687 = vadd.f32 0.0, %v6686
        %v6688 = vpop.f32.mrf.mxu0
        %6689 = vmatprep.mubr.f32.mxu0 0.0
        %6690 = vmatmul.mubr.f32.gmra.mxu0 %v6565
        %v6691 = vpop.f32.mrf.mxu0
        %v6692 = vadd.f32 0.0, %v6691
        %v6693 = vpop.f32.mrf.mxu0
        %6694 = vmatprep.mubr.f32.mxu0 0.0
        %6695 = vmatmul.mubr.f32.gmra.mxu0 %v6566
        %v6696 = vpop.f32.mrf.mxu0
        %v6697 = vadd.f32 0.0, %v6696
        %v6698 = vpop.f32.mrf.mxu0
        %6699 = vmatprep.mubr.f32.mxu0 0.0
        %6700 = vmatmul.mubr.f32.gmra.mxu0 %v6567
        %v6701 = vpop.f32.mrf.mxu0
        %v6702 = vadd.f32 0.0, %v6701
        %v6703 = vpop.f32.mrf.mxu0
        %6704 = vmatprep.mubr.f32.mxu0 0.0
        %6705 = vmatmul.mubr.f32.gmra.mxu0 %v6568
        %v6706 = vpop.f32.mrf.mxu0
        %v6707 = vadd.f32 0.0, %v6706
        %v6708 = vpop.f32.mrf.mxu0
        %6709 = vmatprep.mubr.f32.mxu0 0.0
        %6710 = vmatmul.mubr.f32.gmra.mxu0 %v6569
        %v6711 = vpop.f32.mrf.mxu0
        %v6712 = vadd.f32 0.0, %v6711
        %v6713 = vpop.f32.mrf.mxu0
        %6714 = vmatprep.mubr.f32.mxu0 0.0
        %6715 = vmatmul.mubr.f32.gmra.mxu0 %v6570
        %v6716 = vpop.f32.mrf.mxu0
        %v6717 = vadd.f32 0.0, %v6716
        %v6718 = vpop.f32.mrf.mxu0
        %6719 = vmatprep.mubr.f32.mxu0 0.0
        %6720 = vmatmul.mubr.f32.gmra.mxu0 %v6571
        %v6721 = vpop.f32.mrf.mxu0
        %v6722 = vadd.f32 0.0, %v6721
        %v6723 = vpop.f32.mrf.mxu0
        %6724 = vmatprep.mubr.f32.mxu0 0.0
        %6725 = vmatmul.mubr.f32.gmra.mxu0 %v6572
        %v6726 = vpop.f32.mrf.mxu0
        %v6727 = vadd.f32 0.0, %v6726
        %v6728 = vpop.f32.mrf.mxu0
        %6729 = vmatprep.mubr.f32.mxu0 0.0
        %6730 = vmatmul.mubr.f32.gmra.mxu0 %v6573
        %v6731 = vpop.f32.mrf.mxu0
        %v6732 = vadd.f32 0.0, %v6731
        %v6733 = vpop.f32.mrf.mxu0
        %6734 = vdwg.mxu0
        %v6735 = vadd.f32 %v6542, %v6657
        %v6736 = vadd.f32 %v6543, %v6662
        %v6737 = vadd.f32 %v6544, %v6667
        %v6738 = vadd.f32 %v6545, %v6672
        %v6739 = vadd.f32 %v6546, %v6677
        %v6740 = vadd.f32 %v6547, %v6682
        %v6741 = vadd.f32 %v6548, %v6687
        %v6742 = vadd.f32 %v6549, %v6692
        %v6743 = vadd.f32 %v6550, %v6697
        %v6744 = vadd.f32 %v6551, %v6702
        %v6745 = vadd.f32 %v6552, %v6707
        %v6746 = vadd.f32 %v6553, %v6712
        %v6747 = vadd.f32 %v6554, %v6717
        %v6748 = vadd.f32 %v6555, %v6722
        %v6749 = vadd.f32 %v6556, %v6727
        %v6750 = vadd.f32 %v6557, %v6732
        %s6751 = scalar_lea.vmem [#allocation2], %s3191
        %v6752 = vld [vmem:[%s6751] sm:$0xff]
        %v6753 = vld [vmem:[%s6751 + $0x8] sm:$0xff]
        %v6754 = vld [vmem:[%s6751 + $0x18] sm:$0xff]
        %v6755 = vld [vmem:[%s6751 + $0x20] sm:$0xff]
        %v6756 = vld [vmem:[%s6751 + $0x30] sm:$0xff]
        %v6757 = vld [vmem:[%s6751 + $0x38] sm:$0xff]
        %v6758 = vld [vmem:[%s6751 + $0x48] sm:$0xff]
        %v6759 = vld [vmem:[%s6751 + $0x50] sm:$0xff]
        %v6760 = vld [vmem:[%s6751 + $0x60] sm:$0xff]
        %v6761 = vld [vmem:[%s6751 + $0x68] sm:$0xff]
        %v6762 = vld [vmem:[%s6751 + $0x78] sm:$0xff]
        %v6763 = vld [vmem:[%s6751 + $0x80] sm:$0xff]
        %v6764 = vld [vmem:[%s6751 + $0x90] sm:$0xff]
        %v6765 = vld [vmem:[%s6751 + $0x98] sm:$0xff]
        %v6766 = vld [vmem:[%s6751 + $0xa8] sm:$0xff]
        %v6767 = vld [vmem:[%s6751 + $0xb0] sm:$0xff]
        %v6768 = vld [vmem:[%s4970] sm:$0xff]
        %v6769 = vld [vmem:[%s4970 + $0x8] sm:$0xff]
        %v6770 = vld [vmem:[%s4970 + $0x10] sm:$0xff]
        %v6771 = vld [vmem:[%s4970 + $0x18] sm:$0xff]
        %v6772 = vld [vmem:[%s4970 + $0x20] sm:$0xff]
        %v6773 = vld [vmem:[%s4970 + $0x28] sm:$0xff]
        %v6774 = vld [vmem:[%s4970 + $0x30] sm:$0xff]
        %v6775 = vld [vmem:[%s4970 + $0x38] sm:$0xff]
        %v6776 = vld [vmem:[%s4970 + $0x40] sm:$0xff]
        %v6777 = vld [vmem:[%s4970 + $0x48] sm:$0xff]
        %v6778 = vld [vmem:[%s4970 + $0x50] sm:$0xff]
        %v6779 = vld [vmem:[%s4970 + $0x58] sm:$0xff]
        %v6780 = vld [vmem:[%s4970 + $0x60] sm:$0xff]
        %v6781 = vld [vmem:[%s4970 + $0x68] sm:$0xff]
        %v6782 = vld [vmem:[%s4970 + $0x70] sm:$0xff]
        %v6783 = vld [vmem:[%s4970 + $0x78] sm:$0xff]
        %6784 = vmatprep.subr.mxu0 0.0
        %6785 = vmatpush1.msra.mxu0 %v6783
        %6786 = vmatprep.subr.mxu0 0.0
        %6787 = vmatpush1.msra.mxu0 %v6782
        %6788 = vmatprep.subr.mxu0 0.0
        %6789 = vmatpush1.msra.mxu0 %v6781
        %6790 = vmatprep.subr.mxu0 0.0
        %6791 = vmatpush1.msra.mxu0 %v6780
        %6792 = vmatprep.subr.mxu0 0.0
        %6793 = vmatpush1.msra.mxu0 %v6779
        %6794 = vmatprep.subr.mxu0 0.0
        %6795 = vmatpush1.msra.mxu0 %v6778
        %6796 = vmatprep.subr.mxu0 0.0
        %6797 = vmatpush1.msra.mxu0 %v6777
        %6798 = vmatprep.subr.mxu0 0.0
        %6799 = vmatpush1.msra.mxu0 %v6776
        %6800 = vmatprep.subr.mxu0 0.0
        %6801 = vmatpush1.msra.mxu0 %v6775
        %6802 = vmatprep.subr.mxu0 0.0
        %6803 = vmatpush1.msra.mxu0 %v6774
        %6804 = vmatprep.subr.mxu0 0.0
        %6805 = vmatpush1.msra.mxu0 %v6773
        %6806 = vmatprep.subr.mxu0 0.0
        %6807 = vmatpush1.msra.mxu0 %v6772
        %6808 = vmatprep.subr.mxu0 0.0
        %6809 = vmatpush1.msra.mxu0 %v6771
        %6810 = vmatprep.subr.mxu0 0.0
        %6811 = vmatpush1.msra.mxu0 %v6770
        %6812 = vmatprep.subr.mxu0 0.0
        %6813 = vmatpush1.msra.mxu0 %v6769
        %6814 = vmatprep.subr.mxu0 0.0
        %6815 = vmatpush1.msra.mxu0 %v6768
        %6816 = vmatprep.subr.mxu0 0.0
        %6817 = vmatpush2.msra.mxu0 0.0
        %6818 = vmatprep.subr.mxu0 0.0
        %6819 = vmatpush2.msra.mxu0 0.0
        %6820 = vmatprep.subr.mxu0 0.0
        %6821 = vmatpush2.msra.mxu0 0.0
        %6822 = vmatprep.subr.mxu0 0.0
        %6823 = vmatpush2.msra.mxu0 0.0
        %6824 = vmatprep.subr.mxu0 0.0
        %6825 = vmatpush2.msra.mxu0 0.0
        %6826 = vmatprep.subr.mxu0 0.0
        %6827 = vmatpush2.msra.mxu0 0.0
        %6828 = vmatprep.subr.mxu0 0.0
        %6829 = vmatpush2.msra.mxu0 0.0
        %6830 = vmatprep.subr.mxu0 0.0
        %6831 = vmatpush2.msra.mxu0 0.0
        %6832 = vmatprep.subr.mxu0 0.0
        %6833 = vmatpush2.msra.mxu0 0.0
        %6834 = vmatprep.subr.mxu0 0.0
        %6835 = vmatpush2.msra.mxu0 0.0
        %6836 = vmatprep.subr.mxu0 0.0
        %6837 = vmatpush2.msra.mxu0 0.0
        %6838 = vmatprep.subr.mxu0 0.0
        %6839 = vmatpush2.msra.mxu0 0.0
        %6840 = vmatprep.subr.mxu0 0.0
        %6841 = vmatpush2.msra.mxu0 0.0
        %6842 = vmatprep.subr.mxu0 0.0
        %6843 = vmatpush2.msra.mxu0 0.0
        %6844 = vmatprep.subr.mxu0 0.0
        %6845 = vmatpush2.msra.mxu0 0.0
        %6846 = vmatprep.subr.mxu0 0.0
        %6847 = vmatpush2.msra.mxu0 0.0
        %6848 = vmatprep.mubr.f32.mxu0 0.0
        %6849 = vmatmul.mubr.f32.gmra.mxu0 %v6752
        %v6850 = vpop.f32.mrf.mxu0
        %v6851 = vadd.f32 0.0, %v6850
        %v6852 = vpop.f32.mrf.mxu0
        %6853 = vmatprep.mubr.f32.mxu0 0.0
        %6854 = vmatmul.mubr.f32.gmra.mxu0 %v6753
        %v6855 = vpop.f32.mrf.mxu0
        %v6856 = vadd.f32 0.0, %v6855
        %v6857 = vpop.f32.mrf.mxu0
        %6858 = vmatprep.mubr.f32.mxu0 0.0
        %6859 = vmatmul.mubr.f32.gmra.mxu0 %v6754
        %v6860 = vpop.f32.mrf.mxu0
        %v6861 = vadd.f32 0.0, %v6860
        %v6862 = vpop.f32.mrf.mxu0
        %6863 = vmatprep.mubr.f32.mxu0 0.0
        %6864 = vmatmul.mubr.f32.gmra.mxu0 %v6755
        %v6865 = vpop.f32.mrf.mxu0
        %v6866 = vadd.f32 0.0, %v6865
        %v6867 = vpop.f32.mrf.mxu0
        %6868 = vmatprep.mubr.f32.mxu0 0.0
        %6869 = vmatmul.mubr.f32.gmra.mxu0 %v6756
        %v6870 = vpop.f32.mrf.mxu0
        %v6871 = vadd.f32 0.0, %v6870
        %v6872 = vpop.f32.mrf.mxu0
        %6873 = vmatprep.mubr.f32.mxu0 0.0
        %6874 = vmatmul.mubr.f32.gmra.mxu0 %v6757
        %v6875 = vpop.f32.mrf.mxu0
        %v6876 = vadd.f32 0.0, %v6875
        %v6877 = vpop.f32.mrf.mxu0
        %6878 = vmatprep.mubr.f32.mxu0 0.0
        %6879 = vmatmul.mubr.f32.gmra.mxu0 %v6758
        %v6880 = vpop.f32.mrf.mxu0
        %v6881 = vadd.f32 0.0, %v6880
        %v6882 = vpop.f32.mrf.mxu0
        %6883 = vmatprep.mubr.f32.mxu0 0.0
        %6884 = vmatmul.mubr.f32.gmra.mxu0 %v6759
        %v6885 = vpop.f32.mrf.mxu0
        %v6886 = vadd.f32 0.0, %v6885
        %v6887 = vpop.f32.mrf.mxu0
        %6888 = vmatprep.mubr.f32.mxu0 0.0
        %6889 = vmatmul.mubr.f32.gmra.mxu0 %v6760
        %v6890 = vpop.f32.mrf.mxu0
        %v6891 = vadd.f32 0.0, %v6890
        %v6892 = vpop.f32.mrf.mxu0
        %6893 = vmatprep.mubr.f32.mxu0 0.0
        %6894 = vmatmul.mubr.f32.gmra.mxu0 %v6761
        %v6895 = vpop.f32.mrf.mxu0
        %v6896 = vadd.f32 0.0, %v6895
        %v6897 = vpop.f32.mrf.mxu0
        %6898 = vmatprep.mubr.f32.mxu0 0.0
        %6899 = vmatmul.mubr.f32.gmra.mxu0 %v6762
        %v6900 = vpop.f32.mrf.mxu0
        %v6901 = vadd.f32 0.0, %v6900
        %v6902 = vpop.f32.mrf.mxu0
        %6903 = vmatprep.mubr.f32.mxu0 0.0
        %6904 = vmatmul.mubr.f32.gmra.mxu0 %v6763
        %v6905 = vpop.f32.mrf.mxu0
        %v6906 = vadd.f32 0.0, %v6905
        %v6907 = vpop.f32.mrf.mxu0
        %6908 = vmatprep.mubr.f32.mxu0 0.0
        %6909 = vmatmul.mubr.f32.gmra.mxu0 %v6764
        %v6910 = vpop.f32.mrf.mxu0
        %v6911 = vadd.f32 0.0, %v6910
        %v6912 = vpop.f32.mrf.mxu0
        %6913 = vmatprep.mubr.f32.mxu0 0.0
        %6914 = vmatmul.mubr.f32.gmra.mxu0 %v6765
        %v6915 = vpop.f32.mrf.mxu0
        %v6916 = vadd.f32 0.0, %v6915
        %v6917 = vpop.f32.mrf.mxu0
        %6918 = vmatprep.mubr.f32.mxu0 0.0
        %6919 = vmatmul.mubr.f32.gmra.mxu0 %v6766
        %v6920 = vpop.f32.mrf.mxu0
        %v6921 = vadd.f32 0.0, %v6920
        %v6922 = vpop.f32.mrf.mxu0
        %6923 = vmatprep.mubr.f32.mxu0 0.0
        %6924 = vmatmul.mubr.f32.gmra.mxu0 %v6767
        %v6925 = vpop.f32.mrf.mxu0
        %v6926 = vadd.f32 0.0, %v6925
        %v6927 = vpop.f32.mrf.mxu0
        %6928 = vdwg.mxu0
        %v6929 = vadd.f32 %v6735, %v6851
        %v6930 = vadd.f32 %v6736, %v6856
        %v6931 = vadd.f32 %v6737, %v6861
        %v6932 = vadd.f32 %v6738, %v6866
        %v6933 = vadd.f32 %v6739, %v6871
        %v6934 = vadd.f32 %v6740, %v6876
        %v6935 = vadd.f32 %v6741, %v6881
        %v6936 = vadd.f32 %v6742, %v6886
        %v6937 = vadd.f32 %v6743, %v6891
        %v6938 = vadd.f32 %v6744, %v6896
        %v6939 = vadd.f32 %v6745, %v6901
        %v6940 = vadd.f32 %v6746, %v6906
        %v6941 = vadd.f32 %v6747, %v6911
        %v6942 = vadd.f32 %v6748, %v6916
        %v6943 = vadd.f32 %v6749, %v6921
        %v6944 = vadd.f32 %v6750, %v6926
        %v6945 = vld [vmem:[%s6751 + $0x1] sm:$0xff]
        %v6946 = vld [vmem:[%s6751 + $0x9] sm:$0xff]
        %v6947 = vld [vmem:[%s6751 + $0x19] sm:$0xff]
        %v6948 = vld [vmem:[%s6751 + $0x21] sm:$0xff]
        %v6949 = vld [vmem:[%s6751 + $0x31] sm:$0xff]
        %v6950 = vld [vmem:[%s6751 + $0x39] sm:$0xff]
        %v6951 = vld [vmem:[%s6751 + $0x49] sm:$0xff]
        %v6952 = vld [vmem:[%s6751 + $0x51] sm:$0xff]
        %v6953 = vld [vmem:[%s6751 + $0x61] sm:$0xff]
        %v6954 = vld [vmem:[%s6751 + $0x69] sm:$0xff]
        %v6955 = vld [vmem:[%s6751 + $0x79] sm:$0xff]
        %v6956 = vld [vmem:[%s6751 + $0x81] sm:$0xff]
        %v6957 = vld [vmem:[%s6751 + $0x91] sm:$0xff]
        %v6958 = vld [vmem:[%s6751 + $0x99] sm:$0xff]
        %v6959 = vld [vmem:[%s6751 + $0xa9] sm:$0xff]
        %v6960 = vld [vmem:[%s6751 + $0xb1] sm:$0xff]
        %v6961 = vld [vmem:[%s5164] sm:$0xff]
        %v6962 = vld [vmem:[%s5164 + $0x8] sm:$0xff]
        %v6963 = vld [vmem:[%s5164 + $0x10] sm:$0xff]
        %v6964 = vld [vmem:[%s5164 + $0x18] sm:$0xff]
        %v6965 = vld [vmem:[%s5164 + $0x20] sm:$0xff]
        %v6966 = vld [vmem:[%s5164 + $0x28] sm:$0xff]
        %v6967 = vld [vmem:[%s5164 + $0x30] sm:$0xff]
        %v6968 = vld [vmem:[%s5164 + $0x38] sm:$0xff]
        %v6969 = vld [vmem:[%s5164 + $0x40] sm:$0xff]
        %v6970 = vld [vmem:[%s5164 + $0x48] sm:$0xff]
        %v6971 = vld [vmem:[%s5164 + $0x50] sm:$0xff]
        %v6972 = vld [vmem:[%s5164 + $0x58] sm:$0xff]
        %v6973 = vld [vmem:[%s5164 + $0x60] sm:$0xff]
        %v6974 = vld [vmem:[%s5164 + $0x68] sm:$0xff]
        %v6975 = vld [vmem:[%s5164 + $0x70] sm:$0xff]
        %v6976 = vld [vmem:[%s5164 + $0x78] sm:$0xff]
        %6977 = vmatprep.subr.mxu0 0.0
        %6978 = vmatpush1.msra.mxu0 %v6976
        %6979 = vmatprep.subr.mxu0 0.0
        %6980 = vmatpush1.msra.mxu0 %v6975
        %6981 = vmatprep.subr.mxu0 0.0
        %6982 = vmatpush1.msra.mxu0 %v6974
        %6983 = vmatprep.subr.mxu0 0.0
        %6984 = vmatpush1.msra.mxu0 %v6973
        %6985 = vmatprep.subr.mxu0 0.0
        %6986 = vmatpush1.msra.mxu0 %v6972
        %6987 = vmatprep.subr.mxu0 0.0
        %6988 = vmatpush1.msra.mxu0 %v6971
        %6989 = vmatprep.subr.mxu0 0.0
        %6990 = vmatpush1.msra.mxu0 %v6970
        %6991 = vmatprep.subr.mxu0 0.0
        %6992 = vmatpush1.msra.mxu0 %v6969
        %6993 = vmatprep.subr.mxu0 0.0
        %6994 = vmatpush1.msra.mxu0 %v6968
        %6995 = vmatprep.subr.mxu0 0.0
        %6996 = vmatpush1.msra.mxu0 %v6967
        %6997 = vmatprep.subr.mxu0 0.0
        %6998 = vmatpush1.msra.mxu0 %v6966
        %6999 = vmatprep.subr.mxu0 0.0
        %7000 = vmatpush1.msra.mxu0 %v6965
        %7001 = vmatprep.subr.mxu0 0.0
        %7002 = vmatpush1.msra.mxu0 %v6964
        %7003 = vmatprep.subr.mxu0 0.0
        %7004 = vmatpush1.msra.mxu0 %v6963
        %7005 = vmatprep.subr.mxu0 0.0
        %7006 = vmatpush1.msra.mxu0 %v6962
        %7007 = vmatprep.subr.mxu0 0.0
        %7008 = vmatpush1.msra.mxu0 %v6961
        %7009 = vmatprep.subr.mxu0 0.0
        %7010 = vmatpush2.msra.mxu0 0.0
        %7011 = vmatprep.subr.mxu0 0.0
        %7012 = vmatpush2.msra.mxu0 0.0
        %7013 = vmatprep.subr.mxu0 0.0
        %7014 = vmatpush2.msra.mxu0 0.0
        %7015 = vmatprep.subr.mxu0 0.0
        %7016 = vmatpush2.msra.mxu0 0.0
        %7017 = vmatprep.subr.mxu0 0.0
        %7018 = vmatpush2.msra.mxu0 0.0
        %7019 = vmatprep.subr.mxu0 0.0
        %7020 = vmatpush2.msra.mxu0 0.0
        %7021 = vmatprep.subr.mxu0 0.0
        %7022 = vmatpush2.msra.mxu0 0.0
        %7023 = vmatprep.subr.mxu0 0.0
        %7024 = vmatpush2.msra.mxu0 0.0
        %7025 = vmatprep.subr.mxu0 0.0
        %7026 = vmatpush2.msra.mxu0 0.0
        %7027 = vmatprep.subr.mxu0 0.0
        %7028 = vmatpush2.msra.mxu0 0.0
        %7029 = vmatprep.subr.mxu0 0.0
        %7030 = vmatpush2.msra.mxu0 0.0
        %7031 = vmatprep.subr.mxu0 0.0
        %7032 = vmatpush2.msra.mxu0 0.0
        %7033 = vmatprep.subr.mxu0 0.0
        %7034 = vmatpush2.msra.mxu0 0.0
        %7035 = vmatprep.subr.mxu0 0.0
        %7036 = vmatpush2.msra.mxu0 0.0
        %7037 = vmatprep.subr.mxu0 0.0
        %7038 = vmatpush2.msra.mxu0 0.0
        %7039 = vmatprep.subr.mxu0 0.0
        %7040 = vmatpush2.msra.mxu0 0.0
        %7041 = vmatprep.mubr.f32.mxu0 0.0
        %7042 = vmatmul.mubr.f32.gmra.mxu0 %v6945
        %v7043 = vpop.f32.mrf.mxu0
        %v7044 = vadd.f32 0.0, %v7043
        %v7045 = vpop.f32.mrf.mxu0
        %7046 = vmatprep.mubr.f32.mxu0 0.0
        %7047 = vmatmul.mubr.f32.gmra.mxu0 %v6946
        %v7048 = vpop.f32.mrf.mxu0
        %v7049 = vadd.f32 0.0, %v7048
        %v7050 = vpop.f32.mrf.mxu0
        %7051 = vmatprep.mubr.f32.mxu0 0.0
        %7052 = vmatmul.mubr.f32.gmra.mxu0 %v6947
        %v7053 = vpop.f32.mrf.mxu0
        %v7054 = vadd.f32 0.0, %v7053
        %v7055 = vpop.f32.mrf.mxu0
        %7056 = vmatprep.mubr.f32.mxu0 0.0
        %7057 = vmatmul.mubr.f32.gmra.mxu0 %v6948
        %v7058 = vpop.f32.mrf.mxu0
        %v7059 = vadd.f32 0.0, %v7058
        %v7060 = vpop.f32.mrf.mxu0
        %7061 = vmatprep.mubr.f32.mxu0 0.0
        %7062 = vmatmul.mubr.f32.gmra.mxu0 %v6949
        %v7063 = vpop.f32.mrf.mxu0
        %v7064 = vadd.f32 0.0, %v7063
        %v7065 = vpop.f32.mrf.mxu0
        %7066 = vmatprep.mubr.f32.mxu0 0.0
        %7067 = vmatmul.mubr.f32.gmra.mxu0 %v6950
        %v7068 = vpop.f32.mrf.mxu0
        %v7069 = vadd.f32 0.0, %v7068
        %v7070 = vpop.f32.mrf.mxu0
        %7071 = vmatprep.mubr.f32.mxu0 0.0
        %7072 = vmatmul.mubr.f32.gmra.mxu0 %v6951
        %v7073 = vpop.f32.mrf.mxu0
        %v7074 = vadd.f32 0.0, %v7073
        %v7075 = vpop.f32.mrf.mxu0
        %7076 = vmatprep.mubr.f32.mxu0 0.0
        %7077 = vmatmul.mubr.f32.gmra.mxu0 %v6952
        %v7078 = vpop.f32.mrf.mxu0
        %v7079 = vadd.f32 0.0, %v7078
        %v7080 = vpop.f32.mrf.mxu0
        %7081 = vmatprep.mubr.f32.mxu0 0.0
        %7082 = vmatmul.mubr.f32.gmra.mxu0 %v6953
        %v7083 = vpop.f32.mrf.mxu0
        %v7084 = vadd.f32 0.0, %v7083
        %v7085 = vpop.f32.mrf.mxu0
        %7086 = vmatprep.mubr.f32.mxu0 0.0
        %7087 = vmatmul.mubr.f32.gmra.mxu0 %v6954
        %v7088 = vpop.f32.mrf.mxu0
        %v7089 = vadd.f32 0.0, %v7088
        %v7090 = vpop.f32.mrf.mxu0
        %7091 = vmatprep.mubr.f32.mxu0 0.0
        %7092 = vmatmul.mubr.f32.gmra.mxu0 %v6955
        %v7093 = vpop.f32.mrf.mxu0
        %v7094 = vadd.f32 0.0, %v7093
        %v7095 = vpop.f32.mrf.mxu0
        %7096 = vmatprep.mubr.f32.mxu0 0.0
        %7097 = vmatmul.mubr.f32.gmra.mxu0 %v6956
        %v7098 = vpop.f32.mrf.mxu0
        %v7099 = vadd.f32 0.0, %v7098
        %v7100 = vpop.f32.mrf.mxu0
        %7101 = vmatprep.mubr.f32.mxu0 0.0
        %7102 = vmatmul.mubr.f32.gmra.mxu0 %v6957
        %v7103 = vpop.f32.mrf.mxu0
        %v7104 = vadd.f32 0.0, %v7103
        %v7105 = vpop.f32.mrf.mxu0
        %7106 = vmatprep.mubr.f32.mxu0 0.0
        %7107 = vmatmul.mubr.f32.gmra.mxu0 %v6958
        %v7108 = vpop.f32.mrf.mxu0
        %v7109 = vadd.f32 0.0, %v7108
        %v7110 = vpop.f32.mrf.mxu0
        %7111 = vmatprep.mubr.f32.mxu0 0.0
        %7112 = vmatmul.mubr.f32.gmra.mxu0 %v6959
        %v7113 = vpop.f32.mrf.mxu0
        %v7114 = vadd.f32 0.0, %v7113
        %v7115 = vpop.f32.mrf.mxu0
        %7116 = vmatprep.mubr.f32.mxu0 0.0
        %7117 = vmatmul.mubr.f32.gmra.mxu0 %v6960
        %v7118 = vpop.f32.mrf.mxu0
        %v7119 = vadd.f32 0.0, %v7118
        %v7120 = vpop.f32.mrf.mxu0
        %7121 = vdwg.mxu0
        %v7122 = vadd.f32 %v6929, %v7044
        %v7123 = vadd.f32 %v6930, %v7049
        %v7124 = vadd.f32 %v6931, %v7054
        %v7125 = vadd.f32 %v6932, %v7059
        %v7126 = vadd.f32 %v6933, %v7064
        %v7127 = vadd.f32 %v6934, %v7069
        %v7128 = vadd.f32 %v6935, %v7074
        %v7129 = vadd.f32 %v6936, %v7079
        %v7130 = vadd.f32 %v6937, %v7084
        %v7131 = vadd.f32 %v6938, %v7089
        %v7132 = vadd.f32 %v6939, %v7094
        %v7133 = vadd.f32 %v6940, %v7099
        %v7134 = vadd.f32 %v6941, %v7104
        %v7135 = vadd.f32 %v6942, %v7109
        %v7136 = vadd.f32 %v6943, %v7114
        %v7137 = vadd.f32 %v6944, %v7119
        %v7138 = vld [vmem:[%s6751 + $0x2] sm:$0xff]
        %v7139 = vld [vmem:[%s6751 + $0xa] sm:$0xff]
        %v7140 = vld [vmem:[%s6751 + $0x1a] sm:$0xff]
        %v7141 = vld [vmem:[%s6751 + $0x22] sm:$0xff]
        %v7142 = vld [vmem:[%s6751 + $0x32] sm:$0xff]
        %v7143 = vld [vmem:[%s6751 + $0x3a] sm:$0xff]
        %v7144 = vld [vmem:[%s6751 + $0x4a] sm:$0xff]
        %v7145 = vld [vmem:[%s6751 + $0x52] sm:$0xff]
        %v7146 = vld [vmem:[%s6751 + $0x62] sm:$0xff]
        %v7147 = vld [vmem:[%s6751 + $0x6a] sm:$0xff]
        %v7148 = vld [vmem:[%s6751 + $0x7a] sm:$0xff]
        %v7149 = vld [vmem:[%s6751 + $0x82] sm:$0xff]
        %v7150 = vld [vmem:[%s6751 + $0x92] sm:$0xff]
        %v7151 = vld [vmem:[%s6751 + $0x9a] sm:$0xff]
        %v7152 = vld [vmem:[%s6751 + $0xaa] sm:$0xff]
        %v7153 = vld [vmem:[%s6751 + $0xb2] sm:$0xff]
        %v7154 = vld [vmem:[%s5358] sm:$0xff]
        %v7155 = vld [vmem:[%s5358 + $0x8] sm:$0xff]
        %v7156 = vld [vmem:[%s5358 + $0x10] sm:$0xff]
        %v7157 = vld [vmem:[%s5358 + $0x18] sm:$0xff]
        %v7158 = vld [vmem:[%s5358 + $0x20] sm:$0xff]
        %v7159 = vld [vmem:[%s5358 + $0x28] sm:$0xff]
        %v7160 = vld [vmem:[%s5358 + $0x30] sm:$0xff]
        %v7161 = vld [vmem:[%s5358 + $0x38] sm:$0xff]
        %v7162 = vld [vmem:[%s5358 + $0x40] sm:$0xff]
        %v7163 = vld [vmem:[%s5358 + $0x48] sm:$0xff]
        %v7164 = vld [vmem:[%s5358 + $0x50] sm:$0xff]
        %v7165 = vld [vmem:[%s5358 + $0x58] sm:$0xff]
        %v7166 = vld [vmem:[%s5358 + $0x60] sm:$0xff]
        %v7167 = vld [vmem:[%s5358 + $0x68] sm:$0xff]
        %v7168 = vld [vmem:[%s5358 + $0x70] sm:$0xff]
        %v7169 = vld [vmem:[%s5358 + $0x78] sm:$0xff]
        %7170 = vmatprep.subr.mxu0 0.0
        %7171 = vmatpush1.msra.mxu0 %v7169
        %7172 = vmatprep.subr.mxu0 0.0
        %7173 = vmatpush1.msra.mxu0 %v7168
        %7174 = vmatprep.subr.mxu0 0.0
        %7175 = vmatpush1.msra.mxu0 %v7167
        %7176 = vmatprep.subr.mxu0 0.0
        %7177 = vmatpush1.msra.mxu0 %v7166
        %7178 = vmatprep.subr.mxu0 0.0
        %7179 = vmatpush1.msra.mxu0 %v7165
        %7180 = vmatprep.subr.mxu0 0.0
        %7181 = vmatpush1.msra.mxu0 %v7164
        %7182 = vmatprep.subr.mxu0 0.0
        %7183 = vmatpush1.msra.mxu0 %v7163
        %7184 = vmatprep.subr.mxu0 0.0
        %7185 = vmatpush1.msra.mxu0 %v7162
        %7186 = vmatprep.subr.mxu0 0.0
        %7187 = vmatpush1.msra.mxu0 %v7161
        %7188 = vmatprep.subr.mxu0 0.0
        %7189 = vmatpush1.msra.mxu0 %v7160
        %7190 = vmatprep.subr.mxu0 0.0
        %7191 = vmatpush1.msra.mxu0 %v7159
        %7192 = vmatprep.subr.mxu0 0.0
        %7193 = vmatpush1.msra.mxu0 %v7158
        %7194 = vmatprep.subr.mxu0 0.0
        %7195 = vmatpush1.msra.mxu0 %v7157
        %7196 = vmatprep.subr.mxu0 0.0
        %7197 = vmatpush1.msra.mxu0 %v7156
        %7198 = vmatprep.subr.mxu0 0.0
        %7199 = vmatpush1.msra.mxu0 %v7155
        %7200 = vmatprep.subr.mxu0 0.0
        %7201 = vmatpush1.msra.mxu0 %v7154
        %7202 = vmatprep.subr.mxu0 0.0
        %7203 = vmatpush2.msra.mxu0 0.0
        %7204 = vmatprep.subr.mxu0 0.0
        %7205 = vmatpush2.msra.mxu0 0.0
        %7206 = vmatprep.subr.mxu0 0.0
        %7207 = vmatpush2.msra.mxu0 0.0
        %7208 = vmatprep.subr.mxu0 0.0
        %7209 = vmatpush2.msra.mxu0 0.0
        %7210 = vmatprep.subr.mxu0 0.0
        %7211 = vmatpush2.msra.mxu0 0.0
        %7212 = vmatprep.subr.mxu0 0.0
        %7213 = vmatpush2.msra.mxu0 0.0
        %7214 = vmatprep.subr.mxu0 0.0
        %7215 = vmatpush2.msra.mxu0 0.0
        %7216 = vmatprep.subr.mxu0 0.0
        %7217 = vmatpush2.msra.mxu0 0.0
        %7218 = vmatprep.subr.mxu0 0.0
        %7219 = vmatpush2.msra.mxu0 0.0
        %7220 = vmatprep.subr.mxu0 0.0
        %7221 = vmatpush2.msra.mxu0 0.0
        %7222 = vmatprep.subr.mxu0 0.0
        %7223 = vmatpush2.msra.mxu0 0.0
        %7224 = vmatprep.subr.mxu0 0.0
        %7225 = vmatpush2.msra.mxu0 0.0
        %7226 = vmatprep.subr.mxu0 0.0
        %7227 = vmatpush2.msra.mxu0 0.0
        %7228 = vmatprep.subr.mxu0 0.0
        %7229 = vmatpush2.msra.mxu0 0.0
        %7230 = vmatprep.subr.mxu0 0.0
        %7231 = vmatpush2.msra.mxu0 0.0
        %7232 = vmatprep.subr.mxu0 0.0
        %7233 = vmatpush2.msra.mxu0 0.0
        %7234 = vmatprep.mubr.f32.mxu0 0.0
        %7235 = vmatmul.mubr.f32.gmra.mxu0 %v7138
        %v7236 = vpop.f32.mrf.mxu0
        %v7237 = vadd.f32 0.0, %v7236
        %v7238 = vpop.f32.mrf.mxu0
        %7239 = vmatprep.mubr.f32.mxu0 0.0
        %7240 = vmatmul.mubr.f32.gmra.mxu0 %v7139
        %v7241 = vpop.f32.mrf.mxu0
        %v7242 = vadd.f32 0.0, %v7241
        %v7243 = vpop.f32.mrf.mxu0
        %7244 = vmatprep.mubr.f32.mxu0 0.0
        %7245 = vmatmul.mubr.f32.gmra.mxu0 %v7140
        %v7246 = vpop.f32.mrf.mxu0
        %v7247 = vadd.f32 0.0, %v7246
        %v7248 = vpop.f32.mrf.mxu0
        %7249 = vmatprep.mubr.f32.mxu0 0.0
        %7250 = vmatmul.mubr.f32.gmra.mxu0 %v7141
        %v7251 = vpop.f32.mrf.mxu0
        %v7252 = vadd.f32 0.0, %v7251
        %v7253 = vpop.f32.mrf.mxu0
        %7254 = vmatprep.mubr.f32.mxu0 0.0
        %7255 = vmatmul.mubr.f32.gmra.mxu0 %v7142
        %v7256 = vpop.f32.mrf.mxu0
        %v7257 = vadd.f32 0.0, %v7256
        %v7258 = vpop.f32.mrf.mxu0
        %7259 = vmatprep.mubr.f32.mxu0 0.0
        %7260 = vmatmul.mubr.f32.gmra.mxu0 %v7143
        %v7261 = vpop.f32.mrf.mxu0
        %v7262 = vadd.f32 0.0, %v7261
        %v7263 = vpop.f32.mrf.mxu0
        %7264 = vmatprep.mubr.f32.mxu0 0.0
        %7265 = vmatmul.mubr.f32.gmra.mxu0 %v7144
        %v7266 = vpop.f32.mrf.mxu0
        %v7267 = vadd.f32 0.0, %v7266
        %v7268 = vpop.f32.mrf.mxu0
        %7269 = vmatprep.mubr.f32.mxu0 0.0
        %7270 = vmatmul.mubr.f32.gmra.mxu0 %v7145
        %v7271 = vpop.f32.mrf.mxu0
        %v7272 = vadd.f32 0.0, %v7271
        %v7273 = vpop.f32.mrf.mxu0
        %7274 = vmatprep.mubr.f32.mxu0 0.0
        %7275 = vmatmul.mubr.f32.gmra.mxu0 %v7146
        %v7276 = vpop.f32.mrf.mxu0
        %v7277 = vadd.f32 0.0, %v7276
        %v7278 = vpop.f32.mrf.mxu0
        %7279 = vmatprep.mubr.f32.mxu0 0.0
        %7280 = vmatmul.mubr.f32.gmra.mxu0 %v7147
        %v7281 = vpop.f32.mrf.mxu0
        %v7282 = vadd.f32 0.0, %v7281
        %v7283 = vpop.f32.mrf.mxu0
        %7284 = vmatprep.mubr.f32.mxu0 0.0
        %7285 = vmatmul.mubr.f32.gmra.mxu0 %v7148
        %v7286 = vpop.f32.mrf.mxu0
        %v7287 = vadd.f32 0.0, %v7286
        %v7288 = vpop.f32.mrf.mxu0
        %7289 = vmatprep.mubr.f32.mxu0 0.0
        %7290 = vmatmul.mubr.f32.gmra.mxu0 %v7149
        %v7291 = vpop.f32.mrf.mxu0
        %v7292 = vadd.f32 0.0, %v7291
        %v7293 = vpop.f32.mrf.mxu0
        %7294 = vmatprep.mubr.f32.mxu0 0.0
        %7295 = vmatmul.mubr.f32.gmra.mxu0 %v7150
        %v7296 = vpop.f32.mrf.mxu0
        %v7297 = vadd.f32 0.0, %v7296
        %v7298 = vpop.f32.mrf.mxu0
        %7299 = vmatprep.mubr.f32.mxu0 0.0
        %7300 = vmatmul.mubr.f32.gmra.mxu0 %v7151
        %v7301 = vpop.f32.mrf.mxu0
        %v7302 = vadd.f32 0.0, %v7301
        %v7303 = vpop.f32.mrf.mxu0
        %7304 = vmatprep.mubr.f32.mxu0 0.0
        %7305 = vmatmul.mubr.f32.gmra.mxu0 %v7152
        %v7306 = vpop.f32.mrf.mxu0
        %v7307 = vadd.f32 0.0, %v7306
        %v7308 = vpop.f32.mrf.mxu0
        %7309 = vmatprep.mubr.f32.mxu0 0.0
        %7310 = vmatmul.mubr.f32.gmra.mxu0 %v7153
        %v7311 = vpop.f32.mrf.mxu0
        %v7312 = vadd.f32 0.0, %v7311
        %v7313 = vpop.f32.mrf.mxu0
        %7314 = vdwg.mxu0
        %v7315 = vadd.f32 %v7122, %v7237
        %v7316 = vadd.f32 %v7123, %v7242
        %v7317 = vadd.f32 %v7124, %v7247
        %v7318 = vadd.f32 %v7125, %v7252
        %v7319 = vadd.f32 %v7126, %v7257
        %v7320 = vadd.f32 %v7127, %v7262
        %v7321 = vadd.f32 %v7128, %v7267
        %v7322 = vadd.f32 %v7129, %v7272
        %v7323 = vadd.f32 %v7130, %v7277
        %v7324 = vadd.f32 %v7131, %v7282
        %v7325 = vadd.f32 %v7132, %v7287
        %v7326 = vadd.f32 %v7133, %v7292
        %v7327 = vadd.f32 %v7134, %v7297
        %v7328 = vadd.f32 %v7135, %v7302
        %v7329 = vadd.f32 %v7136, %v7307
        %v7330 = vadd.f32 %v7137, %v7312
        %v7331 = vld [vmem:[%s2610 + $0x1] sm:$0xff]
        %v7332 = vld [vmem:[%s2610 + $0x9] sm:$0xff]
        %v7333 = vld [vmem:[%s2610 + $0x19] sm:$0xff]
        %v7334 = vld [vmem:[%s2610 + $0x21] sm:$0xff]
        %v7335 = vld [vmem:[%s2610 + $0x31] sm:$0xff]
        %v7336 = vld [vmem:[%s2610 + $0x39] sm:$0xff]
        %v7337 = vld [vmem:[%s2610 + $0x49] sm:$0xff]
        %v7338 = vld [vmem:[%s2610 + $0x51] sm:$0xff]
        %v7339 = vld [vmem:[%s2610 + $0x61] sm:$0xff]
        %v7340 = vld [vmem:[%s2610 + $0x69] sm:$0xff]
        %v7341 = vld [vmem:[%s2610 + $0x79] sm:$0xff]
        %v7342 = vld [vmem:[%s2610 + $0x81] sm:$0xff]
        %v7343 = vld [vmem:[%s2610 + $0x91] sm:$0xff]
        %v7344 = vld [vmem:[%s2610 + $0x99] sm:$0xff]
        %v7345 = vld [vmem:[%s2610 + $0xa9] sm:$0xff]
        %v7346 = vld [vmem:[%s2610 + $0xb1] sm:$0xff]
        %v7347 = vadd.f32 %v7315, %v5556
        %v7348 = vadd.f32 %v7316, %v5556
        %v7349 = vadd.f32 %v7317, %v5556
        %v7350 = vadd.f32 %v7318, %v5556
        %v7351 = vadd.f32 %v7319, %v5556
        %v7352 = vadd.f32 %v7320, %v5556
        %v7353 = vadd.f32 %v7321, %v5556
        %v7354 = vadd.f32 %v7322, %v5556
        %v7355 = vadd.f32 %v7323, %v5556
        %v7356 = vadd.f32 %v7324, %v5556
        %v7357 = vadd.f32 %v7325, %v5556
        %v7358 = vadd.f32 %v7326, %v5556
        %v7359 = vadd.f32 %v7327, %v5556
        %v7360 = vadd.f32 %v7328, %v5556
        %v7361 = vadd.f32 %v7329, %v5556
        %v7362 = vadd.f32 %v7330, %v5556
        %v7363 = vadd.f32 %v7347, %v7331
        %v7364 = vadd.f32 %v7348, %v7332
        %v7365 = vadd.f32 %v7349, %v7333
        %v7366 = vadd.f32 %v7350, %v7334
        %v7367 = vadd.f32 %v7351, %v7335
        %v7368 = vadd.f32 %v7352, %v7336
        %v7369 = vadd.f32 %v7353, %v7337
        %v7370 = vadd.f32 %v7354, %v7338
        %v7371 = vadd.f32 %v7355, %v7339
        %v7372 = vadd.f32 %v7356, %v7340
        %v7373 = vadd.f32 %v7357, %v7341
        %v7374 = vadd.f32 %v7358, %v7342
        %v7375 = vadd.f32 %v7359, %v7343
        %v7376 = vadd.f32 %v7360, %v7344
        %v7377 = vadd.f32 %v7361, %v7345
        %v7378 = vadd.f32 %v7362, %v7346
        %v7379 = vmax.f32 %v7363, 0.0
        %v7380 = vmax.f32 %v7364, 0.0
        %v7381 = vmax.f32 %v7365, 0.0
        %v7382 = vmax.f32 %v7366, 0.0
        %v7383 = vmax.f32 %v7367, 0.0
        %v7384 = vmax.f32 %v7368, 0.0
        %v7385 = vmax.f32 %v7369, 0.0
        %v7386 = vmax.f32 %v7370, 0.0
        %v7387 = vmax.f32 %v7371, 0.0
        %v7388 = vmax.f32 %v7372, 0.0
        %v7389 = vmax.f32 %v7373, 0.0
        %v7390 = vmax.f32 %v7374, 0.0
        %v7391 = vmax.f32 %v7375, 0.0
        %v7392 = vmax.f32 %v7376, 0.0
        %v7393 = vmax.f32 %v7377, 0.0
        %v7394 = vmax.f32 %v7378, 0.0
        %s7395 = smul.u32 8, 16
        %s7396 = scalar_lea.vmem %s232, %s7395 [#allocation6]
        %7397 = vst [vmem:[%s7396] sm:$0xff] %v7379
        %7398 = vst [vmem:[%s7396 + $0x8] sm:$0xff] %v7380
        %7399 = vst [vmem:[%s7396 + $0x10] sm:$0xff] %v7381
        %7400 = vst [vmem:[%s7396 + $0x18] sm:$0xff] %v7382
        %7401 = vst [vmem:[%s7396 + $0x20] sm:$0xff] %v7383
        %7402 = vst [vmem:[%s7396 + $0x28] sm:$0xff] %v7384
        %7403 = vst [vmem:[%s7396 + $0x30] sm:$0xff] %v7385
        %7404 = vst [vmem:[%s7396 + $0x38] sm:$0xff] %v7386
        %7405 = vst [vmem:[%s7396 + $0x40] sm:$0xff] %v7387
        %7406 = vst [vmem:[%s7396 + $0x48] sm:$0xff] %v7388
        %7407 = vst [vmem:[%s7396 + $0x50] sm:$0xff] %v7389
        %7408 = vst [vmem:[%s7396 + $0x58] sm:$0xff] %v7390
        %7409 = vst [vmem:[%s7396 + $0x60] sm:$0xff] %v7391
        %7410 = vst [vmem:[%s7396 + $0x68] sm:$0xff] %v7392
        %7411 = vst [vmem:[%s7396 + $0x70] sm:$0xff] %v7393
        %7412 = vst [vmem:[%s7396 + $0x78] sm:$0xff] %v7394
        %s7413 = sand.u32 %s138, 1
        %s7414 = scalar_lea.sflag [#allocation5], %s7413
        %s7415 = sand.u32 %s138, 1
        %s7416 = smul.addr %s7415, 256
        %s7417 = scalar_lea.vmem [#allocation6], %s7416
        // Predicated region
        $region45: #{tpu_custom_call.1} parent=39 // pred_check
          %p7418 = pneg %p148
        $region46: #{tpu_custom_call.1} parent=39 // pred_check_branch
          %7420 = sbr.rel (%p7418) target = $region48
        $region47: #{tpu_custom_call.1} parent=39 // pred_region
          %s7422 = ssub.s32 4096, 4096
          %7423 = vsyncadd %s7414, %s7422
          %s7424 = smul.addr %s20, 32
          %s7425 = smul.addr %s7424, 128
          %s7426 = scalar_lea.hbm %s5, %s7425
          %s7427 = sshll.u32 %s7417, 4
          %s7428 = int_to_ptr.vmem [resolvable:$true] %s7427
          %7433 = dma.vmem_to_hbm [thread:$0]  %s7428, 4096, %s7426, %s7414, 128, 128, 8
        $region48: #{tpu_custom_call.1} parent=39 // pred_fallthru
          _
      $region40: #{tpu_custom_call.1} parent=5 // pred_fallthru
        _
      %p7434 = scmp.le.s32.totalorder 2, %s15
      // Predicated region
      $region49: #{tpu_custom_call.1} parent=5 // pred_check
        %p7435 = pneg %p7434
      $region50: #{tpu_custom_call.1} parent=5 // pred_check_branch
        %7437 = sbr.rel (%p7435) target = $region52
      $region51: #{tpu_custom_call.1} parent=5 // pred_region
        %s7438 = ssub.s32 %s15, 2
        // Predicated region
        $region53: #{tpu_custom_call.1} parent=51 // pred_check
          %p7439 = pneg %p154
        $region54: #{tpu_custom_call.1} parent=51 // pred_check_branch
          %7441 = sbr.rel (%p7439) target = $region56
        $region55: #{tpu_custom_call.1} parent=51 // pred_region
          %s7442 = sand.u32 %s139, 1
          %s7443 = scalar_lea.sflag [#allocation5], %s7442
          %s7444 = sand.u32 %s139, 1
          %s7445 = smul.addr %s7444, 256
          %s7446 = scalar_lea.vmem [#allocation6], %s7445
          %7447 = dma.done %s7443, 4096
        $region56: #{tpu_custom_call.1} parent=51 // pred_fallthru
          _
      $region52: #{tpu_custom_call.1} parent=5 // pred_fallthru
        _
    $region6: #{tpu_custom_call.1} parent=1 // loop_footer
      %s19 = sadd.s32 1, %s15
    $region7: #{tpu_custom_call.1} parent=1 // loop_footer_branch
      %14 = sbr.rel target = $region3
    $region8: #{tpu_custom_call.1} parent=1 // loop_exit
      _
    %7448 = vsyncpa [#allocation4], 1
    %s7449 = scalar_lea.sflag [#allocation4], 1
    %7450 = vsyncpa %s7449, 1
    %7451 = vsyncpa [#allocation5], 1
    %s7452 = scalar_lea.sflag [#allocation5], 1
    %7453 = vsyncpa %s7452, 1

</llo_original>
